<compile_context>
chip_gen: v6e
topology: v6e:2x2x1
jax: 0.10.0
libtpu: 0.0.40
codegen_flags: <defaults>
</compile_context>

<pallas_src>
import functools
import numpy as np

import jax
import jax.numpy as jnp
from jax import lax
from jax.experimental import pallas as pl
from jax.experimental.pallas import tpu as pltpu


def _round_up(x, m):
    return ((x + m - 1) // m) * m


def _cdiv(a, b):
    return -(-a // b)


def _pick_tm(M, row_bytes, cap=256, budget=4 << 20):
    """M-tile size from a VMEM byte budget on the input block (not a fixed 512)."""
    tm = min(cap, max(16, budget // max(row_bytes, 1)))
    tm = max(16, (tm // 16) * 16)
    return M if M <= tm else tm


def _pick_ts(T, Bp, Hp, budget=12 << 20, cap=256):
    """Time-chunk for the LSTM recurrence: largest divisor of T whose
    double-buffered bf16 gate + output blocks fit the VMEM budget."""
    per_row = Bp * Hp * 2 * (8 + 2) * 2          # gates(8Hp)+outs(2Hp), bf16, x2 buffers
    c = max(8, min(cap, budget // max(per_row, 1), T))
    for ts in range(int(c), 0, -1):
        if T % ts == 0:
            return ts
    return T


# -----------------------------------------------------------------------------
# Generic M-tiled linear kernels (bf16 operands, f32 accumulation).
# -----------------------------------------------------------------------------
def _linear_kernel(x_ref, w_ref, b_ref, o_ref, *, activate):
    y = jnp.dot(x_ref[...], w_ref[...], preferred_element_type=jnp.float32)
    y = y + b_ref[...]
    if activate:
        y = jnp.tanh(y)
    o_ref[...] = y.astype(o_ref.dtype)


def pallas_linear(x, w, b, *, out_dtype, activate=False, tm_cap=256):
    M, K = x.shape
    N = w.shape[1]
    tm = _pick_tm(M, K * x.dtype.itemsize, cap=tm_cap)
    return pl.pallas_call(
        functools.partial(_linear_kernel, activate=activate),
        out_shape=jax.ShapeDtypeStruct((M, N), out_dtype),
        grid=(_cdiv(M, tm),),
        in_specs=[
            pl.BlockSpec((tm, K), lambda m: (m, 0)),
            pl.BlockSpec((K, N), lambda m: (0, 0)),
            pl.BlockSpec((1, N), lambda m: (0, 0)),
        ],
        out_specs=pl.BlockSpec((tm, N), lambda m: (m, 0)),
        compiler_params=pltpu.CompilerParams(dimension_semantics=("parallel",)),
    )(x, w, b)


def _linear2_kernel(x1_ref, w1_ref, x2_ref, w2_ref, b_ref, o_ref):
    y = jnp.dot(x1_ref[...], w1_ref[...], preferred_element_type=jnp.float32)
    y = y + jnp.dot(x2_ref[...], w2_ref[...], preferred_element_type=jnp.float32)
    o_ref[...] = (y + b_ref[...]).astype(o_ref.dtype)


def pallas_linear2(x1, w1, x2, w2, b, *, out_dtype, tm_cap=256):
    """y = x1 @ w1 + x2 @ w2 + b  — avoids an XLA concat between LSTM layers."""
    M, K1 = x1.shape
    K2 = x2.shape[1]
    N = w1.shape[1]
    tm = _pick_tm(M, (K1 + K2) * x1.dtype.itemsize, cap=tm_cap)
    return pl.pallas_call(
        _linear2_kernel,
        out_shape=jax.ShapeDtypeStruct((M, N), out_dtype),
        grid=(_cdiv(M, tm),),
        in_specs=[
            pl.BlockSpec((tm, K1), lambda m: (m, 0)),
            pl.BlockSpec((K1, N), lambda m: (0, 0)),
            pl.BlockSpec((tm, K2), lambda m: (m, 0)),
            pl.BlockSpec((K2, N), lambda m: (0, 0)),
            pl.BlockSpec((1, N), lambda m: (0, 0)),
        ],
        out_specs=pl.BlockSpec((tm, N), lambda m: (m, 0)),
        compiler_params=pltpu.CompilerParams(dimension_semantics=("parallel",)),
    )(x1, w1, x2, w2, b)


# -----------------------------------------------------------------------------
# Chunked fused bidirectional LSTM recurrence.
# The input-gate projections (+biases) for both directions are precomputed
# (bf16, lane-padded gate layout: 8 groups of Hp lanes = fwd i,f,g,o | bwd
# i,f,g,o).  Grid iterates time chunks ("arbitrary"); h/c persist in VMEM
# scratch across chunks; per step two (Bp,Hp)x(Hp,4Hp) dots, no concats.
# -----------------------------------------------------------------------------
def _bilstm_rec_kernel(gf_ref, gb_ref, whf_ref, whb_ref, of_ref, ob_ref,
                       hf_s, cf_s, hb_s, cb_s, *, Hp):
    ci = pl.program_id(0)

    @pl.when(ci == 0)
    def _():
        hf_s[...] = jnp.zeros_like(hf_s)
        cf_s[...] = jnp.zeros_like(cf_s)
        hb_s[...] = jnp.zeros_like(hb_s)
        cb_s[...] = jnp.zeros_like(cb_s)

    TS = gf_ref.shape[0]
    whf = whf_ref[...]                       # (Hp, 4Hp) f32
    whb = whb_ref[...]

    def cell(gates, c_prev):                 # gate order i, f, g, o (torch)
        i = jax.nn.sigmoid(gates[:, 0 * Hp:1 * Hp])
        f = jax.nn.sigmoid(gates[:, 1 * Hp:2 * Hp])
        g = jnp.tanh(gates[:, 2 * Hp:3 * Hp])
        o = jax.nn.sigmoid(gates[:, 3 * Hp:4 * Hp])
        c_new = f * c_prev + i * g
        h_new = o * jnp.tanh(c_new)
        return h_new, c_new

    def step(t, carry):
        h_f, c_f, h_b, c_b = carry
        rec_f = jnp.dot(h_f, whf, preferred_element_type=jnp.float32)
        rec_b = jnp.dot(h_b, whb, preferred_element_type=jnp.float32)
        gates_f = gf_ref[t].astype(jnp.float32) + rec_f
        gates_b = gb_ref[TS - 1 - t].astype(jnp.float32) + rec_b
        h_f, c_f = cell(gates_f, c_f)
        h_b, c_b = cell(gates_b, c_b)
        of_ref[t] = h_f.astype(of_ref.dtype)
        ob_ref[TS - 1 - t] = h_b.astype(ob_ref.dtype)
        return (h_f, c_f, h_b, c_b)

    init = (hf_s[...], cf_s[...], hb_s[...], cb_s[...])
    h_f, c_f, h_b, c_b = lax.fori_loop(0, TS, step, init)
    hf_s[...] = h_f
    cf_s[...] = c_f
    hb_s[...] = h_b
    cb_s[...] = c_b


def pallas_bilstm_rec(gates, whh_f, whh_b, *, Hp, TS):
    """gates: (T, Bp, 8*Hp) bf16.  Returns (of, ob) each (T, Bp, Hp) bf16."""
    T, Bp, _ = gates.shape
    nc = T // TS
    # TODO(synk): on v7x the fwd/bwd directions could run on the two
    # TensorCores (leading CORE_PARALLEL grid axis); here they are fused into
    # one serial kernel (best for 1-TC v5e/v6e).
    of, ob = pl.pallas_call(
        functools.partial(_bilstm_rec_kernel, Hp=Hp),
        out_shape=(jax.ShapeDtypeStruct((T, Bp, Hp), jnp.bfloat16),
                   jax.ShapeDtypeStruct((T, Bp, Hp), jnp.bfloat16)),
        grid=(nc,),
        in_specs=[
            # fwd half of the gate lanes, time block ci
            pl.BlockSpec((TS, Bp, 4 * Hp), lambda ci: (ci, 0, 0)),
            # bwd half of the gate lanes, mirrored time block
            pl.BlockSpec((TS, Bp, 4 * Hp), lambda ci, nc=nc: (nc - 1 - ci, 0, 1)),
            pl.BlockSpec((Hp, 4 * Hp), lambda ci: (0, 0)),
            pl.BlockSpec((Hp, 4 * Hp), lambda ci: (0, 0)),
        ],
        out_specs=(pl.BlockSpec((TS, Bp, Hp), lambda ci: (ci, 0, 0)),
                   pl.BlockSpec((TS, Bp, Hp), lambda ci, nc=nc: (nc - 1 - ci, 0, 0))),
        scratch_shapes=[pltpu.VMEM((Bp, Hp), jnp.float32)] * 4,
        compiler_params=pltpu.CompilerParams(dimension_semantics=("arbitrary",)),
    )(gates, gates, whh_f, whh_b)
    return of, ob


# -----------------------------------------------------------------------------
# Fused: char_cnn (Conv1d kernel==stride, folded) + enc_fc (+tanh) + the
# HandshakingKernel "cat" projection (wc1|wc2 as one (Hdp, 2*Hdp) matmul).
# Lane-padded Hdp makes the p[:, :Hdp]/p[:, Hdp:] split and the stores aligned.
# -----------------------------------------------------------------------------
def _enc_proj_kernel(x_ref, we_ref, be_ref, wc_ref, bc_ref, o1_ref, o2_ref,
                     *, activate, Hdp):
    y = jnp.dot(x_ref[...], we_ref[...], preferred_element_type=jnp.float32)
    y = y + be_ref[...]
    if activate:
        y = jnp.tanh(y)
    p = jnp.dot(y.astype(wc_ref.dtype), wc_ref[...],
                preferred_element_type=jnp.float32)          # (tm, 2*Hdp)
    o1_ref[...] = p[:, :Hdp].astype(o1_ref.dtype)
    o2_ref[...] = (p[:, Hdp:] + bc_ref[...]).astype(o2_ref.dtype)


def pallas_enc_proj(x, w_eff, b_eff, wc_fused, bc, *, activate, tm_cap=256):
    M, KC = x.shape
    Hdp = wc_fused.shape[0]
    tm = _pick_tm(M, KC * x.dtype.itemsize, cap=tm_cap)
    return pl.pallas_call(
        functools.partial(_enc_proj_kernel, activate=activate, Hdp=Hdp),
        out_shape=(jax.ShapeDtypeStruct((M, Hdp), jnp.bfloat16),
                   jax.ShapeDtypeStruct((M, Hdp), jnp.bfloat16)),
        grid=(_cdiv(M, tm),),
        in_specs=[
            pl.BlockSpec((tm, KC), lambda m: (m, 0)),
            pl.BlockSpec((KC, Hdp), lambda m: (0, 0)),
            pl.BlockSpec((1, Hdp), lambda m: (0, 0)),
            pl.BlockSpec((Hdp, 2 * Hdp), lambda m: (0, 0)),
            pl.BlockSpec((1, Hdp), lambda m: (0, 0)),
        ],
        out_specs=(pl.BlockSpec((tm, Hdp), lambda m: (m, 0)),
                   pl.BlockSpec((tm, Hdp), lambda m: (m, 0))),
        compiler_params=pltpu.CompilerParams(dimension_semantics=("parallel",)),
    )(x, w_eff, b_eff, wc_fused, bc)


# -----------------------------------------------------------------------------
# Handshaking ("cat") + dec_fc restricted to the visual-field band.
#   band[b, k, i, :] = dec( tanh(p1[b, i] + p2[b, i + k]) )   for k in [0, vf)
# One windowed p2 load per grid step, bf16 tanh into a VMEM scratch, then a
# single batched (vf*ti, Hdp)x(Hdp, Epad) MXU dot; bf16 band writeback.
# -----------------------------------------------------------------------------
def _handshake_band_kernel(p1_ref, p2_ref, wd_ref, bd_ref, o_ref, s_ref,
                           *, ti, vf, tw):
    i0 = pl.multiple_of(pl.program_id(1) * ti, ti)
    p1 = p1_ref[0]                                # (ti, Hdp) bf16
    p2w = p2_ref[0, pl.ds(i0, tw), :]             # (tw, Hdp) — loaded ONCE
    for k in range(vf):                           # light unrolled body
        s_ref[pl.ds(k * ti, ti), :] = jnp.tanh(p1 + p2w[k:k + ti])
    s = s_ref[...]                                # (vf*ti, Hdp) bf16
    out = jnp.dot(s, wd_ref[...], preferred_element_type=jnp.float32)
    out = out + bd_ref[...]                       # bias added once, outside loop
    o_ref[0] = out.reshape(vf, ti, -1).astype(o_ref.dtype)


def pallas_handshake_dec(P1, P2, wd_pad, bd_pad, *, vf, ti, tw):
    Bp, Li, Hdp = P1.shape
    Lp = P2.shape[1]
    Epad = wd_pad.shape[1]
    n_it = Li // ti
    return pl.pallas_call(
        functools.partial(_handshake_band_kernel, ti=ti, vf=vf, tw=tw),
        out_shape=jax.ShapeDtypeStruct((Bp, vf, Li, Epad), jnp.bfloat16),
        grid=(Bp, n_it),
        in_specs=[
            pl.BlockSpec((1, ti, Hdp), lambda b, it: (b, it, 0)),
            pl.BlockSpec((1, Lp, Hdp), lambda b, it: (b, 0, 0)),
            pl.BlockSpec((Hdp, Epad), lambda b, it: (0, 0)),
            pl.BlockSpec((1, Epad), lambda b, it: (0, 0)),
        ],
        out_specs=pl.BlockSpec((1, vf, ti, Epad), lambda b, it: (b, 0, it, 0)),
        scratch_shapes=[pltpu.VMEM((vf * ti, Hdp), jnp.bfloat16)],
        compiler_params=pltpu.CompilerParams(
            dimension_semantics=("parallel", "parallel")),
    )(P1, P2, wd_pad, bd_pad)


# -----------------------------------------------------------------------------
# Model: deterministic parameter construction + forward wrapper.
# -----------------------------------------------------------------------------
def _u(key, shape, scale=0.1):
    return jax.random.uniform(key, shape, jnp.float32, -scale, scale)


class TPLinkerNERPallas:
    def __init__(self, char_encoder_config, handshaking_kernel_config,
                 hidden_size, activate_enc_fc, entity_type_num, key):
        cc = char_encoder_config
        self.char_size = cc["char_size"]
        self.char_emb_dim = cc["emb_dim"]
        hs0, hs1 = cc["bilstm_hidden_size"]
        self.K = cc["max_char_num_in_tok"]
        self.hidden_size = hidden_size
        self.activate_enc_fc = activate_enc_fc
        self.entity_type_num = entity_type_num
        self.visual_field = handshaking_kernel_config["visual_field"]
        assert handshaking_kernel_config["shaking_type"] == "cat"
        # TODO(synk): word (GloVe/PubMed), Flair and BERT branches need external
        # pretrained checkpoints; they are disabled (config=None), as the
        # PyTorch module permits.  Dropouts are identity in eval mode.

        H1, H2 = hs0 // 2, hs1 // 2                 # per-direction hidden sizes
        Hp1 = _round_up(max(H1, 128), 128)          # lane-aligned hidden
        Hp2 = _round_up(max(H2, 128), 128)
        Hd = hidden_size
        Hdp = _round_up(max(Hd, 128), 128)
        E = entity_type_num
        Epad = _round_up(max(E, 128), 128)
        D = self.char_emb_dim
        C = hs1                                     # = 2 * H2
        self.H1, self.H2, self.Hp1, self.Hp2 = H1, H2, Hp1, Hp2
        self.Hdp, self.Epad = Hdp, Epad

        keys = iter(jax.random.split(key, 64))
        bf16 = jnp.bfloat16

        # char embedding kept in bf16: the gathered activations are bf16 before
        # they hit any pallas_call (halves DMA bytes everywhere downstream).
        self.char_emb = _u(next(keys), (self.char_size, D), 0.5).astype(bf16)

        def place_gate_cols(dst, src, H, Hp, n_groups):
            # src (rows, n_groups*H) -> dst (rows, n_groups*Hp): each gate block
            # starts at a 128-lane-aligned column; padded lanes stay zero.
            for g in range(n_groups):
                dst = dst.at[:, g * Hp:g * Hp + H].set(src[:, g * H:(g + 1) * H])
            return dst

        def pad_rows(src, rows_pad):
            out = jnp.zeros((rows_pad, src.shape[1]), jnp.float32)
            return out.at[:src.shape[0]].set(src)

        # ----- layer-1 BiLSTM (input dim D, per-direction hidden H1) -----
        w_ih_l1 = _u(next(keys), (D, 8 * H1))       # [fwd i,f,g,o | bwd i,f,g,o]
        b_l1 = _u(next(keys), (1, 8 * H1))          # (b_ih + b_hh) per direction
        whh_l1_f = _u(next(keys), (H1, 4 * H1))
        whh_l1_b = _u(next(keys), (H1, 4 * H1))
        self.w_in1 = place_gate_cols(jnp.zeros((D, 8 * Hp1)), w_ih_l1,
                                     H1, Hp1, 8).astype(bf16)
        self.b_in1 = place_gate_cols(jnp.zeros((1, 8 * Hp1)), b_l1, H1, Hp1, 8)
        self.whh1_f = place_gate_cols(jnp.zeros((Hp1, 4 * Hp1)),
                                      pad_rows(whh_l1_f, Hp1), H1, Hp1, 4)
        self.whh1_b = place_gate_cols(jnp.zeros((Hp1, 4 * Hp1)),
                                      pad_rows(whh_l1_b, Hp1), H1, Hp1, 4)

        # ----- layer-2 BiLSTM (input = [h1_fwd | h1_bwd], hidden H2) -----
        w_ih_l2_f = _u(next(keys), (2 * H1, 4 * H2))   # fwd dir of layer 2
        w_ih_l2_b = _u(next(keys), (2 * H1, 4 * H2))   # bwd dir of layer 2
        b_l2 = _u(next(keys), (1, 8 * H2))
        whh_l2_f = _u(next(keys), (H2, 4 * H2))
        whh_l2_b = _u(next(keys), (H2, 4 * H2))
        w_ih_l2 = jnp.concatenate([w_ih_l2_f, w_ih_l2_b], axis=1)   # (2H1, 8H2)
        # split by which half of the layer-1 output feeds the rows:
        self.w_in2_f = place_gate_cols(jnp.zeros((Hp1, 8 * Hp2)),
                                       pad_rows(w_ih_l2[:H1], Hp1),
                                       H2, Hp2, 8).astype(bf16)
        self.w_in2_b = place_gate_cols(jnp.zeros((Hp1, 8 * Hp2)),
                                       pad_rows(w_ih_l2[H1:], Hp1),
                                       H2, Hp2, 8).astype(bf16)
        self.b_in2 = place_gate_cols(jnp.zeros((1, 8 * Hp2)), b_l2, H2, Hp2, 8)
        self.whh2_f = place_gate_cols(jnp.zeros((Hp2, 4 * Hp2)),
                                      pad_rows(whh_l2_f, Hp2), H2, Hp2, 4)
        self.whh2_b = place_gate_cols(jnp.zeros((Hp2, 4 * Hp2)),
                                      pad_rows(whh_l2_b, Hp2), H2, Hp2, 4)

        # ----- Conv1d(C, C, K, stride=K) folded with enc_fc (linear->linear,
        # no activation between): W_eff = conv_w_mat @ enc_w; b_eff likewise.
        conv_w_torch = _u(next(keys), (C, C, self.K))
        conv_w_mat = jnp.transpose(conv_w_torch, (2, 1, 0)).reshape(self.K * C, C)
        conv_b = _u(next(keys), (1, C))
        enc_w = _u(next(keys), (C, Hd))                 # torch W.T
        enc_b = _u(next(keys), (1, Hd))
        w_eff_true = conv_w_mat @ enc_w                 # (K*C, Hd)
        b_eff_true = conv_b @ enc_w + enc_b             # (1, Hd)
        w_eff = jnp.zeros((self.K * 2 * Hp2, Hdp), jnp.float32)
        for k in range(self.K):
            for d in range(2):                          # 0 = fwd lanes, 1 = bwd
                src = w_eff_true[k * C + d * H2: k * C + (d + 1) * H2]
                r0 = k * 2 * Hp2 + d * Hp2
                w_eff = w_eff.at[r0:r0 + H2, :Hd].set(src)
        self.w_eff = w_eff.astype(bf16)
        self.b_eff = jnp.zeros((1, Hdp), jnp.float32).at[:, :Hd].set(b_eff_true)

        # ----- HandshakingKernel cat_fc: Linear(2*Hd, Hd) split and refused as
        # one lane-padded (Hdp, 2*Hdp) projection [x@wc1 | x@wc2].
        cat_w_torch = _u(next(keys), (Hd, 2 * Hd))
        wc = jnp.zeros((Hdp, 2 * Hdp), jnp.float32)
        wc = wc.at[:Hd, :Hd].set(cat_w_torch[:, :Hd].T)          # start half
        wc = wc.at[:Hd, Hdp:Hdp + Hd].set(cat_w_torch[:, Hd:].T)  # end half
        self.wc_fused = wc.astype(bf16)
        self.bc = jnp.zeros((1, Hdp), jnp.float32).at[:, :Hd].set(
            _u(next(keys), (1, Hd)))

        # ----- dec_fc: Linear(Hd, E), zero-padded to 128 lanes for lane-dense
        # band stores; real E sliced back in glue.
        wd = _u(next(keys), (Hd, E))
        bd = _u(next(keys), (1, E))
        self.wd_pad = jnp.zeros((Hdp, Epad), jnp.float32).at[:Hd, :E].set(
            wd).astype(bf16)
        self.bd_pad = jnp.zeros((1, Epad), jnp.float32).at[:, :E].set(bd)

    def __call__(self, char_input_ids):
        B, TK = char_input_ids.shape
        K = self.K
        L = TK // K
        T = TK
        Hp1, Hp2, Hdp, Epad = self.Hp1, self.Hp2, self.Hdp, self.Epad
        E = self.entity_type_num
        vf = min(self.visual_field, L)

        # pad batch to a full (bf16) sublane tile; padded rows sliced at the end
        Bp = _round_up(max(B, 16), 16)
        ids = jnp.pad(char_input_ids, ((0, Bp - B), (0, 0)))

        # char embedding lookup (XLA glue, bf16); char_emb_dropout == identity
        emb = jnp.take(self.char_emb, ids, axis=0)               # (Bp, T, D) bf16
        x_t = jnp.transpose(emb, (1, 0, 2))                      # (T, Bp, D)

        # ---- layer-1 BiLSTM: hoisted bf16 gate matmul + chunked recurrence
        g1 = pallas_linear(x_t.reshape(T * Bp, -1), self.w_in1, self.b_in1,
                           out_dtype=jnp.bfloat16)
        g1 = g1.reshape(T, Bp, 8 * Hp1)
        of1, ob1 = pallas_bilstm_rec(g1, self.whh1_f, self.whh1_b,
                                     Hp=Hp1, TS=_pick_ts(T, Bp, Hp1))

        # ---- layer-2 BiLSTM: two-operand projection (no concat between layers)
        g2 = pallas_linear2(of1.reshape(T * Bp, Hp1), self.w_in2_f,
                            ob1.reshape(T * Bp, Hp1), self.w_in2_b,
                            self.b_in2, out_dtype=jnp.bfloat16)
        g2 = g2.reshape(T, Bp, 8 * Hp2)
        of2, ob2 = pallas_bilstm_rec(g2, self.whh2_f, self.whh2_b,
                                     Hp=Hp2, TS=_pick_ts(T, Bp, Hp2))

        # ---- fused char_cnn + enc_fc (+tanh) + handshaking "cat" projection
        ch = jnp.transpose(jnp.concatenate([of2, ob2], axis=-1), (1, 0, 2))
        xblocks = ch.reshape(Bp * L, K * 2 * Hp2)                # bf16
        p1, p2 = pallas_enc_proj(xblocks, self.w_eff, self.b_eff,
                                 self.wc_fused, self.bc,
                                 activate=self.activate_enc_fc)  # (Bp*L, Hdp) bf16

        # ---- visual-field band handshaking + dec_fc (bf16 band writeback)
        ti = min(64, _round_up(L, 8))
        n_it = _cdiv(L, ti)
        Li = n_it * ti
        tw = _round_up(ti + vf, 8)        # per-step p2 window (>= ti + vf - 1)
        Lp = Li + tw                       # padded so every window stays in-bounds
        P1 = jnp.pad(p1.reshape(Bp, L, Hdp), ((0, 0), (0, Li - L), (0, 0)))
        P2 = jnp.pad(p2.reshape(Bp, L, Hdp), ((0, 0), (0, Lp - L), (0, 0)))
        band = pallas_handshake_dec(P1, P2, self.wd_pad, self.bd_pad,
                                    vf=vf, ti=ti, tw=tw)
        # band: (Bp, vf, Li, Epad) bf16;  band[:, k, i] = dec(shaking(i, i + k))

        # pack (i, j) pairs in the torch.cat ordering — gather over the small
        # band tensor only (no full LxL grid ever materialized)
        ii, kk = [], []
        for i in range(L):
            for j in range(i, min(L, i + vf)):
                ii.append(i)
                kk.append(j - i)
        ii = jnp.asarray(np.asarray(ii, dtype=np.int32))
        kk = jnp.asarray(np.asarray(kk, dtype=np.int32))
        return band[:B, kk, ii, :E].astype(jnp.float32)          # (B, n_pairs, E)


if __name__ == "__main__":
    # small, module-consistent shapes
    B = 2                 # batch
    L = 8                 # subword sequence length
    K = 4                 # max_char_num_in_tok
    char_size = 50
    char_emb_dim = 16
    hidden_size = 32
    entity_type_num = 5
    visual_field = 4

    char_encoder_config = {
        "char_size": char_size,
        "emb_dim": char_emb_dim,
        "emb_dropout": 0.0,
        "bilstm_hidden_size": [32, 32],
        "bilstm_layers": [1, 1],
        "bilstm_dropout": [0.0, 0.0, 0.0],
        "max_char_num_in_tok": K,
    }
    handshaking_kernel_config = {
        "shaking_type": "cat",
        "context_type": "mean_pooling",   # unused by the "cat" shaking type
        "visual_field": visual_field,
    }

    root = jax.random.PRNGKey(0)
    k_param, k_input = jax.random.split(root)

    model = TPLinkerNERPallas(char_encoder_config, handshaking_kernel_config,
                              hidden_size, activate_enc_fc=True,
                              entity_type_num=entity_type_num, key=k_param)

    char_input_ids = jax.random.randint(k_input, (B, L * K), 0, char_size,
                                        dtype=jnp.int32)

    out = jax.jit(model.__call__)(char_input_ids)
    out = jax.block_until_ready(out)

    expected_len = sum(min(visual_field, L - i) for i in range(L))
    assert out.shape == (B, expected_len, entity_type_num), out.shape
    assert bool(jnp.all(jnp.isfinite(out)))
    print("KERNEL_OK")
</pallas_src>

<mosaic_0001>
module attributes {stable_mosaic.version = 11 : i64} {
  func.func @_bilstm_rec_kernel(%arg0: i32, %arg1: memref<32x16x512xbf16, #tpu.memory_space<vmem>>, %arg2: memref<32x16x512xbf16, #tpu.memory_space<vmem>>, %arg3: memref<128x512xf32, #tpu.memory_space<vmem>>, %arg4: memref<128x512xf32, #tpu.memory_space<vmem>>, %arg5: memref<32x16x128xbf16, #tpu.memory_space<vmem>>, %arg6: memref<32x16x128xbf16, #tpu.memory_space<vmem>>, %arg7: memref<16x128xf32, #tpu.memory_space<vmem>>, %arg8: memref<16x128xf32, #tpu.memory_space<vmem>>, %arg9: memref<16x128xf32, #tpu.memory_space<vmem>>, %arg10: memref<16x128xf32, #tpu.memory_space<vmem>>) attributes {dimension_semantics = [#tpu.dimension_semantics<arbitrary>], iteration_bounds = array<i64: 1>, scalar_prefetch = 0 : i64, scratch_operands = 4 : i64, tpu.core_type = #tpu.core_type<tc>, window_params = [{transform_indices = @transform_0, window_bounds = array<i64: 32, 16, 512>}, {transform_indices = @transform_1, window_bounds = array<i64: 32, 16, 512>}, {pipeline_mode = #tpu.pipeline_mode<synchronous>, transform_indices = @transform_2, window_bounds = array<i64: 128, 512>}, {pipeline_mode = #tpu.pipeline_mode<synchronous>, transform_indices = @transform_3, window_bounds = array<i64: 128, 512>}, {transform_indices = @transform_4, window_bounds = array<i64: 32, 16, 128>}, {transform_indices = @transform_5, window_bounds = array<i64: 32, 16, 128>}]} {
    %c0_i32 = arith.constant 0 : i32
    %0 = arith.cmpi eq, %arg0, %c0_i32 : i32
    %1 = arith.extui %0 : i1 to i32
    %c0_i32_0 = arith.constant 0 : i32
    %2 = arith.cmpi ne, %1, %c0_i32_0 : i32
    scf.if %2 {
      %cst = arith.constant 0.000000e+00 : f32
      %15 = vector.broadcast %cst : f32 to vector<16x128xf32>
      %c0_22 = arith.constant 0 : index
      %c0_23 = arith.constant 0 : index
      %16 = vector.load %arg7[%c0_22, %c0_23] : memref<16x128xf32, #tpu.memory_space<vmem>>, vector<16x128xf32>
      tpu.vector_store %arg7[%c0_22, %c0_23], %15 {strides = array<i32>} : memref<16x128xf32, #tpu.memory_space<vmem>>, vector<16x128xf32>,
      %cst_24 = arith.constant 0.000000e+00 : f32
      %17 = vector.broadcast %cst_24 : f32 to vector<16x128xf32>
      %c0_25 = arith.constant 0 : index
      %c0_26 = arith.constant 0 : index
      %18 = vector.load %arg8[%c0_25, %c0_26] : memref<16x128xf32, #tpu.memory_space<vmem>>, vector<16x128xf32>
      tpu.vector_store %arg8[%c0_25, %c0_26], %17 {strides = array<i32>} : memref<16x128xf32, #tpu.memory_space<vmem>>, vector<16x128xf32>,
      %cst_27 = arith.constant 0.000000e+00 : f32
      %19 = vector.broadcast %cst_27 : f32 to vector<16x128xf32>
      %c0_28 = arith.constant 0 : index
      %c0_29 = arith.constant 0 : index
      %20 = vector.load %arg9[%c0_28, %c0_29] : memref<16x128xf32, #tpu.memory_space<vmem>>, vector<16x128xf32>
      tpu.vector_store %arg9[%c0_28, %c0_29], %19 {strides = array<i32>} : memref<16x128xf32, #tpu.memory_space<vmem>>, vector<16x128xf32>,
      %cst_30 = arith.constant 0.000000e+00 : f32
      %21 = vector.broadcast %cst_30 : f32 to vector<16x128xf32>
      %c0_31 = arith.constant 0 : index
      %c0_32 = arith.constant 0 : index
      %22 = vector.load %arg10[%c0_31, %c0_32] : memref<16x128xf32, #tpu.memory_space<vmem>>, vector<16x128xf32>
      tpu.vector_store %arg10[%c0_31, %c0_32], %21 {strides = array<i32>} : memref<16x128xf32, #tpu.memory_space<vmem>>, vector<16x128xf32>,
    } else {
    }
    %c0 = arith.constant 0 : index
    %c0_1 = arith.constant 0 : index
    %3 = vector.load %arg3[%c0, %c0_1] : memref<128x512xf32, #tpu.memory_space<vmem>>, vector<128x512xf32>
    %c0_2 = arith.constant 0 : index
    %c0_3 = arith.constant 0 : index
    %4 = vector.load %arg4[%c0_2, %c0_3] : memref<128x512xf32, #tpu.memory_space<vmem>>, vector<128x512xf32>
    %c0_4 = arith.constant 0 : index
    %c0_5 = arith.constant 0 : index
    %5 = vector.load %arg7[%c0_4, %c0_5] : memref<16x128xf32, #tpu.memory_space<vmem>>, vector<16x128xf32>
    %c0_6 = arith.constant 0 : index
    %c0_7 = arith.constant 0 : index
    %6 = vector.load %arg8[%c0_6, %c0_7] : memref<16x128xf32, #tpu.memory_space<vmem>>, vector<16x128xf32>
    %c0_8 = arith.constant 0 : index
    %c0_9 = arith.constant 0 : index
    %7 = vector.load %arg9[%c0_8, %c0_9] : memref<16x128xf32, #tpu.memory_space<vmem>>, vector<16x128xf32>
    %c0_10 = arith.constant 0 : index
    %c0_11 = arith.constant 0 : index
    %8 = vector.load %arg10[%c0_10, %c0_11] : memref<16x128xf32, #tpu.memory_space<vmem>>, vector<16x128xf32>
    %c0_i32_12 = arith.constant 0 : i32
    %c32_i32 = arith.constant 32 : i32
    %9 = arith.addi %c0_i32_12, %c32_i32 : i32
    %c1_i32 = arith.constant 1 : i32
    %10:4 = scf.for %arg11 = %c0_i32_12 to %9 step %c1_i32 iter_args(%arg12 = %5, %arg13 = %6, %arg14 = %7, %arg15 = %8) -> (vector<16x128xf32>, vector<16x128xf32>, vector<16x128xf32>, vector<16x128xf32>)  : i32 {
      %cst = arith.constant dense<0.000000e+00> : vector<16x512xf32>
      %15 = tpu.matmul %arg12, %3, %cst {dimension_numbers = #tpu.dot_dimension_numbers<[1], [0], [0], [1], [0, 0, 1, 1], [], []>} : vector<16x128xf32>, vector<128x512xf32>, vector<16x512xf32> -> vector<16x512xf32>
      %cst_22 = arith.constant dense<0.000000e+00> : vector<16x512xf32>
      %16 = tpu.matmul %arg14, %4, %cst_22 {dimension_numbers = #tpu.dot_dimension_numbers<[1], [0], [0], [1], [0, 0, 1, 1], [], []>} : vector<16x128xf32>, vector<128x512xf32>, vector<16x512xf32> -> vector<16x512xf32>
      %17 = arith.index_cast %arg11 : i32 to index
      %c0_23 = arith.constant 0 : index
      %c0_24 = arith.constant 0 : index
      %18 = vector.load %arg1[%17, %c0_23, %c0_24] : memref<32x16x512xbf16, #tpu.memory_space<vmem>>, vector<1x16x512xbf16>
      %19 = vector.shape_cast %18 : vector<1x16x512xbf16> to vector<16x512xbf16>
      %20 = arith.extf %19 : vector<16x512xbf16> to vector<16x512xf32>
      %21 = arith.addf %20, %15 : vector<16x512xf32>
      %c31_i32 = arith.constant 31 : i32
      %22 = arith.subi %c31_i32, %arg11 : i32
      %23 = arith.index_cast %22 : i32 to index
      %c0_25 = arith.constant 0 : index
      %c0_26 = arith.constant 0 : index
      %24 = vector.load %arg2[%23, %c0_25, %c0_26] : memref<32x16x512xbf16, #tpu.memory_space<vmem>>, vector<1x16x512xbf16>
      %25 = vector.shape_cast %24 : vector<1x16x512xbf16> to vector<16x512xbf16>
      %26 = arith.extf %25 : vector<16x512xbf16> to vector<16x512xf32>
      %27 = arith.addf %26, %16 : vector<16x512xf32>
      %28 = vector.extract_strided_slice %21 {offsets = [0, 0], sizes = [16, 128], strides = [1, 1]} : vector<16x512xf32> to vector<16x128xf32>
      %29 = arith.negf %28 : vector<16x128xf32>
      %30 = math.exp %29 : vector<16x128xf32>
      %cst_27 = arith.constant 1.000000e+00 : f32
      %31 = vector.broadcast %cst_27 : f32 to vector<16x128xf32>
      %32 = arith.addf %31, %30 : vector<16x128xf32>
      %33 = arith.divf %31, %32 : vector<16x128xf32>
      %34 = vector.extract_strided_slice %21 {offsets = [0, 128], sizes = [16, 128], strides = [1, 1]} : vector<16x512xf32> to vector<16x128xf32>
      %35 = arith.negf %34 : vector<16x128xf32>
      %36 = math.exp %35 : vector<16x128xf32>
      %cst_28 = arith.constant 1.000000e+00 : f32
      %37 = vector.broadcast %cst_28 : f32 to vector<16x128xf32>
      %38 = arith.addf %37, %36 : vector<16x128xf32>
      %39 = arith.divf %37, %38 : vector<16x128xf32>
      %40 = vector.extract_strided_slice %21 {offsets = [0, 256], sizes = [16, 128], strides = [1, 1]} : vector<16x512xf32> to vector<16x128xf32>
      %41 = math.tanh %40 : vector<16x128xf32>
      %42 = vector.extract_strided_slice %21 {offsets = [0, 384], sizes = [16, 128], strides = [1, 1]} : vector<16x512xf32> to vector<16x128xf32>
      %43 = arith.negf %42 : vector<16x128xf32>
      %44 = math.exp %43 : vector<16x128xf32>
      %cst_29 = arith.constant 1.000000e+00 : f32
      %45 = vector.broadcast %cst_29 : f32 to vector<16x128xf32>
      %46 = arith.addf %45, %44 : vector<16x128xf32>
      %47 = arith.divf %45, %46 : vector<16x128xf32>
      %48 = arith.mulf %39, %arg13 : vector<16x128xf32>
      %49 = arith.mulf %33, %41 : vector<16x128xf32>
      %50 = arith.addf %48, %49 : vector<16x128xf32>
      %51 = math.tanh %50 : vector<16x128xf32>
      %52 = arith.mulf %47, %51 : vector<16x128xf32>
      %53 = vector.extract_strided_slice %27 {offsets = [0, 0], sizes = [16, 128], strides = [1, 1]} : vector<16x512xf32> to vector<16x128xf32>
      %54 = arith.negf %53 : vector<16x128xf32>
      %55 = math.exp %54 : vector<16x128xf32>
      %cst_30 = arith.constant 1.000000e+00 : f32
      %56 = vector.broadcast %cst_30 : f32 to vector<16x128xf32>
      %57 = arith.addf %56, %55 : vector<16x128xf32>
      %58 = arith.divf %56, %57 : vector<16x128xf32>
      %59 = vector.extract_strided_slice %27 {offsets = [0, 128], sizes = [16, 128], strides = [1, 1]} : vector<16x512xf32> to vector<16x128xf32>
      %60 = arith.negf %59 : vector<16x128xf32>
      %61 = math.exp %60 : vector<16x128xf32>
      %cst_31 = arith.constant 1.000000e+00 : f32
      %62 = vector.broadcast %cst_31 : f32 to vector<16x128xf32>
      %63 = arith.addf %62, %61 : vector<16x128xf32>
      %64 = arith.divf %62, %63 : vector<16x128xf32>
      %65 = vector.extract_strided_slice %27 {offsets = [0, 256], sizes = [16, 128], strides = [1, 1]} : vector<16x512xf32> to vector<16x128xf32>
      %66 = math.tanh %65 : vector<16x128xf32>
      %67 = vector.extract_strided_slice %27 {offsets = [0, 384], sizes = [16, 128], strides = [1, 1]} : vector<16x512xf32> to vector<16x128xf32>
      %68 = arith.negf %67 : vector<16x128xf32>
      %69 = math.exp %68 : vector<16x128xf32>
      %cst_32 = arith.constant 1.000000e+00 : f32
      %70 = vector.broadcast %cst_32 : f32 to vector<16x128xf32>
      %71 = arith.addf %70, %69 : vector<16x128xf32>
      %72 = arith.divf %70, %71 : vector<16x128xf32>
      %73 = arith.mulf %64, %arg15 : vector<16x128xf32>
      %74 = arith.mulf %58, %66 : vector<16x128xf32>
      %75 = arith.addf %73, %74 : vector<16x128xf32>
      %76 = math.tanh %75 : vector<16x128xf32>
      %77 = arith.mulf %72, %76 : vector<16x128xf32>
      %78 = arith.truncf %52 : vector<16x128xf32> to vector<16x128xbf16>
      %79 = arith.index_cast %arg11 : i32 to index
      %c0_33 = arith.constant 0 : index
      %c0_34 = arith.constant 0 : index
      %80 = vector.load %arg5[%79, %c0_33, %c0_34] : memref<32x16x128xbf16, #tpu.memory_space<vmem>>, vector<1x16x128xbf16>
      %81 = vector.shape_cast %80 : vector<1x16x128xbf16> to vector<16x128xbf16>
      %82 = vector.shape_cast %78 : vector<16x128xbf16> to vector<1x16x128xbf16>
      tpu.vector_store %arg5[%79, %c0_33, %c0_34], %82 {strides = array<i32>} : memref<32x16x128xbf16, #tpu.memory_space<vmem>>, vector<1x16x128xbf16>,
      %83 = arith.truncf %77 : vector<16x128xf32> to vector<16x128xbf16>
      %c31_i32_35 = arith.constant 31 : i32
      %84 = arith.subi %c31_i32_35, %arg11 : i32
      %85 = arith.index_cast %84 : i32 to index
      %c0_36 = arith.constant 0 : index
      %c0_37 = arith.constant 0 : index
      %86 = vector.load %arg6[%85, %c0_36, %c0_37] : memref<32x16x128xbf16, #tpu.memory_space<vmem>>, vector<1x16x128xbf16>
      %87 = vector.shape_cast %86 : vector<1x16x128xbf16> to vector<16x128xbf16>
      %88 = vector.shape_cast %83 : vector<16x128xbf16> to vector<1x16x128xbf16>
      tpu.vector_store %arg6[%85, %c0_36, %c0_37], %88 {strides = array<i32>} : memref<32x16x128xbf16, #tpu.memory_space<vmem>>, vector<1x16x128xbf16>,
      scf.yield %52, %50, %77, %75 : vector<16x128xf32>, vector<16x128xf32>, vector<16x128xf32>, vector<16x128xf32>
    }
    %c32_i32_13 = arith.constant 32 : i32
    %c0_14 = arith.constant 0 : index
    %c0_15 = arith.constant 0 : index
    %11 = vector.load %arg7[%c0_14, %c0_15] : memref<16x128xf32, #tpu.memory_space<vmem>>, vector<16x128xf32>
    tpu.vector_store %arg7[%c0_14, %c0_15], %10#0 {strides = array<i32>} : memref<16x128xf32, #tpu.memory_space<vmem>>, vector<16x128xf32>,
    %c0_16 = arith.constant 0 : index
    %c0_17 = arith.constant 0 : index
    %12 = vector.load %arg8[%c0_16, %c0_17] : memref<16x128xf32, #tpu.memory_space<vmem>>, vector<16x128xf32>
    tpu.vector_store %arg8[%c0_16, %c0_17], %10#1 {strides = array<i32>} : memref<16x128xf32, #tpu.memory_space<vmem>>, vector<16x128xf32>,
    %c0_18 = arith.constant 0 : index
    %c0_19 = arith.constant 0 : index
    %13 = vector.load %arg9[%c0_18, %c0_19] : memref<16x128xf32, #tpu.memory_space<vmem>>, vector<16x128xf32>
    tpu.vector_store %arg9[%c0_18, %c0_19], %10#2 {strides = array<i32>} : memref<16x128xf32, #tpu.memory_space<vmem>>, vector<16x128xf32>,
    %c0_20 = arith.constant 0 : index
    %c0_21 = arith.constant 0 : index
    %14 = vector.load %arg10[%c0_20, %c0_21] : memref<16x128xf32, #tpu.memory_space<vmem>>, vector<16x128xf32>
    tpu.vector_store %arg10[%c0_20, %c0_21], %10#3 {strides = array<i32>} : memref<16x128xf32, #tpu.memory_space<vmem>>, vector<16x128xf32>,
    return
  }
  func.func @transform_0(%arg0: i32) -> (i32, i32, i32) {
    %c0_i32 = arith.constant 0 : i32
    %c0_i32_0 = arith.constant 0 : i32
    %c0_i32_1 = arith.constant 0 : i32
    return %arg0, %c0_i32, %c0_i32_0 : i32, i32, i32
  }
  func.func @transform_1(%arg0: i32) -> (i32, i32, i32) {
    %c0_i32 = arith.constant 0 : i32
    %0 = arith.subi %c0_i32, %arg0 : i32
    %c0_i32_0 = arith.constant 0 : i32
    %c1_i32 = arith.constant 1 : i32
    %c0_i32_1 = arith.constant 0 : i32
    return %0, %c0_i32_0, %c1_i32 : i32, i32, i32
  }
  func.func @transform_2(%arg0: i32) -> (i32, i32) {
    %c0_i32 = arith.constant 0 : i32
    %c0_i32_0 = arith.constant 0 : i32
    %c0_i32_1 = arith.constant 0 : i32
    return %c0_i32, %c0_i32_0 : i32, i32
  }
  func.func @transform_3(%arg0: i32) -> (i32, i32) {
    %c0_i32 = arith.constant 0 : i32
    %c0_i32_0 = arith.constant 0 : i32
    %c0_i32_1 = arith.constant 0 : i32
    return %c0_i32, %c0_i32_0 : i32, i32
  }
  func.func @transform_4(%arg0: i32) -> (i32, i32, i32) {
    %c0_i32 = arith.constant 0 : i32
    %c0_i32_0 = arith.constant 0 : i32
    %c0_i32_1 = arith.constant 0 : i32
    return %arg0, %c0_i32, %c0_i32_0 : i32, i32, i32
  }
  func.func @transform_5(%arg0: i32) -> (i32, i32, i32) {
    %c0_i32 = arith.constant 0 : i32
    %0 = arith.subi %c0_i32, %arg0 : i32
    %c0_i32_0 = arith.constant 0 : i32
    %c0_i32_1 = arith.constant 0 : i32
    %c0_i32_2 = arith.constant 0 : i32
    return %0, %c0_i32_0, %c0_i32_1 : i32, i32, i32
  }
}

module attributes {stable_mosaic.version = 11 : i64} {
  func.func @_linear_kernel(%arg0: i32, %arg1: memref<256x16xbf16, #tpu.memory_space<vmem>>, %arg2: memref<16x1024xbf16, #tpu.memory_space<vmem>>, %arg3: memref<1x1024xf32, #tpu.memory_space<vmem>>, %arg4: memref<256x1024xbf16, #tpu.memory_space<vmem>>) attributes {dimension_semantics = [#tpu.dimension_semantics<parallel>], iteration_bounds = array<i64: 2>, scalar_prefetch = 0 : i64, scratch_operands = 0 : i64, tpu.core_type = #tpu.core_type<tc>, window_params = [{transform_indices = @transform_0, window_bounds = array<i64: 256, 16>}, {pipeline_mode = #tpu.pipeline_mode<synchronous>, transform_indices = @transform_1, window_bounds = array<i64: 16, 1024>}, {pipeline_mode = #tpu.pipeline_mode<synchronous>, transform_indices = @transform_2, window_bounds = array<i64: 1, 1024>}, {transform_indices = @transform_3, window_bounds = array<i64: 256, 1024>}]} {
    %c0 = arith.constant 0 : index
    %c0_0 = arith.constant 0 : index
    %0 = vector.load %arg1[%c0, %c0_0] : memref<256x16xbf16, #tpu.memory_space<vmem>>, vector<256x16xbf16>
    %c0_1 = arith.constant 0 : index
    %c0_2 = arith.constant 0 : index
    %1 = vector.load %arg2[%c0_1, %c0_2] : memref<16x1024xbf16, #tpu.memory_space<vmem>>, vector<16x1024xbf16>
    %cst = arith.constant dense<0.000000e+00> : vector<256x1024xf32>
    %2 = tpu.matmul %0, %1, %cst {dimension_numbers = #tpu.dot_dimension_numbers<[1], [0], [0], [1], [0, 0, 1, 1], [], []>} : vector<256x16xbf16>, vector<16x1024xbf16>, vector<256x1024xf32> -> vector<256x1024xf32>
    %c0_3 = arith.constant 0 : index
    %c0_4 = arith.constant 0 : index
    %3 = vector.load %arg3[%c0_3, %c0_4] : memref<1x1024xf32, #tpu.memory_space<vmem>>, vector<1x1024xf32>
    %4 = vector.broadcast %3 : vector<1x1024xf32> to vector<256x1024xf32>
    %5 = arith.addf %2, %4 : vector<256x1024xf32>
    %6 = arith.truncf %5 : vector<256x1024xf32> to vector<256x1024xbf16>
    %c0_5 = arith.constant 0 : index
    %c0_6 = arith.constant 0 : index
    %7 = vector.load %arg4[%c0_5, %c0_6] : memref<256x1024xbf16, #tpu.memory_space<vmem>>, vector<256x1024xbf16>
    tpu.vector_store %arg4[%c0_5, %c0_6], %6 {strides = array<i32>} : memref<256x1024xbf16, #tpu.memory_space<vmem>>, vector<256x1024xbf16>,
    return
  }
  func.func @transform_0(%arg0: i32) -> (i32, i32) {
    %c0_i32 = arith.constant 0 : i32
    %c0_i32_0 = arith.constant 0 : i32
    return %arg0, %c0_i32 : i32, i32
  }
  func.func @transform_1(%arg0: i32) -> (i32, i32) {
    %c0_i32 = arith.constant 0 : i32
    %c0_i32_0 = arith.constant 0 : i32
    %c0_i32_1 = arith.constant 0 : i32
    return %c0_i32, %c0_i32_0 : i32, i32
  }
  func.func @transform_2(%arg0: i32) -> (i32, i32) {
    %c0_i32 = arith.constant 0 : i32
    %c0_i32_0 = arith.constant 0 : i32
    %c0_i32_1 = arith.constant 0 : i32
    return %c0_i32, %c0_i32_0 : i32, i32
  }
  func.func @transform_3(%arg0: i32) -> (i32, i32) {
    %c0_i32 = arith.constant 0 : i32
    %c0_i32_0 = arith.constant 0 : i32
    return %arg0, %c0_i32 : i32, i32
  }
}

module attributes {stable_mosaic.version = 11 : i64} {
  func.func @_linear2_kernel(%arg0: i32, %arg1: memref<256x128xbf16, #tpu.memory_space<vmem>>, %arg2: memref<128x1024xbf16, #tpu.memory_space<vmem>>, %arg3: memref<256x128xbf16, #tpu.memory_space<vmem>>, %arg4: memref<128x1024xbf16, #tpu.memory_space<vmem>>, %arg5: memref<1x1024xf32, #tpu.memory_space<vmem>>, %arg6: memref<256x1024xbf16, #tpu.memory_space<vmem>>) attributes {dimension_semantics = [#tpu.dimension_semantics<parallel>], iteration_bounds = array<i64: 2>, scalar_prefetch = 0 : i64, scratch_operands = 0 : i64, tpu.core_type = #tpu.core_type<tc>, window_params = [{transform_indices = @transform_0, window_bounds = array<i64: 256, 128>}, {pipeline_mode = #tpu.pipeline_mode<synchronous>, transform_indices = @transform_1, window_bounds = array<i64: 128, 1024>}, {transform_indices = @transform_2, window_bounds = array<i64: 256, 128>}, {pipeline_mode = #tpu.pipeline_mode<synchronous>, transform_indices = @transform_3, window_bounds = array<i64: 128, 1024>}, {pipeline_mode = #tpu.pipeline_mode<synchronous>, transform_indices = @transform_4, window_bounds = array<i64: 1, 1024>}, {transform_indices = @transform_5, window_bounds = array<i64: 256, 1024>}]} {
    %c0 = arith.constant 0 : index
    %c0_0 = arith.constant 0 : index
    %0 = vector.load %arg1[%c0, %c0_0] : memref<256x128xbf16, #tpu.memory_space<vmem>>, vector<256x128xbf16>
    %c0_1 = arith.constant 0 : index
    %c0_2 = arith.constant 0 : index
    %1 = vector.load %arg2[%c0_1, %c0_2] : memref<128x1024xbf16, #tpu.memory_space<vmem>>, vector<128x1024xbf16>
    %cst = arith.constant dense<0.000000e+00> : vector<256x1024xf32>
    %2 = tpu.matmul %0, %1, %cst {dimension_numbers = #tpu.dot_dimension_numbers<[1], [0], [0], [1], [0, 0, 1, 1], [], []>} : vector<256x128xbf16>, vector<128x1024xbf16>, vector<256x1024xf32> -> vector<256x1024xf32>
    %c0_3 = arith.constant 0 : index
    %c0_4 = arith.constant 0 : index
    %3 = vector.load %arg3[%c0_3, %c0_4] : memref<256x128xbf16, #tpu.memory_space<vmem>>, vector<256x128xbf16>
    %c0_5 = arith.constant 0 : index
    %c0_6 = arith.constant 0 : index
    %4 = vector.load %arg4[%c0_5, %c0_6] : memref<128x1024xbf16, #tpu.memory_space<vmem>>, vector<128x1024xbf16>
    %cst_7 = arith.constant dense<0.000000e+00> : vector<256x1024xf32>
    %5 = tpu.matmul %3, %4, %cst_7 {dimension_numbers = #tpu.dot_dimension_numbers<[1], [0], [0], [1], [0, 0, 1, 1], [], []>} : vector<256x128xbf16>, vector<128x1024xbf16>, vector<256x1024xf32> -> vector<256x1024xf32>
    %6 = arith.addf %2, %5 : vector<256x1024xf32>
    %c0_8 = arith.constant 0 : index
    %c0_9 = arith.constant 0 : index
    %7 = vector.load %arg5[%c0_8, %c0_9] : memref<1x1024xf32, #tpu.memory_space<vmem>>, vector<1x1024xf32>
    %8 = vector.broadcast %7 : vector<1x1024xf32> to vector<256x1024xf32>
    %9 = arith.addf %6, %8 : vector<256x1024xf32>
    %10 = arith.truncf %9 : vector<256x1024xf32> to vector<256x1024xbf16>
    %c0_10 = arith.constant 0 : index
    %c0_11 = arith.constant 0 : index
    %11 = vector.load %arg6[%c0_10, %c0_11] : memref<256x1024xbf16, #tpu.memory_space<vmem>>, vector<256x1024xbf16>
    tpu.vector_store %arg6[%c0_10, %c0_11], %10 {strides = array<i32>} : memref<256x1024xbf16, #tpu.memory_space<vmem>>, vector<256x1024xbf16>,
    return
  }
  func.func @transform_0(%arg0: i32) -> (i32, i32) {
    %c0_i32 = arith.constant 0 : i32
    %c0_i32_0 = arith.constant 0 : i32
    return %arg0, %c0_i32 : i32, i32
  }
  func.func @transform_1(%arg0: i32) -> (i32, i32) {
    %c0_i32 = arith.constant 0 : i32
    %c0_i32_0 = arith.constant 0 : i32
    %c0_i32_1 = arith.constant 0 : i32
    return %c0_i32, %c0_i32_0 : i32, i32
  }
  func.func @transform_2(%arg0: i32) -> (i32, i32) {
    %c0_i32 = arith.constant 0 : i32
    %c0_i32_0 = arith.constant 0 : i32
    return %arg0, %c0_i32 : i32, i32
  }
  func.func @transform_3(%arg0: i32) -> (i32, i32) {
    %c0_i32 = arith.constant 0 : i32
    %c0_i32_0 = arith.constant 0 : i32
    %c0_i32_1 = arith.constant 0 : i32
    return %c0_i32, %c0_i32_0 : i32, i32
  }
  func.func @transform_4(%arg0: i32) -> (i32, i32) {
    %c0_i32 = arith.constant 0 : i32
    %c0_i32_0 = arith.constant 0 : i32
    %c0_i32_1 = arith.constant 0 : i32
    return %c0_i32, %c0_i32_0 : i32, i32
  }
  func.func @transform_5(%arg0: i32) -> (i32, i32) {
    %c0_i32 = arith.constant 0 : i32
    %c0_i32_0 = arith.constant 0 : i32
    return %arg0, %c0_i32 : i32, i32
  }
}

module attributes {stable_mosaic.version = 11 : i64} {
  func.func @_enc_proj_kernel(%arg0: i32, %arg1: memref<128x1024xbf16, #tpu.memory_space<vmem>>, %arg2: memref<1024x128xbf16, #tpu.memory_space<vmem>>, %arg3: memref<1x128xf32, #tpu.memory_space<vmem>>, %arg4: memref<128x256xbf16, #tpu.memory_space<vmem>>, %arg5: memref<1x128xf32, #tpu.memory_space<vmem>>, %arg6: memref<128x128xbf16, #tpu.memory_space<vmem>>, %arg7: memref<128x128xbf16, #tpu.memory_space<vmem>>) attributes {dimension_semantics = [#tpu.dimension_semantics<parallel>], iteration_bounds = array<i64: 1>, scalar_prefetch = 0 : i64, scratch_operands = 0 : i64, tpu.core_type = #tpu.core_type<tc>, window_params = [{transform_indices = @transform_0, window_bounds = array<i64: 128, 1024>}, {pipeline_mode = #tpu.pipeline_mode<synchronous>, transform_indices = @transform_1, window_bounds = array<i64: 1024, 128>}, {pipeline_mode = #tpu.pipeline_mode<synchronous>, transform_indices = @transform_2, window_bounds = array<i64: 1, 128>}, {pipeline_mode = #tpu.pipeline_mode<synchronous>, transform_indices = @transform_3, window_bounds = array<i64: 128, 256>}, {pipeline_mode = #tpu.pipeline_mode<synchronous>, transform_indices = @transform_4, window_bounds = array<i64: 1, 128>}, {transform_indices = @transform_5, window_bounds = array<i64: 128, 128>}, {transform_indices = @transform_6, window_bounds = array<i64: 128, 128>}]} {
    %c0 = arith.constant 0 : index
    %c0_0 = arith.constant 0 : index
    %0 = vector.load %arg1[%c0, %c0_0] : memref<128x1024xbf16, #tpu.memory_space<vmem>>, vector<128x1024xbf16>
    %c0_1 = arith.constant 0 : index
    %c0_2 = arith.constant 0 : index
    %1 = vector.load %arg2[%c0_1, %c0_2] : memref<1024x128xbf16, #tpu.memory_space<vmem>>, vector<1024x128xbf16>
    %cst = arith.constant dense<0.000000e+00> : vector<128x128xf32>
    %2 = tpu.matmul %0, %1, %cst {dimension_numbers = #tpu.dot_dimension_numbers<[1], [0], [0], [1], [0, 0, 1, 1], [], []>} : vector<128x1024xbf16>, vector<1024x128xbf16>, vector<128x128xf32> -> vector<128x128xf32>
    %c0_3 = arith.constant 0 : index
    %c0_4 = arith.constant 0 : index
    %3 = vector.load %arg3[%c0_3, %c0_4] : memref<1x128xf32, #tpu.memory_space<vmem>>, vector<1x128xf32>
    %4 = vector.broadcast %3 : vector<1x128xf32> to vector<128x128xf32>
    %5 = arith.addf %2, %4 : vector<128x128xf32>
    %6 = math.tanh %5 : vector<128x128xf32>
    %7 = arith.truncf %6 : vector<128x128xf32> to vector<128x128xbf16>
    %c0_5 = arith.constant 0 : index
    %c0_6 = arith.constant 0 : index
    %8 = vector.load %arg4[%c0_5, %c0_6] : memref<128x256xbf16, #tpu.memory_space<vmem>>, vector<128x256xbf16>
    %cst_7 = arith.constant dense<0.000000e+00> : vector<128x256xf32>
    %9 = tpu.matmul %7, %8, %cst_7 {dimension_numbers = #tpu.dot_dimension_numbers<[1], [0], [0], [1], [0, 0, 1, 1], [], []>} : vector<128x128xbf16>, vector<128x256xbf16>, vector<128x256xf32> -> vector<128x256xf32>
    %10 = vector.extract_strided_slice %9 {offsets = [0, 0], sizes = [128, 128], strides = [1, 1]} : vector<128x256xf32> to vector<128x128xf32>
    %11 = arith.truncf %10 : vector<128x128xf32> to vector<128x128xbf16>
    %c0_8 = arith.constant 0 : index
    %c0_9 = arith.constant 0 : index
    %12 = vector.load %arg6[%c0_8, %c0_9] : memref<128x128xbf16, #tpu.memory_space<vmem>>, vector<128x128xbf16>
    tpu.vector_store %arg6[%c0_8, %c0_9], %11 {strides = array<i32>} : memref<128x128xbf16, #tpu.memory_space<vmem>>, vector<128x128xbf16>,
    %13 = vector.extract_strided_slice %9 {offsets = [0, 128], sizes = [128, 128], strides = [1, 1]} : vector<128x256xf32> to vector<128x128xf32>
    %c0_10 = arith.constant 0 : index
    %c0_11 = arith.constant 0 : index
    %14 = vector.load %arg5[%c0_10, %c0_11] : memref<1x128xf32, #tpu.memory_space<vmem>>, vector<1x128xf32>
    %15 = vector.broadcast %14 : vector<1x128xf32> to vector<128x128xf32>
    %16 = arith.addf %13, %15 : vector<128x128xf32>
    %17 = arith.truncf %16 : vector<128x128xf32> to vector<128x128xbf16>
    %c0_12 = arith.constant 0 : index
    %c0_13 = arith.constant 0 : index
    %18 = vector.load %arg7[%c0_12, %c0_13] : memref<128x128xbf16, #tpu.memory_space<vmem>>, vector<128x128xbf16>
    tpu.vector_store %arg7[%c0_12, %c0_13], %17 {strides = array<i32>} : memref<128x128xbf16, #tpu.memory_space<vmem>>, vector<128x128xbf16>,
    return
  }
  func.func @transform_0(%arg0: i32) -> (i32, i32) {
    %c0_i32 = arith.constant 0 : i32
    %c0_i32_0 = arith.constant 0 : i32
    return %arg0, %c0_i32 : i32, i32
  }
  func.func @transform_1(%arg0: i32) -> (i32, i32) {
    %c0_i32 = arith.constant 0 : i32
    %c0_i32_0 = arith.constant 0 : i32
    %c0_i32_1 = arith.constant 0 : i32
    return %c0_i32, %c0_i32_0 : i32, i32
  }
  func.func @transform_2(%arg0: i32) -> (i32, i32) {
    %c0_i32 = arith.constant 0 : i32
    %c0_i32_0 = arith.constant 0 : i32
    %c0_i32_1 = arith.constant 0 : i32
    return %c0_i32, %c0_i32_0 : i32, i32
  }
  func.func @transform_3(%arg0: i32) -> (i32, i32) {
    %c0_i32 = arith.constant 0 : i32
    %c0_i32_0 = arith.constant 0 : i32
    %c0_i32_1 = arith.constant 0 : i32
    return %c0_i32, %c0_i32_0 : i32, i32
  }
  func.func @transform_4(%arg0: i32) -> (i32, i32) {
    %c0_i32 = arith.constant 0 : i32
    %c0_i32_0 = arith.constant 0 : i32
    %c0_i32_1 = arith.constant 0 : i32
    return %c0_i32, %c0_i32_0 : i32, i32
  }
  func.func @transform_5(%arg0: i32) -> (i32, i32) {
    %c0_i32 = arith.constant 0 : i32
    %c0_i32_0 = arith.constant 0 : i32
    return %arg0, %c0_i32 : i32, i32
  }
  func.func @transform_6(%arg0: i32) -> (i32, i32) {
    %c0_i32 = arith.constant 0 : i32
    %c0_i32_0 = arith.constant 0 : i32
    return %arg0, %c0_i32 : i32, i32
  }
}

module attributes {stable_mosaic.version = 11 : i64} {
  func.func @_handshake_band_kernel(%arg0: i32, %arg1: i32, %arg2: memref<1x8x128xbf16, #tpu.memory_space<vmem>>, %arg3: memref<1x24x128xbf16, #tpu.memory_space<vmem>>, %arg4: memref<128x128xbf16, #tpu.memory_space<vmem>>, %arg5: memref<1x128xf32, #tpu.memory_space<vmem>>, %arg6: memref<1x4x8x128xbf16, #tpu.memory_space<vmem>>, %arg7: memref<32x128xbf16, #tpu.memory_space<vmem>>) attributes {dimension_semantics = [#tpu.dimension_semantics<parallel>, #tpu.dimension_semantics<parallel>], iteration_bounds = array<i64: 16, 1>, scalar_prefetch = 0 : i64, scratch_operands = 1 : i64, tpu.core_type = #tpu.core_type<tc>, window_params = [{transform_indices = @transform_0, window_bounds = array<i64: 1, 8, 128>}, {transform_indices = @transform_1, window_bounds = array<i64: 1, 24, 128>}, {pipeline_mode = #tpu.pipeline_mode<synchronous>, transform_indices = @transform_2, window_bounds = array<i64: 128, 128>}, {pipeline_mode = #tpu.pipeline_mode<synchronous>, transform_indices = @transform_3, window_bounds = array<i64: 1, 128>}, {transform_indices = @transform_4, window_bounds = array<i64: 1, 4, 8, 128>}]} {
    %c8_i32 = arith.constant 8 : i32
    %0 = arith.muli %arg1, %c8_i32 : i32
    %1 = tpu.assume_multiple %0, 8 : i32
    %c0 = arith.constant 0 : index
    %c0_0 = arith.constant 0 : index
    %c0_1 = arith.constant 0 : index
    %2 = vector.load %arg2[%c0, %c0_0, %c0_1] : memref<1x8x128xbf16, #tpu.memory_space<vmem>>, vector<1x8x128xbf16>
    %3 = vector.shape_cast %2 : vector<1x8x128xbf16> to vector<8x128xbf16>
    %c0_2 = arith.constant 0 : index
    %4 = arith.index_cast %1 : i32 to index
    %c0_3 = arith.constant 0 : index
    %5 = vector.load %arg3[%c0_2, %4, %c0_3] : memref<1x24x128xbf16, #tpu.memory_space<vmem>>, vector<1x16x128xbf16>
    %6 = vector.shape_cast %5 : vector<1x16x128xbf16> to vector<16x128xbf16>
    %7 = vector.extract_strided_slice %6 {offsets = [0, 0], sizes = [8, 128], strides = [1, 1]} : vector<16x128xbf16> to vector<8x128xbf16>
    %8 = arith.addf %3, %7 : vector<8x128xbf16>
    %9 = math.tanh %8 : vector<8x128xbf16>
    %c0_4 = arith.constant 0 : index
    %c0_5 = arith.constant 0 : index
    %10 = vector.load %arg7[%c0_4, %c0_5] : memref<32x128xbf16, #tpu.memory_space<vmem>>, vector<8x128xbf16>
    tpu.vector_store %arg7[%c0_4, %c0_5], %9 {strides = array<i32>} : memref<32x128xbf16, #tpu.memory_space<vmem>>, vector<8x128xbf16>,
    %11 = vector.extract_strided_slice %6 {offsets = [1, 0], sizes = [8, 128], strides = [1, 1]} : vector<16x128xbf16> to vector<8x128xbf16>
    %12 = arith.addf %3, %11 : vector<8x128xbf16>
    %13 = math.tanh %12 : vector<8x128xbf16>
    %c8 = arith.constant 8 : index
    %c0_6 = arith.constant 0 : index
    %14 = vector.load %arg7[%c8, %c0_6] : memref<32x128xbf16, #tpu.memory_space<vmem>>, vector<8x128xbf16>
    tpu.vector_store %arg7[%c8, %c0_6], %13 {strides = array<i32>} : memref<32x128xbf16, #tpu.memory_space<vmem>>, vector<8x128xbf16>,
    %15 = vector.extract_strided_slice %6 {offsets = [2, 0], sizes = [8, 128], strides = [1, 1]} : vector<16x128xbf16> to vector<8x128xbf16>
    %16 = arith.addf %3, %15 : vector<8x128xbf16>
    %17 = math.tanh %16 : vector<8x128xbf16>
    %c16 = arith.constant 16 : index
    %c0_7 = arith.constant 0 : index
    %18 = vector.load %arg7[%c16, %c0_7] : memref<32x128xbf16, #tpu.memory_space<vmem>>, vector<8x128xbf16>
    tpu.vector_store %arg7[%c16, %c0_7], %17 {strides = array<i32>} : memref<32x128xbf16, #tpu.memory_space<vmem>>, vector<8x128xbf16>,
    %19 = vector.extract_strided_slice %6 {offsets = [3, 0], sizes = [8, 128], strides = [1, 1]} : vector<16x128xbf16> to vector<8x128xbf16>
    %20 = arith.addf %3, %19 : vector<8x128xbf16>
    %21 = math.tanh %20 : vector<8x128xbf16>
    %c24 = arith.constant 24 : index
    %c0_8 = arith.constant 0 : index
    %22 = vector.load %arg7[%c24, %c0_8] : memref<32x128xbf16, #tpu.memory_space<vmem>>, vector<8x128xbf16>
    tpu.vector_store %arg7[%c24, %c0_8], %21 {strides = array<i32>} : memref<32x128xbf16, #tpu.memory_space<vmem>>, vector<8x128xbf16>,
    %c0_9 = arith.constant 0 : index
    %c0_10 = arith.constant 0 : index
    %23 = vector.load %arg7[%c0_9, %c0_10] : memref<32x128xbf16, #tpu.memory_space<vmem>>, vector<32x128xbf16>
    %c0_11 = arith.constant 0 : index
    %c0_12 = arith.constant 0 : index
    %24 = vector.load %arg4[%c0_11, %c0_12] : memref<128x128xbf16, #tpu.memory_space<vmem>>, vector<128x128xbf16>
    %cst = arith.constant dense<0.000000e+00> : vector<32x128xf32>
    %25 = tpu.matmul %23, %24, %cst {dimension_numbers = #tpu.dot_dimension_numbers<[1], [0], [0], [1], [0, 0, 1, 1], [], []>} : vector<32x128xbf16>, vector<128x128xbf16>, vector<32x128xf32> -> vector<32x128xf32>
    %c0_13 = arith.constant 0 : index
    %c0_14 = arith.constant 0 : index
    %26 = vector.load %arg5[%c0_13, %c0_14] : memref<1x128xf32, #tpu.memory_space<vmem>>, vector<1x128xf32>
    %27 = vector.broadcast %26 : vector<1x128xf32> to vector<32x128xf32>
    %28 = arith.addf %25, %27 : vector<32x128xf32>
    %29 = vector.shape_cast %28 : vector<32x128xf32> to vector<4x8x128xf32>
    %30 = arith.truncf %29 : vector<4x8x128xf32> to vector<4x8x128xbf16>
    %c0_15 = arith.constant 0 : index
    %c0_16 = arith.constant 0 : index
    %c0_17 = arith.constant 0 : index
    %c0_18 = arith.constant 0 : index
    %31 = vector.load %arg6[%c0_15, %c0_16, %c0_17, %c0_18] : memref<1x4x8x128xbf16, #tpu.memory_space<vmem>>, vector<1x4x8x128xbf16>
    %32 = vector.shape_cast %31 : vector<1x4x8x128xbf16> to vector<4x8x128xbf16>
    %33 = vector.shape_cast %30 : vector<4x8x128xbf16> to vector<1x4x8x128xbf16>
    tpu.vector_store %arg6[%c0_15, %c0_16, %c0_17, %c0_18], %33 {strides = array<i32>} : memref<1x4x8x128xbf16, #tpu.memory_space<vmem>>, vector<1x4x8x128xbf16>,
    return
  }
  func.func @transform_0(%arg0: i32, %arg1: i32) -> (i32, i32, i32) {
    %c0_i32 = arith.constant 0 : i32
    %c0_i32_0 = arith.constant 0 : i32
    return %arg0, %arg1, %c0_i32 : i32, i32, i32
  }
  func.func @transform_1(%arg0: i32, %arg1: i32) -> (i32, i32, i32) {
    %c0_i32 = arith.constant 0 : i32
    %c0_i32_0 = arith.constant 0 : i32
    %c0_i32_1 = arith.constant 0 : i32
    return %arg0, %c0_i32, %c0_i32_0 : i32, i32, i32
  }
  func.func @transform_2(%arg0: i32, %arg1: i32) -> (i32, i32) {
    %c0_i32 = arith.constant 0 : i32
    %c0_i32_0 = arith.constant 0 : i32
    %c0_i32_1 = arith.constant 0 : i32
    return %c0_i32, %c0_i32_0 : i32, i32
  }
  func.func @transform_3(%arg0: i32, %arg1: i32) -> (i32, i32) {
    %c0_i32 = arith.constant 0 : i32
    %c0_i32_0 = arith.constant 0 : i32
    %c0_i32_1 = arith.constant 0 : i32
    return %c0_i32, %c0_i32_0 : i32, i32
  }
  func.func @transform_4(%arg0: i32, %arg1: i32) -> (i32, i32, i32, i32) {
    %c0_i32 = arith.constant 0 : i32
    %c0_i32_0 = arith.constant 0 : i32
    %c0_i32_1 = arith.constant 0 : i32
    return %arg0, %c0_i32, %arg1, %c0_i32_0 : i32, i32, i32, i32
  }
}

</mosaic_0001>

<llo_original>
// kernel: a_call__.7
$region0: #{a_call__.7}
  #allocation0 [shape = 'u32[]', space=smem, size = 0x4, offset = 0x4, fixed_abs, tag = 'smem constant byte address 0x4 - core index']
  #allocation1 [shape = 'u32[144,128]{1,0:T(1,128)}', space=vmem, size = 0x12000, scoped, tag = 'internal scratch']
  #allocation2 [shape = 'f32[16,128]{1,0:T(8,128)}', space=vmem, size = 0x2000, scoped, tag = 'scratch operand']
  #allocation3 [shape = 'f32[16,128]{1,0:T(8,128)}', space=vmem, size = 0x2000, scoped, tag = 'scratch operand']
  #allocation4 [shape = 'f32[16,128]{1,0:T(8,128)}', space=vmem, size = 0x2000, scoped, tag = 'scratch operand']
  #allocation5 [shape = 'f32[16,128]{1,0:T(8,128)}', space=vmem, size = 0x2000, scoped, tag = 'scratch operand']
  %s0 = inlined_call_operand.vmem [shape: bf16[32,16,1024], index: 0, kind: input, shape index: {}, may-alias: {0,1}]
  %s1 = inlined_call_operand.vmem [shape: bf16[32,16,1024], index: 1, kind: input, shape index: {}, may-alias: {0,1}]
  %s2 = inlined_call_operand.vmem [shape: f32[128,512], index: 2, kind: input, shape index: {}]
  %s3 = inlined_call_operand.vmem [shape: f32[128,512], index: 3, kind: input, shape index: {}]
  %s4 = inlined_call_operand.vmem [shape: bf16[32,16,128], index: 4, kind: output, shape index: {0}]
  %s5 = inlined_call_operand.vmem [shape: bf16[32,16,128], index: 5, kind: output, shape index: {1}]
  %6 = xla_tuple %s4, %s5
  %s7 = sld [smem:[#allocation0]]
  $region91: #{a_call__.7} parent=0
    _
  %s9 = ssub.s32 1, %s7
  %s10 = scalar_select 0, %s9, %s7
  $region1: #{a_call__.7} parent=0
    #allocation6 [shape = 'u8[524288]{0}', space=vmem, size = 0x80000, scoped, tag = 'input window, operand 0, single buffered']
    #allocation7 [shape = 'u8[524288]{0}', space=vmem, size = 0x80000, scoped, tag = 'input window, operand 1, single buffered']
    // Predicated region
    $region2: #{a_call__.7} parent=1 // pred_check
      _
    $region3: #{a_call__.7} parent=1 // pred_check_branch
      %12 = sbr.rel (0) target = $region5
    $region4: #{a_call__.7} parent=1 // pred_region
      // Predicated region
      $region6: #{a_call__.7} parent=4 // pred_check
        _
      $region7: #{a_call__.7} parent=4 // pred_check_branch
        %14 = sbr.rel (0) target = $region9
      $region8: #{a_call__.7} parent=4 // pred_region
        // Predicated region
        $region10: #{a_call__.7} parent=8 // pred_check
          _
        $region11: #{a_call__.7} parent=8 // pred_check_branch
          %16 = sbr.rel (0) target = $region13
        $region12: #{a_call__.7} parent=8 // pred_region
          loop: start=0, step=1, limit=1
          $region14: #{a_call__.7} parent=12 // loop_pre_header
            _
          $region15: #{a_call__.7} parent=12 // loop_header
            %s18 = sphi 0, %s22
            %p19 = scmp.ge.s32.totalorder %s18, 1
            %s23 = sphi %s0, %s0
            %s24 = sphi [#allocation6], [#allocation6]
          $region16: #{a_call__.7} parent=12 // loop_header_branch
            %21 = sbr.rel (%p19) target = $region20
          $region17: #{a_call__.7} parent=12 // loop_body
            %v25 = vld [vmem:[%s23] sm:$0xff]
            %26 = vst [vmem:[%s24] sm:$0xff] %v25
            %v27 = vld [vmem:[%s23 + $0x8] sm:$0xff]
            %28 = vst [vmem:[%s24 + $0x8] sm:$0xff] %v27
            %v29 = vld [vmem:[%s23 + $0x20] sm:$0xff]
            %30 = vst [vmem:[%s24 + $0x10] sm:$0xff] %v29
            %v31 = vld [vmem:[%s23 + $0x28] sm:$0xff]
            %32 = vst [vmem:[%s24 + $0x18] sm:$0xff] %v31
            %v33 = vld [vmem:[%s23 + $0x40] sm:$0xff]
            %34 = vst [vmem:[%s24 + $0x20] sm:$0xff] %v33
            %v35 = vld [vmem:[%s23 + $0x48] sm:$0xff]
            %36 = vst [vmem:[%s24 + $0x28] sm:$0xff] %v35
            %v37 = vld [vmem:[%s23 + $0x60] sm:$0xff]
            %38 = vst [vmem:[%s24 + $0x30] sm:$0xff] %v37
            %v39 = vld [vmem:[%s23 + $0x68] sm:$0xff]
            %40 = vst [vmem:[%s24 + $0x38] sm:$0xff] %v39
            %v41 = vld [vmem:[%s23 + $0x80] sm:$0xff]
            %42 = vst [vmem:[%s24 + $0x40] sm:$0xff] %v41
            %v43 = vld [vmem:[%s23 + $0x88] sm:$0xff]
            %44 = vst [vmem:[%s24 + $0x48] sm:$0xff] %v43
            %v45 = vld [vmem:[%s23 + $0xa0] sm:$0xff]
            %46 = vst [vmem:[%s24 + $0x50] sm:$0xff] %v45
            %v47 = vld [vmem:[%s23 + $0xa8] sm:$0xff]
            %48 = vst [vmem:[%s24 + $0x58] sm:$0xff] %v47
            %v49 = vld [vmem:[%s23 + $0xc0] sm:$0xff]
            %50 = vst [vmem:[%s24 + $0x60] sm:$0xff] %v49
            %v51 = vld [vmem:[%s23 + $0xc8] sm:$0xff]
            %52 = vst [vmem:[%s24 + $0x68] sm:$0xff] %v51
            %v53 = vld [vmem:[%s23 + $0xe0] sm:$0xff]
            %54 = vst [vmem:[%s24 + $0x70] sm:$0xff] %v53
            %v55 = vld [vmem:[%s23 + $0xe8] sm:$0xff]
            %56 = vst [vmem:[%s24 + $0x78] sm:$0xff] %v55
            %v57 = vld [vmem:[%s23 + $0x100] sm:$0xff]
            %58 = vst [vmem:[%s24 + $0x80] sm:$0xff] %v57
            %v59 = vld [vmem:[%s23 + $0x108] sm:$0xff]
            %60 = vst [vmem:[%s24 + $0x88] sm:$0xff] %v59
            %v61 = vld [vmem:[%s23 + $0x120] sm:$0xff]
            %62 = vst [vmem:[%s24 + $0x90] sm:$0xff] %v61
            %v63 = vld [vmem:[%s23 + $0x128] sm:$0xff]
            %64 = vst [vmem:[%s24 + $0x98] sm:$0xff] %v63
            %v65 = vld [vmem:[%s23 + $0x140] sm:$0xff]
            %66 = vst [vmem:[%s24 + $0xa0] sm:$0xff] %v65
            %v67 = vld [vmem:[%s23 + $0x148] sm:$0xff]
            %68 = vst [vmem:[%s24 + $0xa8] sm:$0xff] %v67
            %v69 = vld [vmem:[%s23 + $0x160] sm:$0xff]
            %70 = vst [vmem:[%s24 + $0xb0] sm:$0xff] %v69
            %v71 = vld [vmem:[%s23 + $0x168] sm:$0xff]
            %72 = vst [vmem:[%s24 + $0xb8] sm:$0xff] %v71
            %v73 = vld [vmem:[%s23 + $0x180] sm:$0xff]
            %74 = vst [vmem:[%s24 + $0xc0] sm:$0xff] %v73
            %v75 = vld [vmem:[%s23 + $0x188] sm:$0xff]
            %76 = vst [vmem:[%s24 + $0xc8] sm:$0xff] %v75
            %v77 = vld [vmem:[%s23 + $0x1a0] sm:$0xff]
            %78 = vst [vmem:[%s24 + $0xd0] sm:$0xff] %v77
            %v79 = vld [vmem:[%s23 + $0x1a8] sm:$0xff]
            %80 = vst [vmem:[%s24 + $0xd8] sm:$0xff] %v79
            %v81 = vld [vmem:[%s23 + $0x1c0] sm:$0xff]
            %82 = vst [vmem:[%s24 + $0xe0] sm:$0xff] %v81
            %v83 = vld [vmem:[%s23 + $0x1c8] sm:$0xff]
            %84 = vst [vmem:[%s24 + $0xe8] sm:$0xff] %v83
            %v85 = vld [vmem:[%s23 + $0x1e0] sm:$0xff]
            %86 = vst [vmem:[%s24 + $0xf0] sm:$0xff] %v85
            %v87 = vld [vmem:[%s23 + $0x1e8] sm:$0xff]
            %88 = vst [vmem:[%s24 + $0xf8] sm:$0xff] %v87
            %v89 = vld [vmem:[%s23 + $0x200] sm:$0xff]
            %90 = vst [vmem:[%s24 + $0x100] sm:$0xff] %v89
            %v91 = vld [vmem:[%s23 + $0x208] sm:$0xff]
            %92 = vst [vmem:[%s24 + $0x108] sm:$0xff] %v91
            %v93 = vld [vmem:[%s23 + $0x220] sm:$0xff]
            %94 = vst [vmem:[%s24 + $0x110] sm:$0xff] %v93
            %v95 = vld [vmem:[%s23 + $0x228] sm:$0xff]
            %96 = vst [vmem:[%s24 + $0x118] sm:$0xff] %v95
            %v97 = vld [vmem:[%s23 + $0x240] sm:$0xff]
            %98 = vst [vmem:[%s24 + $0x120] sm:$0xff] %v97
            %v99 = vld [vmem:[%s23 + $0x248] sm:$0xff]
            %100 = vst [vmem:[%s24 + $0x128] sm:$0xff] %v99
            %v101 = vld [vmem:[%s23 + $0x260] sm:$0xff]
            %102 = vst [vmem:[%s24 + $0x130] sm:$0xff] %v101
            %v103 = vld [vmem:[%s23 + $0x268] sm:$0xff]
            %104 = vst [vmem:[%s24 + $0x138] sm:$0xff] %v103
            %v105 = vld [vmem:[%s23 + $0x280] sm:$0xff]
            %106 = vst [vmem:[%s24 + $0x140] sm:$0xff] %v105
            %v107 = vld [vmem:[%s23 + $0x288] sm:$0xff]
            %108 = vst [vmem:[%s24 + $0x148] sm:$0xff] %v107
            %v109 = vld [vmem:[%s23 + $0x2a0] sm:$0xff]
            %110 = vst [vmem:[%s24 + $0x150] sm:$0xff] %v109
            %v111 = vld [vmem:[%s23 + $0x2a8] sm:$0xff]
            %112 = vst [vmem:[%s24 + $0x158] sm:$0xff] %v111
            %v113 = vld [vmem:[%s23 + $0x2c0] sm:$0xff]
            %114 = vst [vmem:[%s24 + $0x160] sm:$0xff] %v113
            %v115 = vld [vmem:[%s23 + $0x2c8] sm:$0xff]
            %116 = vst [vmem:[%s24 + $0x168] sm:$0xff] %v115
            %v117 = vld [vmem:[%s23 + $0x2e0] sm:$0xff]
            %118 = vst [vmem:[%s24 + $0x170] sm:$0xff] %v117
            %v119 = vld [vmem:[%s23 + $0x2e8] sm:$0xff]
            %120 = vst [vmem:[%s24 + $0x178] sm:$0xff] %v119
            %v121 = vld [vmem:[%s23 + $0x300] sm:$0xff]
            %122 = vst [vmem:[%s24 + $0x180] sm:$0xff] %v121
            %v123 = vld [vmem:[%s23 + $0x308] sm:$0xff]
            %124 = vst [vmem:[%s24 + $0x188] sm:$0xff] %v123
            %v125 = vld [vmem:[%s23 + $0x320] sm:$0xff]
            %126 = vst [vmem:[%s24 + $0x190] sm:$0xff] %v125
            %v127 = vld [vmem:[%s23 + $0x328] sm:$0xff]
            %128 = vst [vmem:[%s24 + $0x198] sm:$0xff] %v127
            %v129 = vld [vmem:[%s23 + $0x340] sm:$0xff]
            %130 = vst [vmem:[%s24 + $0x1a0] sm:$0xff] %v129
            %v131 = vld [vmem:[%s23 + $0x348] sm:$0xff]
            %132 = vst [vmem:[%s24 + $0x1a8] sm:$0xff] %v131
            %v133 = vld [vmem:[%s23 + $0x360] sm:$0xff]
            %134 = vst [vmem:[%s24 + $0x1b0] sm:$0xff] %v133
            %v135 = vld [vmem:[%s23 + $0x368] sm:$0xff]
            %136 = vst [vmem:[%s24 + $0x1b8] sm:$0xff] %v135
            %v137 = vld [vmem:[%s23 + $0x380] sm:$0xff]
            %138 = vst [vmem:[%s24 + $0x1c0] sm:$0xff] %v137
            %v139 = vld [vmem:[%s23 + $0x388] sm:$0xff]
            %140 = vst [vmem:[%s24 + $0x1c8] sm:$0xff] %v139
            %v141 = vld [vmem:[%s23 + $0x3a0] sm:$0xff]
            %142 = vst [vmem:[%s24 + $0x1d0] sm:$0xff] %v141
            %v143 = vld [vmem:[%s23 + $0x3a8] sm:$0xff]
            %144 = vst [vmem:[%s24 + $0x1d8] sm:$0xff] %v143
            %v145 = vld [vmem:[%s23 + $0x3c0] sm:$0xff]
            %146 = vst [vmem:[%s24 + $0x1e0] sm:$0xff] %v145
            %v147 = vld [vmem:[%s23 + $0x3c8] sm:$0xff]
            %148 = vst [vmem:[%s24 + $0x1e8] sm:$0xff] %v147
            %v149 = vld [vmem:[%s23 + $0x3e0] sm:$0xff]
            %150 = vst [vmem:[%s24 + $0x1f0] sm:$0xff] %v149
            %v151 = vld [vmem:[%s23 + $0x3e8] sm:$0xff]
            %152 = vst [vmem:[%s24 + $0x1f8] sm:$0xff] %v151
            %v153 = vld [vmem:[%s23 + $0x400] sm:$0xff]
            %154 = vst [vmem:[%s24 + $0x200] sm:$0xff] %v153
            %v155 = vld [vmem:[%s23 + $0x408] sm:$0xff]
            %156 = vst [vmem:[%s24 + $0x208] sm:$0xff] %v155
            %v157 = vld [vmem:[%s23 + $0x420] sm:$0xff]
            %158 = vst [vmem:[%s24 + $0x210] sm:$0xff] %v157
            %v159 = vld [vmem:[%s23 + $0x428] sm:$0xff]
            %160 = vst [vmem:[%s24 + $0x218] sm:$0xff] %v159
            %v161 = vld [vmem:[%s23 + $0x440] sm:$0xff]
            %162 = vst [vmem:[%s24 + $0x220] sm:$0xff] %v161
            %v163 = vld [vmem:[%s23 + $0x448] sm:$0xff]
            %164 = vst [vmem:[%s24 + $0x228] sm:$0xff] %v163
            %v165 = vld [vmem:[%s23 + $0x460] sm:$0xff]
            %166 = vst [vmem:[%s24 + $0x230] sm:$0xff] %v165
            %v167 = vld [vmem:[%s23 + $0x468] sm:$0xff]
            %168 = vst [vmem:[%s24 + $0x238] sm:$0xff] %v167
            %v169 = vld [vmem:[%s23 + $0x480] sm:$0xff]
            %170 = vst [vmem:[%s24 + $0x240] sm:$0xff] %v169
            %v171 = vld [vmem:[%s23 + $0x488] sm:$0xff]
            %172 = vst [vmem:[%s24 + $0x248] sm:$0xff] %v171
            %v173 = vld [vmem:[%s23 + $0x4a0] sm:$0xff]
            %174 = vst [vmem:[%s24 + $0x250] sm:$0xff] %v173
            %v175 = vld [vmem:[%s23 + $0x4a8] sm:$0xff]
            %176 = vst [vmem:[%s24 + $0x258] sm:$0xff] %v175
            %v177 = vld [vmem:[%s23 + $0x4c0] sm:$0xff]
            %178 = vst [vmem:[%s24 + $0x260] sm:$0xff] %v177
            %v179 = vld [vmem:[%s23 + $0x4c8] sm:$0xff]
            %180 = vst [vmem:[%s24 + $0x268] sm:$0xff] %v179
            %v181 = vld [vmem:[%s23 + $0x4e0] sm:$0xff]
            %182 = vst [vmem:[%s24 + $0x270] sm:$0xff] %v181
            %v183 = vld [vmem:[%s23 + $0x4e8] sm:$0xff]
            %184 = vst [vmem:[%s24 + $0x278] sm:$0xff] %v183
            %v185 = vld [vmem:[%s23 + $0x500] sm:$0xff]
            %186 = vst [vmem:[%s24 + $0x280] sm:$0xff] %v185
            %v187 = vld [vmem:[%s23 + $0x508] sm:$0xff]
            %188 = vst [vmem:[%s24 + $0x288] sm:$0xff] %v187
            %v189 = vld [vmem:[%s23 + $0x520] sm:$0xff]
            %190 = vst [vmem:[%s24 + $0x290] sm:$0xff] %v189
            %v191 = vld [vmem:[%s23 + $0x528] sm:$0xff]
            %192 = vst [vmem:[%s24 + $0x298] sm:$0xff] %v191
            %v193 = vld [vmem:[%s23 + $0x540] sm:$0xff]
            %194 = vst [vmem:[%s24 + $0x2a0] sm:$0xff] %v193
            %v195 = vld [vmem:[%s23 + $0x548] sm:$0xff]
            %196 = vst [vmem:[%s24 + $0x2a8] sm:$0xff] %v195
            %v197 = vld [vmem:[%s23 + $0x560] sm:$0xff]
            %198 = vst [vmem:[%s24 + $0x2b0] sm:$0xff] %v197
            %v199 = vld [vmem:[%s23 + $0x568] sm:$0xff]
            %200 = vst [vmem:[%s24 + $0x2b8] sm:$0xff] %v199
            %v201 = vld [vmem:[%s23 + $0x580] sm:$0xff]
            %202 = vst [vmem:[%s24 + $0x2c0] sm:$0xff] %v201
            %v203 = vld [vmem:[%s23 + $0x588] sm:$0xff]
            %204 = vst [vmem:[%s24 + $0x2c8] sm:$0xff] %v203
            %v205 = vld [vmem:[%s23 + $0x5a0] sm:$0xff]
            %206 = vst [vmem:[%s24 + $0x2d0] sm:$0xff] %v205
            %v207 = vld [vmem:[%s23 + $0x5a8] sm:$0xff]
            %208 = vst [vmem:[%s24 + $0x2d8] sm:$0xff] %v207
            %v209 = vld [vmem:[%s23 + $0x5c0] sm:$0xff]
            %210 = vst [vmem:[%s24 + $0x2e0] sm:$0xff] %v209
            %v211 = vld [vmem:[%s23 + $0x5c8] sm:$0xff]
            %212 = vst [vmem:[%s24 + $0x2e8] sm:$0xff] %v211
            %v213 = vld [vmem:[%s23 + $0x5e0] sm:$0xff]
            %214 = vst [vmem:[%s24 + $0x2f0] sm:$0xff] %v213
            %v215 = vld [vmem:[%s23 + $0x5e8] sm:$0xff]
            %216 = vst [vmem:[%s24 + $0x2f8] sm:$0xff] %v215
            %v217 = vld [vmem:[%s23 + $0x600] sm:$0xff]
            %218 = vst [vmem:[%s24 + $0x300] sm:$0xff] %v217
            %v219 = vld [vmem:[%s23 + $0x608] sm:$0xff]
            %220 = vst [vmem:[%s24 + $0x308] sm:$0xff] %v219
            %v221 = vld [vmem:[%s23 + $0x620] sm:$0xff]
            %222 = vst [vmem:[%s24 + $0x310] sm:$0xff] %v221
            %v223 = vld [vmem:[%s23 + $0x628] sm:$0xff]
            %224 = vst [vmem:[%s24 + $0x318] sm:$0xff] %v223
            %v225 = vld [vmem:[%s23 + $0x640] sm:$0xff]
            %226 = vst [vmem:[%s24 + $0x320] sm:$0xff] %v225
            %v227 = vld [vmem:[%s23 + $0x648] sm:$0xff]
            %228 = vst [vmem:[%s24 + $0x328] sm:$0xff] %v227
            %v229 = vld [vmem:[%s23 + $0x660] sm:$0xff]
            %230 = vst [vmem:[%s24 + $0x330] sm:$0xff] %v229
            %v231 = vld [vmem:[%s23 + $0x668] sm:$0xff]
            %232 = vst [vmem:[%s24 + $0x338] sm:$0xff] %v231
            %v233 = vld [vmem:[%s23 + $0x680] sm:$0xff]
            %234 = vst [vmem:[%s24 + $0x340] sm:$0xff] %v233
            %v235 = vld [vmem:[%s23 + $0x688] sm:$0xff]
            %236 = vst [vmem:[%s24 + $0x348] sm:$0xff] %v235
            %v237 = vld [vmem:[%s23 + $0x6a0] sm:$0xff]
            %238 = vst [vmem:[%s24 + $0x350] sm:$0xff] %v237
            %v239 = vld [vmem:[%s23 + $0x6a8] sm:$0xff]
            %240 = vst [vmem:[%s24 + $0x358] sm:$0xff] %v239
            %v241 = vld [vmem:[%s23 + $0x6c0] sm:$0xff]
            %242 = vst [vmem:[%s24 + $0x360] sm:$0xff] %v241
            %v243 = vld [vmem:[%s23 + $0x6c8] sm:$0xff]
            %244 = vst [vmem:[%s24 + $0x368] sm:$0xff] %v243
            %v245 = vld [vmem:[%s23 + $0x6e0] sm:$0xff]
            %246 = vst [vmem:[%s24 + $0x370] sm:$0xff] %v245
            %v247 = vld [vmem:[%s23 + $0x6e8] sm:$0xff]
            %248 = vst [vmem:[%s24 + $0x378] sm:$0xff] %v247
            %v249 = vld [vmem:[%s23 + $0x700] sm:$0xff]
            %250 = vst [vmem:[%s24 + $0x380] sm:$0xff] %v249
            %v251 = vld [vmem:[%s23 + $0x708] sm:$0xff]
            %252 = vst [vmem:[%s24 + $0x388] sm:$0xff] %v251
            %v253 = vld [vmem:[%s23 + $0x720] sm:$0xff]
            %254 = vst [vmem:[%s24 + $0x390] sm:$0xff] %v253
            %v255 = vld [vmem:[%s23 + $0x728] sm:$0xff]
            %256 = vst [vmem:[%s24 + $0x398] sm:$0xff] %v255
            %v257 = vld [vmem:[%s23 + $0x740] sm:$0xff]
            %258 = vst [vmem:[%s24 + $0x3a0] sm:$0xff] %v257
            %v259 = vld [vmem:[%s23 + $0x748] sm:$0xff]
            %260 = vst [vmem:[%s24 + $0x3a8] sm:$0xff] %v259
            %v261 = vld [vmem:[%s23 + $0x760] sm:$0xff]
            %262 = vst [vmem:[%s24 + $0x3b0] sm:$0xff] %v261
            %v263 = vld [vmem:[%s23 + $0x768] sm:$0xff]
            %264 = vst [vmem:[%s24 + $0x3b8] sm:$0xff] %v263
            %v265 = vld [vmem:[%s23 + $0x780] sm:$0xff]
            %266 = vst [vmem:[%s24 + $0x3c0] sm:$0xff] %v265
            %v267 = vld [vmem:[%s23 + $0x788] sm:$0xff]
            %268 = vst [vmem:[%s24 + $0x3c8] sm:$0xff] %v267
            %v269 = vld [vmem:[%s23 + $0x7a0] sm:$0xff]
            %270 = vst [vmem:[%s24 + $0x3d0] sm:$0xff] %v269
            %v271 = vld [vmem:[%s23 + $0x7a8] sm:$0xff]
            %272 = vst [vmem:[%s24 + $0x3d8] sm:$0xff] %v271
            %v273 = vld [vmem:[%s23 + $0x7c0] sm:$0xff]
            %274 = vst [vmem:[%s24 + $0x3e0] sm:$0xff] %v273
            %v275 = vld [vmem:[%s23 + $0x7c8] sm:$0xff]
            %276 = vst [vmem:[%s24 + $0x3e8] sm:$0xff] %v275
            %v277 = vld [vmem:[%s23 + $0x7e0] sm:$0xff]
            %278 = vst [vmem:[%s24 + $0x3f0] sm:$0xff] %v277
            %v279 = vld [vmem:[%s23 + $0x7e8] sm:$0xff]
            %280 = vst [vmem:[%s24 + $0x3f8] sm:$0xff] %v279
          $region18: #{a_call__.7} parent=12 // loop_footer
            %s22 = sadd.s32 1, %s18
          $region19: #{a_call__.7} parent=12 // loop_footer_branch
            %17 = sbr.rel target = $region15
          $region20: #{a_call__.7} parent=12 // loop_exit
            _
        $region13: #{a_call__.7} parent=8 // pred_fallthru
          _
        // Predicated region
        $region21: #{a_call__.7} parent=8 // pred_check
          _
        $region22: #{a_call__.7} parent=8 // pred_check_branch
          %282 = sbr.rel target = $region24
        $region23: #{a_call__.7} parent=8 // pred_region
          _
        $region24: #{a_call__.7} parent=8 // pred_fallthru
          _
      $region9: #{a_call__.7} parent=4 // pred_fallthru
        _
      %283 = vnop
    $region5: #{a_call__.7} parent=1 // pred_fallthru
      _
    // Predicated region
    $region25: #{a_call__.7} parent=1 // pred_check
      _
    $region26: #{a_call__.7} parent=1 // pred_check_branch
      %285 = sbr.rel (0) target = $region28
    $region27: #{a_call__.7} parent=1 // pred_region
      %s286 = ssub.s32 0, 0
      %s287 = smul.u32 32, %s286
      %s288 = smul.addr %s287, 16
      %s289 = sadd.s32 4, %s288
      %s290 = smul.addr %s289, 4
      %s291 = scalar_lea.vmem %s1, %s290
      // Predicated region
      $region29: #{a_call__.7} parent=27 // pred_check
        _
      $region30: #{a_call__.7} parent=27 // pred_check_branch
        %293 = sbr.rel (0) target = $region32
      $region31: #{a_call__.7} parent=27 // pred_region
        // Predicated region
        $region33: #{a_call__.7} parent=31 // pred_check
          _
        $region34: #{a_call__.7} parent=31 // pred_check_branch
          %295 = sbr.rel (0) target = $region36
        $region35: #{a_call__.7} parent=31 // pred_region
          loop: start=0, step=1, limit=1
          $region37: #{a_call__.7} parent=35 // loop_pre_header
            _
          $region38: #{a_call__.7} parent=35 // loop_header
            %s297 = sphi 0, %s301
            %p298 = scmp.ge.s32.totalorder %s297, 1
            %s302 = sphi %s291, %s291
            %s303 = sphi [#allocation7], [#allocation7]
          $region39: #{a_call__.7} parent=35 // loop_header_branch
            %300 = sbr.rel (%p298) target = $region43
          $region40: #{a_call__.7} parent=35 // loop_body
            %v304 = vld [vmem:[%s302] sm:$0xff]
            %305 = vst [vmem:[%s303] sm:$0xff] %v304
            %v306 = vld [vmem:[%s302 + $0x8] sm:$0xff]
            %307 = vst [vmem:[%s303 + $0x8] sm:$0xff] %v306
            %v308 = vld [vmem:[%s302 + $0x20] sm:$0xff]
            %309 = vst [vmem:[%s303 + $0x10] sm:$0xff] %v308
            %v310 = vld [vmem:[%s302 + $0x28] sm:$0xff]
            %311 = vst [vmem:[%s303 + $0x18] sm:$0xff] %v310
            %v312 = vld [vmem:[%s302 + $0x40] sm:$0xff]
            %313 = vst [vmem:[%s303 + $0x20] sm:$0xff] %v312
            %v314 = vld [vmem:[%s302 + $0x48] sm:$0xff]
            %315 = vst [vmem:[%s303 + $0x28] sm:$0xff] %v314
            %v316 = vld [vmem:[%s302 + $0x60] sm:$0xff]
            %317 = vst [vmem:[%s303 + $0x30] sm:$0xff] %v316
            %v318 = vld [vmem:[%s302 + $0x68] sm:$0xff]
            %319 = vst [vmem:[%s303 + $0x38] sm:$0xff] %v318
            %v320 = vld [vmem:[%s302 + $0x80] sm:$0xff]
            %321 = vst [vmem:[%s303 + $0x40] sm:$0xff] %v320
            %v322 = vld [vmem:[%s302 + $0x88] sm:$0xff]
            %323 = vst [vmem:[%s303 + $0x48] sm:$0xff] %v322
            %v324 = vld [vmem:[%s302 + $0xa0] sm:$0xff]
            %325 = vst [vmem:[%s303 + $0x50] sm:$0xff] %v324
            %v326 = vld [vmem:[%s302 + $0xa8] sm:$0xff]
            %327 = vst [vmem:[%s303 + $0x58] sm:$0xff] %v326
            %v328 = vld [vmem:[%s302 + $0xc0] sm:$0xff]
            %329 = vst [vmem:[%s303 + $0x60] sm:$0xff] %v328
            %v330 = vld [vmem:[%s302 + $0xc8] sm:$0xff]
            %331 = vst [vmem:[%s303 + $0x68] sm:$0xff] %v330
            %v332 = vld [vmem:[%s302 + $0xe0] sm:$0xff]
            %333 = vst [vmem:[%s303 + $0x70] sm:$0xff] %v332
            %v334 = vld [vmem:[%s302 + $0xe8] sm:$0xff]
            %335 = vst [vmem:[%s303 + $0x78] sm:$0xff] %v334
            %v336 = vld [vmem:[%s302 + $0x100] sm:$0xff]
            %337 = vst [vmem:[%s303 + $0x80] sm:$0xff] %v336
            %v338 = vld [vmem:[%s302 + $0x108] sm:$0xff]
            %339 = vst [vmem:[%s303 + $0x88] sm:$0xff] %v338
            %v340 = vld [vmem:[%s302 + $0x120] sm:$0xff]
            %341 = vst [vmem:[%s303 + $0x90] sm:$0xff] %v340
            %v342 = vld [vmem:[%s302 + $0x128] sm:$0xff]
            %343 = vst [vmem:[%s303 + $0x98] sm:$0xff] %v342
            %v344 = vld [vmem:[%s302 + $0x140] sm:$0xff]
            %345 = vst [vmem:[%s303 + $0xa0] sm:$0xff] %v344
            %v346 = vld [vmem:[%s302 + $0x148] sm:$0xff]
            %347 = vst [vmem:[%s303 + $0xa8] sm:$0xff] %v346
            %v348 = vld [vmem:[%s302 + $0x160] sm:$0xff]
            %349 = vst [vmem:[%s303 + $0xb0] sm:$0xff] %v348
            %v350 = vld [vmem:[%s302 + $0x168] sm:$0xff]
            %351 = vst [vmem:[%s303 + $0xb8] sm:$0xff] %v350
            %v352 = vld [vmem:[%s302 + $0x180] sm:$0xff]
            %353 = vst [vmem:[%s303 + $0xc0] sm:$0xff] %v352
            %v354 = vld [vmem:[%s302 + $0x188] sm:$0xff]
            %355 = vst [vmem:[%s303 + $0xc8] sm:$0xff] %v354
            %v356 = vld [vmem:[%s302 + $0x1a0] sm:$0xff]
            %357 = vst [vmem:[%s303 + $0xd0] sm:$0xff] %v356
            %v358 = vld [vmem:[%s302 + $0x1a8] sm:$0xff]
            %359 = vst [vmem:[%s303 + $0xd8] sm:$0xff] %v358
            %v360 = vld [vmem:[%s302 + $0x1c0] sm:$0xff]
            %361 = vst [vmem:[%s303 + $0xe0] sm:$0xff] %v360
            %v362 = vld [vmem:[%s302 + $0x1c8] sm:$0xff]
            %363 = vst [vmem:[%s303 + $0xe8] sm:$0xff] %v362
            %v364 = vld [vmem:[%s302 + $0x1e0] sm:$0xff]
            %365 = vst [vmem:[%s303 + $0xf0] sm:$0xff] %v364
            %v366 = vld [vmem:[%s302 + $0x1e8] sm:$0xff]
            %367 = vst [vmem:[%s303 + $0xf8] sm:$0xff] %v366
            %v368 = vld [vmem:[%s302 + $0x200] sm:$0xff]
            %369 = vst [vmem:[%s303 + $0x100] sm:$0xff] %v368
            %v370 = vld [vmem:[%s302 + $0x208] sm:$0xff]
            %371 = vst [vmem:[%s303 + $0x108] sm:$0xff] %v370
            %v372 = vld [vmem:[%s302 + $0x220] sm:$0xff]
            %373 = vst [vmem:[%s303 + $0x110] sm:$0xff] %v372
            %v374 = vld [vmem:[%s302 + $0x228] sm:$0xff]
            %375 = vst [vmem:[%s303 + $0x118] sm:$0xff] %v374
            %v376 = vld [vmem:[%s302 + $0x240] sm:$0xff]
            %377 = vst [vmem:[%s303 + $0x120] sm:$0xff] %v376
            %v378 = vld [vmem:[%s302 + $0x248] sm:$0xff]
            %379 = vst [vmem:[%s303 + $0x128] sm:$0xff] %v378
            %v380 = vld [vmem:[%s302 + $0x260] sm:$0xff]
            %381 = vst [vmem:[%s303 + $0x130] sm:$0xff] %v380
            %v382 = vld [vmem:[%s302 + $0x268] sm:$0xff]
            %383 = vst [vmem:[%s303 + $0x138] sm:$0xff] %v382
            %v384 = vld [vmem:[%s302 + $0x280] sm:$0xff]
            %385 = vst [vmem:[%s303 + $0x140] sm:$0xff] %v384
            %v386 = vld [vmem:[%s302 + $0x288] sm:$0xff]
            %387 = vst [vmem:[%s303 + $0x148] sm:$0xff] %v386
            %v388 = vld [vmem:[%s302 + $0x2a0] sm:$0xff]
            %389 = vst [vmem:[%s303 + $0x150] sm:$0xff] %v388
            %v390 = vld [vmem:[%s302 + $0x2a8] sm:$0xff]
            %391 = vst [vmem:[%s303 + $0x158] sm:$0xff] %v390
            %v392 = vld [vmem:[%s302 + $0x2c0] sm:$0xff]
            %393 = vst [vmem:[%s303 + $0x160] sm:$0xff] %v392
            %v394 = vld [vmem:[%s302 + $0x2c8] sm:$0xff]
            %395 = vst [vmem:[%s303 + $0x168] sm:$0xff] %v394
            %v396 = vld [vmem:[%s302 + $0x2e0] sm:$0xff]
            %397 = vst [vmem:[%s303 + $0x170] sm:$0xff] %v396
            %v398 = vld [vmem:[%s302 + $0x2e8] sm:$0xff]
            %399 = vst [vmem:[%s303 + $0x178] sm:$0xff] %v398
            %v400 = vld [vmem:[%s302 + $0x300] sm:$0xff]
            %401 = vst [vmem:[%s303 + $0x180] sm:$0xff] %v400
            %v402 = vld [vmem:[%s302 + $0x308] sm:$0xff]
            %403 = vst [vmem:[%s303 + $0x188] sm:$0xff] %v402
            %v404 = vld [vmem:[%s302 + $0x320] sm:$0xff]
            %405 = vst [vmem:[%s303 + $0x190] sm:$0xff] %v404
            %v406 = vld [vmem:[%s302 + $0x328] sm:$0xff]
            %407 = vst [vmem:[%s303 + $0x198] sm:$0xff] %v406
            %v408 = vld [vmem:[%s302 + $0x340] sm:$0xff]
            %409 = vst [vmem:[%s303 + $0x1a0] sm:$0xff] %v408
            %v410 = vld [vmem:[%s302 + $0x348] sm:$0xff]
            %411 = vst [vmem:[%s303 + $0x1a8] sm:$0xff] %v410
            %v412 = vld [vmem:[%s302 + $0x360] sm:$0xff]
            %413 = vst [vmem:[%s303 + $0x1b0] sm:$0xff] %v412
            %v414 = vld [vmem:[%s302 + $0x368] sm:$0xff]
            %415 = vst [vmem:[%s303 + $0x1b8] sm:$0xff] %v414
            %v416 = vld [vmem:[%s302 + $0x380] sm:$0xff]
            %417 = vst [vmem:[%s303 + $0x1c0] sm:$0xff] %v416
            %v418 = vld [vmem:[%s302 + $0x388] sm:$0xff]
            %419 = vst [vmem:[%s303 + $0x1c8] sm:$0xff] %v418
            %v420 = vld [vmem:[%s302 + $0x3a0] sm:$0xff]
            %421 = vst [vmem:[%s303 + $0x1d0] sm:$0xff] %v420
            %v422 = vld [vmem:[%s302 + $0x3a8] sm:$0xff]
            %423 = vst [vmem:[%s303 + $0x1d8] sm:$0xff] %v422
            %v424 = vld [vmem:[%s302 + $0x3c0] sm:$0xff]
            %425 = vst [vmem:[%s303 + $0x1e0] sm:$0xff] %v424
            %v426 = vld [vmem:[%s302 + $0x3c8] sm:$0xff]
            %427 = vst [vmem:[%s303 + $0x1e8] sm:$0xff] %v426
            %v428 = vld [vmem:[%s302 + $0x3e0] sm:$0xff]
            %429 = vst [vmem:[%s303 + $0x1f0] sm:$0xff] %v428
            %v430 = vld [vmem:[%s302 + $0x3e8] sm:$0xff]
            %431 = vst [vmem:[%s303 + $0x1f8] sm:$0xff] %v430
            %v432 = vld [vmem:[%s302 + $0x400] sm:$0xff]
            %433 = vst [vmem:[%s303 + $0x200] sm:$0xff] %v432
            %v434 = vld [vmem:[%s302 + $0x408] sm:$0xff]
            %435 = vst [vmem:[%s303 + $0x208] sm:$0xff] %v434
            %v436 = vld [vmem:[%s302 + $0x420] sm:$0xff]
            %437 = vst [vmem:[%s303 + $0x210] sm:$0xff] %v436
            %v438 = vld [vmem:[%s302 + $0x428] sm:$0xff]
            %439 = vst [vmem:[%s303 + $0x218] sm:$0xff] %v438
            %v440 = vld [vmem:[%s302 + $0x440] sm:$0xff]
            %441 = vst [vmem:[%s303 + $0x220] sm:$0xff] %v440
            %v442 = vld [vmem:[%s302 + $0x448] sm:$0xff]
            %443 = vst [vmem:[%s303 + $0x228] sm:$0xff] %v442
            %v444 = vld [vmem:[%s302 + $0x460] sm:$0xff]
            %445 = vst [vmem:[%s303 + $0x230] sm:$0xff] %v444
            %v446 = vld [vmem:[%s302 + $0x468] sm:$0xff]
            %447 = vst [vmem:[%s303 + $0x238] sm:$0xff] %v446
            %v448 = vld [vmem:[%s302 + $0x480] sm:$0xff]
            %449 = vst [vmem:[%s303 + $0x240] sm:$0xff] %v448
            %v450 = vld [vmem:[%s302 + $0x488] sm:$0xff]
            %451 = vst [vmem:[%s303 + $0x248] sm:$0xff] %v450
            %v452 = vld [vmem:[%s302 + $0x4a0] sm:$0xff]
            %453 = vst [vmem:[%s303 + $0x250] sm:$0xff] %v452
            %v454 = vld [vmem:[%s302 + $0x4a8] sm:$0xff]
            %455 = vst [vmem:[%s303 + $0x258] sm:$0xff] %v454
            %v456 = vld [vmem:[%s302 + $0x4c0] sm:$0xff]
            %457 = vst [vmem:[%s303 + $0x260] sm:$0xff] %v456
            %v458 = vld [vmem:[%s302 + $0x4c8] sm:$0xff]
            %459 = vst [vmem:[%s303 + $0x268] sm:$0xff] %v458
            %v460 = vld [vmem:[%s302 + $0x4e0] sm:$0xff]
            %461 = vst [vmem:[%s303 + $0x270] sm:$0xff] %v460
            %v462 = vld [vmem:[%s302 + $0x4e8] sm:$0xff]
            %463 = vst [vmem:[%s303 + $0x278] sm:$0xff] %v462
            %v464 = vld [vmem:[%s302 + $0x500] sm:$0xff]
            %465 = vst [vmem:[%s303 + $0x280] sm:$0xff] %v464
            %v466 = vld [vmem:[%s302 + $0x508] sm:$0xff]
            %467 = vst [vmem:[%s303 + $0x288] sm:$0xff] %v466
            %v468 = vld [vmem:[%s302 + $0x520] sm:$0xff]
            %469 = vst [vmem:[%s303 + $0x290] sm:$0xff] %v468
            %v470 = vld [vmem:[%s302 + $0x528] sm:$0xff]
            %471 = vst [vmem:[%s303 + $0x298] sm:$0xff] %v470
            %v472 = vld [vmem:[%s302 + $0x540] sm:$0xff]
            %473 = vst [vmem:[%s303 + $0x2a0] sm:$0xff] %v472
            %v474 = vld [vmem:[%s302 + $0x548] sm:$0xff]
            %475 = vst [vmem:[%s303 + $0x2a8] sm:$0xff] %v474
            %v476 = vld [vmem:[%s302 + $0x560] sm:$0xff]
            %477 = vst [vmem:[%s303 + $0x2b0] sm:$0xff] %v476
            %v478 = vld [vmem:[%s302 + $0x568] sm:$0xff]
            %479 = vst [vmem:[%s303 + $0x2b8] sm:$0xff] %v478
            %v480 = vld [vmem:[%s302 + $0x580] sm:$0xff]
            %481 = vst [vmem:[%s303 + $0x2c0] sm:$0xff] %v480
            %v482 = vld [vmem:[%s302 + $0x588] sm:$0xff]
            %483 = vst [vmem:[%s303 + $0x2c8] sm:$0xff] %v482
            %v484 = vld [vmem:[%s302 + $0x5a0] sm:$0xff]
            %485 = vst [vmem:[%s303 + $0x2d0] sm:$0xff] %v484
            %v486 = vld [vmem:[%s302 + $0x5a8] sm:$0xff]
            %487 = vst [vmem:[%s303 + $0x2d8] sm:$0xff] %v486
            %v488 = vld [vmem:[%s302 + $0x5c0] sm:$0xff]
            %489 = vst [vmem:[%s303 + $0x2e0] sm:$0xff] %v488
            %v490 = vld [vmem:[%s302 + $0x5c8] sm:$0xff]
            %491 = vst [vmem:[%s303 + $0x2e8] sm:$0xff] %v490
            %v492 = vld [vmem:[%s302 + $0x5e0] sm:$0xff]
            %493 = vst [vmem:[%s303 + $0x2f0] sm:$0xff] %v492
            %v494 = vld [vmem:[%s302 + $0x5e8] sm:$0xff]
            %495 = vst [vmem:[%s303 + $0x2f8] sm:$0xff] %v494
            %v496 = vld [vmem:[%s302 + $0x600] sm:$0xff]
            %497 = vst [vmem:[%s303 + $0x300] sm:$0xff] %v496
            %v498 = vld [vmem:[%s302 + $0x608] sm:$0xff]
            %499 = vst [vmem:[%s303 + $0x308] sm:$0xff] %v498
            %v500 = vld [vmem:[%s302 + $0x620] sm:$0xff]
            %501 = vst [vmem:[%s303 + $0x310] sm:$0xff] %v500
            %v502 = vld [vmem:[%s302 + $0x628] sm:$0xff]
            %503 = vst [vmem:[%s303 + $0x318] sm:$0xff] %v502
            %v504 = vld [vmem:[%s302 + $0x640] sm:$0xff]
            %505 = vst [vmem:[%s303 + $0x320] sm:$0xff] %v504
            %v506 = vld [vmem:[%s302 + $0x648] sm:$0xff]
            %507 = vst [vmem:[%s303 + $0x328] sm:$0xff] %v506
            %v508 = vld [vmem:[%s302 + $0x660] sm:$0xff]
            %509 = vst [vmem:[%s303 + $0x330] sm:$0xff] %v508
            %v510 = vld [vmem:[%s302 + $0x668] sm:$0xff]
            %511 = vst [vmem:[%s303 + $0x338] sm:$0xff] %v510
            %v512 = vld [vmem:[%s302 + $0x680] sm:$0xff]
            %513 = vst [vmem:[%s303 + $0x340] sm:$0xff] %v512
            %v514 = vld [vmem:[%s302 + $0x688] sm:$0xff]
            %515 = vst [vmem:[%s303 + $0x348] sm:$0xff] %v514
            %v516 = vld [vmem:[%s302 + $0x6a0] sm:$0xff]
            %517 = vst [vmem:[%s303 + $0x350] sm:$0xff] %v516
            %v518 = vld [vmem:[%s302 + $0x6a8] sm:$0xff]
            %519 = vst [vmem:[%s303 + $0x358] sm:$0xff] %v518
            %v520 = vld [vmem:[%s302 + $0x6c0] sm:$0xff]
            %521 = vst [vmem:[%s303 + $0x360] sm:$0xff] %v520
            %v522 = vld [vmem:[%s302 + $0x6c8] sm:$0xff]
            %523 = vst [vmem:[%s303 + $0x368] sm:$0xff] %v522
            %v524 = vld [vmem:[%s302 + $0x6e0] sm:$0xff]
            %525 = vst [vmem:[%s303 + $0x370] sm:$0xff] %v524
            %v526 = vld [vmem:[%s302 + $0x6e8] sm:$0xff]
            %527 = vst [vmem:[%s303 + $0x378] sm:$0xff] %v526
            %v528 = vld [vmem:[%s302 + $0x700] sm:$0xff]
            %529 = vst [vmem:[%s303 + $0x380] sm:$0xff] %v528
            %v530 = vld [vmem:[%s302 + $0x708] sm:$0xff]
            %531 = vst [vmem:[%s303 + $0x388] sm:$0xff] %v530
            %v532 = vld [vmem:[%s302 + $0x720] sm:$0xff]
            %533 = vst [vmem:[%s303 + $0x390] sm:$0xff] %v532
            %v534 = vld [vmem:[%s302 + $0x728] sm:$0xff]
            %535 = vst [vmem:[%s303 + $0x398] sm:$0xff] %v534
            %v536 = vld [vmem:[%s302 + $0x740] sm:$0xff]
            %537 = vst [vmem:[%s303 + $0x3a0] sm:$0xff] %v536
            %v538 = vld [vmem:[%s302 + $0x748] sm:$0xff]
            %539 = vst [vmem:[%s303 + $0x3a8] sm:$0xff] %v538
            %v540 = vld [vmem:[%s302 + $0x760] sm:$0xff]
            %541 = vst [vmem:[%s303 + $0x3b0] sm:$0xff] %v540
            %v542 = vld [vmem:[%s302 + $0x768] sm:$0xff]
            %543 = vst [vmem:[%s303 + $0x3b8] sm:$0xff] %v542
            %v544 = vld [vmem:[%s302 + $0x780] sm:$0xff]
            %545 = vst [vmem:[%s303 + $0x3c0] sm:$0xff] %v544
            %v546 = vld [vmem:[%s302 + $0x788] sm:$0xff]
            %547 = vst [vmem:[%s303 + $0x3c8] sm:$0xff] %v546
            %v548 = vld [vmem:[%s302 + $0x7a0] sm:$0xff]
            %549 = vst [vmem:[%s303 + $0x3d0] sm:$0xff] %v548
            %v550 = vld [vmem:[%s302 + $0x7a8] sm:$0xff]
            %551 = vst [vmem:[%s303 + $0x3d8] sm:$0xff] %v550
            %v552 = vld [vmem:[%s302 + $0x7c0] sm:$0xff]
            %553 = vst [vmem:[%s303 + $0x3e0] sm:$0xff] %v552
            %v554 = vld [vmem:[%s302 + $0x7c8] sm:$0xff]
            %555 = vst [vmem:[%s303 + $0x3e8] sm:$0xff] %v554
            %v556 = vld [vmem:[%s302 + $0x7e0] sm:$0xff]
            %557 = vst [vmem:[%s303 + $0x3f0] sm:$0xff] %v556
            %v558 = vld [vmem:[%s302 + $0x7e8] sm:$0xff]
            %559 = vst [vmem:[%s303 + $0x3f8] sm:$0xff] %v558
          $region41: #{a_call__.7} parent=35 // loop_footer
            %s301 = sadd.s32 1, %s297
          $region42: #{a_call__.7} parent=35 // loop_footer_branch
            %296 = sbr.rel target = $region38
          $region43: #{a_call__.7} parent=35 // loop_exit
            _
        $region36: #{a_call__.7} parent=31 // pred_fallthru
          _
        // Predicated region
        $region44: #{a_call__.7} parent=31 // pred_check
          _
        $region45: #{a_call__.7} parent=31 // pred_check_branch
          %561 = sbr.rel target = $region47
        $region46: #{a_call__.7} parent=31 // pred_region
          _
        $region47: #{a_call__.7} parent=31 // pred_fallthru
          _
      $region32: #{a_call__.7} parent=27 // pred_fallthru
        _
      %562 = vnop
    $region28: #{a_call__.7} parent=1 // pred_fallthru
      _
    // Predicated region
    $region48: #{a_call__.7} parent=1 // pred_check
      _
    $region49: #{a_call__.7} parent=1 // pred_check_branch
      %564 = sbr.rel (0) target = $region51
    $region50: #{a_call__.7} parent=1 // pred_region
      _
    $region51: #{a_call__.7} parent=1 // pred_fallthru
      _
    // Predicated region
    $region52: #{a_call__.7} parent=1 // pred_check
      _
    $region53: #{a_call__.7} parent=1 // pred_check_branch
      %566 = sbr.rel (0) target = $region55
    $region54: #{a_call__.7} parent=1 // pred_region
      _
    $region55: #{a_call__.7} parent=1 // pred_fallthru
      _
    // Predicated region
    $region56: #{a_call__.7} parent=1 // pred_check
      _
    $region57: #{a_call__.7} parent=1 // pred_check_branch
      %568 = sbr.rel (0) target = $region59
    $region58: #{a_call__.7} parent=1 // pred_region
      _
    $region59: #{a_call__.7} parent=1 // pred_fallthru
      _
    // Predicated region
    $region60: #{a_call__.7} parent=1 // pred_check
      _
    $region61: #{a_call__.7} parent=1 // pred_check_branch
      %570 = sbr.rel (0) target = $region63
    $region62: #{a_call__.7} parent=1 // pred_region
      _
    $region63: #{a_call__.7} parent=1 // pred_fallthru
      _
    %s571 = ssub.s32 0, 0
    %s572 = smul.u32 32, %s571
    %p573 = scmp.lt.s32.totalorder %s572, 31
    %s574 = scalar_select %p573, %s572, 31
    %s575 = smul.addr %s574, 2
    %s576 = smul.addr %s575, 4
    %s577 = scalar_lea.vmem %s5, %s576
    %s578 = ssub.s32 0, 0
    %s579 = smul.u32 32, %s578
    %s580 = ssub.s32 0, 0
    %s581 = smul.u32 32, %s580
    %p582 = scmp.lt.s32.totalorder %s581, 31
    %s583 = scalar_select %p582, %s581, 31
    %s584 = smul.addr %s583, 2
    %s585 = smul.addr %s584, 4
    %s586 = scalar_lea.vmem %s5, %s585
    %s587 = ssub.s32 0, 0
    %s588 = smul.u32 32, %s587
    %p589 = scmp.eq.s32.totalorder 0, 0
    // Predicated region
    $region64: #{a_call__.7} parent=1 // pred_check
      %p590 = pneg %p589
    $region65: #{a_call__.7} parent=1 // pred_check_branch
      %592 = sbr.rel (%p590) target = $region67
    $region66: #{a_call__.7} parent=1 // pred_region
      %593 = vst [vmem:[#allocation2] sm:$0xff] 0.0
      %594 = vst [vmem:[#allocation2 + $0x8] sm:$0xff] 0.0
      %595 = vst [vmem:[#allocation3] sm:$0xff] 0.0
      %596 = vst [vmem:[#allocation3 + $0x8] sm:$0xff] 0.0
      %597 = vst [vmem:[#allocation4] sm:$0xff] 0.0
      %598 = vst [vmem:[#allocation4 + $0x8] sm:$0xff] 0.0
      %599 = vst [vmem:[#allocation5] sm:$0xff] 0.0
      %600 = vst [vmem:[#allocation5 + $0x8] sm:$0xff] 0.0
    $region67: #{a_call__.7} parent=1 // pred_fallthru
      _
    %v601 = vld [vmem:[%s2] sm:$0xff]
    %v602 = vld [vmem:[%s2 + $0x8] sm:$0xff]
    %v603 = vld [vmem:[%s2 + $0x10] sm:$0xff]
    %v604 = vld [vmem:[%s2 + $0x18] sm:$0xff]
    %v605 = vld [vmem:[%s2 + $0x20] sm:$0xff]
    %v606 = vld [vmem:[%s2 + $0x28] sm:$0xff]
    %v607 = vld [vmem:[%s2 + $0x30] sm:$0xff]
    %v608 = vld [vmem:[%s2 + $0x38] sm:$0xff]
    %v609 = vld [vmem:[%s2 + $0x40] sm:$0xff]
    %v610 = vld [vmem:[%s2 + $0x48] sm:$0xff]
    %v611 = vld [vmem:[%s2 + $0x50] sm:$0xff]
    %v612 = vld [vmem:[%s2 + $0x58] sm:$0xff]
    %v613 = vld [vmem:[%s2 + $0x60] sm:$0xff]
    %v614 = vld [vmem:[%s2 + $0x68] sm:$0xff]
    %v615 = vld [vmem:[%s2 + $0x70] sm:$0xff]
    %v616 = vld [vmem:[%s2 + $0x78] sm:$0xff]
    %v617 = vld [vmem:[%s2 + $0x80] sm:$0xff]
    %v618 = vld [vmem:[%s2 + $0x88] sm:$0xff]
    %v619 = vld [vmem:[%s2 + $0x90] sm:$0xff]
    %v620 = vld [vmem:[%s2 + $0x98] sm:$0xff]
    %v621 = vld [vmem:[%s2 + $0xa0] sm:$0xff]
    %v622 = vld [vmem:[%s2 + $0xa8] sm:$0xff]
    %v623 = vld [vmem:[%s2 + $0xb0] sm:$0xff]
    %v624 = vld [vmem:[%s2 + $0xb8] sm:$0xff]
    %v625 = vld [vmem:[%s2 + $0xc0] sm:$0xff]
    %v626 = vld [vmem:[%s2 + $0xc8] sm:$0xff]
    %v627 = vld [vmem:[%s2 + $0xd0] sm:$0xff]
    %v628 = vld [vmem:[%s2 + $0xd8] sm:$0xff]
    %v629 = vld [vmem:[%s2 + $0xe0] sm:$0xff]
    %v630 = vld [vmem:[%s2 + $0xe8] sm:$0xff]
    %v631 = vld [vmem:[%s2 + $0xf0] sm:$0xff]
    %v632 = vld [vmem:[%s2 + $0xf8] sm:$0xff]
    %v633 = vld [vmem:[%s2 + $0x100] sm:$0xff]
    %v634 = vld [vmem:[%s2 + $0x108] sm:$0xff]
    %v635 = vld [vmem:[%s2 + $0x110] sm:$0xff]
    %v636 = vld [vmem:[%s2 + $0x118] sm:$0xff]
    %v637 = vld [vmem:[%s2 + $0x120] sm:$0xff]
    %v638 = vld [vmem:[%s2 + $0x128] sm:$0xff]
    %v639 = vld [vmem:[%s2 + $0x130] sm:$0xff]
    %v640 = vld [vmem:[%s2 + $0x138] sm:$0xff]
    %v641 = vld [vmem:[%s2 + $0x140] sm:$0xff]
    %v642 = vld [vmem:[%s2 + $0x148] sm:$0xff]
    %v643 = vld [vmem:[%s2 + $0x150] sm:$0xff]
    %v644 = vld [vmem:[%s2 + $0x158] sm:$0xff]
    %v645 = vld [vmem:[%s2 + $0x160] sm:$0xff]
    %v646 = vld [vmem:[%s2 + $0x168] sm:$0xff]
    %v647 = vld [vmem:[%s2 + $0x170] sm:$0xff]
    %v648 = vld [vmem:[%s2 + $0x178] sm:$0xff]
    %v649 = vld [vmem:[%s2 + $0x180] sm:$0xff]
    %v650 = vld [vmem:[%s2 + $0x188] sm:$0xff]
    %v651 = vld [vmem:[%s2 + $0x190] sm:$0xff]
    %v652 = vld [vmem:[%s2 + $0x198] sm:$0xff]
    %v653 = vld [vmem:[%s2 + $0x1a0] sm:$0xff]
    %v654 = vld [vmem:[%s2 + $0x1a8] sm:$0xff]
    %v655 = vld [vmem:[%s2 + $0x1b0] sm:$0xff]
    %v656 = vld [vmem:[%s2 + $0x1b8] sm:$0xff]
    %v657 = vld [vmem:[%s2 + $0x1c0] sm:$0xff]
    %v658 = vld [vmem:[%s2 + $0x1c8] sm:$0xff]
    %v659 = vld [vmem:[%s2 + $0x1d0] sm:$0xff]
    %v660 = vld [vmem:[%s2 + $0x1d8] sm:$0xff]
    %v661 = vld [vmem:[%s2 + $0x1e0] sm:$0xff]
    %v662 = vld [vmem:[%s2 + $0x1e8] sm:$0xff]
    %v663 = vld [vmem:[%s2 + $0x1f0] sm:$0xff]
    %v664 = vld [vmem:[%s2 + $0x1f8] sm:$0xff]
    %v665 = vld [vmem:[%s3] sm:$0xff]
    %v666 = vld [vmem:[%s3 + $0x8] sm:$0xff]
    %v667 = vld [vmem:[%s3 + $0x10] sm:$0xff]
    %v668 = vld [vmem:[%s3 + $0x18] sm:$0xff]
    %v669 = vld [vmem:[%s3 + $0x20] sm:$0xff]
    %v670 = vld [vmem:[%s3 + $0x28] sm:$0xff]
    %v671 = vld [vmem:[%s3 + $0x30] sm:$0xff]
    %v672 = vld [vmem:[%s3 + $0x38] sm:$0xff]
    %v673 = vld [vmem:[%s3 + $0x40] sm:$0xff]
    %v674 = vld [vmem:[%s3 + $0x48] sm:$0xff]
    %v675 = vld [vmem:[%s3 + $0x50] sm:$0xff]
    %v676 = vld [vmem:[%s3 + $0x58] sm:$0xff]
    %v677 = vld [vmem:[%s3 + $0x60] sm:$0xff]
    %v678 = vld [vmem:[%s3 + $0x68] sm:$0xff]
    %v679 = vld [vmem:[%s3 + $0x70] sm:$0xff]
    %v680 = vld [vmem:[%s3 + $0x78] sm:$0xff]
    %v681 = vld [vmem:[%s3 + $0x80] sm:$0xff]
    %v682 = vld [vmem:[%s3 + $0x88] sm:$0xff]
    %v683 = vld [vmem:[%s3 + $0x90] sm:$0xff]
    %v684 = vld [vmem:[%s3 + $0x98] sm:$0xff]
    %v685 = vld [vmem:[%s3 + $0xa0] sm:$0xff]
    %v686 = vld [vmem:[%s3 + $0xa8] sm:$0xff]
    %v687 = vld [vmem:[%s3 + $0xb0] sm:$0xff]
    %v688 = vld [vmem:[%s3 + $0xb8] sm:$0xff]
    %v689 = vld [vmem:[%s3 + $0xc0] sm:$0xff]
    %v690 = vld [vmem:[%s3 + $0xc8] sm:$0xff]
    %v691 = vld [vmem:[%s3 + $0xd0] sm:$0xff]
    %v692 = vld [vmem:[%s3 + $0xd8] sm:$0xff]
    %v693 = vld [vmem:[%s3 + $0xe0] sm:$0xff]
    %v694 = vld [vmem:[%s3 + $0xe8] sm:$0xff]
    %v695 = vld [vmem:[%s3 + $0xf0] sm:$0xff]
    %v696 = vld [vmem:[%s3 + $0xf8] sm:$0xff]
    %v697 = vld [vmem:[%s3 + $0x100] sm:$0xff]
    %v698 = vld [vmem:[%s3 + $0x108] sm:$0xff]
    %v699 = vld [vmem:[%s3 + $0x110] sm:$0xff]
    %v700 = vld [vmem:[%s3 + $0x118] sm:$0xff]
    %v701 = vld [vmem:[%s3 + $0x120] sm:$0xff]
    %v702 = vld [vmem:[%s3 + $0x128] sm:$0xff]
    %v703 = vld [vmem:[%s3 + $0x130] sm:$0xff]
    %v704 = vld [vmem:[%s3 + $0x138] sm:$0xff]
    %v705 = vld [vmem:[%s3 + $0x140] sm:$0xff]
    %v706 = vld [vmem:[%s3 + $0x148] sm:$0xff]
    %v707 = vld [vmem:[%s3 + $0x150] sm:$0xff]
    %v708 = vld [vmem:[%s3 + $0x158] sm:$0xff]
    %v709 = vld [vmem:[%s3 + $0x160] sm:$0xff]
    %v710 = vld [vmem:[%s3 + $0x168] sm:$0xff]
    %v711 = vld [vmem:[%s3 + $0x170] sm:$0xff]
    %v712 = vld [vmem:[%s3 + $0x178] sm:$0xff]
    %v713 = vld [vmem:[%s3 + $0x180] sm:$0xff]
    %v714 = vld [vmem:[%s3 + $0x188] sm:$0xff]
    %v715 = vld [vmem:[%s3 + $0x190] sm:$0xff]
    %v716 = vld [vmem:[%s3 + $0x198] sm:$0xff]
    %v717 = vld [vmem:[%s3 + $0x1a0] sm:$0xff]
    %v718 = vld [vmem:[%s3 + $0x1a8] sm:$0xff]
    %v719 = vld [vmem:[%s3 + $0x1b0] sm:$0xff]
    %v720 = vld [vmem:[%s3 + $0x1b8] sm:$0xff]
    %v721 = vld [vmem:[%s3 + $0x1c0] sm:$0xff]
    %v722 = vld [vmem:[%s3 + $0x1c8] sm:$0xff]
    %v723 = vld [vmem:[%s3 + $0x1d0] sm:$0xff]
    %v724 = vld [vmem:[%s3 + $0x1d8] sm:$0xff]
    %v725 = vld [vmem:[%s3 + $0x1e0] sm:$0xff]
    %v726 = vld [vmem:[%s3 + $0x1e8] sm:$0xff]
    %v727 = vld [vmem:[%s3 + $0x1f0] sm:$0xff]
    %v728 = vld [vmem:[%s3 + $0x1f8] sm:$0xff]
    %v729 = vld [vmem:[#allocation2] sm:$0xff]
    %v730 = vld [vmem:[#allocation2 + $0x8] sm:$0xff]
    %v731 = vld [vmem:[#allocation3] sm:$0xff]
    %v732 = vld [vmem:[#allocation3 + $0x8] sm:$0xff]
    %v733 = vld [vmem:[#allocation4] sm:$0xff]
    %v734 = vld [vmem:[#allocation4 + $0x8] sm:$0xff]
    %v735 = vld [vmem:[#allocation5] sm:$0xff]
    %v736 = vld [vmem:[#allocation5 + $0x8] sm:$0xff]
    loop: start=0, step=1, limit=32
    $region68: #{a_call__.7} parent=1 // loop_pre_header
      _
    $region69: #{a_call__.7} parent=1 // loop_header
      %s738 = sphi 0, %s742
      %p739 = scmp.ge.s32.totalorder %s738, 32
      %v743 = vphi %v729, %v1152
      %v744 = vphi %v730, %v1153
      %v745 = vphi %v731, %v1148
      %v746 = vphi %v732, %v1149
      %v747 = vphi %v733, %v1200
      %v748 = vphi %v734, %v1201
      %v749 = vphi %v735, %v1196
      %v750 = vphi %v736, %v1197
    $region70: #{a_call__.7} parent=1 // loop_header_branch
      %741 = sbr.rel (%p739) target = $region74
    $region71: #{a_call__.7} parent=1 // loop_body
      %751 = vmatprep.subr.mxu0 %v662
      %752 = vmatpush1.msra.mxu0 %v661
      %753 = vmatprep.subr.mxu0 %v658
      %754 = vmatpush1.msra.mxu0 %v657
      %755 = vmatprep.subr.mxu0 %v654
      %756 = vmatpush1.msra.mxu0 %v653
      %757 = vmatprep.subr.mxu0 %v650
      %758 = vmatpush1.msra.mxu0 %v649
      %759 = vmatprep.subr.mxu0 %v646
      %760 = vmatpush1.msra.mxu0 %v645
      %761 = vmatprep.subr.mxu0 %v642
      %762 = vmatpush1.msra.mxu0 %v641
      %763 = vmatprep.subr.mxu0 %v638
      %764 = vmatpush1.msra.mxu0 %v637
      %765 = vmatprep.subr.mxu0 %v634
      %766 = vmatpush1.msra.mxu0 %v633
      %767 = vmatprep.subr.mxu0 %v630
      %768 = vmatpush1.msra.mxu0 %v629
      %769 = vmatprep.subr.mxu0 %v626
      %770 = vmatpush1.msra.mxu0 %v625
      %771 = vmatprep.subr.mxu0 %v622
      %772 = vmatpush1.msra.mxu0 %v621
      %773 = vmatprep.subr.mxu0 %v618
      %774 = vmatpush1.msra.mxu0 %v617
      %775 = vmatprep.subr.mxu0 %v614
      %776 = vmatpush1.msra.mxu0 %v613
      %777 = vmatprep.subr.mxu0 %v610
      %778 = vmatpush1.msra.mxu0 %v609
      %779 = vmatprep.subr.mxu0 %v606
      %780 = vmatpush1.msra.mxu0 %v605
      %781 = vmatprep.subr.mxu0 %v602
      %782 = vmatpush1.msra.mxu0 %v601
      %783 = vmatprep.subr.mxu0 0.0
      %784 = vmatpush2.msra.mxu0 0.0
      %785 = vmatprep.subr.mxu0 0.0
      %786 = vmatpush2.msra.mxu0 0.0
      %787 = vmatprep.subr.mxu0 0.0
      %788 = vmatpush2.msra.mxu0 0.0
      %789 = vmatprep.subr.mxu0 0.0
      %790 = vmatpush2.msra.mxu0 0.0
      %791 = vmatprep.subr.mxu0 0.0
      %792 = vmatpush2.msra.mxu0 0.0
      %793 = vmatprep.subr.mxu0 0.0
      %794 = vmatpush2.msra.mxu0 0.0
      %795 = vmatprep.subr.mxu0 0.0
      %796 = vmatpush2.msra.mxu0 0.0
      %797 = vmatprep.subr.mxu0 0.0
      %798 = vmatpush2.msra.mxu0 0.0
      %799 = vmatprep.subr.mxu0 0.0
      %800 = vmatpush2.msra.mxu0 0.0
      %801 = vmatprep.subr.mxu0 0.0
      %802 = vmatpush2.msra.mxu0 0.0
      %803 = vmatprep.subr.mxu0 0.0
      %804 = vmatpush2.msra.mxu0 0.0
      %805 = vmatprep.subr.mxu0 0.0
      %806 = vmatpush2.msra.mxu0 0.0
      %807 = vmatprep.subr.mxu0 0.0
      %808 = vmatpush2.msra.mxu0 0.0
      %809 = vmatprep.subr.mxu0 0.0
      %810 = vmatpush2.msra.mxu0 0.0
      %811 = vmatprep.subr.mxu0 0.0
      %812 = vmatpush2.msra.mxu0 0.0
      %813 = vmatprep.subr.mxu0 0.0
      %814 = vmatpush2.msra.mxu0 0.0
      %815 = vmatprep.mubr.f32.mxu0 0.0
      %816 = vmatmul.mubr.f32.gmra.mxu0 %v743
      %v817 = vpop.f32.mrf.mxu0
      %v818 = vadd.f32 0.0, %v817
      %v819 = vpop.f32.mrf.mxu0
      %v820 = vadd.f32 0.0, %v819
      %821 = vmatprep.mubr.f32.mxu0 0.0
      %822 = vmatmul.mubr.f32.gmra.mxu0 %v744
      %v823 = vpop.f32.mrf.mxu0
      %v824 = vadd.f32 0.0, %v823
      %v825 = vpop.f32.mrf.mxu0
      %v826 = vadd.f32 0.0, %v825
      %827 = vdwg.mxu0
      %828 = vmatprep.subr.mxu0 %v664
      %829 = vmatpush1.msra.mxu0 %v663
      %830 = vmatprep.subr.mxu0 %v660
      %831 = vmatpush1.msra.mxu0 %v659
      %832 = vmatprep.subr.mxu0 %v656
      %833 = vmatpush1.msra.mxu0 %v655
      %834 = vmatprep.subr.mxu0 %v652
      %835 = vmatpush1.msra.mxu0 %v651
      %836 = vmatprep.subr.mxu0 %v648
      %837 = vmatpush1.msra.mxu0 %v647
      %838 = vmatprep.subr.mxu0 %v644
      %839 = vmatpush1.msra.mxu0 %v643
      %840 = vmatprep.subr.mxu0 %v640
      %841 = vmatpush1.msra.mxu0 %v639
      %842 = vmatprep.subr.mxu0 %v636
      %843 = vmatpush1.msra.mxu0 %v635
      %844 = vmatprep.subr.mxu0 %v632
      %845 = vmatpush1.msra.mxu0 %v631
      %846 = vmatprep.subr.mxu0 %v628
      %847 = vmatpush1.msra.mxu0 %v627
      %848 = vmatprep.subr.mxu0 %v624
      %849 = vmatpush1.msra.mxu0 %v623
      %850 = vmatprep.subr.mxu0 %v620
      %851 = vmatpush1.msra.mxu0 %v619
      %852 = vmatprep.subr.mxu0 %v616
      %853 = vmatpush1.msra.mxu0 %v615
      %854 = vmatprep.subr.mxu0 %v612
      %855 = vmatpush1.msra.mxu0 %v611
      %856 = vmatprep.subr.mxu0 %v608
      %857 = vmatpush1.msra.mxu0 %v607
      %858 = vmatprep.subr.mxu0 %v604
      %859 = vmatpush1.msra.mxu0 %v603
      %860 = vmatprep.subr.mxu0 0.0
      %861 = vmatpush2.msra.mxu0 0.0
      %862 = vmatprep.subr.mxu0 0.0
      %863 = vmatpush2.msra.mxu0 0.0
      %864 = vmatprep.subr.mxu0 0.0
      %865 = vmatpush2.msra.mxu0 0.0
      %866 = vmatprep.subr.mxu0 0.0
      %867 = vmatpush2.msra.mxu0 0.0
      %868 = vmatprep.subr.mxu0 0.0
      %869 = vmatpush2.msra.mxu0 0.0
      %870 = vmatprep.subr.mxu0 0.0
      %871 = vmatpush2.msra.mxu0 0.0
      %872 = vmatprep.subr.mxu0 0.0
      %873 = vmatpush2.msra.mxu0 0.0
      %874 = vmatprep.subr.mxu0 0.0
      %875 = vmatpush2.msra.mxu0 0.0
      %876 = vmatprep.subr.mxu0 0.0
      %877 = vmatpush2.msra.mxu0 0.0
      %878 = vmatprep.subr.mxu0 0.0
      %879 = vmatpush2.msra.mxu0 0.0
      %880 = vmatprep.subr.mxu0 0.0
      %881 = vmatpush2.msra.mxu0 0.0
      %882 = vmatprep.subr.mxu0 0.0
      %883 = vmatpush2.msra.mxu0 0.0
      %884 = vmatprep.subr.mxu0 0.0
      %885 = vmatpush2.msra.mxu0 0.0
      %886 = vmatprep.subr.mxu0 0.0
      %887 = vmatpush2.msra.mxu0 0.0
      %888 = vmatprep.subr.mxu0 0.0
      %889 = vmatpush2.msra.mxu0 0.0
      %890 = vmatprep.subr.mxu0 0.0
      %891 = vmatpush2.msra.mxu0 0.0
      %892 = vmatprep.mubr.f32.mxu0 0.0
      %893 = vmatmul.mubr.f32.gmra.mxu0 %v743
      %v894 = vpop.f32.mrf.mxu0
      %v895 = vadd.f32 0.0, %v894
      %v896 = vpop.f32.mrf.mxu0
      %v897 = vadd.f32 0.0, %v896
      %898 = vmatprep.mubr.f32.mxu0 0.0
      %899 = vmatmul.mubr.f32.gmra.mxu0 %v744
      %v900 = vpop.f32.mrf.mxu0
      %v901 = vadd.f32 0.0, %v900
      %v902 = vpop.f32.mrf.mxu0
      %v903 = vadd.f32 0.0, %v902
      %904 = vdwg.mxu0
      %905 = vmatprep.subr.mxu0 %v726
      %906 = vmatpush1.msra.mxu0 %v725
      %907 = vmatprep.subr.mxu0 %v722
      %908 = vmatpush1.msra.mxu0 %v721
      %909 = vmatprep.subr.mxu0 %v718
      %910 = vmatpush1.msra.mxu0 %v717
      %911 = vmatprep.subr.mxu0 %v714
      %912 = vmatpush1.msra.mxu0 %v713
      %913 = vmatprep.subr.mxu0 %v710
      %914 = vmatpush1.msra.mxu0 %v709
      %915 = vmatprep.subr.mxu0 %v706
      %916 = vmatpush1.msra.mxu0 %v705
      %917 = vmatprep.subr.mxu0 %v702
      %918 = vmatpush1.msra.mxu0 %v701
      %919 = vmatprep.subr.mxu0 %v698
      %920 = vmatpush1.msra.mxu0 %v697
      %921 = vmatprep.subr.mxu0 %v694
      %922 = vmatpush1.msra.mxu0 %v693
      %923 = vmatprep.subr.mxu0 %v690
      %924 = vmatpush1.msra.mxu0 %v689
      %925 = vmatprep.subr.mxu0 %v686
      %926 = vmatpush1.msra.mxu0 %v685
      %927 = vmatprep.subr.mxu0 %v682
      %928 = vmatpush1.msra.mxu0 %v681
      %929 = vmatprep.subr.mxu0 %v678
      %930 = vmatpush1.msra.mxu0 %v677
      %931 = vmatprep.subr.mxu0 %v674
      %932 = vmatpush1.msra.mxu0 %v673
      %933 = vmatprep.subr.mxu0 %v670
      %934 = vmatpush1.msra.mxu0 %v669
      %935 = vmatprep.subr.mxu0 %v666
      %936 = vmatpush1.msra.mxu0 %v665
      %937 = vmatprep.subr.mxu0 0.0
      %938 = vmatpush2.msra.mxu0 0.0
      %939 = vmatprep.subr.mxu0 0.0
      %940 = vmatpush2.msra.mxu0 0.0
      %941 = vmatprep.subr.mxu0 0.0
      %942 = vmatpush2.msra.mxu0 0.0
      %943 = vmatprep.subr.mxu0 0.0
      %944 = vmatpush2.msra.mxu0 0.0
      %945 = vmatprep.subr.mxu0 0.0
      %946 = vmatpush2.msra.mxu0 0.0
      %947 = vmatprep.subr.mxu0 0.0
      %948 = vmatpush2.msra.mxu0 0.0
      %949 = vmatprep.subr.mxu0 0.0
      %950 = vmatpush2.msra.mxu0 0.0
      %951 = vmatprep.subr.mxu0 0.0
      %952 = vmatpush2.msra.mxu0 0.0
      %953 = vmatprep.subr.mxu0 0.0
      %954 = vmatpush2.msra.mxu0 0.0
      %955 = vmatprep.subr.mxu0 0.0
      %956 = vmatpush2.msra.mxu0 0.0
      %957 = vmatprep.subr.mxu0 0.0
      %958 = vmatpush2.msra.mxu0 0.0
      %959 = vmatprep.subr.mxu0 0.0
      %960 = vmatpush2.msra.mxu0 0.0
      %961 = vmatprep.subr.mxu0 0.0
      %962 = vmatpush2.msra.mxu0 0.0
      %963 = vmatprep.subr.mxu0 0.0
      %964 = vmatpush2.msra.mxu0 0.0
      %965 = vmatprep.subr.mxu0 0.0
      %966 = vmatpush2.msra.mxu0 0.0
      %967 = vmatprep.subr.mxu0 0.0
      %968 = vmatpush2.msra.mxu0 0.0
      %969 = vmatprep.mubr.f32.mxu0 0.0
      %970 = vmatmul.mubr.f32.gmra.mxu0 %v747
      %v971 = vpop.f32.mrf.mxu0
      %v972 = vadd.f32 0.0, %v971
      %v973 = vpop.f32.mrf.mxu0
      %v974 = vadd.f32 0.0, %v973
      %975 = vmatprep.mubr.f32.mxu0 0.0
      %976 = vmatmul.mubr.f32.gmra.mxu0 %v748
      %v977 = vpop.f32.mrf.mxu0
      %v978 = vadd.f32 0.0, %v977
      %v979 = vpop.f32.mrf.mxu0
      %v980 = vadd.f32 0.0, %v979
      %981 = vdwg.mxu0
      %982 = vmatprep.subr.mxu0 %v728
      %983 = vmatpush1.msra.mxu0 %v727
      %984 = vmatprep.subr.mxu0 %v724
      %985 = vmatpush1.msra.mxu0 %v723
      %986 = vmatprep.subr.mxu0 %v720
      %987 = vmatpush1.msra.mxu0 %v719
      %988 = vmatprep.subr.mxu0 %v716
      %989 = vmatpush1.msra.mxu0 %v715
      %990 = vmatprep.subr.mxu0 %v712
      %991 = vmatpush1.msra.mxu0 %v711
      %992 = vmatprep.subr.mxu0 %v708
      %993 = vmatpush1.msra.mxu0 %v707
      %994 = vmatprep.subr.mxu0 %v704
      %995 = vmatpush1.msra.mxu0 %v703
      %996 = vmatprep.subr.mxu0 %v700
      %997 = vmatpush1.msra.mxu0 %v699
      %998 = vmatprep.subr.mxu0 %v696
      %999 = vmatpush1.msra.mxu0 %v695
      %1000 = vmatprep.subr.mxu0 %v692
      %1001 = vmatpush1.msra.mxu0 %v691
      %1002 = vmatprep.subr.mxu0 %v688
      %1003 = vmatpush1.msra.mxu0 %v687
      %1004 = vmatprep.subr.mxu0 %v684
      %1005 = vmatpush1.msra.mxu0 %v683
      %1006 = vmatprep.subr.mxu0 %v680
      %1007 = vmatpush1.msra.mxu0 %v679
      %1008 = vmatprep.subr.mxu0 %v676
      %1009 = vmatpush1.msra.mxu0 %v675
      %1010 = vmatprep.subr.mxu0 %v672
      %1011 = vmatpush1.msra.mxu0 %v671
      %1012 = vmatprep.subr.mxu0 %v668
      %1013 = vmatpush1.msra.mxu0 %v667
      %1014 = vmatprep.subr.mxu0 0.0
      %1015 = vmatpush2.msra.mxu0 0.0
      %1016 = vmatprep.subr.mxu0 0.0
      %1017 = vmatpush2.msra.mxu0 0.0
      %1018 = vmatprep.subr.mxu0 0.0
      %1019 = vmatpush2.msra.mxu0 0.0
      %1020 = vmatprep.subr.mxu0 0.0
      %1021 = vmatpush2.msra.mxu0 0.0
      %1022 = vmatprep.subr.mxu0 0.0
      %1023 = vmatpush2.msra.mxu0 0.0
      %1024 = vmatprep.subr.mxu0 0.0
      %1025 = vmatpush2.msra.mxu0 0.0
      %1026 = vmatprep.subr.mxu0 0.0
      %1027 = vmatpush2.msra.mxu0 0.0
      %1028 = vmatprep.subr.mxu0 0.0
      %1029 = vmatpush2.msra.mxu0 0.0
      %1030 = vmatprep.subr.mxu0 0.0
      %1031 = vmatpush2.msra.mxu0 0.0
      %1032 = vmatprep.subr.mxu0 0.0
      %1033 = vmatpush2.msra.mxu0 0.0
      %1034 = vmatprep.subr.mxu0 0.0
      %1035 = vmatpush2.msra.mxu0 0.0
      %1036 = vmatprep.subr.mxu0 0.0
      %1037 = vmatpush2.msra.mxu0 0.0
      %1038 = vmatprep.subr.mxu0 0.0
      %1039 = vmatpush2.msra.mxu0 0.0
      %1040 = vmatprep.subr.mxu0 0.0
      %1041 = vmatpush2.msra.mxu0 0.0
      %1042 = vmatprep.subr.mxu0 0.0
      %1043 = vmatpush2.msra.mxu0 0.0
      %1044 = vmatprep.subr.mxu0 0.0
      %1045 = vmatpush2.msra.mxu0 0.0
      %1046 = vmatprep.mubr.f32.mxu0 0.0
      %1047 = vmatmul.mubr.f32.gmra.mxu0 %v747
      %v1048 = vpop.f32.mrf.mxu0
      %v1049 = vadd.f32 0.0, %v1048
      %v1050 = vpop.f32.mrf.mxu0
      %v1051 = vadd.f32 0.0, %v1050
      %1052 = vmatprep.mubr.f32.mxu0 0.0
      %1053 = vmatmul.mubr.f32.gmra.mxu0 %v748
      %v1054 = vpop.f32.mrf.mxu0
      %v1055 = vadd.f32 0.0, %v1054
      %v1056 = vpop.f32.mrf.mxu0
      %v1057 = vadd.f32 0.0, %v1056
      %1058 = vdwg.mxu0
      %s1059 = smul.u32 %s738, 8
      %s1060 = smul.addr %s1059, 4
      %s1061 = scalar_lea.vmem [#allocation6], %s1060
      %v1062 = vld [vmem:[%s1061] sm:$0xff]
      %v1063 = vld [vmem:[%s1061 + $0x8] sm:$0xff]
      %v1064 = vld [vmem:[%s1061 + $0x10] sm:$0xff]
      %v1065 = vld [vmem:[%s1061 + $0x18] sm:$0xff]
      %v1066 = vunpack.c.l.bf16 %v1062
      %v1067 = vunpack.c.h.bf16 %v1062
      %v1068 = vunpack.c.l.bf16 %v1063
      %v1069 = vunpack.c.h.bf16 %v1063
      %v1070 = vunpack.c.l.bf16 %v1064
      %v1071 = vunpack.c.h.bf16 %v1064
      %v1072 = vunpack.c.l.bf16 %v1065
      %v1073 = vunpack.c.h.bf16 %v1065
      %v1074 = vadd.f32 %v1066, %v818
      %v1075 = vadd.f32 %v1067, %v820
      %v1076 = vadd.f32 %v1068, %v895
      %v1077 = vadd.f32 %v1069, %v897
      %v1078 = vadd.f32 %v1070, %v824
      %v1079 = vadd.f32 %v1071, %v826
      %v1080 = vadd.f32 %v1072, %v901
      %v1081 = vadd.f32 %v1073, %v903
      %s1082 = ssub.s32 31, %s738
      %s1083 = smul.u32 %s1082, 8
      %s1084 = smul.addr %s1083, 4
      %s1085 = scalar_lea.vmem [#allocation7], %s1084
      %v1086 = vld [vmem:[%s1085] sm:$0xff]
      %v1087 = vld [vmem:[%s1085 + $0x8] sm:$0xff]
      %v1088 = vld [vmem:[%s1085 + $0x10] sm:$0xff]
      %v1089 = vld [vmem:[%s1085 + $0x18] sm:$0xff]
      %v1090 = vunpack.c.l.bf16 %v1086
      %v1091 = vunpack.c.h.bf16 %v1086
      %v1092 = vunpack.c.l.bf16 %v1087
      %v1093 = vunpack.c.h.bf16 %v1087
      %v1094 = vunpack.c.l.bf16 %v1088
      %v1095 = vunpack.c.h.bf16 %v1088
      %v1096 = vunpack.c.l.bf16 %v1089
      %v1097 = vunpack.c.h.bf16 %v1089
      %v1098 = vadd.f32 %v1090, %v972
      %v1099 = vadd.f32 %v1091, %v974
      %v1100 = vadd.f32 %v1092, %v1049
      %v1101 = vadd.f32 %v1093, %v1051
      %v1102 = vadd.f32 %v1094, %v978
      %v1103 = vadd.f32 %v1095, %v980
      %v1104 = vadd.f32 %v1096, %v1055
      %v1105 = vadd.f32 %v1097, %v1057
      %v1106 = vxor.u32 %v1074, 2147483648
      %v1107 = vxor.u32 %v1078, 2147483648
      %v1108 = vmul.f32 %v1106, 1.442695
      %v1109 = vpow.pop %v1108
      %v1110 = vmul.f32 %v1107, 1.442695
      %v1111 = vpow.pop %v1110
      %v1112 = vadd.f32 %v1109, 1.0
      %v1113 = vadd.f32 %v1111, 1.0
      %v1114 = vrcp.pop %v1112
      %v1115 = vmul.f32 1.0, %v1114
      %v1116 = vrcp.pop %v1113
      %v1117 = vmul.f32 1.0, %v1116
      %v1118 = vxor.u32 %v1075, 2147483648
      %v1119 = vxor.u32 %v1079, 2147483648
      %v1120 = vmul.f32 %v1118, 1.442695
      %v1121 = vpow.pop %v1120
      %v1122 = vmul.f32 %v1119, 1.442695
      %v1123 = vpow.pop %v1122
      %v1124 = vadd.f32 %v1121, 1.0
      %v1125 = vadd.f32 %v1123, 1.0
      %v1126 = vrcp.pop %v1124
      %v1127 = vmul.f32 1.0, %v1126
      %v1128 = vrcp.pop %v1125
      %v1129 = vmul.f32 1.0, %v1128
      %v1130 = vtanh.pop %v1076
      %v1131 = vtanh.pop %v1080
      %v1132 = vxor.u32 %v1077, 2147483648
      %v1133 = vxor.u32 %v1081, 2147483648
      %v1134 = vmul.f32 %v1132, 1.442695
      %v1135 = vpow.pop %v1134
      %v1136 = vmul.f32 %v1133, 1.442695
      %v1137 = vpow.pop %v1136
      %v1138 = vadd.f32 %v1135, 1.0
      %v1139 = vadd.f32 %v1137, 1.0
      %v1140 = vrcp.pop %v1138
      %v1141 = vmul.f32 1.0, %v1140
      %v1142 = vrcp.pop %v1139
      %v1143 = vmul.f32 1.0, %v1142
      %v1144 = vmul.f32 %v1127, %v745
      %v1145 = vmul.f32 %v1129, %v746
      %v1146 = vmul.f32 %v1115, %v1130
      %v1147 = vmul.f32 %v1117, %v1131
      %v1148 = vadd.f32 %v1144, %v1146
      %v1149 = vadd.f32 %v1145, %v1147
      %v1150 = vtanh.pop %v1148
      %v1151 = vtanh.pop %v1149
      %v1152 = vmul.f32 %v1141, %v1150
      %v1153 = vmul.f32 %v1143, %v1151
      %v1154 = vxor.u32 %v1098, 2147483648
      %v1155 = vxor.u32 %v1102, 2147483648
      %v1156 = vmul.f32 %v1154, 1.442695
      %v1157 = vpow.pop %v1156
      %v1158 = vmul.f32 %v1155, 1.442695
      %v1159 = vpow.pop %v1158
      %v1160 = vadd.f32 %v1157, 1.0
      %v1161 = vadd.f32 %v1159, 1.0
      %v1162 = vrcp.pop %v1160
      %v1163 = vmul.f32 1.0, %v1162
      %v1164 = vrcp.pop %v1161
      %v1165 = vmul.f32 1.0, %v1164
      %v1166 = vxor.u32 %v1099, 2147483648
      %v1167 = vxor.u32 %v1103, 2147483648
      %v1168 = vmul.f32 %v1166, 1.442695
      %v1169 = vpow.pop %v1168
      %v1170 = vmul.f32 %v1167, 1.442695
      %v1171 = vpow.pop %v1170
      %v1172 = vadd.f32 %v1169, 1.0
      %v1173 = vadd.f32 %v1171, 1.0
      %v1174 = vrcp.pop %v1172
      %v1175 = vmul.f32 1.0, %v1174
      %v1176 = vrcp.pop %v1173
      %v1177 = vmul.f32 1.0, %v1176
      %v1178 = vtanh.pop %v1100
      %v1179 = vtanh.pop %v1104
      %v1180 = vxor.u32 %v1101, 2147483648
      %v1181 = vxor.u32 %v1105, 2147483648
      %v1182 = vmul.f32 %v1180, 1.442695
      %v1183 = vpow.pop %v1182
      %v1184 = vmul.f32 %v1181, 1.442695
      %v1185 = vpow.pop %v1184
      %v1186 = vadd.f32 %v1183, 1.0
      %v1187 = vadd.f32 %v1185, 1.0
      %v1188 = vrcp.pop %v1186
      %v1189 = vmul.f32 1.0, %v1188
      %v1190 = vrcp.pop %v1187
      %v1191 = vmul.f32 1.0, %v1190
      %v1192 = vmul.f32 %v1175, %v749
      %v1193 = vmul.f32 %v1177, %v750
      %v1194 = vmul.f32 %v1163, %v1178
      %v1195 = vmul.f32 %v1165, %v1179
      %v1196 = vadd.f32 %v1192, %v1194
      %v1197 = vadd.f32 %v1193, %v1195
      %v1198 = vtanh.pop %v1196
      %v1199 = vtanh.pop %v1197
      %v1200 = vmul.f32 %v1189, %v1198
      %v1201 = vmul.f32 %v1191, %v1199
      %v1202 = vpack.c.bf16 %v1153, %v1152
      %v1204 = vunpack.c.l.b16 %v1202
      %v1205 = vunpack.c.h.b16 %v1202
      %v1206 = vpack.c.b16 %v1204, %v1204
      %v1207 = vpack.c.b16 %v1205, %v1205
      %s1210 = smul.u32 %s738, 2
      %s1211 = smul.addr %s1210, 4
      %s1212 = scalar_lea.vmem %s4, %s1211
      %1213 = vst [vmem:[%s1212] sm:$0xf] %v1206
      %1214 = vst [vmem:[%s1212 + $0x4] sm:$0xf] %v1207
      %v1215 = vpack.c.bf16 %v1201, %v1200
      %v1217 = vunpack.c.l.b16 %v1215
      %v1218 = vunpack.c.h.b16 %v1215
      %v1219 = vpack.c.b16 %v1217, %v1217
      %v1220 = vpack.c.b16 %v1218, %v1218
      %s1223 = smul.u32 %s1082, 2
      %s1224 = smul.addr %s1223, 4
      %s1225 = scalar_lea.vmem %s586, %s1224
      %1226 = vst [vmem:[%s1225] sm:$0xf] %v1219
      %1227 = vst [vmem:[%s1225 + $0x4] sm:$0xf] %v1220
    $region72: #{a_call__.7} parent=1 // loop_footer
      %s742 = sadd.s32 1, %s738
    $region73: #{a_call__.7} parent=1 // loop_footer_branch
      %737 = sbr.rel target = $region69
    $region74: #{a_call__.7} parent=1 // loop_exit
      _
    %1228 = vst [vmem:[#allocation2] sm:$0xff] %v743
    %1229 = vst [vmem:[#allocation2 + $0x8] sm:$0xff] %v744
    %1230 = vst [vmem:[#allocation3] sm:$0xff] %v745
    %1231 = vst [vmem:[#allocation3 + $0x8] sm:$0xff] %v746
    %1232 = vst [vmem:[#allocation4] sm:$0xff] %v747
    %1233 = vst [vmem:[#allocation4 + $0x8] sm:$0xff] %v748
    %1234 = vst [vmem:[#allocation5] sm:$0xff] %v749
    %1235 = vst [vmem:[#allocation5 + $0x8] sm:$0xff] %v750
    %s1236 = ssub.s32 0, 0
    %s1237 = smul.u32 32, %s1236
    %p1238 = scmp.lt.s32.totalorder %s1237, 31
    %s1239 = scalar_select %p1238, %s1237, 31
    %s1240 = smul.addr %s1239, 2
    %s1241 = smul.addr %s1240, 4
    %s1242 = scalar_lea.vmem %s5, %s1241
    // Predicated region
    $region75: #{a_call__.7} parent=1 // pred_check
      _
    $region76: #{a_call__.7} parent=1 // pred_check_branch
      %1244 = sbr.rel (0) target = $region78
    $region77: #{a_call__.7} parent=1 // pred_region
      _
    $region78: #{a_call__.7} parent=1 // pred_fallthru
      _
    // Predicated region
    $region79: #{a_call__.7} parent=1 // pred_check
      _
    $region80: #{a_call__.7} parent=1 // pred_check_branch
      %1246 = sbr.rel (0) target = $region82
    $region81: #{a_call__.7} parent=1 // pred_region
      %s1247 = ssub.s32 0, 0
      %s1248 = smul.u32 32, %s1247
    $region82: #{a_call__.7} parent=1 // pred_fallthru
      _
    // Predicated region
    $region83: #{a_call__.7} parent=1 // pred_check
      _
    $region84: #{a_call__.7} parent=1 // pred_check_branch
      %1250 = sbr.rel (0) target = $region86
    $region85: #{a_call__.7} parent=1 // pred_region
      _
    $region86: #{a_call__.7} parent=1 // pred_fallthru
      _
    // Predicated region
    $region87: #{a_call__.7} parent=1 // pred_check
      _
    $region88: #{a_call__.7} parent=1 // pred_check_branch
      %1252 = sbr.rel (0) target = $region90
    $region89: #{a_call__.7} parent=1 // pred_region
      %s1253 = ssub.s32 0, 0
      %s1254 = smul.u32 32, %s1253
      %p1255 = scmp.lt.s32.totalorder %s1254, 31
      %s1256 = scalar_select %p1255, %s1254, 31
      %s1257 = smul.addr %s1256, 2
      %s1258 = smul.addr %s1257, 4
      %s1259 = scalar_lea.vmem %s5, %s1258
    $region90: #{a_call__.7} parent=1 // pred_fallthru
      _

// kernel: a_call__.6
$region0: #{a_call__.6}
  #allocation0 [shape = 'u32[]', space=smem, size = 0x4, offset = 0x4, fixed_abs, tag = 'smem constant byte address 0x4 - core index']
  #allocation1 [shape = 'u32[144,128]{1,0:T(1,128)}', space=vmem, size = 0x12000, scoped, tag = 'internal scratch']
  %s0 = inlined_call_operand.vmem [shape: bf16[512,16], index: 0, kind: input, shape index: {}]
  %s1 = inlined_call_operand.vmem [shape: bf16[16,1024], index: 1, kind: input, shape index: {}]
  %s2 = inlined_call_operand.vmem [shape: f32[1,1024], index: 2, kind: input, shape index: {}]
  %s3 = inlined_call_operand.vmem [shape: bf16[512,1024], index: 3, kind: output, shape index: {}]
  %s4 = sld [smem:[#allocation0]]
  $region45: #{a_call__.6} parent=0
    _
  %s6 = ssub.s32 1, %s4
  %s7 = scalar_select 0, %s6, %s4
  loop: start=0, step=1, limit=4
  $region2: #{a_call__.6} parent=0 // loop_pre_header
    _
  $region3: #{a_call__.6} parent=0 // loop_header
    %s9 = sphi 0, %s13
    %p10 = scmp.ge.s32.totalorder %s9, 4
    %s19 = sphi 0, %s21
    %s22 = sphi 0, %s19
    %s23 = sphi 0, %s22
    %s39 = sphi 0, %s23
    %s43 = sphi 0, %s43
    %s45 = sphi 0, %s43
    %s46 = sphi 0, %s45
    %s60 = sphi 0, %s46
    %s64 = sphi 0, %s64
    %s66 = sphi 0, %s64
    %s67 = sphi 0, %s66
    %s81 = sphi 0, %s67
    %s87 = sphi 0, %s89
    %s90 = sphi 0, %s87
    %s91 = sphi 0, %s90
    %s107 = sphi 0, %s91
  $region4: #{a_call__.6} parent=0 // loop_header_branch
    %12 = sbr.rel (%p10) target = $region8
  $region5: #{a_call__.6} parent=0 // loop_body
    %s14 = ssub.s32 %s9, 1
    %s15 = ssub.s32 %s9, 2
    %s16 = sadd.s32 %s9, 1
    %s17 = ssub.s32 %s9, %s16
    %p18 = scmp.eq.s32.totalorder %s17, 0
    %s20 = sadd.s32 %s19, 1
    %s21 = scalar_select %p18, %s19, %s20
    %p24 = pneg %p18
    %p25 = scmp.eq.s32.totalorder %s9, 1
    %p26 = por %p24, %p25
    %p27 = scmp.ne.s32.totalorder %s19, %s22
    %p28 = scmp.eq.s32.totalorder %s9, 0
    %p29 = por %p27, %p28
    %p30 = scmp.ne.s32.totalorder %s19, %s22
    %p31 = scmp.eq.s32.totalorder %s14, 1
    %p32 = por %p30, %p31
    %p33 = scmp.ne.s32.totalorder %s22, %s23
    %p34 = scmp.eq.s32.totalorder %s14, 0
    %p35 = por %p33, %p34
    %p36 = scmp.ne.s32.totalorder %s22, %s23
    %p37 = scmp.eq.s32.totalorder %s15, 1
    %p38 = por %p36, %p37
    %p40 = scmp.ne.s32.totalorder %s23, %s39
    %p41 = scmp.eq.s32.totalorder %s15, 0
    %p42 = por %p40, %p41
    %s44 = sadd.s32 %s43, 1
    %p47 = scmp.eq.s32.totalorder %s9, 1
    %p48 = scmp.ne.s32.totalorder %s43, %s45
    %p49 = scmp.eq.s32.totalorder %s9, 0
    %p50 = por %p48, %p49
    %p51 = scmp.ne.s32.totalorder %s43, %s45
    %p52 = scmp.eq.s32.totalorder %s14, 1
    %p53 = por %p51, %p52
    %p54 = scmp.ne.s32.totalorder %s45, %s46
    %p55 = scmp.eq.s32.totalorder %s14, 0
    %p56 = por %p54, %p55
    %p57 = scmp.ne.s32.totalorder %s45, %s46
    %p58 = scmp.eq.s32.totalorder %s15, 1
    %p59 = por %p57, %p58
    %p61 = scmp.ne.s32.totalorder %s46, %s60
    %p62 = scmp.eq.s32.totalorder %s15, 0
    %p63 = por %p61, %p62
    %s65 = sadd.s32 %s64, 1
    %p68 = scmp.eq.s32.totalorder %s9, 1
    %p69 = scmp.ne.s32.totalorder %s64, %s66
    %p70 = scmp.eq.s32.totalorder %s9, 0
    %p71 = por %p69, %p70
    %p72 = scmp.ne.s32.totalorder %s64, %s66
    %p73 = scmp.eq.s32.totalorder %s14, 1
    %p74 = por %p72, %p73
    %p75 = scmp.ne.s32.totalorder %s66, %s67
    %p76 = scmp.eq.s32.totalorder %s14, 0
    %p77 = por %p75, %p76
    %p78 = scmp.ne.s32.totalorder %s66, %s67
    %p79 = scmp.eq.s32.totalorder %s15, 1
    %p80 = por %p78, %p79
    %p82 = scmp.ne.s32.totalorder %s67, %s81
    %p83 = scmp.eq.s32.totalorder %s15, 0
    %p84 = por %p82, %p83
    %s85 = ssub.s32 %s9, %s16
    %p86 = scmp.eq.s32.totalorder %s85, 0
    %s88 = sadd.s32 %s87, 1
    %s89 = scalar_select %p86, %s87, %s88
    %p92 = pneg %p86
    %p93 = scmp.eq.s32.totalorder %s9, 1
    %p94 = por %p92, %p93
    %p95 = scmp.ne.s32.totalorder %s87, %s90
    %p96 = scmp.eq.s32.totalorder %s9, 0
    %p97 = por %p95, %p96
    %p98 = scmp.ne.s32.totalorder %s87, %s90
    %p99 = scmp.eq.s32.totalorder %s14, 1
    %p100 = por %p98, %p99
    %p101 = scmp.ne.s32.totalorder %s90, %s91
    %p102 = scmp.eq.s32.totalorder %s14, 0
    %p103 = por %p101, %p102
    %p104 = scmp.ne.s32.totalorder %s90, %s91
    %p105 = scmp.eq.s32.totalorder %s15, 1
    %p106 = por %p104, %p105
    %p108 = scmp.ne.s32.totalorder %s91, %s107
    %p109 = scmp.eq.s32.totalorder %s15, 0
    %p110 = por %p108, %p109
    %p111 = scmp.le.s32.totalorder 1, %s9
    %p112 = scmp.lt.s32.totalorder %s9, 3
    %p113 = pnand %p111, %p112
    %p114 = pneg %p113
    // Predicated region
    $region9: #{a_call__.6} parent=5 // pred_check
      _
    $region10: #{a_call__.6} parent=5 // pred_check_branch
      %116 = sbr.rel (%p113) target = $region12
    $region11: #{a_call__.6} parent=5 // pred_region
      %s117 = ssub.s32 %s9, 1
      // Predicated region
      $region13: #{a_call__.6} parent=11 // pred_check
        %p118 = pneg %p56
      $region14: #{a_call__.6} parent=11 // pred_check_branch
        %120 = sbr.rel (%p118) target = $region16
      $region15: #{a_call__.6} parent=11 // pred_region
        _
      $region16: #{a_call__.6} parent=11 // pred_fallthru
        _
      // Predicated region
      $region17: #{a_call__.6} parent=11 // pred_check
        %p121 = pneg %p77
      $region18: #{a_call__.6} parent=11 // pred_check_branch
        %123 = sbr.rel (%p121) target = $region20
      $region19: #{a_call__.6} parent=11 // pred_region
        _
      $region20: #{a_call__.6} parent=11 // pred_fallthru
        _
    $region12: #{a_call__.6} parent=5 // pred_fallthru
      _
    %p124 = scmp.lt.s32.totalorder %s9, 2
    // Predicated region
    $region21: #{a_call__.6} parent=5 // pred_check
      %p125 = pneg %p124
    $region22: #{a_call__.6} parent=5 // pred_check_branch
      %127 = sbr.rel (%p125) target = $region24
    $region23: #{a_call__.6} parent=5 // pred_region
      // Predicated region
      $region25: #{a_call__.6} parent=23 // pred_check
        %p128 = pneg %p29
      $region26: #{a_call__.6} parent=23 // pred_check_branch
        %130 = sbr.rel (%p128) target = $region28
      $region27: #{a_call__.6} parent=23 // pred_region
        %s131 = smul.u32 32, %s9
        %p132 = scmp.lt.s32.totalorder %s131, 63
        %s133 = scalar_select %p132, %s131, 63
        %s134 = smul.addr %s133, 4
        %s135 = scalar_lea.vmem %s0, %s134
        %s136 = smul.u32 32, %s9
      $region28: #{a_call__.6} parent=23 // pred_fallthru
        _
    $region24: #{a_call__.6} parent=5 // pred_fallthru
      _
    %p137 = scmp.le.s32.totalorder 1, %s9
    %p138 = scmp.lt.s32.totalorder %s9, 3
    %p139 = pnand %p137, %p138
    %p140 = pneg %p139
    // Predicated region
    $region29: #{a_call__.6} parent=5 // pred_check
      _
    $region30: #{a_call__.6} parent=5 // pred_check_branch
      %142 = sbr.rel (%p139) target = $region32
    $region31: #{a_call__.6} parent=5 // pred_region
      %s143 = ssub.s32 %s9, 1
      %s144 = smul.u32 32, %s14
      %p145 = scmp.lt.s32.totalorder %s144, 63
      %s146 = scalar_select %p145, %s144, 63
      %s147 = smul.addr %s146, 4
      %s148 = scalar_lea.vmem %s0, %s147
      %p149 = pneg %p35
      %p150 = pneg %p32
      %p151 = pneg %p56
      %p152 = pneg %p53
      %p153 = pneg %p77
      %p154 = pneg %p74
      %p155 = pneg %p103
      %p156 = pneg %p100
      %s157 = smul.u32 32, %s14
      %p158 = scmp.lt.s32.totalorder %s157, 63
      %s159 = scalar_select %p158, %s157, 63
      %s160 = smul.addr %s159, 8
      %s161 = smul.addr %s160, 4
      %s162 = scalar_lea.vmem %s3, %s161
      %s163 = smul.u32 32, %s14
      %p164 = scmp.lt.s32.totalorder %s163, 63
      %s165 = scalar_select %p164, %s163, 63
      %s166 = smul.addr %s165, 4
      %s167 = scalar_lea.vmem %s0, %s166
      %s168 = smul.u32 32, %s14
      %s169 = smul.u32 32, %s14
      %p170 = scmp.lt.s32.totalorder %s169, 63
      %s171 = scalar_select %p170, %s169, 63
      %s172 = smul.addr %s171, 8
      %s173 = smul.addr %s172, 4
      %s174 = scalar_lea.vmem %s3, %s173
      %s175 = smul.u32 32, %s14
      %v177 = vld [vmem:[%s167] sm:$0xf]
      %v178 = vld [vmem:[%s167 + $0x4] sm:$0xf]
      %v179 = vld [vmem:[%s167 + $0x8] sm:$0xf]
      %v180 = vld [vmem:[%s167 + $0xc] sm:$0xf]
      %v181 = vld [vmem:[%s167 + $0x10] sm:$0xf]
      %v182 = vld [vmem:[%s167 + $0x14] sm:$0xf]
      %v183 = vld [vmem:[%s167 + $0x18] sm:$0xf]
      %v184 = vld [vmem:[%s167 + $0x1c] sm:$0xf]
      %v185 = vld [vmem:[%s167 + $0x20] sm:$0xf]
      %v186 = vld [vmem:[%s167 + $0x24] sm:$0xf]
      %v187 = vld [vmem:[%s167 + $0x28] sm:$0xf]
      %v188 = vld [vmem:[%s167 + $0x2c] sm:$0xf]
      %v189 = vld [vmem:[%s167 + $0x30] sm:$0xf]
      %v190 = vld [vmem:[%s167 + $0x34] sm:$0xf]
      %v191 = vld [vmem:[%s167 + $0x38] sm:$0xf]
      %v192 = vld [vmem:[%s167 + $0x3c] sm:$0xf]
      %v193 = vld [vmem:[%s167 + $0x40] sm:$0xf]
      %v194 = vld [vmem:[%s167 + $0x44] sm:$0xf]
      %v195 = vld [vmem:[%s167 + $0x48] sm:$0xf]
      %v196 = vld [vmem:[%s167 + $0x4c] sm:$0xf]
      %v197 = vld [vmem:[%s167 + $0x50] sm:$0xf]
      %v198 = vld [vmem:[%s167 + $0x54] sm:$0xf]
      %v199 = vld [vmem:[%s167 + $0x58] sm:$0xf]
      %v200 = vld [vmem:[%s167 + $0x5c] sm:$0xf]
      %v201 = vld [vmem:[%s167 + $0x60] sm:$0xf]
      %v202 = vld [vmem:[%s167 + $0x64] sm:$0xf]
      %v203 = vld [vmem:[%s167 + $0x68] sm:$0xf]
      %v204 = vld [vmem:[%s167 + $0x6c] sm:$0xf]
      %v205 = vld [vmem:[%s167 + $0x70] sm:$0xf]
      %v206 = vld [vmem:[%s167 + $0x74] sm:$0xf]
      %v207 = vld [vmem:[%s167 + $0x78] sm:$0xf]
      %v208 = vld [vmem:[%s167 + $0x7c] sm:$0xf]
      %v209 = vld [vmem:[%s1] sm:$0xff]
      %v210 = vld [vmem:[%s1 + $0x8] sm:$0xff]
      %v211 = vld [vmem:[%s1 + $0x10] sm:$0xff]
      %v212 = vld [vmem:[%s1 + $0x18] sm:$0xff]
      %v213 = vld [vmem:[%s1 + $0x20] sm:$0xff]
      %v214 = vld [vmem:[%s1 + $0x28] sm:$0xff]
      %v215 = vld [vmem:[%s1 + $0x30] sm:$0xff]
      %v216 = vld [vmem:[%s1 + $0x38] sm:$0xff]
      %v217 = vld [vmem:[%s2] sm:$0xff]
      %v219 = vlaneseq
      %v220 = vshrl.u32 %v219, 7
      %v221 = vsub.s32 0, %v220
      %v222 = vrot.slane %v217, %v221
      %v223 = vlaneseq
      %v224 = vshrl.u32 %v223, 7
      %v225 = vsub.s32 1, %v224
      %v226 = vrot.slane %v217, %v225
      %v227 = vlaneseq
      %v228 = vshrl.u32 %v227, 7
      %v229 = vsub.s32 2, %v228
      %v230 = vrot.slane %v217, %v229
      %v231 = vlaneseq
      %v232 = vshrl.u32 %v231, 7
      %v233 = vsub.s32 3, %v232
      %v234 = vrot.slane %v217, %v233
      %v235 = vlaneseq
      %v236 = vshrl.u32 %v235, 7
      %v237 = vsub.s32 4, %v236
      %v238 = vrot.slane %v217, %v237
      %v239 = vlaneseq
      %v240 = vshrl.u32 %v239, 7
      %v241 = vsub.s32 5, %v240
      %v242 = vrot.slane %v217, %v241
      %v243 = vlaneseq
      %v244 = vshrl.u32 %v243, 7
      %v245 = vsub.s32 6, %v244
      %v246 = vrot.slane %v217, %v245
      %v247 = vlaneseq
      %v248 = vshrl.u32 %v247, 7
      %v249 = vsub.s32 7, %v248
      %v250 = vrot.slane %v217, %v249
      %v291 = vunpack.c.l.b16 %v177
      %v292 = vunpack.c.l.b16 %v178
      %v293 = vunpack.c.l.b16 %v179
      %v294 = vunpack.c.l.b16 %v180
      %v295 = vunpack.c.l.b16 %v181
      %v296 = vunpack.c.l.b16 %v182
      %v297 = vunpack.c.l.b16 %v183
      %v298 = vunpack.c.l.b16 %v184
      %v299 = vunpack.c.l.b16 %v185
      %v300 = vunpack.c.l.b16 %v186
      %v301 = vunpack.c.l.b16 %v187
      %v302 = vunpack.c.l.b16 %v188
      %v303 = vunpack.c.l.b16 %v189
      %v304 = vunpack.c.l.b16 %v190
      %v305 = vunpack.c.l.b16 %v191
      %v306 = vunpack.c.l.b16 %v192
      %v307 = vunpack.c.l.b16 %v193
      %v308 = vunpack.c.l.b16 %v194
      %v309 = vunpack.c.l.b16 %v195
      %v310 = vunpack.c.l.b16 %v196
      %v311 = vunpack.c.l.b16 %v197
      %v312 = vunpack.c.l.b16 %v198
      %v313 = vunpack.c.l.b16 %v199
      %v314 = vunpack.c.l.b16 %v200
      %v315 = vunpack.c.l.b16 %v201
      %v316 = vunpack.c.l.b16 %v202
      %v317 = vunpack.c.l.b16 %v203
      %v318 = vunpack.c.l.b16 %v204
      %v319 = vunpack.c.l.b16 %v205
      %v320 = vunpack.c.l.b16 %v206
      %v321 = vunpack.c.l.b16 %v207
      %v322 = vunpack.c.l.b16 %v208
      %v323 = vpack.c.b16 %v292, %v291
      %v324 = vpack.c.b16 %v294, %v293
      %v325 = vpack.c.b16 %v296, %v295
      %v326 = vpack.c.b16 %v298, %v297
      %v327 = vpack.c.b16 %v300, %v299
      %v328 = vpack.c.b16 %v302, %v301
      %v329 = vpack.c.b16 %v304, %v303
      %v330 = vpack.c.b16 %v306, %v305
      %v331 = vpack.c.b16 %v308, %v307
      %v332 = vpack.c.b16 %v310, %v309
      %v333 = vpack.c.b16 %v312, %v311
      %v334 = vpack.c.b16 %v314, %v313
      %v335 = vpack.c.b16 %v316, %v315
      %v336 = vpack.c.b16 %v318, %v317
      %v337 = vpack.c.b16 %v320, %v319
      %v338 = vpack.c.b16 %v322, %v321
      %v347 = vunpack.c.l.b16 %v209
      %v348 = vunpack.c.h.b16 %v209
      %v349 = vunpack.c.l.b16 %v210
      %v350 = vunpack.c.h.b16 %v210
      %v351 = vunpack.c.l.b16 %v211
      %v352 = vunpack.c.h.b16 %v211
      %v353 = vunpack.c.l.b16 %v212
      %v354 = vunpack.c.h.b16 %v212
      %v355 = vunpack.c.l.b16 %v213
      %v356 = vunpack.c.h.b16 %v213
      %v357 = vunpack.c.l.b16 %v214
      %v358 = vunpack.c.h.b16 %v214
      %v359 = vunpack.c.l.b16 %v215
      %v360 = vunpack.c.h.b16 %v215
      %v361 = vunpack.c.l.b16 %v216
      %v362 = vunpack.c.h.b16 %v216
      %v363 = vpack.c.b16 %v355, %v347
      %v364 = vpack.c.b16 %v356, %v348
      %v365 = vpack.c.b16 %v357, %v349
      %v366 = vpack.c.b16 %v358, %v350
      %v367 = vpack.c.b16 %v359, %v351
      %v368 = vpack.c.b16 %v360, %v352
      %v369 = vpack.c.b16 %v361, %v353
      %v370 = vpack.c.b16 %v362, %v354
      %vm379 = vcmask 130048
      %v381 = vsel %vm379, %v323, 0
      %v384 = vsel %vm379, %v324, 0
      %v387 = vsel %vm379, %v325, 0
      %v390 = vsel %vm379, %v326, 0
      %v393 = vsel %vm379, %v327, 0
      %v396 = vsel %vm379, %v328, 0
      %v399 = vsel %vm379, %v329, 0
      %v402 = vsel %vm379, %v330, 0
      %v405 = vsel %vm379, %v331, 0
      %v408 = vsel %vm379, %v332, 0
      %v411 = vsel %vm379, %v333, 0
      %v414 = vsel %vm379, %v334, 0
      %v417 = vsel %vm379, %v335, 0
      %v420 = vsel %vm379, %v336, 0
      %v423 = vsel %vm379, %v337, 0
      %v426 = vsel %vm379, %v338, 0
      %428 = vmatprep.subr.bf16.mxu0 0
      %429 = vmatpush1.bf16.msra.mxu0 0
      %430 = vmatprep.subr.bf16.mxu0 0
      %431 = vmatpush1.bf16.msra.mxu0 0
      %432 = vmatprep.subr.bf16.mxu0 0
      %433 = vmatpush1.bf16.msra.mxu0 0
      %434 = vmatprep.subr.bf16.mxu0 0
      %435 = vmatpush1.bf16.msra.mxu0 0
      %436 = vmatprep.subr.bf16.mxu0 0
      %437 = vmatpush1.bf16.msra.mxu0 0
      %438 = vmatprep.subr.bf16.mxu0 0
      %439 = vmatpush1.bf16.msra.mxu0 0
      %440 = vmatprep.subr.bf16.mxu0 0
      %441 = vmatpush1.bf16.msra.mxu0 0
      %442 = vmatprep.subr.bf16.mxu0 %v364
      %443 = vmatpush1.bf16.msra.mxu0 %v363
      %444 = vmatprep.subr.bf16.mxu0 0
      %445 = vmatpush2.bf16.msra.mxu0 0
      %446 = vmatprep.subr.bf16.mxu0 0
      %447 = vmatpush2.bf16.msra.mxu0 0
      %448 = vmatprep.subr.bf16.mxu0 0
      %449 = vmatpush2.bf16.msra.mxu0 0
      %450 = vmatprep.subr.bf16.mxu0 0
      %451 = vmatpush2.bf16.msra.mxu0 0
      %452 = vmatprep.subr.bf16.mxu0 0
      %453 = vmatpush2.bf16.msra.mxu0 0
      %454 = vmatprep.subr.bf16.mxu0 0
      %455 = vmatpush2.bf16.msra.mxu0 0
      %456 = vmatprep.subr.bf16.mxu0 0
      %457 = vmatpush2.bf16.msra.mxu0 0
      %458 = vmatprep.subr.bf16.mxu0 0
      %459 = vmatpush2.bf16.msra.mxu0 0
      %460 = vmatprep.mubr.bf16.mxu0 0
      %461 = vmatmul.mubr.bf16.gmra.mxu0 %v381
      %v462 = vpop.f32.mrf.mxu0
      %v463 = vadd.f32 %v222, %v462
      %v464 = vpop.f32.mrf.mxu0
      %v465 = vadd.f32 %v226, %v464
      %v466 = vpop.f32.mrf.mxu0
      %v467 = vadd.f32 %v222, %v466
      %v468 = vpop.f32.mrf.mxu0
      %v469 = vadd.f32 %v226, %v468
      %470 = vmatprep.mubr.bf16.mxu0 0
      %471 = vmatmul.mubr.bf16.gmra.mxu0 %v384
      %v472 = vpop.f32.mrf.mxu0
      %v473 = vadd.f32 %v222, %v472
      %v474 = vpop.f32.mrf.mxu0
      %v475 = vadd.f32 %v226, %v474
      %v476 = vpop.f32.mrf.mxu0
      %v477 = vadd.f32 %v222, %v476
      %v478 = vpop.f32.mrf.mxu0
      %v479 = vadd.f32 %v226, %v478
      %480 = vmatprep.mubr.bf16.mxu0 0
      %481 = vmatmul.mubr.bf16.gmra.mxu0 %v387
      %v482 = vpop.f32.mrf.mxu0
      %v483 = vadd.f32 %v222, %v482
      %v484 = vpop.f32.mrf.mxu0
      %v485 = vadd.f32 %v226, %v484
      %v486 = vpop.f32.mrf.mxu0
      %v487 = vadd.f32 %v222, %v486
      %v488 = vpop.f32.mrf.mxu0
      %v489 = vadd.f32 %v226, %v488
      %490 = vmatprep.mubr.bf16.mxu0 0
      %491 = vmatmul.mubr.bf16.gmra.mxu0 %v390
      %v492 = vpop.f32.mrf.mxu0
      %v493 = vadd.f32 %v222, %v492
      %v494 = vpop.f32.mrf.mxu0
      %v495 = vadd.f32 %v226, %v494
      %v496 = vpop.f32.mrf.mxu0
      %v497 = vadd.f32 %v222, %v496
      %v498 = vpop.f32.mrf.mxu0
      %v499 = vadd.f32 %v226, %v498
      %500 = vmatprep.mubr.bf16.mxu0 0
      %501 = vmatmul.mubr.bf16.gmra.mxu0 %v393
      %v502 = vpop.f32.mrf.mxu0
      %v503 = vadd.f32 %v222, %v502
      %v504 = vpop.f32.mrf.mxu0
      %v505 = vadd.f32 %v226, %v504
      %v506 = vpop.f32.mrf.mxu0
      %v507 = vadd.f32 %v222, %v506
      %v508 = vpop.f32.mrf.mxu0
      %v509 = vadd.f32 %v226, %v508
      %510 = vmatprep.mubr.bf16.mxu0 0
      %511 = vmatmul.mubr.bf16.gmra.mxu0 %v396
      %v512 = vpop.f32.mrf.mxu0
      %v513 = vadd.f32 %v222, %v512
      %v514 = vpop.f32.mrf.mxu0
      %v515 = vadd.f32 %v226, %v514
      %v516 = vpop.f32.mrf.mxu0
      %v517 = vadd.f32 %v222, %v516
      %v518 = vpop.f32.mrf.mxu0
      %v519 = vadd.f32 %v226, %v518
      %520 = vmatprep.mubr.bf16.mxu0 0
      %521 = vmatmul.mubr.bf16.gmra.mxu0 %v399
      %v522 = vpop.f32.mrf.mxu0
      %v523 = vadd.f32 %v222, %v522
      %v524 = vpop.f32.mrf.mxu0
      %v525 = vadd.f32 %v226, %v524
      %v526 = vpop.f32.mrf.mxu0
      %v527 = vadd.f32 %v222, %v526
      %v528 = vpop.f32.mrf.mxu0
      %v529 = vadd.f32 %v226, %v528
      %530 = vmatprep.mubr.bf16.mxu0 0
      %531 = vmatmul.mubr.bf16.gmra.mxu0 %v402
      %v532 = vpop.f32.mrf.mxu0
      %v533 = vadd.f32 %v222, %v532
      %v534 = vpop.f32.mrf.mxu0
      %v535 = vadd.f32 %v226, %v534
      %v536 = vpop.f32.mrf.mxu0
      %v537 = vadd.f32 %v222, %v536
      %v538 = vpop.f32.mrf.mxu0
      %v539 = vadd.f32 %v226, %v538
      %540 = vmatprep.mubr.bf16.mxu0 0
      %541 = vmatmul.mubr.bf16.gmra.mxu0 %v405
      %v542 = vpop.f32.mrf.mxu0
      %v543 = vadd.f32 %v222, %v542
      %v544 = vpop.f32.mrf.mxu0
      %v545 = vadd.f32 %v226, %v544
      %v546 = vpop.f32.mrf.mxu0
      %v547 = vadd.f32 %v222, %v546
      %v548 = vpop.f32.mrf.mxu0
      %v549 = vadd.f32 %v226, %v548
      %550 = vmatprep.mubr.bf16.mxu0 0
      %551 = vmatmul.mubr.bf16.gmra.mxu0 %v408
      %v552 = vpop.f32.mrf.mxu0
      %v553 = vadd.f32 %v222, %v552
      %v554 = vpop.f32.mrf.mxu0
      %v555 = vadd.f32 %v226, %v554
      %v556 = vpop.f32.mrf.mxu0
      %v557 = vadd.f32 %v222, %v556
      %v558 = vpop.f32.mrf.mxu0
      %v559 = vadd.f32 %v226, %v558
      %560 = vmatprep.mubr.bf16.mxu0 0
      %561 = vmatmul.mubr.bf16.gmra.mxu0 %v411
      %v562 = vpop.f32.mrf.mxu0
      %v563 = vadd.f32 %v222, %v562
      %v564 = vpop.f32.mrf.mxu0
      %v565 = vadd.f32 %v226, %v564
      %v566 = vpop.f32.mrf.mxu0
      %v567 = vadd.f32 %v222, %v566
      %v568 = vpop.f32.mrf.mxu0
      %v569 = vadd.f32 %v226, %v568
      %570 = vmatprep.mubr.bf16.mxu0 0
      %571 = vmatmul.mubr.bf16.gmra.mxu0 %v414
      %v572 = vpop.f32.mrf.mxu0
      %v573 = vadd.f32 %v222, %v572
      %v574 = vpop.f32.mrf.mxu0
      %v575 = vadd.f32 %v226, %v574
      %v576 = vpop.f32.mrf.mxu0
      %v577 = vadd.f32 %v222, %v576
      %v578 = vpop.f32.mrf.mxu0
      %v579 = vadd.f32 %v226, %v578
      %580 = vmatprep.mubr.bf16.mxu0 0
      %581 = vmatmul.mubr.bf16.gmra.mxu0 %v417
      %v582 = vpop.f32.mrf.mxu0
      %v583 = vadd.f32 %v222, %v582
      %v584 = vpop.f32.mrf.mxu0
      %v585 = vadd.f32 %v226, %v584
      %v586 = vpop.f32.mrf.mxu0
      %v587 = vadd.f32 %v222, %v586
      %v588 = vpop.f32.mrf.mxu0
      %v589 = vadd.f32 %v226, %v588
      %590 = vmatprep.mubr.bf16.mxu0 0
      %591 = vmatmul.mubr.bf16.gmra.mxu0 %v420
      %v592 = vpop.f32.mrf.mxu0
      %v593 = vadd.f32 %v222, %v592
      %v594 = vpop.f32.mrf.mxu0
      %v595 = vadd.f32 %v226, %v594
      %v596 = vpop.f32.mrf.mxu0
      %v597 = vadd.f32 %v222, %v596
      %v598 = vpop.f32.mrf.mxu0
      %v599 = vadd.f32 %v226, %v598
      %600 = vmatprep.mubr.bf16.mxu0 0
      %601 = vmatmul.mubr.bf16.gmra.mxu0 %v423
      %v602 = vpop.f32.mrf.mxu0
      %v603 = vadd.f32 %v222, %v602
      %v604 = vpop.f32.mrf.mxu0
      %v605 = vadd.f32 %v226, %v604
      %v606 = vpop.f32.mrf.mxu0
      %v607 = vadd.f32 %v222, %v606
      %v608 = vpop.f32.mrf.mxu0
      %v609 = vadd.f32 %v226, %v608
      %610 = vmatprep.mubr.bf16.mxu0 0
      %611 = vmatmul.mubr.bf16.gmra.mxu0 %v426
      %v612 = vpop.f32.mrf.mxu0
      %v613 = vadd.f32 %v222, %v612
      %v614 = vpop.f32.mrf.mxu0
      %v615 = vadd.f32 %v226, %v614
      %v616 = vpop.f32.mrf.mxu0
      %v617 = vadd.f32 %v222, %v616
      %v618 = vpop.f32.mrf.mxu0
      %v619 = vadd.f32 %v226, %v618
      %620 = vdwg.mxu0
      %621 = vmatprep.subr.bf16.mxu0 0
      %622 = vmatpush1.bf16.msra.mxu0 0
      %623 = vmatprep.subr.bf16.mxu0 0
      %624 = vmatpush1.bf16.msra.mxu0 0
      %625 = vmatprep.subr.bf16.mxu0 0
      %626 = vmatpush1.bf16.msra.mxu0 0
      %627 = vmatprep.subr.bf16.mxu0 0
      %628 = vmatpush1.bf16.msra.mxu0 0
      %629 = vmatprep.subr.bf16.mxu0 0
      %630 = vmatpush1.bf16.msra.mxu0 0
      %631 = vmatprep.subr.bf16.mxu0 0
      %632 = vmatpush1.bf16.msra.mxu0 0
      %633 = vmatprep.subr.bf16.mxu0 0
      %634 = vmatpush1.bf16.msra.mxu0 0
      %635 = vmatprep.subr.bf16.mxu0 %v366
      %636 = vmatpush1.bf16.msra.mxu0 %v365
      %637 = vmatprep.subr.bf16.mxu0 0
      %638 = vmatpush2.bf16.msra.mxu0 0
      %639 = vmatprep.subr.bf16.mxu0 0
      %640 = vmatpush2.bf16.msra.mxu0 0
      %641 = vmatprep.subr.bf16.mxu0 0
      %642 = vmatpush2.bf16.msra.mxu0 0
      %643 = vmatprep.subr.bf16.mxu0 0
      %644 = vmatpush2.bf16.msra.mxu0 0
      %645 = vmatprep.subr.bf16.mxu0 0
      %646 = vmatpush2.bf16.msra.mxu0 0
      %647 = vmatprep.subr.bf16.mxu0 0
      %648 = vmatpush2.bf16.msra.mxu0 0
      %649 = vmatprep.subr.bf16.mxu0 0
      %650 = vmatpush2.bf16.msra.mxu0 0
      %651 = vmatprep.subr.bf16.mxu0 0
      %652 = vmatpush2.bf16.msra.mxu0 0
      %653 = vmatprep.mubr.bf16.mxu0 0
      %654 = vmatmul.mubr.bf16.gmra.mxu0 %v381
      %v655 = vpop.f32.mrf.mxu0
      %v656 = vadd.f32 %v230, %v655
      %v657 = vpop.f32.mrf.mxu0
      %v658 = vadd.f32 %v234, %v657
      %v659 = vpop.f32.mrf.mxu0
      %v660 = vadd.f32 %v230, %v659
      %v661 = vpop.f32.mrf.mxu0
      %v662 = vadd.f32 %v234, %v661
      %663 = vmatprep.mubr.bf16.mxu0 0
      %664 = vmatmul.mubr.bf16.gmra.mxu0 %v384
      %v665 = vpop.f32.mrf.mxu0
      %v666 = vadd.f32 %v230, %v665
      %v667 = vpop.f32.mrf.mxu0
      %v668 = vadd.f32 %v234, %v667
      %v669 = vpop.f32.mrf.mxu0
      %v670 = vadd.f32 %v230, %v669
      %v671 = vpop.f32.mrf.mxu0
      %v672 = vadd.f32 %v234, %v671
      %673 = vmatprep.mubr.bf16.mxu0 0
      %674 = vmatmul.mubr.bf16.gmra.mxu0 %v387
      %v675 = vpop.f32.mrf.mxu0
      %v676 = vadd.f32 %v230, %v675
      %v677 = vpop.f32.mrf.mxu0
      %v678 = vadd.f32 %v234, %v677
      %v679 = vpop.f32.mrf.mxu0
      %v680 = vadd.f32 %v230, %v679
      %v681 = vpop.f32.mrf.mxu0
      %v682 = vadd.f32 %v234, %v681
      %683 = vmatprep.mubr.bf16.mxu0 0
      %684 = vmatmul.mubr.bf16.gmra.mxu0 %v390
      %v685 = vpop.f32.mrf.mxu0
      %v686 = vadd.f32 %v230, %v685
      %v687 = vpop.f32.mrf.mxu0
      %v688 = vadd.f32 %v234, %v687
      %v689 = vpop.f32.mrf.mxu0
      %v690 = vadd.f32 %v230, %v689
      %v691 = vpop.f32.mrf.mxu0
      %v692 = vadd.f32 %v234, %v691
      %693 = vmatprep.mubr.bf16.mxu0 0
      %694 = vmatmul.mubr.bf16.gmra.mxu0 %v393
      %v695 = vpop.f32.mrf.mxu0
      %v696 = vadd.f32 %v230, %v695
      %v697 = vpop.f32.mrf.mxu0
      %v698 = vadd.f32 %v234, %v697
      %v699 = vpop.f32.mrf.mxu0
      %v700 = vadd.f32 %v230, %v699
      %v701 = vpop.f32.mrf.mxu0
      %v702 = vadd.f32 %v234, %v701
      %703 = vmatprep.mubr.bf16.mxu0 0
      %704 = vmatmul.mubr.bf16.gmra.mxu0 %v396
      %v705 = vpop.f32.mrf.mxu0
      %v706 = vadd.f32 %v230, %v705
      %v707 = vpop.f32.mrf.mxu0
      %v708 = vadd.f32 %v234, %v707
      %v709 = vpop.f32.mrf.mxu0
      %v710 = vadd.f32 %v230, %v709
      %v711 = vpop.f32.mrf.mxu0
      %v712 = vadd.f32 %v234, %v711
      %713 = vmatprep.mubr.bf16.mxu0 0
      %714 = vmatmul.mubr.bf16.gmra.mxu0 %v399
      %v715 = vpop.f32.mrf.mxu0
      %v716 = vadd.f32 %v230, %v715
      %v717 = vpop.f32.mrf.mxu0
      %v718 = vadd.f32 %v234, %v717
      %v719 = vpop.f32.mrf.mxu0
      %v720 = vadd.f32 %v230, %v719
      %v721 = vpop.f32.mrf.mxu0
      %v722 = vadd.f32 %v234, %v721
      %723 = vmatprep.mubr.bf16.mxu0 0
      %724 = vmatmul.mubr.bf16.gmra.mxu0 %v402
      %v725 = vpop.f32.mrf.mxu0
      %v726 = vadd.f32 %v230, %v725
      %v727 = vpop.f32.mrf.mxu0
      %v728 = vadd.f32 %v234, %v727
      %v729 = vpop.f32.mrf.mxu0
      %v730 = vadd.f32 %v230, %v729
      %v731 = vpop.f32.mrf.mxu0
      %v732 = vadd.f32 %v234, %v731
      %733 = vmatprep.mubr.bf16.mxu0 0
      %734 = vmatmul.mubr.bf16.gmra.mxu0 %v405
      %v735 = vpop.f32.mrf.mxu0
      %v736 = vadd.f32 %v230, %v735
      %v737 = vpop.f32.mrf.mxu0
      %v738 = vadd.f32 %v234, %v737
      %v739 = vpop.f32.mrf.mxu0
      %v740 = vadd.f32 %v230, %v739
      %v741 = vpop.f32.mrf.mxu0
      %v742 = vadd.f32 %v234, %v741
      %743 = vmatprep.mubr.bf16.mxu0 0
      %744 = vmatmul.mubr.bf16.gmra.mxu0 %v408
      %v745 = vpop.f32.mrf.mxu0
      %v746 = vadd.f32 %v230, %v745
      %v747 = vpop.f32.mrf.mxu0
      %v748 = vadd.f32 %v234, %v747
      %v749 = vpop.f32.mrf.mxu0
      %v750 = vadd.f32 %v230, %v749
      %v751 = vpop.f32.mrf.mxu0
      %v752 = vadd.f32 %v234, %v751
      %753 = vmatprep.mubr.bf16.mxu0 0
      %754 = vmatmul.mubr.bf16.gmra.mxu0 %v411
      %v755 = vpop.f32.mrf.mxu0
      %v756 = vadd.f32 %v230, %v755
      %v757 = vpop.f32.mrf.mxu0
      %v758 = vadd.f32 %v234, %v757
      %v759 = vpop.f32.mrf.mxu0
      %v760 = vadd.f32 %v230, %v759
      %v761 = vpop.f32.mrf.mxu0
      %v762 = vadd.f32 %v234, %v761
      %763 = vmatprep.mubr.bf16.mxu0 0
      %764 = vmatmul.mubr.bf16.gmra.mxu0 %v414
      %v765 = vpop.f32.mrf.mxu0
      %v766 = vadd.f32 %v230, %v765
      %v767 = vpop.f32.mrf.mxu0
      %v768 = vadd.f32 %v234, %v767
      %v769 = vpop.f32.mrf.mxu0
      %v770 = vadd.f32 %v230, %v769
      %v771 = vpop.f32.mrf.mxu0
      %v772 = vadd.f32 %v234, %v771
      %773 = vmatprep.mubr.bf16.mxu0 0
      %774 = vmatmul.mubr.bf16.gmra.mxu0 %v417
      %v775 = vpop.f32.mrf.mxu0
      %v776 = vadd.f32 %v230, %v775
      %v777 = vpop.f32.mrf.mxu0
      %v778 = vadd.f32 %v234, %v777
      %v779 = vpop.f32.mrf.mxu0
      %v780 = vadd.f32 %v230, %v779
      %v781 = vpop.f32.mrf.mxu0
      %v782 = vadd.f32 %v234, %v781
      %783 = vmatprep.mubr.bf16.mxu0 0
      %784 = vmatmul.mubr.bf16.gmra.mxu0 %v420
      %v785 = vpop.f32.mrf.mxu0
      %v786 = vadd.f32 %v230, %v785
      %v787 = vpop.f32.mrf.mxu0
      %v788 = vadd.f32 %v234, %v787
      %v789 = vpop.f32.mrf.mxu0
      %v790 = vadd.f32 %v230, %v789
      %v791 = vpop.f32.mrf.mxu0
      %v792 = vadd.f32 %v234, %v791
      %793 = vmatprep.mubr.bf16.mxu0 0
      %794 = vmatmul.mubr.bf16.gmra.mxu0 %v423
      %v795 = vpop.f32.mrf.mxu0
      %v796 = vadd.f32 %v230, %v795
      %v797 = vpop.f32.mrf.mxu0
      %v798 = vadd.f32 %v234, %v797
      %v799 = vpop.f32.mrf.mxu0
      %v800 = vadd.f32 %v230, %v799
      %v801 = vpop.f32.mrf.mxu0
      %v802 = vadd.f32 %v234, %v801
      %803 = vmatprep.mubr.bf16.mxu0 0
      %804 = vmatmul.mubr.bf16.gmra.mxu0 %v426
      %v805 = vpop.f32.mrf.mxu0
      %v806 = vadd.f32 %v230, %v805
      %v807 = vpop.f32.mrf.mxu0
      %v808 = vadd.f32 %v234, %v807
      %v809 = vpop.f32.mrf.mxu0
      %v810 = vadd.f32 %v230, %v809
      %v811 = vpop.f32.mrf.mxu0
      %v812 = vadd.f32 %v234, %v811
      %813 = vdwg.mxu0
      %814 = vmatprep.subr.bf16.mxu0 0
      %815 = vmatpush1.bf16.msra.mxu0 0
      %816 = vmatprep.subr.bf16.mxu0 0
      %817 = vmatpush1.bf16.msra.mxu0 0
      %818 = vmatprep.subr.bf16.mxu0 0
      %819 = vmatpush1.bf16.msra.mxu0 0
      %820 = vmatprep.subr.bf16.mxu0 0
      %821 = vmatpush1.bf16.msra.mxu0 0
      %822 = vmatprep.subr.bf16.mxu0 0
      %823 = vmatpush1.bf16.msra.mxu0 0
      %824 = vmatprep.subr.bf16.mxu0 0
      %825 = vmatpush1.bf16.msra.mxu0 0
      %826 = vmatprep.subr.bf16.mxu0 0
      %827 = vmatpush1.bf16.msra.mxu0 0
      %828 = vmatprep.subr.bf16.mxu0 %v368
      %829 = vmatpush1.bf16.msra.mxu0 %v367
      %830 = vmatprep.subr.bf16.mxu0 0
      %831 = vmatpush2.bf16.msra.mxu0 0
      %832 = vmatprep.subr.bf16.mxu0 0
      %833 = vmatpush2.bf16.msra.mxu0 0
      %834 = vmatprep.subr.bf16.mxu0 0
      %835 = vmatpush2.bf16.msra.mxu0 0
      %836 = vmatprep.subr.bf16.mxu0 0
      %837 = vmatpush2.bf16.msra.mxu0 0
      %838 = vmatprep.subr.bf16.mxu0 0
      %839 = vmatpush2.bf16.msra.mxu0 0
      %840 = vmatprep.subr.bf16.mxu0 0
      %841 = vmatpush2.bf16.msra.mxu0 0
      %842 = vmatprep.subr.bf16.mxu0 0
      %843 = vmatpush2.bf16.msra.mxu0 0
      %844 = vmatprep.subr.bf16.mxu0 0
      %845 = vmatpush2.bf16.msra.mxu0 0
      %846 = vmatprep.mubr.bf16.mxu0 0
      %847 = vmatmul.mubr.bf16.gmra.mxu0 %v381
      %v848 = vpop.f32.mrf.mxu0
      %v849 = vadd.f32 %v238, %v848
      %v850 = vpop.f32.mrf.mxu0
      %v851 = vadd.f32 %v242, %v850
      %v852 = vpop.f32.mrf.mxu0
      %v853 = vadd.f32 %v238, %v852
      %v854 = vpop.f32.mrf.mxu0
      %v855 = vadd.f32 %v242, %v854
      %856 = vmatprep.mubr.bf16.mxu0 0
      %857 = vmatmul.mubr.bf16.gmra.mxu0 %v384
      %v858 = vpop.f32.mrf.mxu0
      %v859 = vadd.f32 %v238, %v858
      %v860 = vpop.f32.mrf.mxu0
      %v861 = vadd.f32 %v242, %v860
      %v862 = vpop.f32.mrf.mxu0
      %v863 = vadd.f32 %v238, %v862
      %v864 = vpop.f32.mrf.mxu0
      %v865 = vadd.f32 %v242, %v864
      %866 = vmatprep.mubr.bf16.mxu0 0
      %867 = vmatmul.mubr.bf16.gmra.mxu0 %v387
      %v868 = vpop.f32.mrf.mxu0
      %v869 = vadd.f32 %v238, %v868
      %v870 = vpop.f32.mrf.mxu0
      %v871 = vadd.f32 %v242, %v870
      %v872 = vpop.f32.mrf.mxu0
      %v873 = vadd.f32 %v238, %v872
      %v874 = vpop.f32.mrf.mxu0
      %v875 = vadd.f32 %v242, %v874
      %876 = vmatprep.mubr.bf16.mxu0 0
      %877 = vmatmul.mubr.bf16.gmra.mxu0 %v390
      %v878 = vpop.f32.mrf.mxu0
      %v879 = vadd.f32 %v238, %v878
      %v880 = vpop.f32.mrf.mxu0
      %v881 = vadd.f32 %v242, %v880
      %v882 = vpop.f32.mrf.mxu0
      %v883 = vadd.f32 %v238, %v882
      %v884 = vpop.f32.mrf.mxu0
      %v885 = vadd.f32 %v242, %v884
      %886 = vmatprep.mubr.bf16.mxu0 0
      %887 = vmatmul.mubr.bf16.gmra.mxu0 %v393
      %v888 = vpop.f32.mrf.mxu0
      %v889 = vadd.f32 %v238, %v888
      %v890 = vpop.f32.mrf.mxu0
      %v891 = vadd.f32 %v242, %v890
      %v892 = vpop.f32.mrf.mxu0
      %v893 = vadd.f32 %v238, %v892
      %v894 = vpop.f32.mrf.mxu0
      %v895 = vadd.f32 %v242, %v894
      %896 = vmatprep.mubr.bf16.mxu0 0
      %897 = vmatmul.mubr.bf16.gmra.mxu0 %v396
      %v898 = vpop.f32.mrf.mxu0
      %v899 = vadd.f32 %v238, %v898
      %v900 = vpop.f32.mrf.mxu0
      %v901 = vadd.f32 %v242, %v900
      %v902 = vpop.f32.mrf.mxu0
      %v903 = vadd.f32 %v238, %v902
      %v904 = vpop.f32.mrf.mxu0
      %v905 = vadd.f32 %v242, %v904
      %906 = vmatprep.mubr.bf16.mxu0 0
      %907 = vmatmul.mubr.bf16.gmra.mxu0 %v399
      %v908 = vpop.f32.mrf.mxu0
      %v909 = vadd.f32 %v238, %v908
      %v910 = vpop.f32.mrf.mxu0
      %v911 = vadd.f32 %v242, %v910
      %v912 = vpop.f32.mrf.mxu0
      %v913 = vadd.f32 %v238, %v912
      %v914 = vpop.f32.mrf.mxu0
      %v915 = vadd.f32 %v242, %v914
      %916 = vmatprep.mubr.bf16.mxu0 0
      %917 = vmatmul.mubr.bf16.gmra.mxu0 %v402
      %v918 = vpop.f32.mrf.mxu0
      %v919 = vadd.f32 %v238, %v918
      %v920 = vpop.f32.mrf.mxu0
      %v921 = vadd.f32 %v242, %v920
      %v922 = vpop.f32.mrf.mxu0
      %v923 = vadd.f32 %v238, %v922
      %v924 = vpop.f32.mrf.mxu0
      %v925 = vadd.f32 %v242, %v924
      %926 = vmatprep.mubr.bf16.mxu0 0
      %927 = vmatmul.mubr.bf16.gmra.mxu0 %v405
      %v928 = vpop.f32.mrf.mxu0
      %v929 = vadd.f32 %v238, %v928
      %v930 = vpop.f32.mrf.mxu0
      %v931 = vadd.f32 %v242, %v930
      %v932 = vpop.f32.mrf.mxu0
      %v933 = vadd.f32 %v238, %v932
      %v934 = vpop.f32.mrf.mxu0
      %v935 = vadd.f32 %v242, %v934
      %936 = vmatprep.mubr.bf16.mxu0 0
      %937 = vmatmul.mubr.bf16.gmra.mxu0 %v408
      %v938 = vpop.f32.mrf.mxu0
      %v939 = vadd.f32 %v238, %v938
      %v940 = vpop.f32.mrf.mxu0
      %v941 = vadd.f32 %v242, %v940
      %v942 = vpop.f32.mrf.mxu0
      %v943 = vadd.f32 %v238, %v942
      %v944 = vpop.f32.mrf.mxu0
      %v945 = vadd.f32 %v242, %v944
      %946 = vmatprep.mubr.bf16.mxu0 0
      %947 = vmatmul.mubr.bf16.gmra.mxu0 %v411
      %v948 = vpop.f32.mrf.mxu0
      %v949 = vadd.f32 %v238, %v948
      %v950 = vpop.f32.mrf.mxu0
      %v951 = vadd.f32 %v242, %v950
      %v952 = vpop.f32.mrf.mxu0
      %v953 = vadd.f32 %v238, %v952
      %v954 = vpop.f32.mrf.mxu0
      %v955 = vadd.f32 %v242, %v954
      %956 = vmatprep.mubr.bf16.mxu0 0
      %957 = vmatmul.mubr.bf16.gmra.mxu0 %v414
      %v958 = vpop.f32.mrf.mxu0
      %v959 = vadd.f32 %v238, %v958
      %v960 = vpop.f32.mrf.mxu0
      %v961 = vadd.f32 %v242, %v960
      %v962 = vpop.f32.mrf.mxu0
      %v963 = vadd.f32 %v238, %v962
      %v964 = vpop.f32.mrf.mxu0
      %v965 = vadd.f32 %v242, %v964
      %966 = vmatprep.mubr.bf16.mxu0 0
      %967 = vmatmul.mubr.bf16.gmra.mxu0 %v417
      %v968 = vpop.f32.mrf.mxu0
      %v969 = vadd.f32 %v238, %v968
      %v970 = vpop.f32.mrf.mxu0
      %v971 = vadd.f32 %v242, %v970
      %v972 = vpop.f32.mrf.mxu0
      %v973 = vadd.f32 %v238, %v972
      %v974 = vpop.f32.mrf.mxu0
      %v975 = vadd.f32 %v242, %v974
      %976 = vmatprep.mubr.bf16.mxu0 0
      %977 = vmatmul.mubr.bf16.gmra.mxu0 %v420
      %v978 = vpop.f32.mrf.mxu0
      %v979 = vadd.f32 %v238, %v978
      %v980 = vpop.f32.mrf.mxu0
      %v981 = vadd.f32 %v242, %v980
      %v982 = vpop.f32.mrf.mxu0
      %v983 = vadd.f32 %v238, %v982
      %v984 = vpop.f32.mrf.mxu0
      %v985 = vadd.f32 %v242, %v984
      %986 = vmatprep.mubr.bf16.mxu0 0
      %987 = vmatmul.mubr.bf16.gmra.mxu0 %v423
      %v988 = vpop.f32.mrf.mxu0
      %v989 = vadd.f32 %v238, %v988
      %v990 = vpop.f32.mrf.mxu0
      %v991 = vadd.f32 %v242, %v990
      %v992 = vpop.f32.mrf.mxu0
      %v993 = vadd.f32 %v238, %v992
      %v994 = vpop.f32.mrf.mxu0
      %v995 = vadd.f32 %v242, %v994
      %996 = vmatprep.mubr.bf16.mxu0 0
      %997 = vmatmul.mubr.bf16.gmra.mxu0 %v426
      %v998 = vpop.f32.mrf.mxu0
      %v999 = vadd.f32 %v238, %v998
      %v1000 = vpop.f32.mrf.mxu0
      %v1001 = vadd.f32 %v242, %v1000
      %v1002 = vpop.f32.mrf.mxu0
      %v1003 = vadd.f32 %v238, %v1002
      %v1004 = vpop.f32.mrf.mxu0
      %v1005 = vadd.f32 %v242, %v1004
      %1006 = vdwg.mxu0
      %1007 = vmatprep.subr.bf16.mxu0 0
      %1008 = vmatpush1.bf16.msra.mxu0 0
      %1009 = vmatprep.subr.bf16.mxu0 0
      %1010 = vmatpush1.bf16.msra.mxu0 0
      %1011 = vmatprep.subr.bf16.mxu0 0
      %1012 = vmatpush1.bf16.msra.mxu0 0
      %1013 = vmatprep.subr.bf16.mxu0 0
      %1014 = vmatpush1.bf16.msra.mxu0 0
      %1015 = vmatprep.subr.bf16.mxu0 0
      %1016 = vmatpush1.bf16.msra.mxu0 0
      %1017 = vmatprep.subr.bf16.mxu0 0
      %1018 = vmatpush1.bf16.msra.mxu0 0
      %1019 = vmatprep.subr.bf16.mxu0 0
      %1020 = vmatpush1.bf16.msra.mxu0 0
      %1021 = vmatprep.subr.bf16.mxu0 %v370
      %1022 = vmatpush1.bf16.msra.mxu0 %v369
      %1023 = vmatprep.subr.bf16.mxu0 0
      %1024 = vmatpush2.bf16.msra.mxu0 0
      %1025 = vmatprep.subr.bf16.mxu0 0
      %1026 = vmatpush2.bf16.msra.mxu0 0
      %1027 = vmatprep.subr.bf16.mxu0 0
      %1028 = vmatpush2.bf16.msra.mxu0 0
      %1029 = vmatprep.subr.bf16.mxu0 0
      %1030 = vmatpush2.bf16.msra.mxu0 0
      %1031 = vmatprep.subr.bf16.mxu0 0
      %1032 = vmatpush2.bf16.msra.mxu0 0
      %1033 = vmatprep.subr.bf16.mxu0 0
      %1034 = vmatpush2.bf16.msra.mxu0 0
      %1035 = vmatprep.subr.bf16.mxu0 0
      %1036 = vmatpush2.bf16.msra.mxu0 0
      %1037 = vmatprep.subr.bf16.mxu0 0
      %1038 = vmatpush2.bf16.msra.mxu0 0
      %1039 = vmatprep.mubr.bf16.mxu0 0
      %1040 = vmatmul.mubr.bf16.gmra.mxu0 %v381
      %v1041 = vpop.f32.mrf.mxu0
      %v1042 = vadd.f32 %v246, %v1041
      %v1043 = vpop.f32.mrf.mxu0
      %v1044 = vadd.f32 %v250, %v1043
      %v1045 = vpop.f32.mrf.mxu0
      %v1046 = vadd.f32 %v246, %v1045
      %v1047 = vpop.f32.mrf.mxu0
      %v1048 = vadd.f32 %v250, %v1047
      %1049 = vmatprep.mubr.bf16.mxu0 0
      %1050 = vmatmul.mubr.bf16.gmra.mxu0 %v384
      %v1051 = vpop.f32.mrf.mxu0
      %v1052 = vadd.f32 %v246, %v1051
      %v1053 = vpop.f32.mrf.mxu0
      %v1054 = vadd.f32 %v250, %v1053
      %v1055 = vpop.f32.mrf.mxu0
      %v1056 = vadd.f32 %v246, %v1055
      %v1057 = vpop.f32.mrf.mxu0
      %v1058 = vadd.f32 %v250, %v1057
      %1059 = vmatprep.mubr.bf16.mxu0 0
      %1060 = vmatmul.mubr.bf16.gmra.mxu0 %v387
      %v1061 = vpop.f32.mrf.mxu0
      %v1062 = vadd.f32 %v246, %v1061
      %v1063 = vpop.f32.mrf.mxu0
      %v1064 = vadd.f32 %v250, %v1063
      %v1065 = vpop.f32.mrf.mxu0
      %v1066 = vadd.f32 %v246, %v1065
      %v1067 = vpop.f32.mrf.mxu0
      %v1068 = vadd.f32 %v250, %v1067
      %1069 = vmatprep.mubr.bf16.mxu0 0
      %1070 = vmatmul.mubr.bf16.gmra.mxu0 %v390
      %v1071 = vpop.f32.mrf.mxu0
      %v1072 = vadd.f32 %v246, %v1071
      %v1073 = vpop.f32.mrf.mxu0
      %v1074 = vadd.f32 %v250, %v1073
      %v1075 = vpop.f32.mrf.mxu0
      %v1076 = vadd.f32 %v246, %v1075
      %v1077 = vpop.f32.mrf.mxu0
      %v1078 = vadd.f32 %v250, %v1077
      %1079 = vmatprep.mubr.bf16.mxu0 0
      %1080 = vmatmul.mubr.bf16.gmra.mxu0 %v393
      %v1081 = vpop.f32.mrf.mxu0
      %v1082 = vadd.f32 %v246, %v1081
      %v1083 = vpop.f32.mrf.mxu0
      %v1084 = vadd.f32 %v250, %v1083
      %v1085 = vpop.f32.mrf.mxu0
      %v1086 = vadd.f32 %v246, %v1085
      %v1087 = vpop.f32.mrf.mxu0
      %v1088 = vadd.f32 %v250, %v1087
      %1089 = vmatprep.mubr.bf16.mxu0 0
      %1090 = vmatmul.mubr.bf16.gmra.mxu0 %v396
      %v1091 = vpop.f32.mrf.mxu0
      %v1092 = vadd.f32 %v246, %v1091
      %v1093 = vpop.f32.mrf.mxu0
      %v1094 = vadd.f32 %v250, %v1093
      %v1095 = vpop.f32.mrf.mxu0
      %v1096 = vadd.f32 %v246, %v1095
      %v1097 = vpop.f32.mrf.mxu0
      %v1098 = vadd.f32 %v250, %v1097
      %1099 = vmatprep.mubr.bf16.mxu0 0
      %1100 = vmatmul.mubr.bf16.gmra.mxu0 %v399
      %v1101 = vpop.f32.mrf.mxu0
      %v1102 = vadd.f32 %v246, %v1101
      %v1103 = vpop.f32.mrf.mxu0
      %v1104 = vadd.f32 %v250, %v1103
      %v1105 = vpop.f32.mrf.mxu0
      %v1106 = vadd.f32 %v246, %v1105
      %v1107 = vpop.f32.mrf.mxu0
      %v1108 = vadd.f32 %v250, %v1107
      %1109 = vmatprep.mubr.bf16.mxu0 0
      %1110 = vmatmul.mubr.bf16.gmra.mxu0 %v402
      %v1111 = vpop.f32.mrf.mxu0
      %v1112 = vadd.f32 %v246, %v1111
      %v1113 = vpop.f32.mrf.mxu0
      %v1114 = vadd.f32 %v250, %v1113
      %v1115 = vpop.f32.mrf.mxu0
      %v1116 = vadd.f32 %v246, %v1115
      %v1117 = vpop.f32.mrf.mxu0
      %v1118 = vadd.f32 %v250, %v1117
      %1119 = vmatprep.mubr.bf16.mxu0 0
      %1120 = vmatmul.mubr.bf16.gmra.mxu0 %v405
      %v1121 = vpop.f32.mrf.mxu0
      %v1122 = vadd.f32 %v246, %v1121
      %v1123 = vpop.f32.mrf.mxu0
      %v1124 = vadd.f32 %v250, %v1123
      %v1125 = vpop.f32.mrf.mxu0
      %v1126 = vadd.f32 %v246, %v1125
      %v1127 = vpop.f32.mrf.mxu0
      %v1128 = vadd.f32 %v250, %v1127
      %1129 = vmatprep.mubr.bf16.mxu0 0
      %1130 = vmatmul.mubr.bf16.gmra.mxu0 %v408
      %v1131 = vpop.f32.mrf.mxu0
      %v1132 = vadd.f32 %v246, %v1131
      %v1133 = vpop.f32.mrf.mxu0
      %v1134 = vadd.f32 %v250, %v1133
      %v1135 = vpop.f32.mrf.mxu0
      %v1136 = vadd.f32 %v246, %v1135
      %v1137 = vpop.f32.mrf.mxu0
      %v1138 = vadd.f32 %v250, %v1137
      %1139 = vmatprep.mubr.bf16.mxu0 0
      %1140 = vmatmul.mubr.bf16.gmra.mxu0 %v411
      %v1141 = vpop.f32.mrf.mxu0
      %v1142 = vadd.f32 %v246, %v1141
      %v1143 = vpop.f32.mrf.mxu0
      %v1144 = vadd.f32 %v250, %v1143
      %v1145 = vpop.f32.mrf.mxu0
      %v1146 = vadd.f32 %v246, %v1145
      %v1147 = vpop.f32.mrf.mxu0
      %v1148 = vadd.f32 %v250, %v1147
      %1149 = vmatprep.mubr.bf16.mxu0 0
      %1150 = vmatmul.mubr.bf16.gmra.mxu0 %v414
      %v1151 = vpop.f32.mrf.mxu0
      %v1152 = vadd.f32 %v246, %v1151
      %v1153 = vpop.f32.mrf.mxu0
      %v1154 = vadd.f32 %v250, %v1153
      %v1155 = vpop.f32.mrf.mxu0
      %v1156 = vadd.f32 %v246, %v1155
      %v1157 = vpop.f32.mrf.mxu0
      %v1158 = vadd.f32 %v250, %v1157
      %1159 = vmatprep.mubr.bf16.mxu0 0
      %1160 = vmatmul.mubr.bf16.gmra.mxu0 %v417
      %v1161 = vpop.f32.mrf.mxu0
      %v1162 = vadd.f32 %v246, %v1161
      %v1163 = vpop.f32.mrf.mxu0
      %v1164 = vadd.f32 %v250, %v1163
      %v1165 = vpop.f32.mrf.mxu0
      %v1166 = vadd.f32 %v246, %v1165
      %v1167 = vpop.f32.mrf.mxu0
      %v1168 = vadd.f32 %v250, %v1167
      %1169 = vmatprep.mubr.bf16.mxu0 0
      %1170 = vmatmul.mubr.bf16.gmra.mxu0 %v420
      %v1171 = vpop.f32.mrf.mxu0
      %v1172 = vadd.f32 %v246, %v1171
      %v1173 = vpop.f32.mrf.mxu0
      %v1174 = vadd.f32 %v250, %v1173
      %v1175 = vpop.f32.mrf.mxu0
      %v1176 = vadd.f32 %v246, %v1175
      %v1177 = vpop.f32.mrf.mxu0
      %v1178 = vadd.f32 %v250, %v1177
      %1179 = vmatprep.mubr.bf16.mxu0 0
      %1180 = vmatmul.mubr.bf16.gmra.mxu0 %v423
      %v1181 = vpop.f32.mrf.mxu0
      %v1182 = vadd.f32 %v246, %v1181
      %v1183 = vpop.f32.mrf.mxu0
      %v1184 = vadd.f32 %v250, %v1183
      %v1185 = vpop.f32.mrf.mxu0
      %v1186 = vadd.f32 %v246, %v1185
      %v1187 = vpop.f32.mrf.mxu0
      %v1188 = vadd.f32 %v250, %v1187
      %1189 = vmatprep.mubr.bf16.mxu0 0
      %1190 = vmatmul.mubr.bf16.gmra.mxu0 %v426
      %v1191 = vpop.f32.mrf.mxu0
      %v1192 = vadd.f32 %v246, %v1191
      %v1193 = vpop.f32.mrf.mxu0
      %v1194 = vadd.f32 %v250, %v1193
      %v1195 = vpop.f32.mrf.mxu0
      %v1196 = vadd.f32 %v246, %v1195
      %v1197 = vpop.f32.mrf.mxu0
      %v1198 = vadd.f32 %v250, %v1197
      %1199 = vdwg.mxu0
      %v1200 = vpack.c.bf16 %v467, %v463
      %v1201 = vpack.c.bf16 %v469, %v465
      %v1202 = vpack.c.bf16 %v660, %v656
      %v1203 = vpack.c.bf16 %v662, %v658
      %v1204 = vpack.c.bf16 %v853, %v849
      %v1205 = vpack.c.bf16 %v855, %v851
      %v1206 = vpack.c.bf16 %v1046, %v1042
      %v1207 = vpack.c.bf16 %v1048, %v1044
      %v1208 = vpack.c.bf16 %v477, %v473
      %v1209 = vpack.c.bf16 %v479, %v475
      %v1210 = vpack.c.bf16 %v670, %v666
      %v1211 = vpack.c.bf16 %v672, %v668
      %v1212 = vpack.c.bf16 %v863, %v859
      %v1213 = vpack.c.bf16 %v865, %v861
      %v1214 = vpack.c.bf16 %v1056, %v1052
      %v1215 = vpack.c.bf16 %v1058, %v1054
      %v1216 = vpack.c.bf16 %v487, %v483
      %v1217 = vpack.c.bf16 %v489, %v485
      %v1218 = vpack.c.bf16 %v680, %v676
      %v1219 = vpack.c.bf16 %v682, %v678
      %v1220 = vpack.c.bf16 %v873, %v869
      %v1221 = vpack.c.bf16 %v875, %v871
      %v1222 = vpack.c.bf16 %v1066, %v1062
      %v1223 = vpack.c.bf16 %v1068, %v1064
      %v1224 = vpack.c.bf16 %v497, %v493
      %v1225 = vpack.c.bf16 %v499, %v495
      %v1226 = vpack.c.bf16 %v690, %v686
      %v1227 = vpack.c.bf16 %v692, %v688
      %v1228 = vpack.c.bf16 %v883, %v879
      %v1229 = vpack.c.bf16 %v885, %v881
      %v1230 = vpack.c.bf16 %v1076, %v1072
      %v1231 = vpack.c.bf16 %v1078, %v1074
      %v1232 = vpack.c.bf16 %v507, %v503
      %v1233 = vpack.c.bf16 %v509, %v505
      %v1234 = vpack.c.bf16 %v700, %v696
      %v1235 = vpack.c.bf16 %v702, %v698
      %v1236 = vpack.c.bf16 %v893, %v889
      %v1237 = vpack.c.bf16 %v895, %v891
      %v1238 = vpack.c.bf16 %v1086, %v1082
      %v1239 = vpack.c.bf16 %v1088, %v1084
      %v1240 = vpack.c.bf16 %v517, %v513
      %v1241 = vpack.c.bf16 %v519, %v515
      %v1242 = vpack.c.bf16 %v710, %v706
      %v1243 = vpack.c.bf16 %v712, %v708
      %v1244 = vpack.c.bf16 %v903, %v899
      %v1245 = vpack.c.bf16 %v905, %v901
      %v1246 = vpack.c.bf16 %v1096, %v1092
      %v1247 = vpack.c.bf16 %v1098, %v1094
      %v1248 = vpack.c.bf16 %v527, %v523
      %v1249 = vpack.c.bf16 %v529, %v525
      %v1250 = vpack.c.bf16 %v720, %v716
      %v1251 = vpack.c.bf16 %v722, %v718
      %v1252 = vpack.c.bf16 %v913, %v909
      %v1253 = vpack.c.bf16 %v915, %v911
      %v1254 = vpack.c.bf16 %v1106, %v1102
      %v1255 = vpack.c.bf16 %v1108, %v1104
      %v1256 = vpack.c.bf16 %v537, %v533
      %v1257 = vpack.c.bf16 %v539, %v535
      %v1258 = vpack.c.bf16 %v730, %v726
      %v1259 = vpack.c.bf16 %v732, %v728
      %v1260 = vpack.c.bf16 %v923, %v919
      %v1261 = vpack.c.bf16 %v925, %v921
      %v1262 = vpack.c.bf16 %v1116, %v1112
      %v1263 = vpack.c.bf16 %v1118, %v1114
      %v1264 = vpack.c.bf16 %v547, %v543
      %v1265 = vpack.c.bf16 %v549, %v545
      %v1266 = vpack.c.bf16 %v740, %v736
      %v1267 = vpack.c.bf16 %v742, %v738
      %v1268 = vpack.c.bf16 %v933, %v929
      %v1269 = vpack.c.bf16 %v935, %v931
      %v1270 = vpack.c.bf16 %v1126, %v1122
      %v1271 = vpack.c.bf16 %v1128, %v1124
      %v1272 = vpack.c.bf16 %v557, %v553
      %v1273 = vpack.c.bf16 %v559, %v555
      %v1274 = vpack.c.bf16 %v750, %v746
      %v1275 = vpack.c.bf16 %v752, %v748
      %v1276 = vpack.c.bf16 %v943, %v939
      %v1277 = vpack.c.bf16 %v945, %v941
      %v1278 = vpack.c.bf16 %v1136, %v1132
      %v1279 = vpack.c.bf16 %v1138, %v1134
      %v1280 = vpack.c.bf16 %v567, %v563
      %v1281 = vpack.c.bf16 %v569, %v565
      %v1282 = vpack.c.bf16 %v760, %v756
      %v1283 = vpack.c.bf16 %v762, %v758
      %v1284 = vpack.c.bf16 %v953, %v949
      %v1285 = vpack.c.bf16 %v955, %v951
      %v1286 = vpack.c.bf16 %v1146, %v1142
      %v1287 = vpack.c.bf16 %v1148, %v1144
      %v1288 = vpack.c.bf16 %v577, %v573
      %v1289 = vpack.c.bf16 %v579, %v575
      %v1290 = vpack.c.bf16 %v770, %v766
      %v1291 = vpack.c.bf16 %v772, %v768
      %v1292 = vpack.c.bf16 %v963, %v959
      %v1293 = vpack.c.bf16 %v965, %v961
      %v1294 = vpack.c.bf16 %v1156, %v1152
      %v1295 = vpack.c.bf16 %v1158, %v1154
      %v1296 = vpack.c.bf16 %v587, %v583
      %v1297 = vpack.c.bf16 %v589, %v585
      %v1298 = vpack.c.bf16 %v780, %v776
      %v1299 = vpack.c.bf16 %v782, %v778
      %v1300 = vpack.c.bf16 %v973, %v969
      %v1301 = vpack.c.bf16 %v975, %v971
      %v1302 = vpack.c.bf16 %v1166, %v1162
      %v1303 = vpack.c.bf16 %v1168, %v1164
      %v1304 = vpack.c.bf16 %v597, %v593
      %v1305 = vpack.c.bf16 %v599, %v595
      %v1306 = vpack.c.bf16 %v790, %v786
      %v1307 = vpack.c.bf16 %v792, %v788
      %v1308 = vpack.c.bf16 %v983, %v979
      %v1309 = vpack.c.bf16 %v985, %v981
      %v1310 = vpack.c.bf16 %v1176, %v1172
      %v1311 = vpack.c.bf16 %v1178, %v1174
      %v1312 = vpack.c.bf16 %v607, %v603
      %v1313 = vpack.c.bf16 %v609, %v605
      %v1314 = vpack.c.bf16 %v800, %v796
      %v1315 = vpack.c.bf16 %v802, %v798
      %v1316 = vpack.c.bf16 %v993, %v989
      %v1317 = vpack.c.bf16 %v995, %v991
      %v1318 = vpack.c.bf16 %v1186, %v1182
      %v1319 = vpack.c.bf16 %v1188, %v1184
      %v1320 = vpack.c.bf16 %v617, %v613
      %v1321 = vpack.c.bf16 %v619, %v615
      %v1322 = vpack.c.bf16 %v810, %v806
      %v1323 = vpack.c.bf16 %v812, %v808
      %v1324 = vpack.c.bf16 %v1003, %v999
      %v1325 = vpack.c.bf16 %v1005, %v1001
      %v1326 = vpack.c.bf16 %v1196, %v1192
      %v1327 = vpack.c.bf16 %v1198, %v1194
      %v1456 = vunpack.c.l.b16 %v1200
      %v1457 = vunpack.c.l.b16 %v1201
      %v1458 = vunpack.c.l.b16 %v1202
      %v1459 = vunpack.c.l.b16 %v1203
      %v1460 = vunpack.c.l.b16 %v1204
      %v1461 = vunpack.c.l.b16 %v1205
      %v1462 = vunpack.c.l.b16 %v1206
      %v1463 = vunpack.c.l.b16 %v1207
      %v1464 = vunpack.c.h.b16 %v1200
      %v1465 = vunpack.c.h.b16 %v1201
      %v1466 = vunpack.c.h.b16 %v1202
      %v1467 = vunpack.c.h.b16 %v1203
      %v1468 = vunpack.c.h.b16 %v1204
      %v1469 = vunpack.c.h.b16 %v1205
      %v1470 = vunpack.c.h.b16 %v1206
      %v1471 = vunpack.c.h.b16 %v1207
      %v1472 = vunpack.c.l.b16 %v1208
      %v1473 = vunpack.c.l.b16 %v1209
      %v1474 = vunpack.c.l.b16 %v1210
      %v1475 = vunpack.c.l.b16 %v1211
      %v1476 = vunpack.c.l.b16 %v1212
      %v1477 = vunpack.c.l.b16 %v1213
      %v1478 = vunpack.c.l.b16 %v1214
      %v1479 = vunpack.c.l.b16 %v1215
      %v1480 = vunpack.c.h.b16 %v1208
      %v1481 = vunpack.c.h.b16 %v1209
      %v1482 = vunpack.c.h.b16 %v1210
      %v1483 = vunpack.c.h.b16 %v1211
      %v1484 = vunpack.c.h.b16 %v1212
      %v1485 = vunpack.c.h.b16 %v1213
      %v1486 = vunpack.c.h.b16 %v1214
      %v1487 = vunpack.c.h.b16 %v1215
      %v1488 = vunpack.c.l.b16 %v1216
      %v1489 = vunpack.c.l.b16 %v1217
      %v1490 = vunpack.c.l.b16 %v1218
      %v1491 = vunpack.c.l.b16 %v1219
      %v1492 = vunpack.c.l.b16 %v1220
      %v1493 = vunpack.c.l.b16 %v1221
      %v1494 = vunpack.c.l.b16 %v1222
      %v1495 = vunpack.c.l.b16 %v1223
      %v1496 = vunpack.c.h.b16 %v1216
      %v1497 = vunpack.c.h.b16 %v1217
      %v1498 = vunpack.c.h.b16 %v1218
      %v1499 = vunpack.c.h.b16 %v1219
      %v1500 = vunpack.c.h.b16 %v1220
      %v1501 = vunpack.c.h.b16 %v1221
      %v1502 = vunpack.c.h.b16 %v1222
      %v1503 = vunpack.c.h.b16 %v1223
      %v1504 = vunpack.c.l.b16 %v1224
      %v1505 = vunpack.c.l.b16 %v1225
      %v1506 = vunpack.c.l.b16 %v1226
      %v1507 = vunpack.c.l.b16 %v1227
      %v1508 = vunpack.c.l.b16 %v1228
      %v1509 = vunpack.c.l.b16 %v1229
      %v1510 = vunpack.c.l.b16 %v1230
      %v1511 = vunpack.c.l.b16 %v1231
      %v1512 = vunpack.c.h.b16 %v1224
      %v1513 = vunpack.c.h.b16 %v1225
      %v1514 = vunpack.c.h.b16 %v1226
      %v1515 = vunpack.c.h.b16 %v1227
      %v1516 = vunpack.c.h.b16 %v1228
      %v1517 = vunpack.c.h.b16 %v1229
      %v1518 = vunpack.c.h.b16 %v1230
      %v1519 = vunpack.c.h.b16 %v1231
      %v1520 = vunpack.c.l.b16 %v1232
      %v1521 = vunpack.c.l.b16 %v1233
      %v1522 = vunpack.c.l.b16 %v1234
      %v1523 = vunpack.c.l.b16 %v1235
      %v1524 = vunpack.c.l.b16 %v1236
      %v1525 = vunpack.c.l.b16 %v1237
      %v1526 = vunpack.c.l.b16 %v1238
      %v1527 = vunpack.c.l.b16 %v1239
      %v1528 = vunpack.c.h.b16 %v1232
      %v1529 = vunpack.c.h.b16 %v1233
      %v1530 = vunpack.c.h.b16 %v1234
      %v1531 = vunpack.c.h.b16 %v1235
      %v1532 = vunpack.c.h.b16 %v1236
      %v1533 = vunpack.c.h.b16 %v1237
      %v1534 = vunpack.c.h.b16 %v1238
      %v1535 = vunpack.c.h.b16 %v1239
      %v1536 = vunpack.c.l.b16 %v1240
      %v1537 = vunpack.c.l.b16 %v1241
      %v1538 = vunpack.c.l.b16 %v1242
      %v1539 = vunpack.c.l.b16 %v1243
      %v1540 = vunpack.c.l.b16 %v1244
      %v1541 = vunpack.c.l.b16 %v1245
      %v1542 = vunpack.c.l.b16 %v1246
      %v1543 = vunpack.c.l.b16 %v1247
      %v1544 = vunpack.c.h.b16 %v1240
      %v1545 = vunpack.c.h.b16 %v1241
      %v1546 = vunpack.c.h.b16 %v1242
      %v1547 = vunpack.c.h.b16 %v1243
      %v1548 = vunpack.c.h.b16 %v1244
      %v1549 = vunpack.c.h.b16 %v1245
      %v1550 = vunpack.c.h.b16 %v1246
      %v1551 = vunpack.c.h.b16 %v1247
      %v1552 = vunpack.c.l.b16 %v1248
      %v1553 = vunpack.c.l.b16 %v1249
      %v1554 = vunpack.c.l.b16 %v1250
      %v1555 = vunpack.c.l.b16 %v1251
      %v1556 = vunpack.c.l.b16 %v1252
      %v1557 = vunpack.c.l.b16 %v1253
      %v1558 = vunpack.c.l.b16 %v1254
      %v1559 = vunpack.c.l.b16 %v1255
      %v1560 = vunpack.c.h.b16 %v1248
      %v1561 = vunpack.c.h.b16 %v1249
      %v1562 = vunpack.c.h.b16 %v1250
      %v1563 = vunpack.c.h.b16 %v1251
      %v1564 = vunpack.c.h.b16 %v1252
      %v1565 = vunpack.c.h.b16 %v1253
      %v1566 = vunpack.c.h.b16 %v1254
      %v1567 = vunpack.c.h.b16 %v1255
      %v1568 = vunpack.c.l.b16 %v1256
      %v1569 = vunpack.c.l.b16 %v1257
      %v1570 = vunpack.c.l.b16 %v1258
      %v1571 = vunpack.c.l.b16 %v1259
      %v1572 = vunpack.c.l.b16 %v1260
      %v1573 = vunpack.c.l.b16 %v1261
      %v1574 = vunpack.c.l.b16 %v1262
      %v1575 = vunpack.c.l.b16 %v1263
      %v1576 = vunpack.c.h.b16 %v1256
      %v1577 = vunpack.c.h.b16 %v1257
      %v1578 = vunpack.c.h.b16 %v1258
      %v1579 = vunpack.c.h.b16 %v1259
      %v1580 = vunpack.c.h.b16 %v1260
      %v1581 = vunpack.c.h.b16 %v1261
      %v1582 = vunpack.c.h.b16 %v1262
      %v1583 = vunpack.c.h.b16 %v1263
      %v1584 = vunpack.c.l.b16 %v1264
      %v1585 = vunpack.c.l.b16 %v1265
      %v1586 = vunpack.c.l.b16 %v1266
      %v1587 = vunpack.c.l.b16 %v1267
      %v1588 = vunpack.c.l.b16 %v1268
      %v1589 = vunpack.c.l.b16 %v1269
      %v1590 = vunpack.c.l.b16 %v1270
      %v1591 = vunpack.c.l.b16 %v1271
      %v1592 = vunpack.c.h.b16 %v1264
      %v1593 = vunpack.c.h.b16 %v1265
      %v1594 = vunpack.c.h.b16 %v1266
      %v1595 = vunpack.c.h.b16 %v1267
      %v1596 = vunpack.c.h.b16 %v1268
      %v1597 = vunpack.c.h.b16 %v1269
      %v1598 = vunpack.c.h.b16 %v1270
      %v1599 = vunpack.c.h.b16 %v1271
      %v1600 = vunpack.c.l.b16 %v1272
      %v1601 = vunpack.c.l.b16 %v1273
      %v1602 = vunpack.c.l.b16 %v1274
      %v1603 = vunpack.c.l.b16 %v1275
      %v1604 = vunpack.c.l.b16 %v1276
      %v1605 = vunpack.c.l.b16 %v1277
      %v1606 = vunpack.c.l.b16 %v1278
      %v1607 = vunpack.c.l.b16 %v1279
      %v1608 = vunpack.c.h.b16 %v1272
      %v1609 = vunpack.c.h.b16 %v1273
      %v1610 = vunpack.c.h.b16 %v1274
      %v1611 = vunpack.c.h.b16 %v1275
      %v1612 = vunpack.c.h.b16 %v1276
      %v1613 = vunpack.c.h.b16 %v1277
      %v1614 = vunpack.c.h.b16 %v1278
      %v1615 = vunpack.c.h.b16 %v1279
      %v1616 = vunpack.c.l.b16 %v1280
      %v1617 = vunpack.c.l.b16 %v1281
      %v1618 = vunpack.c.l.b16 %v1282
      %v1619 = vunpack.c.l.b16 %v1283
      %v1620 = vunpack.c.l.b16 %v1284
      %v1621 = vunpack.c.l.b16 %v1285
      %v1622 = vunpack.c.l.b16 %v1286
      %v1623 = vunpack.c.l.b16 %v1287
      %v1624 = vunpack.c.h.b16 %v1280
      %v1625 = vunpack.c.h.b16 %v1281
      %v1626 = vunpack.c.h.b16 %v1282
      %v1627 = vunpack.c.h.b16 %v1283
      %v1628 = vunpack.c.h.b16 %v1284
      %v1629 = vunpack.c.h.b16 %v1285
      %v1630 = vunpack.c.h.b16 %v1286
      %v1631 = vunpack.c.h.b16 %v1287
      %v1632 = vunpack.c.l.b16 %v1288
      %v1633 = vunpack.c.l.b16 %v1289
      %v1634 = vunpack.c.l.b16 %v1290
      %v1635 = vunpack.c.l.b16 %v1291
      %v1636 = vunpack.c.l.b16 %v1292
      %v1637 = vunpack.c.l.b16 %v1293
      %v1638 = vunpack.c.l.b16 %v1294
      %v1639 = vunpack.c.l.b16 %v1295
      %v1640 = vunpack.c.h.b16 %v1288
      %v1641 = vunpack.c.h.b16 %v1289
      %v1642 = vunpack.c.h.b16 %v1290
      %v1643 = vunpack.c.h.b16 %v1291
      %v1644 = vunpack.c.h.b16 %v1292
      %v1645 = vunpack.c.h.b16 %v1293
      %v1646 = vunpack.c.h.b16 %v1294
      %v1647 = vunpack.c.h.b16 %v1295
      %v1648 = vunpack.c.l.b16 %v1296
      %v1649 = vunpack.c.l.b16 %v1297
      %v1650 = vunpack.c.l.b16 %v1298
      %v1651 = vunpack.c.l.b16 %v1299
      %v1652 = vunpack.c.l.b16 %v1300
      %v1653 = vunpack.c.l.b16 %v1301
      %v1654 = vunpack.c.l.b16 %v1302
      %v1655 = vunpack.c.l.b16 %v1303
      %v1656 = vunpack.c.h.b16 %v1296
      %v1657 = vunpack.c.h.b16 %v1297
      %v1658 = vunpack.c.h.b16 %v1298
      %v1659 = vunpack.c.h.b16 %v1299
      %v1660 = vunpack.c.h.b16 %v1300
      %v1661 = vunpack.c.h.b16 %v1301
      %v1662 = vunpack.c.h.b16 %v1302
      %v1663 = vunpack.c.h.b16 %v1303
      %v1664 = vunpack.c.l.b16 %v1304
      %v1665 = vunpack.c.l.b16 %v1305
      %v1666 = vunpack.c.l.b16 %v1306
      %v1667 = vunpack.c.l.b16 %v1307
      %v1668 = vunpack.c.l.b16 %v1308
      %v1669 = vunpack.c.l.b16 %v1309
      %v1670 = vunpack.c.l.b16 %v1310
      %v1671 = vunpack.c.l.b16 %v1311
      %v1672 = vunpack.c.h.b16 %v1304
      %v1673 = vunpack.c.h.b16 %v1305
      %v1674 = vunpack.c.h.b16 %v1306
      %v1675 = vunpack.c.h.b16 %v1307
      %v1676 = vunpack.c.h.b16 %v1308
      %v1677 = vunpack.c.h.b16 %v1309
      %v1678 = vunpack.c.h.b16 %v1310
      %v1679 = vunpack.c.h.b16 %v1311
      %v1680 = vunpack.c.l.b16 %v1312
      %v1681 = vunpack.c.l.b16 %v1313
      %v1682 = vunpack.c.l.b16 %v1314
      %v1683 = vunpack.c.l.b16 %v1315
      %v1684 = vunpack.c.l.b16 %v1316
      %v1685 = vunpack.c.l.b16 %v1317
      %v1686 = vunpack.c.l.b16 %v1318
      %v1687 = vunpack.c.l.b16 %v1319
      %v1688 = vunpack.c.h.b16 %v1312
      %v1689 = vunpack.c.h.b16 %v1313
      %v1690 = vunpack.c.h.b16 %v1314
      %v1691 = vunpack.c.h.b16 %v1315
      %v1692 = vunpack.c.h.b16 %v1316
      %v1693 = vunpack.c.h.b16 %v1317
      %v1694 = vunpack.c.h.b16 %v1318
      %v1695 = vunpack.c.h.b16 %v1319
      %v1696 = vunpack.c.l.b16 %v1320
      %v1697 = vunpack.c.l.b16 %v1321
      %v1698 = vunpack.c.l.b16 %v1322
      %v1699 = vunpack.c.l.b16 %v1323
      %v1700 = vunpack.c.l.b16 %v1324
      %v1701 = vunpack.c.l.b16 %v1325
      %v1702 = vunpack.c.l.b16 %v1326
      %v1703 = vunpack.c.l.b16 %v1327
      %v1704 = vunpack.c.h.b16 %v1320
      %v1705 = vunpack.c.h.b16 %v1321
      %v1706 = vunpack.c.h.b16 %v1322
      %v1707 = vunpack.c.h.b16 %v1323
      %v1708 = vunpack.c.h.b16 %v1324
      %v1709 = vunpack.c.h.b16 %v1325
      %v1710 = vunpack.c.h.b16 %v1326
      %v1711 = vunpack.c.h.b16 %v1327
      %v1712 = vpack.c.b16 %v1457, %v1456
      %v1713 = vpack.c.b16 %v1459, %v1458
      %v1714 = vpack.c.b16 %v1461, %v1460
      %v1715 = vpack.c.b16 %v1463, %v1462
      %v1716 = vpack.c.b16 %v1465, %v1464
      %v1717 = vpack.c.b16 %v1467, %v1466
      %v1718 = vpack.c.b16 %v1469, %v1468
      %v1719 = vpack.c.b16 %v1471, %v1470
      %v1720 = vpack.c.b16 %v1473, %v1472
      %v1721 = vpack.c.b16 %v1475, %v1474
      %v1722 = vpack.c.b16 %v1477, %v1476
      %v1723 = vpack.c.b16 %v1479, %v1478
      %v1724 = vpack.c.b16 %v1481, %v1480
      %v1725 = vpack.c.b16 %v1483, %v1482
      %v1726 = vpack.c.b16 %v1485, %v1484
      %v1727 = vpack.c.b16 %v1487, %v1486
      %v1728 = vpack.c.b16 %v1489, %v1488
      %v1729 = vpack.c.b16 %v1491, %v1490
      %v1730 = vpack.c.b16 %v1493, %v1492
      %v1731 = vpack.c.b16 %v1495, %v1494
      %v1732 = vpack.c.b16 %v1497, %v1496
      %v1733 = vpack.c.b16 %v1499, %v1498
      %v1734 = vpack.c.b16 %v1501, %v1500
      %v1735 = vpack.c.b16 %v1503, %v1502
      %v1736 = vpack.c.b16 %v1505, %v1504
      %v1737 = vpack.c.b16 %v1507, %v1506
      %v1738 = vpack.c.b16 %v1509, %v1508
      %v1739 = vpack.c.b16 %v1511, %v1510
      %v1740 = vpack.c.b16 %v1513, %v1512
      %v1741 = vpack.c.b16 %v1515, %v1514
      %v1742 = vpack.c.b16 %v1517, %v1516
      %v1743 = vpack.c.b16 %v1519, %v1518
      %v1744 = vpack.c.b16 %v1521, %v1520
      %v1745 = vpack.c.b16 %v1523, %v1522
      %v1746 = vpack.c.b16 %v1525, %v1524
      %v1747 = vpack.c.b16 %v1527, %v1526
      %v1748 = vpack.c.b16 %v1529, %v1528
      %v1749 = vpack.c.b16 %v1531, %v1530
      %v1750 = vpack.c.b16 %v1533, %v1532
      %v1751 = vpack.c.b16 %v1535, %v1534
      %v1752 = vpack.c.b16 %v1537, %v1536
      %v1753 = vpack.c.b16 %v1539, %v1538
      %v1754 = vpack.c.b16 %v1541, %v1540
      %v1755 = vpack.c.b16 %v1543, %v1542
      %v1756 = vpack.c.b16 %v1545, %v1544
      %v1757 = vpack.c.b16 %v1547, %v1546
      %v1758 = vpack.c.b16 %v1549, %v1548
      %v1759 = vpack.c.b16 %v1551, %v1550
      %v1760 = vpack.c.b16 %v1553, %v1552
      %v1761 = vpack.c.b16 %v1555, %v1554
      %v1762 = vpack.c.b16 %v1557, %v1556
      %v1763 = vpack.c.b16 %v1559, %v1558
      %v1764 = vpack.c.b16 %v1561, %v1560
      %v1765 = vpack.c.b16 %v1563, %v1562
      %v1766 = vpack.c.b16 %v1565, %v1564
      %v1767 = vpack.c.b16 %v1567, %v1566
      %v1768 = vpack.c.b16 %v1569, %v1568
      %v1769 = vpack.c.b16 %v1571, %v1570
      %v1770 = vpack.c.b16 %v1573, %v1572
      %v1771 = vpack.c.b16 %v1575, %v1574
      %v1772 = vpack.c.b16 %v1577, %v1576
      %v1773 = vpack.c.b16 %v1579, %v1578
      %v1774 = vpack.c.b16 %v1581, %v1580
      %v1775 = vpack.c.b16 %v1583, %v1582
      %v1776 = vpack.c.b16 %v1585, %v1584
      %v1777 = vpack.c.b16 %v1587, %v1586
      %v1778 = vpack.c.b16 %v1589, %v1588
      %v1779 = vpack.c.b16 %v1591, %v1590
      %v1780 = vpack.c.b16 %v1593, %v1592
      %v1781 = vpack.c.b16 %v1595, %v1594
      %v1782 = vpack.c.b16 %v1597, %v1596
      %v1783 = vpack.c.b16 %v1599, %v1598
      %v1784 = vpack.c.b16 %v1601, %v1600
      %v1785 = vpack.c.b16 %v1603, %v1602
      %v1786 = vpack.c.b16 %v1605, %v1604
      %v1787 = vpack.c.b16 %v1607, %v1606
      %v1788 = vpack.c.b16 %v1609, %v1608
      %v1789 = vpack.c.b16 %v1611, %v1610
      %v1790 = vpack.c.b16 %v1613, %v1612
      %v1791 = vpack.c.b16 %v1615, %v1614
      %v1792 = vpack.c.b16 %v1617, %v1616
      %v1793 = vpack.c.b16 %v1619, %v1618
      %v1794 = vpack.c.b16 %v1621, %v1620
      %v1795 = vpack.c.b16 %v1623, %v1622
      %v1796 = vpack.c.b16 %v1625, %v1624
      %v1797 = vpack.c.b16 %v1627, %v1626
      %v1798 = vpack.c.b16 %v1629, %v1628
      %v1799 = vpack.c.b16 %v1631, %v1630
      %v1800 = vpack.c.b16 %v1633, %v1632
      %v1801 = vpack.c.b16 %v1635, %v1634
      %v1802 = vpack.c.b16 %v1637, %v1636
      %v1803 = vpack.c.b16 %v1639, %v1638
      %v1804 = vpack.c.b16 %v1641, %v1640
      %v1805 = vpack.c.b16 %v1643, %v1642
      %v1806 = vpack.c.b16 %v1645, %v1644
      %v1807 = vpack.c.b16 %v1647, %v1646
      %v1808 = vpack.c.b16 %v1649, %v1648
      %v1809 = vpack.c.b16 %v1651, %v1650
      %v1810 = vpack.c.b16 %v1653, %v1652
      %v1811 = vpack.c.b16 %v1655, %v1654
      %v1812 = vpack.c.b16 %v1657, %v1656
      %v1813 = vpack.c.b16 %v1659, %v1658
      %v1814 = vpack.c.b16 %v1661, %v1660
      %v1815 = vpack.c.b16 %v1663, %v1662
      %v1816 = vpack.c.b16 %v1665, %v1664
      %v1817 = vpack.c.b16 %v1667, %v1666
      %v1818 = vpack.c.b16 %v1669, %v1668
      %v1819 = vpack.c.b16 %v1671, %v1670
      %v1820 = vpack.c.b16 %v1673, %v1672
      %v1821 = vpack.c.b16 %v1675, %v1674
      %v1822 = vpack.c.b16 %v1677, %v1676
      %v1823 = vpack.c.b16 %v1679, %v1678
      %v1824 = vpack.c.b16 %v1681, %v1680
      %v1825 = vpack.c.b16 %v1683, %v1682
      %v1826 = vpack.c.b16 %v1685, %v1684
      %v1827 = vpack.c.b16 %v1687, %v1686
      %v1828 = vpack.c.b16 %v1689, %v1688
      %v1829 = vpack.c.b16 %v1691, %v1690
      %v1830 = vpack.c.b16 %v1693, %v1692
      %v1831 = vpack.c.b16 %v1695, %v1694
      %v1832 = vpack.c.b16 %v1697, %v1696
      %v1833 = vpack.c.b16 %v1699, %v1698
      %v1834 = vpack.c.b16 %v1701, %v1700
      %v1835 = vpack.c.b16 %v1703, %v1702
      %v1836 = vpack.c.b16 %v1705, %v1704
      %v1837 = vpack.c.b16 %v1707, %v1706
      %v1838 = vpack.c.b16 %v1709, %v1708
      %v1839 = vpack.c.b16 %v1711, %v1710
      %1968 = vst [vmem:[%s174] sm:$0xff] %v1712
      %1969 = vst [vmem:[%s174 + $0x8] sm:$0xff] %v1713
      %1970 = vst [vmem:[%s174 + $0x10] sm:$0xff] %v1714
      %1971 = vst [vmem:[%s174 + $0x18] sm:$0xff] %v1715
      %1972 = vst [vmem:[%s174 + $0x20] sm:$0xff] %v1716
      %1973 = vst [vmem:[%s174 + $0x28] sm:$0xff] %v1717
      %1974 = vst [vmem:[%s174 + $0x30] sm:$0xff] %v1718
      %1975 = vst [vmem:[%s174 + $0x38] sm:$0xff] %v1719
      %1976 = vst [vmem:[%s174 + $0x40] sm:$0xff] %v1720
      %1977 = vst [vmem:[%s174 + $0x48] sm:$0xff] %v1721
      %1978 = vst [vmem:[%s174 + $0x50] sm:$0xff] %v1722
      %1979 = vst [vmem:[%s174 + $0x58] sm:$0xff] %v1723
      %1980 = vst [vmem:[%s174 + $0x60] sm:$0xff] %v1724
      %1981 = vst [vmem:[%s174 + $0x68] sm:$0xff] %v1725
      %1982 = vst [vmem:[%s174 + $0x70] sm:$0xff] %v1726
      %1983 = vst [vmem:[%s174 + $0x78] sm:$0xff] %v1727
      %1984 = vst [vmem:[%s174 + $0x80] sm:$0xff] %v1728
      %1985 = vst [vmem:[%s174 + $0x88] sm:$0xff] %v1729
      %1986 = vst [vmem:[%s174 + $0x90] sm:$0xff] %v1730
      %1987 = vst [vmem:[%s174 + $0x98] sm:$0xff] %v1731
      %1988 = vst [vmem:[%s174 + $0xa0] sm:$0xff] %v1732
      %1989 = vst [vmem:[%s174 + $0xa8] sm:$0xff] %v1733
      %1990 = vst [vmem:[%s174 + $0xb0] sm:$0xff] %v1734
      %1991 = vst [vmem:[%s174 + $0xb8] sm:$0xff] %v1735
      %1992 = vst [vmem:[%s174 + $0xc0] sm:$0xff] %v1736
      %1993 = vst [vmem:[%s174 + $0xc8] sm:$0xff] %v1737
      %1994 = vst [vmem:[%s174 + $0xd0] sm:$0xff] %v1738
      %1995 = vst [vmem:[%s174 + $0xd8] sm:$0xff] %v1739
      %1996 = vst [vmem:[%s174 + $0xe0] sm:$0xff] %v1740
      %1997 = vst [vmem:[%s174 + $0xe8] sm:$0xff] %v1741
      %1998 = vst [vmem:[%s174 + $0xf0] sm:$0xff] %v1742
      %1999 = vst [vmem:[%s174 + $0xf8] sm:$0xff] %v1743
      %2000 = vst [vmem:[%s174 + $0x100] sm:$0xff] %v1744
      %2001 = vst [vmem:[%s174 + $0x108] sm:$0xff] %v1745
      %2002 = vst [vmem:[%s174 + $0x110] sm:$0xff] %v1746
      %2003 = vst [vmem:[%s174 + $0x118] sm:$0xff] %v1747
      %2004 = vst [vmem:[%s174 + $0x120] sm:$0xff] %v1748
      %2005 = vst [vmem:[%s174 + $0x128] sm:$0xff] %v1749
      %2006 = vst [vmem:[%s174 + $0x130] sm:$0xff] %v1750
      %2007 = vst [vmem:[%s174 + $0x138] sm:$0xff] %v1751
      %2008 = vst [vmem:[%s174 + $0x140] sm:$0xff] %v1752
      %2009 = vst [vmem:[%s174 + $0x148] sm:$0xff] %v1753
      %2010 = vst [vmem:[%s174 + $0x150] sm:$0xff] %v1754
      %2011 = vst [vmem:[%s174 + $0x158] sm:$0xff] %v1755
      %2012 = vst [vmem:[%s174 + $0x160] sm:$0xff] %v1756
      %2013 = vst [vmem:[%s174 + $0x168] sm:$0xff] %v1757
      %2014 = vst [vmem:[%s174 + $0x170] sm:$0xff] %v1758
      %2015 = vst [vmem:[%s174 + $0x178] sm:$0xff] %v1759
      %2016 = vst [vmem:[%s174 + $0x180] sm:$0xff] %v1760
      %2017 = vst [vmem:[%s174 + $0x188] sm:$0xff] %v1761
      %2018 = vst [vmem:[%s174 + $0x190] sm:$0xff] %v1762
      %2019 = vst [vmem:[%s174 + $0x198] sm:$0xff] %v1763
      %2020 = vst [vmem:[%s174 + $0x1a0] sm:$0xff] %v1764
      %2021 = vst [vmem:[%s174 + $0x1a8] sm:$0xff] %v1765
      %2022 = vst [vmem:[%s174 + $0x1b0] sm:$0xff] %v1766
      %2023 = vst [vmem:[%s174 + $0x1b8] sm:$0xff] %v1767
      %2024 = vst [vmem:[%s174 + $0x1c0] sm:$0xff] %v1768
      %2025 = vst [vmem:[%s174 + $0x1c8] sm:$0xff] %v1769
      %2026 = vst [vmem:[%s174 + $0x1d0] sm:$0xff] %v1770
      %2027 = vst [vmem:[%s174 + $0x1d8] sm:$0xff] %v1771
      %2028 = vst [vmem:[%s174 + $0x1e0] sm:$0xff] %v1772
      %2029 = vst [vmem:[%s174 + $0x1e8] sm:$0xff] %v1773
      %2030 = vst [vmem:[%s174 + $0x1f0] sm:$0xff] %v1774
      %2031 = vst [vmem:[%s174 + $0x1f8] sm:$0xff] %v1775
      %2032 = vst [vmem:[%s174 + $0x200] sm:$0xff] %v1776
      %2033 = vst [vmem:[%s174 + $0x208] sm:$0xff] %v1777
      %2034 = vst [vmem:[%s174 + $0x210] sm:$0xff] %v1778
      %2035 = vst [vmem:[%s174 + $0x218] sm:$0xff] %v1779
      %2036 = vst [vmem:[%s174 + $0x220] sm:$0xff] %v1780
      %2037 = vst [vmem:[%s174 + $0x228] sm:$0xff] %v1781
      %2038 = vst [vmem:[%s174 + $0x230] sm:$0xff] %v1782
      %2039 = vst [vmem:[%s174 + $0x238] sm:$0xff] %v1783
      %2040 = vst [vmem:[%s174 + $0x240] sm:$0xff] %v1784
      %2041 = vst [vmem:[%s174 + $0x248] sm:$0xff] %v1785
      %2042 = vst [vmem:[%s174 + $0x250] sm:$0xff] %v1786
      %2043 = vst [vmem:[%s174 + $0x258] sm:$0xff] %v1787
      %2044 = vst [vmem:[%s174 + $0x260] sm:$0xff] %v1788
      %2045 = vst [vmem:[%s174 + $0x268] sm:$0xff] %v1789
      %2046 = vst [vmem:[%s174 + $0x270] sm:$0xff] %v1790
      %2047 = vst [vmem:[%s174 + $0x278] sm:$0xff] %v1791
      %2048 = vst [vmem:[%s174 + $0x280] sm:$0xff] %v1792
      %2049 = vst [vmem:[%s174 + $0x288] sm:$0xff] %v1793
      %2050 = vst [vmem:[%s174 + $0x290] sm:$0xff] %v1794
      %2051 = vst [vmem:[%s174 + $0x298] sm:$0xff] %v1795
      %2052 = vst [vmem:[%s174 + $0x2a0] sm:$0xff] %v1796
      %2053 = vst [vmem:[%s174 + $0x2a8] sm:$0xff] %v1797
      %2054 = vst [vmem:[%s174 + $0x2b0] sm:$0xff] %v1798
      %2055 = vst [vmem:[%s174 + $0x2b8] sm:$0xff] %v1799
      %2056 = vst [vmem:[%s174 + $0x2c0] sm:$0xff] %v1800
      %2057 = vst [vmem:[%s174 + $0x2c8] sm:$0xff] %v1801
      %2058 = vst [vmem:[%s174 + $0x2d0] sm:$0xff] %v1802
      %2059 = vst [vmem:[%s174 + $0x2d8] sm:$0xff] %v1803
      %2060 = vst [vmem:[%s174 + $0x2e0] sm:$0xff] %v1804
      %2061 = vst [vmem:[%s174 + $0x2e8] sm:$0xff] %v1805
      %2062 = vst [vmem:[%s174 + $0x2f0] sm:$0xff] %v1806
      %2063 = vst [vmem:[%s174 + $0x2f8] sm:$0xff] %v1807
      %2064 = vst [vmem:[%s174 + $0x300] sm:$0xff] %v1808
      %2065 = vst [vmem:[%s174 + $0x308] sm:$0xff] %v1809
      %2066 = vst [vmem:[%s174 + $0x310] sm:$0xff] %v1810
      %2067 = vst [vmem:[%s174 + $0x318] sm:$0xff] %v1811
      %2068 = vst [vmem:[%s174 + $0x320] sm:$0xff] %v1812
      %2069 = vst [vmem:[%s174 + $0x328] sm:$0xff] %v1813
      %2070 = vst [vmem:[%s174 + $0x330] sm:$0xff] %v1814
      %2071 = vst [vmem:[%s174 + $0x338] sm:$0xff] %v1815
      %2072 = vst [vmem:[%s174 + $0x340] sm:$0xff] %v1816
      %2073 = vst [vmem:[%s174 + $0x348] sm:$0xff] %v1817
      %2074 = vst [vmem:[%s174 + $0x350] sm:$0xff] %v1818
      %2075 = vst [vmem:[%s174 + $0x358] sm:$0xff] %v1819
      %2076 = vst [vmem:[%s174 + $0x360] sm:$0xff] %v1820
      %2077 = vst [vmem:[%s174 + $0x368] sm:$0xff] %v1821
      %2078 = vst [vmem:[%s174 + $0x370] sm:$0xff] %v1822
      %2079 = vst [vmem:[%s174 + $0x378] sm:$0xff] %v1823
      %2080 = vst [vmem:[%s174 + $0x380] sm:$0xff] %v1824
      %2081 = vst [vmem:[%s174 + $0x388] sm:$0xff] %v1825
      %2082 = vst [vmem:[%s174 + $0x390] sm:$0xff] %v1826
      %2083 = vst [vmem:[%s174 + $0x398] sm:$0xff] %v1827
      %2084 = vst [vmem:[%s174 + $0x3a0] sm:$0xff] %v1828
      %2085 = vst [vmem:[%s174 + $0x3a8] sm:$0xff] %v1829
      %2086 = vst [vmem:[%s174 + $0x3b0] sm:$0xff] %v1830
      %2087 = vst [vmem:[%s174 + $0x3b8] sm:$0xff] %v1831
      %2088 = vst [vmem:[%s174 + $0x3c0] sm:$0xff] %v1832
      %2089 = vst [vmem:[%s174 + $0x3c8] sm:$0xff] %v1833
      %2090 = vst [vmem:[%s174 + $0x3d0] sm:$0xff] %v1834
      %2091 = vst [vmem:[%s174 + $0x3d8] sm:$0xff] %v1835
      %2092 = vst [vmem:[%s174 + $0x3e0] sm:$0xff] %v1836
      %2093 = vst [vmem:[%s174 + $0x3e8] sm:$0xff] %v1837
      %2094 = vst [vmem:[%s174 + $0x3f0] sm:$0xff] %v1838
      %2095 = vst [vmem:[%s174 + $0x3f8] sm:$0xff] %v1839
      %s2096 = smul.u32 32, %s14
      %p2097 = scmp.lt.s32.totalorder %s2096, 63
      %s2098 = scalar_select %p2097, %s2096, 63
      %s2099 = smul.addr %s2098, 8
      %s2100 = smul.addr %s2099, 4
      %s2101 = scalar_lea.vmem %s3, %s2100
      // Predicated region
      $region33: #{a_call__.6} parent=31 // pred_check
        %p2102 = pneg %p100
      $region34: #{a_call__.6} parent=31 // pred_check_branch
        %2104 = sbr.rel (%p2102) target = $region36
      $region35: #{a_call__.6} parent=31 // pred_region
        %s2105 = smul.u32 32, %s14
      $region36: #{a_call__.6} parent=31 // pred_fallthru
        _
    $region32: #{a_call__.6} parent=5 // pred_fallthru
      _
    %p2106 = scmp.le.s32.totalorder 2, %s9
    // Predicated region
    $region37: #{a_call__.6} parent=5 // pred_check
      %p2107 = pneg %p2106
    $region38: #{a_call__.6} parent=5 // pred_check_branch
      %2109 = sbr.rel (%p2107) target = $region40
    $region39: #{a_call__.6} parent=5 // pred_region
      %s2110 = ssub.s32 %s9, 2
      // Predicated region
      $region41: #{a_call__.6} parent=39 // pred_check
        %p2111 = pneg %p106
      $region42: #{a_call__.6} parent=39 // pred_check_branch
        %2113 = sbr.rel (%p2111) target = $region44
      $region43: #{a_call__.6} parent=39 // pred_region
        %s2114 = smul.u32 32, %s15
        %p2115 = scmp.lt.s32.totalorder %s2114, 63
        %s2116 = scalar_select %p2115, %s2114, 63
        %s2117 = smul.addr %s2116, 8
        %s2118 = smul.addr %s2117, 4
        %s2119 = scalar_lea.vmem %s3, %s2118
      $region44: #{a_call__.6} parent=39 // pred_fallthru
        _
    $region40: #{a_call__.6} parent=5 // pred_fallthru
      _
  $region6: #{a_call__.6} parent=0 // loop_footer
    %s13 = sadd.s32 1, %s9
  $region7: #{a_call__.6} parent=0 // loop_footer_branch
    %8 = sbr.rel target = $region3
  $region8: #{a_call__.6} parent=0 // loop_exit
    _

// kernel: a_call__.8
$region0: #{a_call__.8}
  #allocation0 [shape = 'u32[]', space=smem, size = 0x4, offset = 0x4, fixed_abs, tag = 'smem constant byte address 0x4 - core index']
  #allocation1 [shape = 'u32[144,128]{1,0:T(1,128)}', space=vmem, size = 0x12000, scoped, tag = 'internal scratch']
  %s0 = inlined_call_operand.vmem [shape: bf16[512,128], index: 0, kind: input, shape index: {}]
  %s1 = inlined_call_operand.vmem [shape: bf16[128,1024], index: 1, kind: input, shape index: {}]
  %s2 = inlined_call_operand.vmem [shape: bf16[512,128], index: 2, kind: input, shape index: {}]
  %s3 = inlined_call_operand.vmem [shape: bf16[128,1024], index: 3, kind: input, shape index: {}]
  %s4 = inlined_call_operand.vmem [shape: f32[1,1024], index: 4, kind: input, shape index: {}]
  %s5 = inlined_call_operand.vmem [shape: bf16[512,1024], index: 5, kind: output, shape index: {}]
  %s6 = sld [smem:[#allocation0]]
  $region53: #{a_call__.8} parent=0
    _
  %s8 = ssub.s32 1, %s6
  %s9 = scalar_select 0, %s8, %s6
  loop: start=0, step=1, limit=4
  $region2: #{a_call__.8} parent=0 // loop_pre_header
    _
  $region3: #{a_call__.8} parent=0 // loop_header
    %s11 = sphi 0, %s15
    %p12 = scmp.ge.s32.totalorder %s11, 4
    %s21 = sphi 0, %s23
    %s24 = sphi 0, %s21
    %s25 = sphi 0, %s24
    %s41 = sphi 0, %s25
    %s45 = sphi 0, %s45
    %s47 = sphi 0, %s45
    %s48 = sphi 0, %s47
    %s62 = sphi 0, %s48
    %s68 = sphi 0, %s70
    %s71 = sphi 0, %s68
    %s72 = sphi 0, %s71
    %s88 = sphi 0, %s72
    %s92 = sphi 0, %s92
    %s94 = sphi 0, %s92
    %s95 = sphi 0, %s94
    %s109 = sphi 0, %s95
    %s113 = sphi 0, %s113
    %s115 = sphi 0, %s113
    %s116 = sphi 0, %s115
    %s130 = sphi 0, %s116
    %s136 = sphi 0, %s138
    %s139 = sphi 0, %s136
    %s140 = sphi 0, %s139
    %s156 = sphi 0, %s140
  $region4: #{a_call__.8} parent=0 // loop_header_branch
    %14 = sbr.rel (%p12) target = $region8
  $region5: #{a_call__.8} parent=0 // loop_body
    %s16 = ssub.s32 %s11, 1
    %s17 = ssub.s32 %s11, 2
    %s18 = sadd.s32 %s11, 1
    %s19 = ssub.s32 %s11, %s18
    %p20 = scmp.eq.s32.totalorder %s19, 0
    %s22 = sadd.s32 %s21, 1
    %s23 = scalar_select %p20, %s21, %s22
    %p26 = pneg %p20
    %p27 = scmp.eq.s32.totalorder %s11, 1
    %p28 = por %p26, %p27
    %p29 = scmp.ne.s32.totalorder %s21, %s24
    %p30 = scmp.eq.s32.totalorder %s11, 0
    %p31 = por %p29, %p30
    %p32 = scmp.ne.s32.totalorder %s21, %s24
    %p33 = scmp.eq.s32.totalorder %s16, 1
    %p34 = por %p32, %p33
    %p35 = scmp.ne.s32.totalorder %s24, %s25
    %p36 = scmp.eq.s32.totalorder %s16, 0
    %p37 = por %p35, %p36
    %p38 = scmp.ne.s32.totalorder %s24, %s25
    %p39 = scmp.eq.s32.totalorder %s17, 1
    %p40 = por %p38, %p39
    %p42 = scmp.ne.s32.totalorder %s25, %s41
    %p43 = scmp.eq.s32.totalorder %s17, 0
    %p44 = por %p42, %p43
    %s46 = sadd.s32 %s45, 1
    %p49 = scmp.eq.s32.totalorder %s11, 1
    %p50 = scmp.ne.s32.totalorder %s45, %s47
    %p51 = scmp.eq.s32.totalorder %s11, 0
    %p52 = por %p50, %p51
    %p53 = scmp.ne.s32.totalorder %s45, %s47
    %p54 = scmp.eq.s32.totalorder %s16, 1
    %p55 = por %p53, %p54
    %p56 = scmp.ne.s32.totalorder %s47, %s48
    %p57 = scmp.eq.s32.totalorder %s16, 0
    %p58 = por %p56, %p57
    %p59 = scmp.ne.s32.totalorder %s47, %s48
    %p60 = scmp.eq.s32.totalorder %s17, 1
    %p61 = por %p59, %p60
    %p63 = scmp.ne.s32.totalorder %s48, %s62
    %p64 = scmp.eq.s32.totalorder %s17, 0
    %p65 = por %p63, %p64
    %s66 = ssub.s32 %s11, %s18
    %p67 = scmp.eq.s32.totalorder %s66, 0
    %s69 = sadd.s32 %s68, 1
    %s70 = scalar_select %p67, %s68, %s69
    %p73 = pneg %p67
    %p74 = scmp.eq.s32.totalorder %s11, 1
    %p75 = por %p73, %p74
    %p76 = scmp.ne.s32.totalorder %s68, %s71
    %p77 = scmp.eq.s32.totalorder %s11, 0
    %p78 = por %p76, %p77
    %p79 = scmp.ne.s32.totalorder %s68, %s71
    %p80 = scmp.eq.s32.totalorder %s16, 1
    %p81 = por %p79, %p80
    %p82 = scmp.ne.s32.totalorder %s71, %s72
    %p83 = scmp.eq.s32.totalorder %s16, 0
    %p84 = por %p82, %p83
    %p85 = scmp.ne.s32.totalorder %s71, %s72
    %p86 = scmp.eq.s32.totalorder %s17, 1
    %p87 = por %p85, %p86
    %p89 = scmp.ne.s32.totalorder %s72, %s88
    %p90 = scmp.eq.s32.totalorder %s17, 0
    %p91 = por %p89, %p90
    %s93 = sadd.s32 %s92, 1
    %p96 = scmp.eq.s32.totalorder %s11, 1
    %p97 = scmp.ne.s32.totalorder %s92, %s94
    %p98 = scmp.eq.s32.totalorder %s11, 0
    %p99 = por %p97, %p98
    %p100 = scmp.ne.s32.totalorder %s92, %s94
    %p101 = scmp.eq.s32.totalorder %s16, 1
    %p102 = por %p100, %p101
    %p103 = scmp.ne.s32.totalorder %s94, %s95
    %p104 = scmp.eq.s32.totalorder %s16, 0
    %p105 = por %p103, %p104
    %p106 = scmp.ne.s32.totalorder %s94, %s95
    %p107 = scmp.eq.s32.totalorder %s17, 1
    %p108 = por %p106, %p107
    %p110 = scmp.ne.s32.totalorder %s95, %s109
    %p111 = scmp.eq.s32.totalorder %s17, 0
    %p112 = por %p110, %p111
    %s114 = sadd.s32 %s113, 1
    %p117 = scmp.eq.s32.totalorder %s11, 1
    %p118 = scmp.ne.s32.totalorder %s113, %s115
    %p119 = scmp.eq.s32.totalorder %s11, 0
    %p120 = por %p118, %p119
    %p121 = scmp.ne.s32.totalorder %s113, %s115
    %p122 = scmp.eq.s32.totalorder %s16, 1
    %p123 = por %p121, %p122
    %p124 = scmp.ne.s32.totalorder %s115, %s116
    %p125 = scmp.eq.s32.totalorder %s16, 0
    %p126 = por %p124, %p125
    %p127 = scmp.ne.s32.totalorder %s115, %s116
    %p128 = scmp.eq.s32.totalorder %s17, 1
    %p129 = por %p127, %p128
    %p131 = scmp.ne.s32.totalorder %s116, %s130
    %p132 = scmp.eq.s32.totalorder %s17, 0
    %p133 = por %p131, %p132
    %s134 = ssub.s32 %s11, %s18
    %p135 = scmp.eq.s32.totalorder %s134, 0
    %s137 = sadd.s32 %s136, 1
    %s138 = scalar_select %p135, %s136, %s137
    %p141 = pneg %p135
    %p142 = scmp.eq.s32.totalorder %s11, 1
    %p143 = por %p141, %p142
    %p144 = scmp.ne.s32.totalorder %s136, %s139
    %p145 = scmp.eq.s32.totalorder %s11, 0
    %p146 = por %p144, %p145
    %p147 = scmp.ne.s32.totalorder %s136, %s139
    %p148 = scmp.eq.s32.totalorder %s16, 1
    %p149 = por %p147, %p148
    %p150 = scmp.ne.s32.totalorder %s139, %s140
    %p151 = scmp.eq.s32.totalorder %s16, 0
    %p152 = por %p150, %p151
    %p153 = scmp.ne.s32.totalorder %s139, %s140
    %p154 = scmp.eq.s32.totalorder %s17, 1
    %p155 = por %p153, %p154
    %p157 = scmp.ne.s32.totalorder %s140, %s156
    %p158 = scmp.eq.s32.totalorder %s17, 0
    %p159 = por %p157, %p158
    %p160 = scmp.le.s32.totalorder 1, %s11
    %p161 = scmp.lt.s32.totalorder %s11, 3
    %p162 = pnand %p160, %p161
    %p163 = pneg %p162
    // Predicated region
    $region9: #{a_call__.8} parent=5 // pred_check
      _
    $region10: #{a_call__.8} parent=5 // pred_check_branch
      %165 = sbr.rel (%p162) target = $region12
    $region11: #{a_call__.8} parent=5 // pred_region
      %s166 = ssub.s32 %s11, 1
      // Predicated region
      $region13: #{a_call__.8} parent=11 // pred_check
        %p167 = pneg %p58
      $region14: #{a_call__.8} parent=11 // pred_check_branch
        %169 = sbr.rel (%p167) target = $region16
      $region15: #{a_call__.8} parent=11 // pred_region
        _
      $region16: #{a_call__.8} parent=11 // pred_fallthru
        _
      // Predicated region
      $region17: #{a_call__.8} parent=11 // pred_check
        %p170 = pneg %p105
      $region18: #{a_call__.8} parent=11 // pred_check_branch
        %172 = sbr.rel (%p170) target = $region20
      $region19: #{a_call__.8} parent=11 // pred_region
        _
      $region20: #{a_call__.8} parent=11 // pred_fallthru
        _
      // Predicated region
      $region21: #{a_call__.8} parent=11 // pred_check
        %p173 = pneg %p126
      $region22: #{a_call__.8} parent=11 // pred_check_branch
        %175 = sbr.rel (%p173) target = $region24
      $region23: #{a_call__.8} parent=11 // pred_region
        _
      $region24: #{a_call__.8} parent=11 // pred_fallthru
        _
    $region12: #{a_call__.8} parent=5 // pred_fallthru
      _
    %p176 = scmp.lt.s32.totalorder %s11, 2
    // Predicated region
    $region25: #{a_call__.8} parent=5 // pred_check
      %p177 = pneg %p176
    $region26: #{a_call__.8} parent=5 // pred_check_branch
      %179 = sbr.rel (%p177) target = $region28
    $region27: #{a_call__.8} parent=5 // pred_region
      // Predicated region
      $region29: #{a_call__.8} parent=27 // pred_check
        %p180 = pneg %p31
      $region30: #{a_call__.8} parent=27 // pred_check_branch
        %182 = sbr.rel (%p180) target = $region32
      $region31: #{a_call__.8} parent=27 // pred_region
        %s183 = smul.u32 32, %s11
        %p184 = scmp.lt.s32.totalorder %s183, 63
        %s185 = scalar_select %p184, %s183, 63
        %s186 = smul.addr %s185, 4
        %s187 = scalar_lea.vmem %s0, %s186
        %s188 = smul.u32 32, %s11
      $region32: #{a_call__.8} parent=27 // pred_fallthru
        _
      // Predicated region
      $region33: #{a_call__.8} parent=27 // pred_check
        %p189 = pneg %p78
      $region34: #{a_call__.8} parent=27 // pred_check_branch
        %191 = sbr.rel (%p189) target = $region36
      $region35: #{a_call__.8} parent=27 // pred_region
        %s192 = smul.u32 32, %s11
        %p193 = scmp.lt.s32.totalorder %s192, 63
        %s194 = scalar_select %p193, %s192, 63
        %s195 = smul.addr %s194, 4
        %s196 = scalar_lea.vmem %s2, %s195
        %s197 = smul.u32 32, %s11
      $region36: #{a_call__.8} parent=27 // pred_fallthru
        _
    $region28: #{a_call__.8} parent=5 // pred_fallthru
      _
    %p198 = scmp.le.s32.totalorder 1, %s11
    %p199 = scmp.lt.s32.totalorder %s11, 3
    %p200 = pnand %p198, %p199
    %p201 = pneg %p200
    // Predicated region
    $region37: #{a_call__.8} parent=5 // pred_check
      _
    $region38: #{a_call__.8} parent=5 // pred_check_branch
      %203 = sbr.rel (%p200) target = $region40
    $region39: #{a_call__.8} parent=5 // pred_region
      %s204 = ssub.s32 %s11, 1
      %s205 = smul.u32 32, %s16
      %p206 = scmp.lt.s32.totalorder %s205, 63
      %s207 = scalar_select %p206, %s205, 63
      %s208 = smul.addr %s207, 4
      %s209 = scalar_lea.vmem %s0, %s208
      %p210 = pneg %p37
      %p211 = pneg %p34
      %p212 = pneg %p58
      %p213 = pneg %p55
      %s214 = smul.u32 32, %s16
      %p215 = scmp.lt.s32.totalorder %s214, 63
      %s216 = scalar_select %p215, %s214, 63
      %s217 = smul.addr %s216, 4
      %s218 = scalar_lea.vmem %s2, %s217
      %p219 = pneg %p84
      %p220 = pneg %p81
      %p221 = pneg %p105
      %p222 = pneg %p102
      %p223 = pneg %p126
      %p224 = pneg %p123
      %p225 = pneg %p152
      %p226 = pneg %p149
      %s227 = smul.u32 32, %s16
      %p228 = scmp.lt.s32.totalorder %s227, 63
      %s229 = scalar_select %p228, %s227, 63
      %s230 = smul.addr %s229, 8
      %s231 = smul.addr %s230, 4
      %s232 = scalar_lea.vmem %s5, %s231
      %s233 = smul.u32 32, %s16
      %p234 = scmp.lt.s32.totalorder %s233, 63
      %s235 = scalar_select %p234, %s233, 63
      %s236 = smul.addr %s235, 4
      %s237 = scalar_lea.vmem %s0, %s236
      %s238 = smul.u32 32, %s16
      %s239 = smul.u32 32, %s16
      %p240 = scmp.lt.s32.totalorder %s239, 63
      %s241 = scalar_select %p240, %s239, 63
      %s242 = smul.addr %s241, 4
      %s243 = scalar_lea.vmem %s2, %s242
      %s244 = smul.u32 32, %s16
      %s245 = smul.u32 32, %s16
      %p246 = scmp.lt.s32.totalorder %s245, 63
      %s247 = scalar_select %p246, %s245, 63
      %s248 = smul.addr %s247, 8
      %s249 = smul.addr %s248, 4
      %s250 = scalar_lea.vmem %s5, %s249
      %s251 = smul.u32 32, %s16
      %v253 = vld [vmem:[%s237] sm:$0xf]
      %v254 = vld [vmem:[%s237 + $0x4] sm:$0xf]
      %v255 = vld [vmem:[%s237 + $0x8] sm:$0xf]
      %v256 = vld [vmem:[%s237 + $0xc] sm:$0xf]
      %v257 = vld [vmem:[%s237 + $0x10] sm:$0xf]
      %v258 = vld [vmem:[%s237 + $0x14] sm:$0xf]
      %v259 = vld [vmem:[%s237 + $0x18] sm:$0xf]
      %v260 = vld [vmem:[%s237 + $0x1c] sm:$0xf]
      %v261 = vld [vmem:[%s237 + $0x20] sm:$0xf]
      %v262 = vld [vmem:[%s237 + $0x24] sm:$0xf]
      %v263 = vld [vmem:[%s237 + $0x28] sm:$0xf]
      %v264 = vld [vmem:[%s237 + $0x2c] sm:$0xf]
      %v265 = vld [vmem:[%s237 + $0x30] sm:$0xf]
      %v266 = vld [vmem:[%s237 + $0x34] sm:$0xf]
      %v267 = vld [vmem:[%s237 + $0x38] sm:$0xf]
      %v268 = vld [vmem:[%s237 + $0x3c] sm:$0xf]
      %v269 = vld [vmem:[%s237 + $0x40] sm:$0xf]
      %v270 = vld [vmem:[%s237 + $0x44] sm:$0xf]
      %v271 = vld [vmem:[%s237 + $0x48] sm:$0xf]
      %v272 = vld [vmem:[%s237 + $0x4c] sm:$0xf]
      %v273 = vld [vmem:[%s237 + $0x50] sm:$0xf]
      %v274 = vld [vmem:[%s237 + $0x54] sm:$0xf]
      %v275 = vld [vmem:[%s237 + $0x58] sm:$0xf]
      %v276 = vld [vmem:[%s237 + $0x5c] sm:$0xf]
      %v277 = vld [vmem:[%s237 + $0x60] sm:$0xf]
      %v278 = vld [vmem:[%s237 + $0x64] sm:$0xf]
      %v279 = vld [vmem:[%s237 + $0x68] sm:$0xf]
      %v280 = vld [vmem:[%s237 + $0x6c] sm:$0xf]
      %v281 = vld [vmem:[%s237 + $0x70] sm:$0xf]
      %v282 = vld [vmem:[%s237 + $0x74] sm:$0xf]
      %v283 = vld [vmem:[%s237 + $0x78] sm:$0xf]
      %v284 = vld [vmem:[%s237 + $0x7c] sm:$0xf]
      %v285 = vld [vmem:[%s1] sm:$0xff]
      %v286 = vld [vmem:[%s1 + $0x8] sm:$0xff]
      %v287 = vld [vmem:[%s1 + $0x10] sm:$0xff]
      %v288 = vld [vmem:[%s1 + $0x18] sm:$0xff]
      %v289 = vld [vmem:[%s1 + $0x20] sm:$0xff]
      %v290 = vld [vmem:[%s1 + $0x28] sm:$0xff]
      %v291 = vld [vmem:[%s1 + $0x30] sm:$0xff]
      %v292 = vld [vmem:[%s1 + $0x38] sm:$0xff]
      %v293 = vld [vmem:[%s1 + $0x40] sm:$0xff]
      %v294 = vld [vmem:[%s1 + $0x48] sm:$0xff]
      %v295 = vld [vmem:[%s1 + $0x50] sm:$0xff]
      %v296 = vld [vmem:[%s1 + $0x58] sm:$0xff]
      %v297 = vld [vmem:[%s1 + $0x60] sm:$0xff]
      %v298 = vld [vmem:[%s1 + $0x68] sm:$0xff]
      %v299 = vld [vmem:[%s1 + $0x70] sm:$0xff]
      %v300 = vld [vmem:[%s1 + $0x78] sm:$0xff]
      %v301 = vld [vmem:[%s1 + $0x80] sm:$0xff]
      %v302 = vld [vmem:[%s1 + $0x88] sm:$0xff]
      %v303 = vld [vmem:[%s1 + $0x90] sm:$0xff]
      %v304 = vld [vmem:[%s1 + $0x98] sm:$0xff]
      %v305 = vld [vmem:[%s1 + $0xa0] sm:$0xff]
      %v306 = vld [vmem:[%s1 + $0xa8] sm:$0xff]
      %v307 = vld [vmem:[%s1 + $0xb0] sm:$0xff]
      %v308 = vld [vmem:[%s1 + $0xb8] sm:$0xff]
      %v309 = vld [vmem:[%s1 + $0xc0] sm:$0xff]
      %v310 = vld [vmem:[%s1 + $0xc8] sm:$0xff]
      %v311 = vld [vmem:[%s1 + $0xd0] sm:$0xff]
      %v312 = vld [vmem:[%s1 + $0xd8] sm:$0xff]
      %v313 = vld [vmem:[%s1 + $0xe0] sm:$0xff]
      %v314 = vld [vmem:[%s1 + $0xe8] sm:$0xff]
      %v315 = vld [vmem:[%s1 + $0xf0] sm:$0xff]
      %v316 = vld [vmem:[%s1 + $0xf8] sm:$0xff]
      %v317 = vld [vmem:[%s1 + $0x100] sm:$0xff]
      %v318 = vld [vmem:[%s1 + $0x108] sm:$0xff]
      %v319 = vld [vmem:[%s1 + $0x110] sm:$0xff]
      %v320 = vld [vmem:[%s1 + $0x118] sm:$0xff]
      %v321 = vld [vmem:[%s1 + $0x120] sm:$0xff]
      %v322 = vld [vmem:[%s1 + $0x128] sm:$0xff]
      %v323 = vld [vmem:[%s1 + $0x130] sm:$0xff]
      %v324 = vld [vmem:[%s1 + $0x138] sm:$0xff]
      %v325 = vld [vmem:[%s1 + $0x140] sm:$0xff]
      %v326 = vld [vmem:[%s1 + $0x148] sm:$0xff]
      %v327 = vld [vmem:[%s1 + $0x150] sm:$0xff]
      %v328 = vld [vmem:[%s1 + $0x158] sm:$0xff]
      %v329 = vld [vmem:[%s1 + $0x160] sm:$0xff]
      %v330 = vld [vmem:[%s1 + $0x168] sm:$0xff]
      %v331 = vld [vmem:[%s1 + $0x170] sm:$0xff]
      %v332 = vld [vmem:[%s1 + $0x178] sm:$0xff]
      %v333 = vld [vmem:[%s1 + $0x180] sm:$0xff]
      %v334 = vld [vmem:[%s1 + $0x188] sm:$0xff]
      %v335 = vld [vmem:[%s1 + $0x190] sm:$0xff]
      %v336 = vld [vmem:[%s1 + $0x198] sm:$0xff]
      %v337 = vld [vmem:[%s1 + $0x1a0] sm:$0xff]
      %v338 = vld [vmem:[%s1 + $0x1a8] sm:$0xff]
      %v339 = vld [vmem:[%s1 + $0x1b0] sm:$0xff]
      %v340 = vld [vmem:[%s1 + $0x1b8] sm:$0xff]
      %v341 = vld [vmem:[%s1 + $0x1c0] sm:$0xff]
      %v342 = vld [vmem:[%s1 + $0x1c8] sm:$0xff]
      %v343 = vld [vmem:[%s1 + $0x1d0] sm:$0xff]
      %v344 = vld [vmem:[%s1 + $0x1d8] sm:$0xff]
      %v345 = vld [vmem:[%s1 + $0x1e0] sm:$0xff]
      %v346 = vld [vmem:[%s1 + $0x1e8] sm:$0xff]
      %v347 = vld [vmem:[%s1 + $0x1f0] sm:$0xff]
      %v348 = vld [vmem:[%s1 + $0x1f8] sm:$0xff]
      %v349 = vld [vmem:[%s243] sm:$0xf]
      %v350 = vld [vmem:[%s243 + $0x4] sm:$0xf]
      %v351 = vld [vmem:[%s243 + $0x8] sm:$0xf]
      %v352 = vld [vmem:[%s243 + $0xc] sm:$0xf]
      %v353 = vld [vmem:[%s243 + $0x10] sm:$0xf]
      %v354 = vld [vmem:[%s243 + $0x14] sm:$0xf]
      %v355 = vld [vmem:[%s243 + $0x18] sm:$0xf]
      %v356 = vld [vmem:[%s243 + $0x1c] sm:$0xf]
      %v357 = vld [vmem:[%s243 + $0x20] sm:$0xf]
      %v358 = vld [vmem:[%s243 + $0x24] sm:$0xf]
      %v359 = vld [vmem:[%s243 + $0x28] sm:$0xf]
      %v360 = vld [vmem:[%s243 + $0x2c] sm:$0xf]
      %v361 = vld [vmem:[%s243 + $0x30] sm:$0xf]
      %v362 = vld [vmem:[%s243 + $0x34] sm:$0xf]
      %v363 = vld [vmem:[%s243 + $0x38] sm:$0xf]
      %v364 = vld [vmem:[%s243 + $0x3c] sm:$0xf]
      %v365 = vld [vmem:[%s243 + $0x40] sm:$0xf]
      %v366 = vld [vmem:[%s243 + $0x44] sm:$0xf]
      %v367 = vld [vmem:[%s243 + $0x48] sm:$0xf]
      %v368 = vld [vmem:[%s243 + $0x4c] sm:$0xf]
      %v369 = vld [vmem:[%s243 + $0x50] sm:$0xf]
      %v370 = vld [vmem:[%s243 + $0x54] sm:$0xf]
      %v371 = vld [vmem:[%s243 + $0x58] sm:$0xf]
      %v372 = vld [vmem:[%s243 + $0x5c] sm:$0xf]
      %v373 = vld [vmem:[%s243 + $0x60] sm:$0xf]
      %v374 = vld [vmem:[%s243 + $0x64] sm:$0xf]
      %v375 = vld [vmem:[%s243 + $0x68] sm:$0xf]
      %v376 = vld [vmem:[%s243 + $0x6c] sm:$0xf]
      %v377 = vld [vmem:[%s243 + $0x70] sm:$0xf]
      %v378 = vld [vmem:[%s243 + $0x74] sm:$0xf]
      %v379 = vld [vmem:[%s243 + $0x78] sm:$0xf]
      %v380 = vld [vmem:[%s243 + $0x7c] sm:$0xf]
      %v381 = vld [vmem:[%s3] sm:$0xff]
      %v382 = vld [vmem:[%s3 + $0x8] sm:$0xff]
      %v383 = vld [vmem:[%s3 + $0x10] sm:$0xff]
      %v384 = vld [vmem:[%s3 + $0x18] sm:$0xff]
      %v385 = vld [vmem:[%s3 + $0x20] sm:$0xff]
      %v386 = vld [vmem:[%s3 + $0x28] sm:$0xff]
      %v387 = vld [vmem:[%s3 + $0x30] sm:$0xff]
      %v388 = vld [vmem:[%s3 + $0x38] sm:$0xff]
      %v389 = vld [vmem:[%s3 + $0x40] sm:$0xff]
      %v390 = vld [vmem:[%s3 + $0x48] sm:$0xff]
      %v391 = vld [vmem:[%s3 + $0x50] sm:$0xff]
      %v392 = vld [vmem:[%s3 + $0x58] sm:$0xff]
      %v393 = vld [vmem:[%s3 + $0x60] sm:$0xff]
      %v394 = vld [vmem:[%s3 + $0x68] sm:$0xff]
      %v395 = vld [vmem:[%s3 + $0x70] sm:$0xff]
      %v396 = vld [vmem:[%s3 + $0x78] sm:$0xff]
      %v397 = vld [vmem:[%s3 + $0x80] sm:$0xff]
      %v398 = vld [vmem:[%s3 + $0x88] sm:$0xff]
      %v399 = vld [vmem:[%s3 + $0x90] sm:$0xff]
      %v400 = vld [vmem:[%s3 + $0x98] sm:$0xff]
      %v401 = vld [vmem:[%s3 + $0xa0] sm:$0xff]
      %v402 = vld [vmem:[%s3 + $0xa8] sm:$0xff]
      %v403 = vld [vmem:[%s3 + $0xb0] sm:$0xff]
      %v404 = vld [vmem:[%s3 + $0xb8] sm:$0xff]
      %v405 = vld [vmem:[%s3 + $0xc0] sm:$0xff]
      %v406 = vld [vmem:[%s3 + $0xc8] sm:$0xff]
      %v407 = vld [vmem:[%s3 + $0xd0] sm:$0xff]
      %v408 = vld [vmem:[%s3 + $0xd8] sm:$0xff]
      %v409 = vld [vmem:[%s3 + $0xe0] sm:$0xff]
      %v410 = vld [vmem:[%s3 + $0xe8] sm:$0xff]
      %v411 = vld [vmem:[%s3 + $0xf0] sm:$0xff]
      %v412 = vld [vmem:[%s3 + $0xf8] sm:$0xff]
      %v413 = vld [vmem:[%s3 + $0x100] sm:$0xff]
      %v414 = vld [vmem:[%s3 + $0x108] sm:$0xff]
      %v415 = vld [vmem:[%s3 + $0x110] sm:$0xff]
      %v416 = vld [vmem:[%s3 + $0x118] sm:$0xff]
      %v417 = vld [vmem:[%s3 + $0x120] sm:$0xff]
      %v418 = vld [vmem:[%s3 + $0x128] sm:$0xff]
      %v419 = vld [vmem:[%s3 + $0x130] sm:$0xff]
      %v420 = vld [vmem:[%s3 + $0x138] sm:$0xff]
      %v421 = vld [vmem:[%s3 + $0x140] sm:$0xff]
      %v422 = vld [vmem:[%s3 + $0x148] sm:$0xff]
      %v423 = vld [vmem:[%s3 + $0x150] sm:$0xff]
      %v424 = vld [vmem:[%s3 + $0x158] sm:$0xff]
      %v425 = vld [vmem:[%s3 + $0x160] sm:$0xff]
      %v426 = vld [vmem:[%s3 + $0x168] sm:$0xff]
      %v427 = vld [vmem:[%s3 + $0x170] sm:$0xff]
      %v428 = vld [vmem:[%s3 + $0x178] sm:$0xff]
      %v429 = vld [vmem:[%s3 + $0x180] sm:$0xff]
      %v430 = vld [vmem:[%s3 + $0x188] sm:$0xff]
      %v431 = vld [vmem:[%s3 + $0x190] sm:$0xff]
      %v432 = vld [vmem:[%s3 + $0x198] sm:$0xff]
      %v433 = vld [vmem:[%s3 + $0x1a0] sm:$0xff]
      %v434 = vld [vmem:[%s3 + $0x1a8] sm:$0xff]
      %v435 = vld [vmem:[%s3 + $0x1b0] sm:$0xff]
      %v436 = vld [vmem:[%s3 + $0x1b8] sm:$0xff]
      %v437 = vld [vmem:[%s3 + $0x1c0] sm:$0xff]
      %v438 = vld [vmem:[%s3 + $0x1c8] sm:$0xff]
      %v439 = vld [vmem:[%s3 + $0x1d0] sm:$0xff]
      %v440 = vld [vmem:[%s3 + $0x1d8] sm:$0xff]
      %v441 = vld [vmem:[%s3 + $0x1e0] sm:$0xff]
      %v442 = vld [vmem:[%s3 + $0x1e8] sm:$0xff]
      %v443 = vld [vmem:[%s3 + $0x1f0] sm:$0xff]
      %v444 = vld [vmem:[%s3 + $0x1f8] sm:$0xff]
      %v477 = vunpack.c.l.b16 %v349
      %v478 = vunpack.c.l.b16 %v350
      %v479 = vunpack.c.l.b16 %v351
      %v480 = vunpack.c.l.b16 %v352
      %v481 = vunpack.c.l.b16 %v353
      %v482 = vunpack.c.l.b16 %v354
      %v483 = vunpack.c.l.b16 %v355
      %v484 = vunpack.c.l.b16 %v356
      %v485 = vunpack.c.l.b16 %v357
      %v486 = vunpack.c.l.b16 %v358
      %v487 = vunpack.c.l.b16 %v359
      %v488 = vunpack.c.l.b16 %v360
      %v489 = vunpack.c.l.b16 %v361
      %v490 = vunpack.c.l.b16 %v362
      %v491 = vunpack.c.l.b16 %v363
      %v492 = vunpack.c.l.b16 %v364
      %v493 = vunpack.c.l.b16 %v365
      %v494 = vunpack.c.l.b16 %v366
      %v495 = vunpack.c.l.b16 %v367
      %v496 = vunpack.c.l.b16 %v368
      %v497 = vunpack.c.l.b16 %v369
      %v498 = vunpack.c.l.b16 %v370
      %v499 = vunpack.c.l.b16 %v371
      %v500 = vunpack.c.l.b16 %v372
      %v501 = vunpack.c.l.b16 %v373
      %v502 = vunpack.c.l.b16 %v374
      %v503 = vunpack.c.l.b16 %v375
      %v504 = vunpack.c.l.b16 %v376
      %v505 = vunpack.c.l.b16 %v377
      %v506 = vunpack.c.l.b16 %v378
      %v507 = vunpack.c.l.b16 %v379
      %v508 = vunpack.c.l.b16 %v380
      %v509 = vpack.c.b16 %v478, %v477
      %v510 = vpack.c.b16 %v480, %v479
      %v511 = vpack.c.b16 %v482, %v481
      %v512 = vpack.c.b16 %v484, %v483
      %v513 = vpack.c.b16 %v486, %v485
      %v514 = vpack.c.b16 %v488, %v487
      %v515 = vpack.c.b16 %v490, %v489
      %v516 = vpack.c.b16 %v492, %v491
      %v517 = vpack.c.b16 %v494, %v493
      %v518 = vpack.c.b16 %v496, %v495
      %v519 = vpack.c.b16 %v498, %v497
      %v520 = vpack.c.b16 %v500, %v499
      %v521 = vpack.c.b16 %v502, %v501
      %v522 = vpack.c.b16 %v504, %v503
      %v523 = vpack.c.b16 %v506, %v505
      %v524 = vpack.c.b16 %v508, %v507
      %v605 = vunpack.c.l.b16 %v381
      %v606 = vunpack.c.h.b16 %v381
      %v607 = vunpack.c.l.b16 %v382
      %v608 = vunpack.c.h.b16 %v382
      %v609 = vunpack.c.l.b16 %v383
      %v610 = vunpack.c.h.b16 %v383
      %v611 = vunpack.c.l.b16 %v384
      %v612 = vunpack.c.h.b16 %v384
      %v613 = vunpack.c.l.b16 %v385
      %v614 = vunpack.c.h.b16 %v385
      %v615 = vunpack.c.l.b16 %v386
      %v616 = vunpack.c.h.b16 %v386
      %v617 = vunpack.c.l.b16 %v387
      %v618 = vunpack.c.h.b16 %v387
      %v619 = vunpack.c.l.b16 %v388
      %v620 = vunpack.c.h.b16 %v388
      %v621 = vunpack.c.l.b16 %v389
      %v622 = vunpack.c.h.b16 %v389
      %v623 = vunpack.c.l.b16 %v390
      %v624 = vunpack.c.h.b16 %v390
      %v625 = vunpack.c.l.b16 %v391
      %v626 = vunpack.c.h.b16 %v391
      %v627 = vunpack.c.l.b16 %v392
      %v628 = vunpack.c.h.b16 %v392
      %v629 = vunpack.c.l.b16 %v393
      %v630 = vunpack.c.h.b16 %v393
      %v631 = vunpack.c.l.b16 %v394
      %v632 = vunpack.c.h.b16 %v394
      %v633 = vunpack.c.l.b16 %v395
      %v634 = vunpack.c.h.b16 %v395
      %v635 = vunpack.c.l.b16 %v396
      %v636 = vunpack.c.h.b16 %v396
      %v637 = vunpack.c.l.b16 %v397
      %v638 = vunpack.c.h.b16 %v397
      %v639 = vunpack.c.l.b16 %v398
      %v640 = vunpack.c.h.b16 %v398
      %v641 = vunpack.c.l.b16 %v399
      %v642 = vunpack.c.h.b16 %v399
      %v643 = vunpack.c.l.b16 %v400
      %v644 = vunpack.c.h.b16 %v400
      %v645 = vunpack.c.l.b16 %v401
      %v646 = vunpack.c.h.b16 %v401
      %v647 = vunpack.c.l.b16 %v402
      %v648 = vunpack.c.h.b16 %v402
      %v649 = vunpack.c.l.b16 %v403
      %v650 = vunpack.c.h.b16 %v403
      %v651 = vunpack.c.l.b16 %v404
      %v652 = vunpack.c.h.b16 %v404
      %v653 = vunpack.c.l.b16 %v405
      %v654 = vunpack.c.h.b16 %v405
      %v655 = vunpack.c.l.b16 %v406
      %v656 = vunpack.c.h.b16 %v406
      %v657 = vunpack.c.l.b16 %v407
      %v658 = vunpack.c.h.b16 %v407
      %v659 = vunpack.c.l.b16 %v408
      %v660 = vunpack.c.h.b16 %v408
      %v661 = vunpack.c.l.b16 %v409
      %v662 = vunpack.c.h.b16 %v409
      %v663 = vunpack.c.l.b16 %v410
      %v664 = vunpack.c.h.b16 %v410
      %v665 = vunpack.c.l.b16 %v411
      %v666 = vunpack.c.h.b16 %v411
      %v667 = vunpack.c.l.b16 %v412
      %v668 = vunpack.c.h.b16 %v412
      %v669 = vunpack.c.l.b16 %v413
      %v670 = vunpack.c.h.b16 %v413
      %v671 = vunpack.c.l.b16 %v414
      %v672 = vunpack.c.h.b16 %v414
      %v673 = vunpack.c.l.b16 %v415
      %v674 = vunpack.c.h.b16 %v415
      %v675 = vunpack.c.l.b16 %v416
      %v676 = vunpack.c.h.b16 %v416
      %v677 = vunpack.c.l.b16 %v417
      %v678 = vunpack.c.h.b16 %v417
      %v679 = vunpack.c.l.b16 %v418
      %v680 = vunpack.c.h.b16 %v418
      %v681 = vunpack.c.l.b16 %v419
      %v682 = vunpack.c.h.b16 %v419
      %v683 = vunpack.c.l.b16 %v420
      %v684 = vunpack.c.h.b16 %v420
      %v685 = vunpack.c.l.b16 %v421
      %v686 = vunpack.c.h.b16 %v421
      %v687 = vunpack.c.l.b16 %v422
      %v688 = vunpack.c.h.b16 %v422
      %v689 = vunpack.c.l.b16 %v423
      %v690 = vunpack.c.h.b16 %v423
      %v691 = vunpack.c.l.b16 %v424
      %v692 = vunpack.c.h.b16 %v424
      %v693 = vunpack.c.l.b16 %v425
      %v694 = vunpack.c.h.b16 %v425
      %v695 = vunpack.c.l.b16 %v426
      %v696 = vunpack.c.h.b16 %v426
      %v697 = vunpack.c.l.b16 %v427
      %v698 = vunpack.c.h.b16 %v427
      %v699 = vunpack.c.l.b16 %v428
      %v700 = vunpack.c.h.b16 %v428
      %v701 = vunpack.c.l.b16 %v429
      %v702 = vunpack.c.h.b16 %v429
      %v703 = vunpack.c.l.b16 %v430
      %v704 = vunpack.c.h.b16 %v430
      %v705 = vunpack.c.l.b16 %v431
      %v706 = vunpack.c.h.b16 %v431
      %v707 = vunpack.c.l.b16 %v432
      %v708 = vunpack.c.h.b16 %v432
      %v709 = vunpack.c.l.b16 %v433
      %v710 = vunpack.c.h.b16 %v433
      %v711 = vunpack.c.l.b16 %v434
      %v712 = vunpack.c.h.b16 %v434
      %v713 = vunpack.c.l.b16 %v435
      %v714 = vunpack.c.h.b16 %v435
      %v715 = vunpack.c.l.b16 %v436
      %v716 = vunpack.c.h.b16 %v436
      %v717 = vunpack.c.l.b16 %v437
      %v718 = vunpack.c.h.b16 %v437
      %v719 = vunpack.c.l.b16 %v438
      %v720 = vunpack.c.h.b16 %v438
      %v721 = vunpack.c.l.b16 %v439
      %v722 = vunpack.c.h.b16 %v439
      %v723 = vunpack.c.l.b16 %v440
      %v724 = vunpack.c.h.b16 %v440
      %v725 = vunpack.c.l.b16 %v441
      %v726 = vunpack.c.h.b16 %v441
      %v727 = vunpack.c.l.b16 %v442
      %v728 = vunpack.c.h.b16 %v442
      %v729 = vunpack.c.l.b16 %v443
      %v730 = vunpack.c.h.b16 %v443
      %v731 = vunpack.c.l.b16 %v444
      %v732 = vunpack.c.h.b16 %v444
      %v733 = vpack.c.b16 %v613, %v605
      %v734 = vpack.c.b16 %v614, %v606
      %v735 = vpack.c.b16 %v615, %v607
      %v736 = vpack.c.b16 %v616, %v608
      %v737 = vpack.c.b16 %v617, %v609
      %v738 = vpack.c.b16 %v618, %v610
      %v739 = vpack.c.b16 %v619, %v611
      %v740 = vpack.c.b16 %v620, %v612
      %v741 = vpack.c.b16 %v629, %v621
      %v742 = vpack.c.b16 %v630, %v622
      %v743 = vpack.c.b16 %v631, %v623
      %v744 = vpack.c.b16 %v632, %v624
      %v745 = vpack.c.b16 %v633, %v625
      %v746 = vpack.c.b16 %v634, %v626
      %v747 = vpack.c.b16 %v635, %v627
      %v748 = vpack.c.b16 %v636, %v628
      %v749 = vpack.c.b16 %v645, %v637
      %v750 = vpack.c.b16 %v646, %v638
      %v751 = vpack.c.b16 %v647, %v639
      %v752 = vpack.c.b16 %v648, %v640
      %v753 = vpack.c.b16 %v649, %v641
      %v754 = vpack.c.b16 %v650, %v642
      %v755 = vpack.c.b16 %v651, %v643
      %v756 = vpack.c.b16 %v652, %v644
      %v757 = vpack.c.b16 %v661, %v653
      %v758 = vpack.c.b16 %v662, %v654
      %v759 = vpack.c.b16 %v663, %v655
      %v760 = vpack.c.b16 %v664, %v656
      %v761 = vpack.c.b16 %v665, %v657
      %v762 = vpack.c.b16 %v666, %v658
      %v763 = vpack.c.b16 %v667, %v659
      %v764 = vpack.c.b16 %v668, %v660
      %v765 = vpack.c.b16 %v677, %v669
      %v766 = vpack.c.b16 %v678, %v670
      %v767 = vpack.c.b16 %v679, %v671
      %v768 = vpack.c.b16 %v680, %v672
      %v769 = vpack.c.b16 %v681, %v673
      %v770 = vpack.c.b16 %v682, %v674
      %v771 = vpack.c.b16 %v683, %v675
      %v772 = vpack.c.b16 %v684, %v676
      %v773 = vpack.c.b16 %v693, %v685
      %v774 = vpack.c.b16 %v694, %v686
      %v775 = vpack.c.b16 %v695, %v687
      %v776 = vpack.c.b16 %v696, %v688
      %v777 = vpack.c.b16 %v697, %v689
      %v778 = vpack.c.b16 %v698, %v690
      %v779 = vpack.c.b16 %v699, %v691
      %v780 = vpack.c.b16 %v700, %v692
      %v781 = vpack.c.b16 %v709, %v701
      %v782 = vpack.c.b16 %v710, %v702
      %v783 = vpack.c.b16 %v711, %v703
      %v784 = vpack.c.b16 %v712, %v704
      %v785 = vpack.c.b16 %v713, %v705
      %v786 = vpack.c.b16 %v714, %v706
      %v787 = vpack.c.b16 %v715, %v707
      %v788 = vpack.c.b16 %v716, %v708
      %v789 = vpack.c.b16 %v725, %v717
      %v790 = vpack.c.b16 %v726, %v718
      %v791 = vpack.c.b16 %v727, %v719
      %v792 = vpack.c.b16 %v728, %v720
      %v793 = vpack.c.b16 %v729, %v721
      %v794 = vpack.c.b16 %v730, %v722
      %v795 = vpack.c.b16 %v731, %v723
      %v796 = vpack.c.b16 %v732, %v724
      %861 = vmatprep.subr.bf16.mxu0 %v790
      %862 = vmatpush1.bf16.msra.mxu0 %v789
      %863 = vmatprep.subr.bf16.mxu0 %v782
      %864 = vmatpush1.bf16.msra.mxu0 %v781
      %865 = vmatprep.subr.bf16.mxu0 %v774
      %866 = vmatpush1.bf16.msra.mxu0 %v773
      %867 = vmatprep.subr.bf16.mxu0 %v766
      %868 = vmatpush1.bf16.msra.mxu0 %v765
      %869 = vmatprep.subr.bf16.mxu0 %v758
      %870 = vmatpush1.bf16.msra.mxu0 %v757
      %871 = vmatprep.subr.bf16.mxu0 %v750
      %872 = vmatpush1.bf16.msra.mxu0 %v749
      %873 = vmatprep.subr.bf16.mxu0 %v742
      %874 = vmatpush1.bf16.msra.mxu0 %v741
      %875 = vmatprep.subr.bf16.mxu0 %v734
      %876 = vmatpush1.bf16.msra.mxu0 %v733
      %877 = vmatprep.subr.bf16.mxu0 0
      %878 = vmatpush2.bf16.msra.mxu0 0
      %879 = vmatprep.subr.bf16.mxu0 0
      %880 = vmatpush2.bf16.msra.mxu0 0
      %881 = vmatprep.subr.bf16.mxu0 0
      %882 = vmatpush2.bf16.msra.mxu0 0
      %883 = vmatprep.subr.bf16.mxu0 0
      %884 = vmatpush2.bf16.msra.mxu0 0
      %885 = vmatprep.subr.bf16.mxu0 0
      %886 = vmatpush2.bf16.msra.mxu0 0
      %887 = vmatprep.subr.bf16.mxu0 0
      %888 = vmatpush2.bf16.msra.mxu0 0
      %889 = vmatprep.subr.bf16.mxu0 0
      %890 = vmatpush2.bf16.msra.mxu0 0
      %891 = vmatprep.subr.bf16.mxu0 0
      %892 = vmatpush2.bf16.msra.mxu0 0
      %893 = vmatprep.mubr.bf16.mxu0 0
      %894 = vmatmul.mubr.bf16.gmra.mxu0 %v509
      %v895 = vpop.f32.mrf.mxu0
      %v896 = vadd.f32 0.0, %v895
      %v897 = vpop.f32.mrf.mxu0
      %v898 = vadd.f32 0.0, %v897
      %v899 = vpop.f32.mrf.mxu0
      %v900 = vadd.f32 0.0, %v899
      %v901 = vpop.f32.mrf.mxu0
      %v902 = vadd.f32 0.0, %v901
      %903 = vmatprep.mubr.bf16.mxu0 0
      %904 = vmatmul.mubr.bf16.gmra.mxu0 %v510
      %v905 = vpop.f32.mrf.mxu0
      %v906 = vadd.f32 0.0, %v905
      %v907 = vpop.f32.mrf.mxu0
      %v908 = vadd.f32 0.0, %v907
      %v909 = vpop.f32.mrf.mxu0
      %v910 = vadd.f32 0.0, %v909
      %v911 = vpop.f32.mrf.mxu0
      %v912 = vadd.f32 0.0, %v911
      %913 = vmatprep.mubr.bf16.mxu0 0
      %914 = vmatmul.mubr.bf16.gmra.mxu0 %v511
      %v915 = vpop.f32.mrf.mxu0
      %v916 = vadd.f32 0.0, %v915
      %v917 = vpop.f32.mrf.mxu0
      %v918 = vadd.f32 0.0, %v917
      %v919 = vpop.f32.mrf.mxu0
      %v920 = vadd.f32 0.0, %v919
      %v921 = vpop.f32.mrf.mxu0
      %v922 = vadd.f32 0.0, %v921
      %923 = vmatprep.mubr.bf16.mxu0 0
      %924 = vmatmul.mubr.bf16.gmra.mxu0 %v512
      %v925 = vpop.f32.mrf.mxu0
      %v926 = vadd.f32 0.0, %v925
      %v927 = vpop.f32.mrf.mxu0
      %v928 = vadd.f32 0.0, %v927
      %v929 = vpop.f32.mrf.mxu0
      %v930 = vadd.f32 0.0, %v929
      %v931 = vpop.f32.mrf.mxu0
      %v932 = vadd.f32 0.0, %v931
      %933 = vmatprep.mubr.bf16.mxu0 0
      %934 = vmatmul.mubr.bf16.gmra.mxu0 %v513
      %v935 = vpop.f32.mrf.mxu0
      %v936 = vadd.f32 0.0, %v935
      %v937 = vpop.f32.mrf.mxu0
      %v938 = vadd.f32 0.0, %v937
      %v939 = vpop.f32.mrf.mxu0
      %v940 = vadd.f32 0.0, %v939
      %v941 = vpop.f32.mrf.mxu0
      %v942 = vadd.f32 0.0, %v941
      %943 = vmatprep.mubr.bf16.mxu0 0
      %944 = vmatmul.mubr.bf16.gmra.mxu0 %v514
      %v945 = vpop.f32.mrf.mxu0
      %v946 = vadd.f32 0.0, %v945
      %v947 = vpop.f32.mrf.mxu0
      %v948 = vadd.f32 0.0, %v947
      %v949 = vpop.f32.mrf.mxu0
      %v950 = vadd.f32 0.0, %v949
      %v951 = vpop.f32.mrf.mxu0
      %v952 = vadd.f32 0.0, %v951
      %953 = vmatprep.mubr.bf16.mxu0 0
      %954 = vmatmul.mubr.bf16.gmra.mxu0 %v515
      %v955 = vpop.f32.mrf.mxu0
      %v956 = vadd.f32 0.0, %v955
      %v957 = vpop.f32.mrf.mxu0
      %v958 = vadd.f32 0.0, %v957
      %v959 = vpop.f32.mrf.mxu0
      %v960 = vadd.f32 0.0, %v959
      %v961 = vpop.f32.mrf.mxu0
      %v962 = vadd.f32 0.0, %v961
      %963 = vmatprep.mubr.bf16.mxu0 0
      %964 = vmatmul.mubr.bf16.gmra.mxu0 %v516
      %v965 = vpop.f32.mrf.mxu0
      %v966 = vadd.f32 0.0, %v965
      %v967 = vpop.f32.mrf.mxu0
      %v968 = vadd.f32 0.0, %v967
      %v969 = vpop.f32.mrf.mxu0
      %v970 = vadd.f32 0.0, %v969
      %v971 = vpop.f32.mrf.mxu0
      %v972 = vadd.f32 0.0, %v971
      %973 = vmatprep.mubr.bf16.mxu0 0
      %974 = vmatmul.mubr.bf16.gmra.mxu0 %v517
      %v975 = vpop.f32.mrf.mxu0
      %v976 = vadd.f32 0.0, %v975
      %v977 = vpop.f32.mrf.mxu0
      %v978 = vadd.f32 0.0, %v977
      %v979 = vpop.f32.mrf.mxu0
      %v980 = vadd.f32 0.0, %v979
      %v981 = vpop.f32.mrf.mxu0
      %v982 = vadd.f32 0.0, %v981
      %983 = vmatprep.mubr.bf16.mxu0 0
      %984 = vmatmul.mubr.bf16.gmra.mxu0 %v518
      %v985 = vpop.f32.mrf.mxu0
      %v986 = vadd.f32 0.0, %v985
      %v987 = vpop.f32.mrf.mxu0
      %v988 = vadd.f32 0.0, %v987
      %v989 = vpop.f32.mrf.mxu0
      %v990 = vadd.f32 0.0, %v989
      %v991 = vpop.f32.mrf.mxu0
      %v992 = vadd.f32 0.0, %v991
      %993 = vmatprep.mubr.bf16.mxu0 0
      %994 = vmatmul.mubr.bf16.gmra.mxu0 %v519
      %v995 = vpop.f32.mrf.mxu0
      %v996 = vadd.f32 0.0, %v995
      %v997 = vpop.f32.mrf.mxu0
      %v998 = vadd.f32 0.0, %v997
      %v999 = vpop.f32.mrf.mxu0
      %v1000 = vadd.f32 0.0, %v999
      %v1001 = vpop.f32.mrf.mxu0
      %v1002 = vadd.f32 0.0, %v1001
      %1003 = vmatprep.mubr.bf16.mxu0 0
      %1004 = vmatmul.mubr.bf16.gmra.mxu0 %v520
      %v1005 = vpop.f32.mrf.mxu0
      %v1006 = vadd.f32 0.0, %v1005
      %v1007 = vpop.f32.mrf.mxu0
      %v1008 = vadd.f32 0.0, %v1007
      %v1009 = vpop.f32.mrf.mxu0
      %v1010 = vadd.f32 0.0, %v1009
      %v1011 = vpop.f32.mrf.mxu0
      %v1012 = vadd.f32 0.0, %v1011
      %1013 = vmatprep.mubr.bf16.mxu0 0
      %1014 = vmatmul.mubr.bf16.gmra.mxu0 %v521
      %v1015 = vpop.f32.mrf.mxu0
      %v1016 = vadd.f32 0.0, %v1015
      %v1017 = vpop.f32.mrf.mxu0
      %v1018 = vadd.f32 0.0, %v1017
      %v1019 = vpop.f32.mrf.mxu0
      %v1020 = vadd.f32 0.0, %v1019
      %v1021 = vpop.f32.mrf.mxu0
      %v1022 = vadd.f32 0.0, %v1021
      %1023 = vmatprep.mubr.bf16.mxu0 0
      %1024 = vmatmul.mubr.bf16.gmra.mxu0 %v522
      %v1025 = vpop.f32.mrf.mxu0
      %v1026 = vadd.f32 0.0, %v1025
      %v1027 = vpop.f32.mrf.mxu0
      %v1028 = vadd.f32 0.0, %v1027
      %v1029 = vpop.f32.mrf.mxu0
      %v1030 = vadd.f32 0.0, %v1029
      %v1031 = vpop.f32.mrf.mxu0
      %v1032 = vadd.f32 0.0, %v1031
      %1033 = vmatprep.mubr.bf16.mxu0 0
      %1034 = vmatmul.mubr.bf16.gmra.mxu0 %v523
      %v1035 = vpop.f32.mrf.mxu0
      %v1036 = vadd.f32 0.0, %v1035
      %v1037 = vpop.f32.mrf.mxu0
      %v1038 = vadd.f32 0.0, %v1037
      %v1039 = vpop.f32.mrf.mxu0
      %v1040 = vadd.f32 0.0, %v1039
      %v1041 = vpop.f32.mrf.mxu0
      %v1042 = vadd.f32 0.0, %v1041
      %1043 = vmatprep.mubr.bf16.mxu0 0
      %1044 = vmatmul.mubr.bf16.gmra.mxu0 %v524
      %v1045 = vpop.f32.mrf.mxu0
      %v1046 = vadd.f32 0.0, %v1045
      %v1047 = vpop.f32.mrf.mxu0
      %v1048 = vadd.f32 0.0, %v1047
      %v1049 = vpop.f32.mrf.mxu0
      %v1050 = vadd.f32 0.0, %v1049
      %v1051 = vpop.f32.mrf.mxu0
      %v1052 = vadd.f32 0.0, %v1051
      %1053 = vdwg.mxu0
      %1054 = vmatprep.subr.bf16.mxu0 %v792
      %1055 = vmatpush1.bf16.msra.mxu0 %v791
      %1056 = vmatprep.subr.bf16.mxu0 %v784
      %1057 = vmatpush1.bf16.msra.mxu0 %v783
      %1058 = vmatprep.subr.bf16.mxu0 %v776
      %1059 = vmatpush1.bf16.msra.mxu0 %v775
      %1060 = vmatprep.subr.bf16.mxu0 %v768
      %1061 = vmatpush1.bf16.msra.mxu0 %v767
      %1062 = vmatprep.subr.bf16.mxu0 %v760
      %1063 = vmatpush1.bf16.msra.mxu0 %v759
      %1064 = vmatprep.subr.bf16.mxu0 %v752
      %1065 = vmatpush1.bf16.msra.mxu0 %v751
      %1066 = vmatprep.subr.bf16.mxu0 %v744
      %1067 = vmatpush1.bf16.msra.mxu0 %v743
      %1068 = vmatprep.subr.bf16.mxu0 %v736
      %1069 = vmatpush1.bf16.msra.mxu0 %v735
      %1070 = vmatprep.subr.bf16.mxu0 0
      %1071 = vmatpush2.bf16.msra.mxu0 0
      %1072 = vmatprep.subr.bf16.mxu0 0
      %1073 = vmatpush2.bf16.msra.mxu0 0
      %1074 = vmatprep.subr.bf16.mxu0 0
      %1075 = vmatpush2.bf16.msra.mxu0 0
      %1076 = vmatprep.subr.bf16.mxu0 0
      %1077 = vmatpush2.bf16.msra.mxu0 0
      %1078 = vmatprep.subr.bf16.mxu0 0
      %1079 = vmatpush2.bf16.msra.mxu0 0
      %1080 = vmatprep.subr.bf16.mxu0 0
      %1081 = vmatpush2.bf16.msra.mxu0 0
      %1082 = vmatprep.subr.bf16.mxu0 0
      %1083 = vmatpush2.bf16.msra.mxu0 0
      %1084 = vmatprep.subr.bf16.mxu0 0
      %1085 = vmatpush2.bf16.msra.mxu0 0
      %1086 = vmatprep.mubr.bf16.mxu0 0
      %1087 = vmatmul.mubr.bf16.gmra.mxu0 %v509
      %v1088 = vpop.f32.mrf.mxu0
      %v1089 = vadd.f32 0.0, %v1088
      %v1090 = vpop.f32.mrf.mxu0
      %v1091 = vadd.f32 0.0, %v1090
      %v1092 = vpop.f32.mrf.mxu0
      %v1093 = vadd.f32 0.0, %v1092
      %v1094 = vpop.f32.mrf.mxu0
      %v1095 = vadd.f32 0.0, %v1094
      %1096 = vmatprep.mubr.bf16.mxu0 0
      %1097 = vmatmul.mubr.bf16.gmra.mxu0 %v510
      %v1098 = vpop.f32.mrf.mxu0
      %v1099 = vadd.f32 0.0, %v1098
      %v1100 = vpop.f32.mrf.mxu0
      %v1101 = vadd.f32 0.0, %v1100
      %v1102 = vpop.f32.mrf.mxu0
      %v1103 = vadd.f32 0.0, %v1102
      %v1104 = vpop.f32.mrf.mxu0
      %v1105 = vadd.f32 0.0, %v1104
      %1106 = vmatprep.mubr.bf16.mxu0 0
      %1107 = vmatmul.mubr.bf16.gmra.mxu0 %v511
      %v1108 = vpop.f32.mrf.mxu0
      %v1109 = vadd.f32 0.0, %v1108
      %v1110 = vpop.f32.mrf.mxu0
      %v1111 = vadd.f32 0.0, %v1110
      %v1112 = vpop.f32.mrf.mxu0
      %v1113 = vadd.f32 0.0, %v1112
      %v1114 = vpop.f32.mrf.mxu0
      %v1115 = vadd.f32 0.0, %v1114
      %1116 = vmatprep.mubr.bf16.mxu0 0
      %1117 = vmatmul.mubr.bf16.gmra.mxu0 %v512
      %v1118 = vpop.f32.mrf.mxu0
      %v1119 = vadd.f32 0.0, %v1118
      %v1120 = vpop.f32.mrf.mxu0
      %v1121 = vadd.f32 0.0, %v1120
      %v1122 = vpop.f32.mrf.mxu0
      %v1123 = vadd.f32 0.0, %v1122
      %v1124 = vpop.f32.mrf.mxu0
      %v1125 = vadd.f32 0.0, %v1124
      %1126 = vmatprep.mubr.bf16.mxu0 0
      %1127 = vmatmul.mubr.bf16.gmra.mxu0 %v513
      %v1128 = vpop.f32.mrf.mxu0
      %v1129 = vadd.f32 0.0, %v1128
      %v1130 = vpop.f32.mrf.mxu0
      %v1131 = vadd.f32 0.0, %v1130
      %v1132 = vpop.f32.mrf.mxu0
      %v1133 = vadd.f32 0.0, %v1132
      %v1134 = vpop.f32.mrf.mxu0
      %v1135 = vadd.f32 0.0, %v1134
      %1136 = vmatprep.mubr.bf16.mxu0 0
      %1137 = vmatmul.mubr.bf16.gmra.mxu0 %v514
      %v1138 = vpop.f32.mrf.mxu0
      %v1139 = vadd.f32 0.0, %v1138
      %v1140 = vpop.f32.mrf.mxu0
      %v1141 = vadd.f32 0.0, %v1140
      %v1142 = vpop.f32.mrf.mxu0
      %v1143 = vadd.f32 0.0, %v1142
      %v1144 = vpop.f32.mrf.mxu0
      %v1145 = vadd.f32 0.0, %v1144
      %1146 = vmatprep.mubr.bf16.mxu0 0
      %1147 = vmatmul.mubr.bf16.gmra.mxu0 %v515
      %v1148 = vpop.f32.mrf.mxu0
      %v1149 = vadd.f32 0.0, %v1148
      %v1150 = vpop.f32.mrf.mxu0
      %v1151 = vadd.f32 0.0, %v1150
      %v1152 = vpop.f32.mrf.mxu0
      %v1153 = vadd.f32 0.0, %v1152
      %v1154 = vpop.f32.mrf.mxu0
      %v1155 = vadd.f32 0.0, %v1154
      %1156 = vmatprep.mubr.bf16.mxu0 0
      %1157 = vmatmul.mubr.bf16.gmra.mxu0 %v516
      %v1158 = vpop.f32.mrf.mxu0
      %v1159 = vadd.f32 0.0, %v1158
      %v1160 = vpop.f32.mrf.mxu0
      %v1161 = vadd.f32 0.0, %v1160
      %v1162 = vpop.f32.mrf.mxu0
      %v1163 = vadd.f32 0.0, %v1162
      %v1164 = vpop.f32.mrf.mxu0
      %v1165 = vadd.f32 0.0, %v1164
      %1166 = vmatprep.mubr.bf16.mxu0 0
      %1167 = vmatmul.mubr.bf16.gmra.mxu0 %v517
      %v1168 = vpop.f32.mrf.mxu0
      %v1169 = vadd.f32 0.0, %v1168
      %v1170 = vpop.f32.mrf.mxu0
      %v1171 = vadd.f32 0.0, %v1170
      %v1172 = vpop.f32.mrf.mxu0
      %v1173 = vadd.f32 0.0, %v1172
      %v1174 = vpop.f32.mrf.mxu0
      %v1175 = vadd.f32 0.0, %v1174
      %1176 = vmatprep.mubr.bf16.mxu0 0
      %1177 = vmatmul.mubr.bf16.gmra.mxu0 %v518
      %v1178 = vpop.f32.mrf.mxu0
      %v1179 = vadd.f32 0.0, %v1178
      %v1180 = vpop.f32.mrf.mxu0
      %v1181 = vadd.f32 0.0, %v1180
      %v1182 = vpop.f32.mrf.mxu0
      %v1183 = vadd.f32 0.0, %v1182
      %v1184 = vpop.f32.mrf.mxu0
      %v1185 = vadd.f32 0.0, %v1184
      %1186 = vmatprep.mubr.bf16.mxu0 0
      %1187 = vmatmul.mubr.bf16.gmra.mxu0 %v519
      %v1188 = vpop.f32.mrf.mxu0
      %v1189 = vadd.f32 0.0, %v1188
      %v1190 = vpop.f32.mrf.mxu0
      %v1191 = vadd.f32 0.0, %v1190
      %v1192 = vpop.f32.mrf.mxu0
      %v1193 = vadd.f32 0.0, %v1192
      %v1194 = vpop.f32.mrf.mxu0
      %v1195 = vadd.f32 0.0, %v1194
      %1196 = vmatprep.mubr.bf16.mxu0 0
      %1197 = vmatmul.mubr.bf16.gmra.mxu0 %v520
      %v1198 = vpop.f32.mrf.mxu0
      %v1199 = vadd.f32 0.0, %v1198
      %v1200 = vpop.f32.mrf.mxu0
      %v1201 = vadd.f32 0.0, %v1200
      %v1202 = vpop.f32.mrf.mxu0
      %v1203 = vadd.f32 0.0, %v1202
      %v1204 = vpop.f32.mrf.mxu0
      %v1205 = vadd.f32 0.0, %v1204
      %1206 = vmatprep.mubr.bf16.mxu0 0
      %1207 = vmatmul.mubr.bf16.gmra.mxu0 %v521
      %v1208 = vpop.f32.mrf.mxu0
      %v1209 = vadd.f32 0.0, %v1208
      %v1210 = vpop.f32.mrf.mxu0
      %v1211 = vadd.f32 0.0, %v1210
      %v1212 = vpop.f32.mrf.mxu0
      %v1213 = vadd.f32 0.0, %v1212
      %v1214 = vpop.f32.mrf.mxu0
      %v1215 = vadd.f32 0.0, %v1214
      %1216 = vmatprep.mubr.bf16.mxu0 0
      %1217 = vmatmul.mubr.bf16.gmra.mxu0 %v522
      %v1218 = vpop.f32.mrf.mxu0
      %v1219 = vadd.f32 0.0, %v1218
      %v1220 = vpop.f32.mrf.mxu0
      %v1221 = vadd.f32 0.0, %v1220
      %v1222 = vpop.f32.mrf.mxu0
      %v1223 = vadd.f32 0.0, %v1222
      %v1224 = vpop.f32.mrf.mxu0
      %v1225 = vadd.f32 0.0, %v1224
      %1226 = vmatprep.mubr.bf16.mxu0 0
      %1227 = vmatmul.mubr.bf16.gmra.mxu0 %v523
      %v1228 = vpop.f32.mrf.mxu0
      %v1229 = vadd.f32 0.0, %v1228
      %v1230 = vpop.f32.mrf.mxu0
      %v1231 = vadd.f32 0.0, %v1230
      %v1232 = vpop.f32.mrf.mxu0
      %v1233 = vadd.f32 0.0, %v1232
      %v1234 = vpop.f32.mrf.mxu0
      %v1235 = vadd.f32 0.0, %v1234
      %1236 = vmatprep.mubr.bf16.mxu0 0
      %1237 = vmatmul.mubr.bf16.gmra.mxu0 %v524
      %v1238 = vpop.f32.mrf.mxu0
      %v1239 = vadd.f32 0.0, %v1238
      %v1240 = vpop.f32.mrf.mxu0
      %v1241 = vadd.f32 0.0, %v1240
      %v1242 = vpop.f32.mrf.mxu0
      %v1243 = vadd.f32 0.0, %v1242
      %v1244 = vpop.f32.mrf.mxu0
      %v1245 = vadd.f32 0.0, %v1244
      %1246 = vdwg.mxu0
      %1247 = vmatprep.subr.bf16.mxu0 %v794
      %1248 = vmatpush1.bf16.msra.mxu0 %v793
      %1249 = vmatprep.subr.bf16.mxu0 %v786
      %1250 = vmatpush1.bf16.msra.mxu0 %v785
      %1251 = vmatprep.subr.bf16.mxu0 %v778
      %1252 = vmatpush1.bf16.msra.mxu0 %v777
      %1253 = vmatprep.subr.bf16.mxu0 %v770
      %1254 = vmatpush1.bf16.msra.mxu0 %v769
      %1255 = vmatprep.subr.bf16.mxu0 %v762
      %1256 = vmatpush1.bf16.msra.mxu0 %v761
      %1257 = vmatprep.subr.bf16.mxu0 %v754
      %1258 = vmatpush1.bf16.msra.mxu0 %v753
      %1259 = vmatprep.subr.bf16.mxu0 %v746
      %1260 = vmatpush1.bf16.msra.mxu0 %v745
      %1261 = vmatprep.subr.bf16.mxu0 %v738
      %1262 = vmatpush1.bf16.msra.mxu0 %v737
      %1263 = vmatprep.subr.bf16.mxu0 0
      %1264 = vmatpush2.bf16.msra.mxu0 0
      %1265 = vmatprep.subr.bf16.mxu0 0
      %1266 = vmatpush2.bf16.msra.mxu0 0
      %1267 = vmatprep.subr.bf16.mxu0 0
      %1268 = vmatpush2.bf16.msra.mxu0 0
      %1269 = vmatprep.subr.bf16.mxu0 0
      %1270 = vmatpush2.bf16.msra.mxu0 0
      %1271 = vmatprep.subr.bf16.mxu0 0
      %1272 = vmatpush2.bf16.msra.mxu0 0
      %1273 = vmatprep.subr.bf16.mxu0 0
      %1274 = vmatpush2.bf16.msra.mxu0 0
      %1275 = vmatprep.subr.bf16.mxu0 0
      %1276 = vmatpush2.bf16.msra.mxu0 0
      %1277 = vmatprep.subr.bf16.mxu0 0
      %1278 = vmatpush2.bf16.msra.mxu0 0
      %1279 = vmatprep.mubr.bf16.mxu0 0
      %1280 = vmatmul.mubr.bf16.gmra.mxu0 %v509
      %v1281 = vpop.f32.mrf.mxu0
      %v1282 = vadd.f32 0.0, %v1281
      %v1283 = vpop.f32.mrf.mxu0
      %v1284 = vadd.f32 0.0, %v1283
      %v1285 = vpop.f32.mrf.mxu0
      %v1286 = vadd.f32 0.0, %v1285
      %v1287 = vpop.f32.mrf.mxu0
      %v1288 = vadd.f32 0.0, %v1287
      %1289 = vmatprep.mubr.bf16.mxu0 0
      %1290 = vmatmul.mubr.bf16.gmra.mxu0 %v510
      %v1291 = vpop.f32.mrf.mxu0
      %v1292 = vadd.f32 0.0, %v1291
      %v1293 = vpop.f32.mrf.mxu0
      %v1294 = vadd.f32 0.0, %v1293
      %v1295 = vpop.f32.mrf.mxu0
      %v1296 = vadd.f32 0.0, %v1295
      %v1297 = vpop.f32.mrf.mxu0
      %v1298 = vadd.f32 0.0, %v1297
      %1299 = vmatprep.mubr.bf16.mxu0 0
      %1300 = vmatmul.mubr.bf16.gmra.mxu0 %v511
      %v1301 = vpop.f32.mrf.mxu0
      %v1302 = vadd.f32 0.0, %v1301
      %v1303 = vpop.f32.mrf.mxu0
      %v1304 = vadd.f32 0.0, %v1303
      %v1305 = vpop.f32.mrf.mxu0
      %v1306 = vadd.f32 0.0, %v1305
      %v1307 = vpop.f32.mrf.mxu0
      %v1308 = vadd.f32 0.0, %v1307
      %1309 = vmatprep.mubr.bf16.mxu0 0
      %1310 = vmatmul.mubr.bf16.gmra.mxu0 %v512
      %v1311 = vpop.f32.mrf.mxu0
      %v1312 = vadd.f32 0.0, %v1311
      %v1313 = vpop.f32.mrf.mxu0
      %v1314 = vadd.f32 0.0, %v1313
      %v1315 = vpop.f32.mrf.mxu0
      %v1316 = vadd.f32 0.0, %v1315
      %v1317 = vpop.f32.mrf.mxu0
      %v1318 = vadd.f32 0.0, %v1317
      %1319 = vmatprep.mubr.bf16.mxu0 0
      %1320 = vmatmul.mubr.bf16.gmra.mxu0 %v513
      %v1321 = vpop.f32.mrf.mxu0
      %v1322 = vadd.f32 0.0, %v1321
      %v1323 = vpop.f32.mrf.mxu0
      %v1324 = vadd.f32 0.0, %v1323
      %v1325 = vpop.f32.mrf.mxu0
      %v1326 = vadd.f32 0.0, %v1325
      %v1327 = vpop.f32.mrf.mxu0
      %v1328 = vadd.f32 0.0, %v1327
      %1329 = vmatprep.mubr.bf16.mxu0 0
      %1330 = vmatmul.mubr.bf16.gmra.mxu0 %v514
      %v1331 = vpop.f32.mrf.mxu0
      %v1332 = vadd.f32 0.0, %v1331
      %v1333 = vpop.f32.mrf.mxu0
      %v1334 = vadd.f32 0.0, %v1333
      %v1335 = vpop.f32.mrf.mxu0
      %v1336 = vadd.f32 0.0, %v1335
      %v1337 = vpop.f32.mrf.mxu0
      %v1338 = vadd.f32 0.0, %v1337
      %1339 = vmatprep.mubr.bf16.mxu0 0
      %1340 = vmatmul.mubr.bf16.gmra.mxu0 %v515
      %v1341 = vpop.f32.mrf.mxu0
      %v1342 = vadd.f32 0.0, %v1341
      %v1343 = vpop.f32.mrf.mxu0
      %v1344 = vadd.f32 0.0, %v1343
      %v1345 = vpop.f32.mrf.mxu0
      %v1346 = vadd.f32 0.0, %v1345
      %v1347 = vpop.f32.mrf.mxu0
      %v1348 = vadd.f32 0.0, %v1347
      %1349 = vmatprep.mubr.bf16.mxu0 0
      %1350 = vmatmul.mubr.bf16.gmra.mxu0 %v516
      %v1351 = vpop.f32.mrf.mxu0
      %v1352 = vadd.f32 0.0, %v1351
      %v1353 = vpop.f32.mrf.mxu0
      %v1354 = vadd.f32 0.0, %v1353
      %v1355 = vpop.f32.mrf.mxu0
      %v1356 = vadd.f32 0.0, %v1355
      %v1357 = vpop.f32.mrf.mxu0
      %v1358 = vadd.f32 0.0, %v1357
      %1359 = vmatprep.mubr.bf16.mxu0 0
      %1360 = vmatmul.mubr.bf16.gmra.mxu0 %v517
      %v1361 = vpop.f32.mrf.mxu0
      %v1362 = vadd.f32 0.0, %v1361
      %v1363 = vpop.f32.mrf.mxu0
      %v1364 = vadd.f32 0.0, %v1363
      %v1365 = vpop.f32.mrf.mxu0
      %v1366 = vadd.f32 0.0, %v1365
      %v1367 = vpop.f32.mrf.mxu0
      %v1368 = vadd.f32 0.0, %v1367
      %1369 = vmatprep.mubr.bf16.mxu0 0
      %1370 = vmatmul.mubr.bf16.gmra.mxu0 %v518
      %v1371 = vpop.f32.mrf.mxu0
      %v1372 = vadd.f32 0.0, %v1371
      %v1373 = vpop.f32.mrf.mxu0
      %v1374 = vadd.f32 0.0, %v1373
      %v1375 = vpop.f32.mrf.mxu0
      %v1376 = vadd.f32 0.0, %v1375
      %v1377 = vpop.f32.mrf.mxu0
      %v1378 = vadd.f32 0.0, %v1377
      %1379 = vmatprep.mubr.bf16.mxu0 0
      %1380 = vmatmul.mubr.bf16.gmra.mxu0 %v519
      %v1381 = vpop.f32.mrf.mxu0
      %v1382 = vadd.f32 0.0, %v1381
      %v1383 = vpop.f32.mrf.mxu0
      %v1384 = vadd.f32 0.0, %v1383
      %v1385 = vpop.f32.mrf.mxu0
      %v1386 = vadd.f32 0.0, %v1385
      %v1387 = vpop.f32.mrf.mxu0
      %v1388 = vadd.f32 0.0, %v1387
      %1389 = vmatprep.mubr.bf16.mxu0 0
      %1390 = vmatmul.mubr.bf16.gmra.mxu0 %v520
      %v1391 = vpop.f32.mrf.mxu0
      %v1392 = vadd.f32 0.0, %v1391
      %v1393 = vpop.f32.mrf.mxu0
      %v1394 = vadd.f32 0.0, %v1393
      %v1395 = vpop.f32.mrf.mxu0
      %v1396 = vadd.f32 0.0, %v1395
      %v1397 = vpop.f32.mrf.mxu0
      %v1398 = vadd.f32 0.0, %v1397
      %1399 = vmatprep.mubr.bf16.mxu0 0
      %1400 = vmatmul.mubr.bf16.gmra.mxu0 %v521
      %v1401 = vpop.f32.mrf.mxu0
      %v1402 = vadd.f32 0.0, %v1401
      %v1403 = vpop.f32.mrf.mxu0
      %v1404 = vadd.f32 0.0, %v1403
      %v1405 = vpop.f32.mrf.mxu0
      %v1406 = vadd.f32 0.0, %v1405
      %v1407 = vpop.f32.mrf.mxu0
      %v1408 = vadd.f32 0.0, %v1407
      %1409 = vmatprep.mubr.bf16.mxu0 0
      %1410 = vmatmul.mubr.bf16.gmra.mxu0 %v522
      %v1411 = vpop.f32.mrf.mxu0
      %v1412 = vadd.f32 0.0, %v1411
      %v1413 = vpop.f32.mrf.mxu0
      %v1414 = vadd.f32 0.0, %v1413
      %v1415 = vpop.f32.mrf.mxu0
      %v1416 = vadd.f32 0.0, %v1415
      %v1417 = vpop.f32.mrf.mxu0
      %v1418 = vadd.f32 0.0, %v1417
      %1419 = vmatprep.mubr.bf16.mxu0 0
      %1420 = vmatmul.mubr.bf16.gmra.mxu0 %v523
      %v1421 = vpop.f32.mrf.mxu0
      %v1422 = vadd.f32 0.0, %v1421
      %v1423 = vpop.f32.mrf.mxu0
      %v1424 = vadd.f32 0.0, %v1423
      %v1425 = vpop.f32.mrf.mxu0
      %v1426 = vadd.f32 0.0, %v1425
      %v1427 = vpop.f32.mrf.mxu0
      %v1428 = vadd.f32 0.0, %v1427
      %1429 = vmatprep.mubr.bf16.mxu0 0
      %1430 = vmatmul.mubr.bf16.gmra.mxu0 %v524
      %v1431 = vpop.f32.mrf.mxu0
      %v1432 = vadd.f32 0.0, %v1431
      %v1433 = vpop.f32.mrf.mxu0
      %v1434 = vadd.f32 0.0, %v1433
      %v1435 = vpop.f32.mrf.mxu0
      %v1436 = vadd.f32 0.0, %v1435
      %v1437 = vpop.f32.mrf.mxu0
      %v1438 = vadd.f32 0.0, %v1437
      %1439 = vdwg.mxu0
      %1440 = vmatprep.subr.bf16.mxu0 %v796
      %1441 = vmatpush1.bf16.msra.mxu0 %v795
      %1442 = vmatprep.subr.bf16.mxu0 %v788
      %1443 = vmatpush1.bf16.msra.mxu0 %v787
      %1444 = vmatprep.subr.bf16.mxu0 %v780
      %1445 = vmatpush1.bf16.msra.mxu0 %v779
      %1446 = vmatprep.subr.bf16.mxu0 %v772
      %1447 = vmatpush1.bf16.msra.mxu0 %v771
      %1448 = vmatprep.subr.bf16.mxu0 %v764
      %1449 = vmatpush1.bf16.msra.mxu0 %v763
      %1450 = vmatprep.subr.bf16.mxu0 %v756
      %1451 = vmatpush1.bf16.msra.mxu0 %v755
      %1452 = vmatprep.subr.bf16.mxu0 %v748
      %1453 = vmatpush1.bf16.msra.mxu0 %v747
      %1454 = vmatprep.subr.bf16.mxu0 %v740
      %1455 = vmatpush1.bf16.msra.mxu0 %v739
      %1456 = vmatprep.subr.bf16.mxu0 0
      %1457 = vmatpush2.bf16.msra.mxu0 0
      %1458 = vmatprep.subr.bf16.mxu0 0
      %1459 = vmatpush2.bf16.msra.mxu0 0
      %1460 = vmatprep.subr.bf16.mxu0 0
      %1461 = vmatpush2.bf16.msra.mxu0 0
      %1462 = vmatprep.subr.bf16.mxu0 0
      %1463 = vmatpush2.bf16.msra.mxu0 0
      %1464 = vmatprep.subr.bf16.mxu0 0
      %1465 = vmatpush2.bf16.msra.mxu0 0
      %1466 = vmatprep.subr.bf16.mxu0 0
      %1467 = vmatpush2.bf16.msra.mxu0 0
      %1468 = vmatprep.subr.bf16.mxu0 0
      %1469 = vmatpush2.bf16.msra.mxu0 0
      %1470 = vmatprep.subr.bf16.mxu0 0
      %1471 = vmatpush2.bf16.msra.mxu0 0
      %1472 = vmatprep.mubr.bf16.mxu0 0
      %1473 = vmatmul.mubr.bf16.gmra.mxu0 %v509
      %v1474 = vpop.f32.mrf.mxu0
      %v1475 = vadd.f32 0.0, %v1474
      %v1476 = vpop.f32.mrf.mxu0
      %v1477 = vadd.f32 0.0, %v1476
      %v1478 = vpop.f32.mrf.mxu0
      %v1479 = vadd.f32 0.0, %v1478
      %v1480 = vpop.f32.mrf.mxu0
      %v1481 = vadd.f32 0.0, %v1480
      %1482 = vmatprep.mubr.bf16.mxu0 0
      %1483 = vmatmul.mubr.bf16.gmra.mxu0 %v510
      %v1484 = vpop.f32.mrf.mxu0
      %v1485 = vadd.f32 0.0, %v1484
      %v1486 = vpop.f32.mrf.mxu0
      %v1487 = vadd.f32 0.0, %v1486
      %v1488 = vpop.f32.mrf.mxu0
      %v1489 = vadd.f32 0.0, %v1488
      %v1490 = vpop.f32.mrf.mxu0
      %v1491 = vadd.f32 0.0, %v1490
      %1492 = vmatprep.mubr.bf16.mxu0 0
      %1493 = vmatmul.mubr.bf16.gmra.mxu0 %v511
      %v1494 = vpop.f32.mrf.mxu0
      %v1495 = vadd.f32 0.0, %v1494
      %v1496 = vpop.f32.mrf.mxu0
      %v1497 = vadd.f32 0.0, %v1496
      %v1498 = vpop.f32.mrf.mxu0
      %v1499 = vadd.f32 0.0, %v1498
      %v1500 = vpop.f32.mrf.mxu0
      %v1501 = vadd.f32 0.0, %v1500
      %1502 = vmatprep.mubr.bf16.mxu0 0
      %1503 = vmatmul.mubr.bf16.gmra.mxu0 %v512
      %v1504 = vpop.f32.mrf.mxu0
      %v1505 = vadd.f32 0.0, %v1504
      %v1506 = vpop.f32.mrf.mxu0
      %v1507 = vadd.f32 0.0, %v1506
      %v1508 = vpop.f32.mrf.mxu0
      %v1509 = vadd.f32 0.0, %v1508
      %v1510 = vpop.f32.mrf.mxu0
      %v1511 = vadd.f32 0.0, %v1510
      %1512 = vmatprep.mubr.bf16.mxu0 0
      %1513 = vmatmul.mubr.bf16.gmra.mxu0 %v513
      %v1514 = vpop.f32.mrf.mxu0
      %v1515 = vadd.f32 0.0, %v1514
      %v1516 = vpop.f32.mrf.mxu0
      %v1517 = vadd.f32 0.0, %v1516
      %v1518 = vpop.f32.mrf.mxu0
      %v1519 = vadd.f32 0.0, %v1518
      %v1520 = vpop.f32.mrf.mxu0
      %v1521 = vadd.f32 0.0, %v1520
      %1522 = vmatprep.mubr.bf16.mxu0 0
      %1523 = vmatmul.mubr.bf16.gmra.mxu0 %v514
      %v1524 = vpop.f32.mrf.mxu0
      %v1525 = vadd.f32 0.0, %v1524
      %v1526 = vpop.f32.mrf.mxu0
      %v1527 = vadd.f32 0.0, %v1526
      %v1528 = vpop.f32.mrf.mxu0
      %v1529 = vadd.f32 0.0, %v1528
      %v1530 = vpop.f32.mrf.mxu0
      %v1531 = vadd.f32 0.0, %v1530
      %1532 = vmatprep.mubr.bf16.mxu0 0
      %1533 = vmatmul.mubr.bf16.gmra.mxu0 %v515
      %v1534 = vpop.f32.mrf.mxu0
      %v1535 = vadd.f32 0.0, %v1534
      %v1536 = vpop.f32.mrf.mxu0
      %v1537 = vadd.f32 0.0, %v1536
      %v1538 = vpop.f32.mrf.mxu0
      %v1539 = vadd.f32 0.0, %v1538
      %v1540 = vpop.f32.mrf.mxu0
      %v1541 = vadd.f32 0.0, %v1540
      %1542 = vmatprep.mubr.bf16.mxu0 0
      %1543 = vmatmul.mubr.bf16.gmra.mxu0 %v516
      %v1544 = vpop.f32.mrf.mxu0
      %v1545 = vadd.f32 0.0, %v1544
      %v1546 = vpop.f32.mrf.mxu0
      %v1547 = vadd.f32 0.0, %v1546
      %v1548 = vpop.f32.mrf.mxu0
      %v1549 = vadd.f32 0.0, %v1548
      %v1550 = vpop.f32.mrf.mxu0
      %v1551 = vadd.f32 0.0, %v1550
      %1552 = vmatprep.mubr.bf16.mxu0 0
      %1553 = vmatmul.mubr.bf16.gmra.mxu0 %v517
      %v1554 = vpop.f32.mrf.mxu0
      %v1555 = vadd.f32 0.0, %v1554
      %v1556 = vpop.f32.mrf.mxu0
      %v1557 = vadd.f32 0.0, %v1556
      %v1558 = vpop.f32.mrf.mxu0
      %v1559 = vadd.f32 0.0, %v1558
      %v1560 = vpop.f32.mrf.mxu0
      %v1561 = vadd.f32 0.0, %v1560
      %1562 = vmatprep.mubr.bf16.mxu0 0
      %1563 = vmatmul.mubr.bf16.gmra.mxu0 %v518
      %v1564 = vpop.f32.mrf.mxu0
      %v1565 = vadd.f32 0.0, %v1564
      %v1566 = vpop.f32.mrf.mxu0
      %v1567 = vadd.f32 0.0, %v1566
      %v1568 = vpop.f32.mrf.mxu0
      %v1569 = vadd.f32 0.0, %v1568
      %v1570 = vpop.f32.mrf.mxu0
      %v1571 = vadd.f32 0.0, %v1570
      %1572 = vmatprep.mubr.bf16.mxu0 0
      %1573 = vmatmul.mubr.bf16.gmra.mxu0 %v519
      %v1574 = vpop.f32.mrf.mxu0
      %v1575 = vadd.f32 0.0, %v1574
      %v1576 = vpop.f32.mrf.mxu0
      %v1577 = vadd.f32 0.0, %v1576
      %v1578 = vpop.f32.mrf.mxu0
      %v1579 = vadd.f32 0.0, %v1578
      %v1580 = vpop.f32.mrf.mxu0
      %v1581 = vadd.f32 0.0, %v1580
      %1582 = vmatprep.mubr.bf16.mxu0 0
      %1583 = vmatmul.mubr.bf16.gmra.mxu0 %v520
      %v1584 = vpop.f32.mrf.mxu0
      %v1585 = vadd.f32 0.0, %v1584
      %v1586 = vpop.f32.mrf.mxu0
      %v1587 = vadd.f32 0.0, %v1586
      %v1588 = vpop.f32.mrf.mxu0
      %v1589 = vadd.f32 0.0, %v1588
      %v1590 = vpop.f32.mrf.mxu0
      %v1591 = vadd.f32 0.0, %v1590
      %1592 = vmatprep.mubr.bf16.mxu0 0
      %1593 = vmatmul.mubr.bf16.gmra.mxu0 %v521
      %v1594 = vpop.f32.mrf.mxu0
      %v1595 = vadd.f32 0.0, %v1594
      %v1596 = vpop.f32.mrf.mxu0
      %v1597 = vadd.f32 0.0, %v1596
      %v1598 = vpop.f32.mrf.mxu0
      %v1599 = vadd.f32 0.0, %v1598
      %v1600 = vpop.f32.mrf.mxu0
      %v1601 = vadd.f32 0.0, %v1600
      %1602 = vmatprep.mubr.bf16.mxu0 0
      %1603 = vmatmul.mubr.bf16.gmra.mxu0 %v522
      %v1604 = vpop.f32.mrf.mxu0
      %v1605 = vadd.f32 0.0, %v1604
      %v1606 = vpop.f32.mrf.mxu0
      %v1607 = vadd.f32 0.0, %v1606
      %v1608 = vpop.f32.mrf.mxu0
      %v1609 = vadd.f32 0.0, %v1608
      %v1610 = vpop.f32.mrf.mxu0
      %v1611 = vadd.f32 0.0, %v1610
      %1612 = vmatprep.mubr.bf16.mxu0 0
      %1613 = vmatmul.mubr.bf16.gmra.mxu0 %v523
      %v1614 = vpop.f32.mrf.mxu0
      %v1615 = vadd.f32 0.0, %v1614
      %v1616 = vpop.f32.mrf.mxu0
      %v1617 = vadd.f32 0.0, %v1616
      %v1618 = vpop.f32.mrf.mxu0
      %v1619 = vadd.f32 0.0, %v1618
      %v1620 = vpop.f32.mrf.mxu0
      %v1621 = vadd.f32 0.0, %v1620
      %1622 = vmatprep.mubr.bf16.mxu0 0
      %1623 = vmatmul.mubr.bf16.gmra.mxu0 %v524
      %v1624 = vpop.f32.mrf.mxu0
      %v1625 = vadd.f32 0.0, %v1624
      %v1626 = vpop.f32.mrf.mxu0
      %v1627 = vadd.f32 0.0, %v1626
      %v1628 = vpop.f32.mrf.mxu0
      %v1629 = vadd.f32 0.0, %v1628
      %v1630 = vpop.f32.mrf.mxu0
      %v1631 = vadd.f32 0.0, %v1630
      %1632 = vdwg.mxu0
      %v1665 = vunpack.c.l.b16 %v253
      %v1666 = vunpack.c.l.b16 %v254
      %v1667 = vunpack.c.l.b16 %v255
      %v1668 = vunpack.c.l.b16 %v256
      %v1669 = vunpack.c.l.b16 %v257
      %v1670 = vunpack.c.l.b16 %v258
      %v1671 = vunpack.c.l.b16 %v259
      %v1672 = vunpack.c.l.b16 %v260
      %v1673 = vunpack.c.l.b16 %v261
      %v1674 = vunpack.c.l.b16 %v262
      %v1675 = vunpack.c.l.b16 %v263
      %v1676 = vunpack.c.l.b16 %v264
      %v1677 = vunpack.c.l.b16 %v265
      %v1678 = vunpack.c.l.b16 %v266
      %v1679 = vunpack.c.l.b16 %v267
      %v1680 = vunpack.c.l.b16 %v268
      %v1681 = vunpack.c.l.b16 %v269
      %v1682 = vunpack.c.l.b16 %v270
      %v1683 = vunpack.c.l.b16 %v271
      %v1684 = vunpack.c.l.b16 %v272
      %v1685 = vunpack.c.l.b16 %v273
      %v1686 = vunpack.c.l.b16 %v274
      %v1687 = vunpack.c.l.b16 %v275
      %v1688 = vunpack.c.l.b16 %v276
      %v1689 = vunpack.c.l.b16 %v277
      %v1690 = vunpack.c.l.b16 %v278
      %v1691 = vunpack.c.l.b16 %v279
      %v1692 = vunpack.c.l.b16 %v280
      %v1693 = vunpack.c.l.b16 %v281
      %v1694 = vunpack.c.l.b16 %v282
      %v1695 = vunpack.c.l.b16 %v283
      %v1696 = vunpack.c.l.b16 %v284
      %v1697 = vpack.c.b16 %v1666, %v1665
      %v1698 = vpack.c.b16 %v1668, %v1667
      %v1699 = vpack.c.b16 %v1670, %v1669
      %v1700 = vpack.c.b16 %v1672, %v1671
      %v1701 = vpack.c.b16 %v1674, %v1673
      %v1702 = vpack.c.b16 %v1676, %v1675
      %v1703 = vpack.c.b16 %v1678, %v1677
      %v1704 = vpack.c.b16 %v1680, %v1679
      %v1705 = vpack.c.b16 %v1682, %v1681
      %v1706 = vpack.c.b16 %v1684, %v1683
      %v1707 = vpack.c.b16 %v1686, %v1685
      %v1708 = vpack.c.b16 %v1688, %v1687
      %v1709 = vpack.c.b16 %v1690, %v1689
      %v1710 = vpack.c.b16 %v1692, %v1691
      %v1711 = vpack.c.b16 %v1694, %v1693
      %v1712 = vpack.c.b16 %v1696, %v1695
      %v1793 = vunpack.c.l.b16 %v285
      %v1794 = vunpack.c.h.b16 %v285
      %v1795 = vunpack.c.l.b16 %v286
      %v1796 = vunpack.c.h.b16 %v286
      %v1797 = vunpack.c.l.b16 %v287
      %v1798 = vunpack.c.h.b16 %v287
      %v1799 = vunpack.c.l.b16 %v288
      %v1800 = vunpack.c.h.b16 %v288
      %v1801 = vunpack.c.l.b16 %v289
      %v1802 = vunpack.c.h.b16 %v289
      %v1803 = vunpack.c.l.b16 %v290
      %v1804 = vunpack.c.h.b16 %v290
      %v1805 = vunpack.c.l.b16 %v291
      %v1806 = vunpack.c.h.b16 %v291
      %v1807 = vunpack.c.l.b16 %v292
      %v1808 = vunpack.c.h.b16 %v292
      %v1809 = vunpack.c.l.b16 %v293
      %v1810 = vunpack.c.h.b16 %v293
      %v1811 = vunpack.c.l.b16 %v294
      %v1812 = vunpack.c.h.b16 %v294
      %v1813 = vunpack.c.l.b16 %v295
      %v1814 = vunpack.c.h.b16 %v295
      %v1815 = vunpack.c.l.b16 %v296
      %v1816 = vunpack.c.h.b16 %v296
      %v1817 = vunpack.c.l.b16 %v297
      %v1818 = vunpack.c.h.b16 %v297
      %v1819 = vunpack.c.l.b16 %v298
      %v1820 = vunpack.c.h.b16 %v298
      %v1821 = vunpack.c.l.b16 %v299
      %v1822 = vunpack.c.h.b16 %v299
      %v1823 = vunpack.c.l.b16 %v300
      %v1824 = vunpack.c.h.b16 %v300
      %v1825 = vunpack.c.l.b16 %v301
      %v1826 = vunpack.c.h.b16 %v301
      %v1827 = vunpack.c.l.b16 %v302
      %v1828 = vunpack.c.h.b16 %v302
      %v1829 = vunpack.c.l.b16 %v303
      %v1830 = vunpack.c.h.b16 %v303
      %v1831 = vunpack.c.l.b16 %v304
      %v1832 = vunpack.c.h.b16 %v304
      %v1833 = vunpack.c.l.b16 %v305
      %v1834 = vunpack.c.h.b16 %v305
      %v1835 = vunpack.c.l.b16 %v306
      %v1836 = vunpack.c.h.b16 %v306
      %v1837 = vunpack.c.l.b16 %v307
      %v1838 = vunpack.c.h.b16 %v307
      %v1839 = vunpack.c.l.b16 %v308
      %v1840 = vunpack.c.h.b16 %v308
      %v1841 = vunpack.c.l.b16 %v309
      %v1842 = vunpack.c.h.b16 %v309
      %v1843 = vunpack.c.l.b16 %v310
      %v1844 = vunpack.c.h.b16 %v310
      %v1845 = vunpack.c.l.b16 %v311
      %v1846 = vunpack.c.h.b16 %v311
      %v1847 = vunpack.c.l.b16 %v312
      %v1848 = vunpack.c.h.b16 %v312
      %v1849 = vunpack.c.l.b16 %v313
      %v1850 = vunpack.c.h.b16 %v313
      %v1851 = vunpack.c.l.b16 %v314
      %v1852 = vunpack.c.h.b16 %v314
      %v1853 = vunpack.c.l.b16 %v315
      %v1854 = vunpack.c.h.b16 %v315
      %v1855 = vunpack.c.l.b16 %v316
      %v1856 = vunpack.c.h.b16 %v316
      %v1857 = vunpack.c.l.b16 %v317
      %v1858 = vunpack.c.h.b16 %v317
      %v1859 = vunpack.c.l.b16 %v318
      %v1860 = vunpack.c.h.b16 %v318
      %v1861 = vunpack.c.l.b16 %v319
      %v1862 = vunpack.c.h.b16 %v319
      %v1863 = vunpack.c.l.b16 %v320
      %v1864 = vunpack.c.h.b16 %v320
      %v1865 = vunpack.c.l.b16 %v321
      %v1866 = vunpack.c.h.b16 %v321
      %v1867 = vunpack.c.l.b16 %v322
      %v1868 = vunpack.c.h.b16 %v322
      %v1869 = vunpack.c.l.b16 %v323
      %v1870 = vunpack.c.h.b16 %v323
      %v1871 = vunpack.c.l.b16 %v324
      %v1872 = vunpack.c.h.b16 %v324
      %v1873 = vunpack.c.l.b16 %v325
      %v1874 = vunpack.c.h.b16 %v325
      %v1875 = vunpack.c.l.b16 %v326
      %v1876 = vunpack.c.h.b16 %v326
      %v1877 = vunpack.c.l.b16 %v327
      %v1878 = vunpack.c.h.b16 %v327
      %v1879 = vunpack.c.l.b16 %v328
      %v1880 = vunpack.c.h.b16 %v328
      %v1881 = vunpack.c.l.b16 %v329
      %v1882 = vunpack.c.h.b16 %v329
      %v1883 = vunpack.c.l.b16 %v330
      %v1884 = vunpack.c.h.b16 %v330
      %v1885 = vunpack.c.l.b16 %v331
      %v1886 = vunpack.c.h.b16 %v331
      %v1887 = vunpack.c.l.b16 %v332
      %v1888 = vunpack.c.h.b16 %v332
      %v1889 = vunpack.c.l.b16 %v333
      %v1890 = vunpack.c.h.b16 %v333
      %v1891 = vunpack.c.l.b16 %v334
      %v1892 = vunpack.c.h.b16 %v334
      %v1893 = vunpack.c.l.b16 %v335
      %v1894 = vunpack.c.h.b16 %v335
      %v1895 = vunpack.c.l.b16 %v336
      %v1896 = vunpack.c.h.b16 %v336
      %v1897 = vunpack.c.l.b16 %v337
      %v1898 = vunpack.c.h.b16 %v337
      %v1899 = vunpack.c.l.b16 %v338
      %v1900 = vunpack.c.h.b16 %v338
      %v1901 = vunpack.c.l.b16 %v339
      %v1902 = vunpack.c.h.b16 %v339
      %v1903 = vunpack.c.l.b16 %v340
      %v1904 = vunpack.c.h.b16 %v340
      %v1905 = vunpack.c.l.b16 %v341
      %v1906 = vunpack.c.h.b16 %v341
      %v1907 = vunpack.c.l.b16 %v342
      %v1908 = vunpack.c.h.b16 %v342
      %v1909 = vunpack.c.l.b16 %v343
      %v1910 = vunpack.c.h.b16 %v343
      %v1911 = vunpack.c.l.b16 %v344
      %v1912 = vunpack.c.h.b16 %v344
      %v1913 = vunpack.c.l.b16 %v345
      %v1914 = vunpack.c.h.b16 %v345
      %v1915 = vunpack.c.l.b16 %v346
      %v1916 = vunpack.c.h.b16 %v346
      %v1917 = vunpack.c.l.b16 %v347
      %v1918 = vunpack.c.h.b16 %v347
      %v1919 = vunpack.c.l.b16 %v348
      %v1920 = vunpack.c.h.b16 %v348
      %v1921 = vpack.c.b16 %v1801, %v1793
      %v1922 = vpack.c.b16 %v1802, %v1794
      %v1923 = vpack.c.b16 %v1803, %v1795
      %v1924 = vpack.c.b16 %v1804, %v1796
      %v1925 = vpack.c.b16 %v1805, %v1797
      %v1926 = vpack.c.b16 %v1806, %v1798
      %v1927 = vpack.c.b16 %v1807, %v1799
      %v1928 = vpack.c.b16 %v1808, %v1800
      %v1929 = vpack.c.b16 %v1817, %v1809
      %v1930 = vpack.c.b16 %v1818, %v1810
      %v1931 = vpack.c.b16 %v1819, %v1811
      %v1932 = vpack.c.b16 %v1820, %v1812
      %v1933 = vpack.c.b16 %v1821, %v1813
      %v1934 = vpack.c.b16 %v1822, %v1814
      %v1935 = vpack.c.b16 %v1823, %v1815
      %v1936 = vpack.c.b16 %v1824, %v1816
      %v1937 = vpack.c.b16 %v1833, %v1825
      %v1938 = vpack.c.b16 %v1834, %v1826
      %v1939 = vpack.c.b16 %v1835, %v1827
      %v1940 = vpack.c.b16 %v1836, %v1828
      %v1941 = vpack.c.b16 %v1837, %v1829
      %v1942 = vpack.c.b16 %v1838, %v1830
      %v1943 = vpack.c.b16 %v1839, %v1831
      %v1944 = vpack.c.b16 %v1840, %v1832
      %v1945 = vpack.c.b16 %v1849, %v1841
      %v1946 = vpack.c.b16 %v1850, %v1842
      %v1947 = vpack.c.b16 %v1851, %v1843
      %v1948 = vpack.c.b16 %v1852, %v1844
      %v1949 = vpack.c.b16 %v1853, %v1845
      %v1950 = vpack.c.b16 %v1854, %v1846
      %v1951 = vpack.c.b16 %v1855, %v1847
      %v1952 = vpack.c.b16 %v1856, %v1848
      %v1953 = vpack.c.b16 %v1865, %v1857
      %v1954 = vpack.c.b16 %v1866, %v1858
      %v1955 = vpack.c.b16 %v1867, %v1859
      %v1956 = vpack.c.b16 %v1868, %v1860
      %v1957 = vpack.c.b16 %v1869, %v1861
      %v1958 = vpack.c.b16 %v1870, %v1862
      %v1959 = vpack.c.b16 %v1871, %v1863
      %v1960 = vpack.c.b16 %v1872, %v1864
      %v1961 = vpack.c.b16 %v1881, %v1873
      %v1962 = vpack.c.b16 %v1882, %v1874
      %v1963 = vpack.c.b16 %v1883, %v1875
      %v1964 = vpack.c.b16 %v1884, %v1876
      %v1965 = vpack.c.b16 %v1885, %v1877
      %v1966 = vpack.c.b16 %v1886, %v1878
      %v1967 = vpack.c.b16 %v1887, %v1879
      %v1968 = vpack.c.b16 %v1888, %v1880
      %v1969 = vpack.c.b16 %v1897, %v1889
      %v1970 = vpack.c.b16 %v1898, %v1890
      %v1971 = vpack.c.b16 %v1899, %v1891
      %v1972 = vpack.c.b16 %v1900, %v1892
      %v1973 = vpack.c.b16 %v1901, %v1893
      %v1974 = vpack.c.b16 %v1902, %v1894
      %v1975 = vpack.c.b16 %v1903, %v1895
      %v1976 = vpack.c.b16 %v1904, %v1896
      %v1977 = vpack.c.b16 %v1913, %v1905
      %v1978 = vpack.c.b16 %v1914, %v1906
      %v1979 = vpack.c.b16 %v1915, %v1907
      %v1980 = vpack.c.b16 %v1916, %v1908
      %v1981 = vpack.c.b16 %v1917, %v1909
      %v1982 = vpack.c.b16 %v1918, %v1910
      %v1983 = vpack.c.b16 %v1919, %v1911
      %v1984 = vpack.c.b16 %v1920, %v1912
      %2049 = vmatprep.subr.bf16.mxu0 %v1978
      %2050 = vmatpush1.bf16.msra.mxu0 %v1977
      %2051 = vmatprep.subr.bf16.mxu0 %v1970
      %2052 = vmatpush1.bf16.msra.mxu0 %v1969
      %2053 = vmatprep.subr.bf16.mxu0 %v1962
      %2054 = vmatpush1.bf16.msra.mxu0 %v1961
      %2055 = vmatprep.subr.bf16.mxu0 %v1954
      %2056 = vmatpush1.bf16.msra.mxu0 %v1953
      %2057 = vmatprep.subr.bf16.mxu0 %v1946
      %2058 = vmatpush1.bf16.msra.mxu0 %v1945
      %2059 = vmatprep.subr.bf16.mxu0 %v1938
      %2060 = vmatpush1.bf16.msra.mxu0 %v1937
      %2061 = vmatprep.subr.bf16.mxu0 %v1930
      %2062 = vmatpush1.bf16.msra.mxu0 %v1929
      %2063 = vmatprep.subr.bf16.mxu0 %v1922
      %2064 = vmatpush1.bf16.msra.mxu0 %v1921
      %2065 = vmatprep.subr.bf16.mxu0 0
      %2066 = vmatpush2.bf16.msra.mxu0 0
      %2067 = vmatprep.subr.bf16.mxu0 0
      %2068 = vmatpush2.bf16.msra.mxu0 0
      %2069 = vmatprep.subr.bf16.mxu0 0
      %2070 = vmatpush2.bf16.msra.mxu0 0
      %2071 = vmatprep.subr.bf16.mxu0 0
      %2072 = vmatpush2.bf16.msra.mxu0 0
      %2073 = vmatprep.subr.bf16.mxu0 0
      %2074 = vmatpush2.bf16.msra.mxu0 0
      %2075 = vmatprep.subr.bf16.mxu0 0
      %2076 = vmatpush2.bf16.msra.mxu0 0
      %2077 = vmatprep.subr.bf16.mxu0 0
      %2078 = vmatpush2.bf16.msra.mxu0 0
      %2079 = vmatprep.subr.bf16.mxu0 0
      %2080 = vmatpush2.bf16.msra.mxu0 0
      %2081 = vmatprep.mubr.bf16.mxu0 0
      %2082 = vmatmul.mubr.bf16.gmra.mxu0 %v1697
      %v2083 = vpop.f32.mrf.mxu0
      %v2084 = vadd.f32 %v896, %v2083
      %v2085 = vpop.f32.mrf.mxu0
      %v2086 = vadd.f32 %v898, %v2085
      %v2087 = vpop.f32.mrf.mxu0
      %v2088 = vadd.f32 %v900, %v2087
      %v2089 = vpop.f32.mrf.mxu0
      %v2090 = vadd.f32 %v902, %v2089
      %2091 = vmatprep.mubr.bf16.mxu0 0
      %2092 = vmatmul.mubr.bf16.gmra.mxu0 %v1698
      %v2093 = vpop.f32.mrf.mxu0
      %v2094 = vadd.f32 %v906, %v2093
      %v2095 = vpop.f32.mrf.mxu0
      %v2096 = vadd.f32 %v908, %v2095
      %v2097 = vpop.f32.mrf.mxu0
      %v2098 = vadd.f32 %v910, %v2097
      %v2099 = vpop.f32.mrf.mxu0
      %v2100 = vadd.f32 %v912, %v2099
      %2101 = vmatprep.mubr.bf16.mxu0 0
      %2102 = vmatmul.mubr.bf16.gmra.mxu0 %v1699
      %v2103 = vpop.f32.mrf.mxu0
      %v2104 = vadd.f32 %v916, %v2103
      %v2105 = vpop.f32.mrf.mxu0
      %v2106 = vadd.f32 %v918, %v2105
      %v2107 = vpop.f32.mrf.mxu0
      %v2108 = vadd.f32 %v920, %v2107
      %v2109 = vpop.f32.mrf.mxu0
      %v2110 = vadd.f32 %v922, %v2109
      %2111 = vmatprep.mubr.bf16.mxu0 0
      %2112 = vmatmul.mubr.bf16.gmra.mxu0 %v1700
      %v2113 = vpop.f32.mrf.mxu0
      %v2114 = vadd.f32 %v926, %v2113
      %v2115 = vpop.f32.mrf.mxu0
      %v2116 = vadd.f32 %v928, %v2115
      %v2117 = vpop.f32.mrf.mxu0
      %v2118 = vadd.f32 %v930, %v2117
      %v2119 = vpop.f32.mrf.mxu0
      %v2120 = vadd.f32 %v932, %v2119
      %2121 = vmatprep.mubr.bf16.mxu0 0
      %2122 = vmatmul.mubr.bf16.gmra.mxu0 %v1701
      %v2123 = vpop.f32.mrf.mxu0
      %v2124 = vadd.f32 %v936, %v2123
      %v2125 = vpop.f32.mrf.mxu0
      %v2126 = vadd.f32 %v938, %v2125
      %v2127 = vpop.f32.mrf.mxu0
      %v2128 = vadd.f32 %v940, %v2127
      %v2129 = vpop.f32.mrf.mxu0
      %v2130 = vadd.f32 %v942, %v2129
      %2131 = vmatprep.mubr.bf16.mxu0 0
      %2132 = vmatmul.mubr.bf16.gmra.mxu0 %v1702
      %v2133 = vpop.f32.mrf.mxu0
      %v2134 = vadd.f32 %v946, %v2133
      %v2135 = vpop.f32.mrf.mxu0
      %v2136 = vadd.f32 %v948, %v2135
      %v2137 = vpop.f32.mrf.mxu0
      %v2138 = vadd.f32 %v950, %v2137
      %v2139 = vpop.f32.mrf.mxu0
      %v2140 = vadd.f32 %v952, %v2139
      %2141 = vmatprep.mubr.bf16.mxu0 0
      %2142 = vmatmul.mubr.bf16.gmra.mxu0 %v1703
      %v2143 = vpop.f32.mrf.mxu0
      %v2144 = vadd.f32 %v956, %v2143
      %v2145 = vpop.f32.mrf.mxu0
      %v2146 = vadd.f32 %v958, %v2145
      %v2147 = vpop.f32.mrf.mxu0
      %v2148 = vadd.f32 %v960, %v2147
      %v2149 = vpop.f32.mrf.mxu0
      %v2150 = vadd.f32 %v962, %v2149
      %2151 = vmatprep.mubr.bf16.mxu0 0
      %2152 = vmatmul.mubr.bf16.gmra.mxu0 %v1704
      %v2153 = vpop.f32.mrf.mxu0
      %v2154 = vadd.f32 %v966, %v2153
      %v2155 = vpop.f32.mrf.mxu0
      %v2156 = vadd.f32 %v968, %v2155
      %v2157 = vpop.f32.mrf.mxu0
      %v2158 = vadd.f32 %v970, %v2157
      %v2159 = vpop.f32.mrf.mxu0
      %v2160 = vadd.f32 %v972, %v2159
      %2161 = vmatprep.mubr.bf16.mxu0 0
      %2162 = vmatmul.mubr.bf16.gmra.mxu0 %v1705
      %v2163 = vpop.f32.mrf.mxu0
      %v2164 = vadd.f32 %v976, %v2163
      %v2165 = vpop.f32.mrf.mxu0
      %v2166 = vadd.f32 %v978, %v2165
      %v2167 = vpop.f32.mrf.mxu0
      %v2168 = vadd.f32 %v980, %v2167
      %v2169 = vpop.f32.mrf.mxu0
      %v2170 = vadd.f32 %v982, %v2169
      %2171 = vmatprep.mubr.bf16.mxu0 0
      %2172 = vmatmul.mubr.bf16.gmra.mxu0 %v1706
      %v2173 = vpop.f32.mrf.mxu0
      %v2174 = vadd.f32 %v986, %v2173
      %v2175 = vpop.f32.mrf.mxu0
      %v2176 = vadd.f32 %v988, %v2175
      %v2177 = vpop.f32.mrf.mxu0
      %v2178 = vadd.f32 %v990, %v2177
      %v2179 = vpop.f32.mrf.mxu0
      %v2180 = vadd.f32 %v992, %v2179
      %2181 = vmatprep.mubr.bf16.mxu0 0
      %2182 = vmatmul.mubr.bf16.gmra.mxu0 %v1707
      %v2183 = vpop.f32.mrf.mxu0
      %v2184 = vadd.f32 %v996, %v2183
      %v2185 = vpop.f32.mrf.mxu0
      %v2186 = vadd.f32 %v998, %v2185
      %v2187 = vpop.f32.mrf.mxu0
      %v2188 = vadd.f32 %v1000, %v2187
      %v2189 = vpop.f32.mrf.mxu0
      %v2190 = vadd.f32 %v1002, %v2189
      %2191 = vmatprep.mubr.bf16.mxu0 0
      %2192 = vmatmul.mubr.bf16.gmra.mxu0 %v1708
      %v2193 = vpop.f32.mrf.mxu0
      %v2194 = vadd.f32 %v1006, %v2193
      %v2195 = vpop.f32.mrf.mxu0
      %v2196 = vadd.f32 %v1008, %v2195
      %v2197 = vpop.f32.mrf.mxu0
      %v2198 = vadd.f32 %v1010, %v2197
      %v2199 = vpop.f32.mrf.mxu0
      %v2200 = vadd.f32 %v1012, %v2199
      %2201 = vmatprep.mubr.bf16.mxu0 0
      %2202 = vmatmul.mubr.bf16.gmra.mxu0 %v1709
      %v2203 = vpop.f32.mrf.mxu0
      %v2204 = vadd.f32 %v1016, %v2203
      %v2205 = vpop.f32.mrf.mxu0
      %v2206 = vadd.f32 %v1018, %v2205
      %v2207 = vpop.f32.mrf.mxu0
      %v2208 = vadd.f32 %v1020, %v2207
      %v2209 = vpop.f32.mrf.mxu0
      %v2210 = vadd.f32 %v1022, %v2209
      %2211 = vmatprep.mubr.bf16.mxu0 0
      %2212 = vmatmul.mubr.bf16.gmra.mxu0 %v1710
      %v2213 = vpop.f32.mrf.mxu0
      %v2214 = vadd.f32 %v1026, %v2213
      %v2215 = vpop.f32.mrf.mxu0
      %v2216 = vadd.f32 %v1028, %v2215
      %v2217 = vpop.f32.mrf.mxu0
      %v2218 = vadd.f32 %v1030, %v2217
      %v2219 = vpop.f32.mrf.mxu0
      %v2220 = vadd.f32 %v1032, %v2219
      %2221 = vmatprep.mubr.bf16.mxu0 0
      %2222 = vmatmul.mubr.bf16.gmra.mxu0 %v1711
      %v2223 = vpop.f32.mrf.mxu0
      %v2224 = vadd.f32 %v1036, %v2223
      %v2225 = vpop.f32.mrf.mxu0
      %v2226 = vadd.f32 %v1038, %v2225
      %v2227 = vpop.f32.mrf.mxu0
      %v2228 = vadd.f32 %v1040, %v2227
      %v2229 = vpop.f32.mrf.mxu0
      %v2230 = vadd.f32 %v1042, %v2229
      %2231 = vmatprep.mubr.bf16.mxu0 0
      %2232 = vmatmul.mubr.bf16.gmra.mxu0 %v1712
      %v2233 = vpop.f32.mrf.mxu0
      %v2234 = vadd.f32 %v1046, %v2233
      %v2235 = vpop.f32.mrf.mxu0
      %v2236 = vadd.f32 %v1048, %v2235
      %v2237 = vpop.f32.mrf.mxu0
      %v2238 = vadd.f32 %v1050, %v2237
      %v2239 = vpop.f32.mrf.mxu0
      %v2240 = vadd.f32 %v1052, %v2239
      %2241 = vdwg.mxu0
      %2242 = vmatprep.subr.bf16.mxu0 %v1980
      %2243 = vmatpush1.bf16.msra.mxu0 %v1979
      %2244 = vmatprep.subr.bf16.mxu0 %v1972
      %2245 = vmatpush1.bf16.msra.mxu0 %v1971
      %2246 = vmatprep.subr.bf16.mxu0 %v1964
      %2247 = vmatpush1.bf16.msra.mxu0 %v1963
      %2248 = vmatprep.subr.bf16.mxu0 %v1956
      %2249 = vmatpush1.bf16.msra.mxu0 %v1955
      %2250 = vmatprep.subr.bf16.mxu0 %v1948
      %2251 = vmatpush1.bf16.msra.mxu0 %v1947
      %2252 = vmatprep.subr.bf16.mxu0 %v1940
      %2253 = vmatpush1.bf16.msra.mxu0 %v1939
      %2254 = vmatprep.subr.bf16.mxu0 %v1932
      %2255 = vmatpush1.bf16.msra.mxu0 %v1931
      %2256 = vmatprep.subr.bf16.mxu0 %v1924
      %2257 = vmatpush1.bf16.msra.mxu0 %v1923
      %2258 = vmatprep.subr.bf16.mxu0 0
      %2259 = vmatpush2.bf16.msra.mxu0 0
      %2260 = vmatprep.subr.bf16.mxu0 0
      %2261 = vmatpush2.bf16.msra.mxu0 0
      %2262 = vmatprep.subr.bf16.mxu0 0
      %2263 = vmatpush2.bf16.msra.mxu0 0
      %2264 = vmatprep.subr.bf16.mxu0 0
      %2265 = vmatpush2.bf16.msra.mxu0 0
      %2266 = vmatprep.subr.bf16.mxu0 0
      %2267 = vmatpush2.bf16.msra.mxu0 0
      %2268 = vmatprep.subr.bf16.mxu0 0
      %2269 = vmatpush2.bf16.msra.mxu0 0
      %2270 = vmatprep.subr.bf16.mxu0 0
      %2271 = vmatpush2.bf16.msra.mxu0 0
      %2272 = vmatprep.subr.bf16.mxu0 0
      %2273 = vmatpush2.bf16.msra.mxu0 0
      %2274 = vmatprep.mubr.bf16.mxu0 0
      %2275 = vmatmul.mubr.bf16.gmra.mxu0 %v1697
      %v2276 = vpop.f32.mrf.mxu0
      %v2277 = vadd.f32 %v1089, %v2276
      %v2278 = vpop.f32.mrf.mxu0
      %v2279 = vadd.f32 %v1091, %v2278
      %v2280 = vpop.f32.mrf.mxu0
      %v2281 = vadd.f32 %v1093, %v2280
      %v2282 = vpop.f32.mrf.mxu0
      %v2283 = vadd.f32 %v1095, %v2282
      %2284 = vmatprep.mubr.bf16.mxu0 0
      %2285 = vmatmul.mubr.bf16.gmra.mxu0 %v1698
      %v2286 = vpop.f32.mrf.mxu0
      %v2287 = vadd.f32 %v1099, %v2286
      %v2288 = vpop.f32.mrf.mxu0
      %v2289 = vadd.f32 %v1101, %v2288
      %v2290 = vpop.f32.mrf.mxu0
      %v2291 = vadd.f32 %v1103, %v2290
      %v2292 = vpop.f32.mrf.mxu0
      %v2293 = vadd.f32 %v1105, %v2292
      %2294 = vmatprep.mubr.bf16.mxu0 0
      %2295 = vmatmul.mubr.bf16.gmra.mxu0 %v1699
      %v2296 = vpop.f32.mrf.mxu0
      %v2297 = vadd.f32 %v1109, %v2296
      %v2298 = vpop.f32.mrf.mxu0
      %v2299 = vadd.f32 %v1111, %v2298
      %v2300 = vpop.f32.mrf.mxu0
      %v2301 = vadd.f32 %v1113, %v2300
      %v2302 = vpop.f32.mrf.mxu0
      %v2303 = vadd.f32 %v1115, %v2302
      %2304 = vmatprep.mubr.bf16.mxu0 0
      %2305 = vmatmul.mubr.bf16.gmra.mxu0 %v1700
      %v2306 = vpop.f32.mrf.mxu0
      %v2307 = vadd.f32 %v1119, %v2306
      %v2308 = vpop.f32.mrf.mxu0
      %v2309 = vadd.f32 %v1121, %v2308
      %v2310 = vpop.f32.mrf.mxu0
      %v2311 = vadd.f32 %v1123, %v2310
      %v2312 = vpop.f32.mrf.mxu0
      %v2313 = vadd.f32 %v1125, %v2312
      %2314 = vmatprep.mubr.bf16.mxu0 0
      %2315 = vmatmul.mubr.bf16.gmra.mxu0 %v1701
      %v2316 = vpop.f32.mrf.mxu0
      %v2317 = vadd.f32 %v1129, %v2316
      %v2318 = vpop.f32.mrf.mxu0
      %v2319 = vadd.f32 %v1131, %v2318
      %v2320 = vpop.f32.mrf.mxu0
      %v2321 = vadd.f32 %v1133, %v2320
      %v2322 = vpop.f32.mrf.mxu0
      %v2323 = vadd.f32 %v1135, %v2322
      %2324 = vmatprep.mubr.bf16.mxu0 0
      %2325 = vmatmul.mubr.bf16.gmra.mxu0 %v1702
      %v2326 = vpop.f32.mrf.mxu0
      %v2327 = vadd.f32 %v1139, %v2326
      %v2328 = vpop.f32.mrf.mxu0
      %v2329 = vadd.f32 %v1141, %v2328
      %v2330 = vpop.f32.mrf.mxu0
      %v2331 = vadd.f32 %v1143, %v2330
      %v2332 = vpop.f32.mrf.mxu0
      %v2333 = vadd.f32 %v1145, %v2332
      %2334 = vmatprep.mubr.bf16.mxu0 0
      %2335 = vmatmul.mubr.bf16.gmra.mxu0 %v1703
      %v2336 = vpop.f32.mrf.mxu0
      %v2337 = vadd.f32 %v1149, %v2336
      %v2338 = vpop.f32.mrf.mxu0
      %v2339 = vadd.f32 %v1151, %v2338
      %v2340 = vpop.f32.mrf.mxu0
      %v2341 = vadd.f32 %v1153, %v2340
      %v2342 = vpop.f32.mrf.mxu0
      %v2343 = vadd.f32 %v1155, %v2342
      %2344 = vmatprep.mubr.bf16.mxu0 0
      %2345 = vmatmul.mubr.bf16.gmra.mxu0 %v1704
      %v2346 = vpop.f32.mrf.mxu0
      %v2347 = vadd.f32 %v1159, %v2346
      %v2348 = vpop.f32.mrf.mxu0
      %v2349 = vadd.f32 %v1161, %v2348
      %v2350 = vpop.f32.mrf.mxu0
      %v2351 = vadd.f32 %v1163, %v2350
      %v2352 = vpop.f32.mrf.mxu0
      %v2353 = vadd.f32 %v1165, %v2352
      %2354 = vmatprep.mubr.bf16.mxu0 0
      %2355 = vmatmul.mubr.bf16.gmra.mxu0 %v1705
      %v2356 = vpop.f32.mrf.mxu0
      %v2357 = vadd.f32 %v1169, %v2356
      %v2358 = vpop.f32.mrf.mxu0
      %v2359 = vadd.f32 %v1171, %v2358
      %v2360 = vpop.f32.mrf.mxu0
      %v2361 = vadd.f32 %v1173, %v2360
      %v2362 = vpop.f32.mrf.mxu0
      %v2363 = vadd.f32 %v1175, %v2362
      %2364 = vmatprep.mubr.bf16.mxu0 0
      %2365 = vmatmul.mubr.bf16.gmra.mxu0 %v1706
      %v2366 = vpop.f32.mrf.mxu0
      %v2367 = vadd.f32 %v1179, %v2366
      %v2368 = vpop.f32.mrf.mxu0
      %v2369 = vadd.f32 %v1181, %v2368
      %v2370 = vpop.f32.mrf.mxu0
      %v2371 = vadd.f32 %v1183, %v2370
      %v2372 = vpop.f32.mrf.mxu0
      %v2373 = vadd.f32 %v1185, %v2372
      %2374 = vmatprep.mubr.bf16.mxu0 0
      %2375 = vmatmul.mubr.bf16.gmra.mxu0 %v1707
      %v2376 = vpop.f32.mrf.mxu0
      %v2377 = vadd.f32 %v1189, %v2376
      %v2378 = vpop.f32.mrf.mxu0
      %v2379 = vadd.f32 %v1191, %v2378
      %v2380 = vpop.f32.mrf.mxu0
      %v2381 = vadd.f32 %v1193, %v2380
      %v2382 = vpop.f32.mrf.mxu0
      %v2383 = vadd.f32 %v1195, %v2382
      %2384 = vmatprep.mubr.bf16.mxu0 0
      %2385 = vmatmul.mubr.bf16.gmra.mxu0 %v1708
      %v2386 = vpop.f32.mrf.mxu0
      %v2387 = vadd.f32 %v1199, %v2386
      %v2388 = vpop.f32.mrf.mxu0
      %v2389 = vadd.f32 %v1201, %v2388
      %v2390 = vpop.f32.mrf.mxu0
      %v2391 = vadd.f32 %v1203, %v2390
      %v2392 = vpop.f32.mrf.mxu0
      %v2393 = vadd.f32 %v1205, %v2392
      %2394 = vmatprep.mubr.bf16.mxu0 0
      %2395 = vmatmul.mubr.bf16.gmra.mxu0 %v1709
      %v2396 = vpop.f32.mrf.mxu0
      %v2397 = vadd.f32 %v1209, %v2396
      %v2398 = vpop.f32.mrf.mxu0
      %v2399 = vadd.f32 %v1211, %v2398
      %v2400 = vpop.f32.mrf.mxu0
      %v2401 = vadd.f32 %v1213, %v2400
      %v2402 = vpop.f32.mrf.mxu0
      %v2403 = vadd.f32 %v1215, %v2402
      %2404 = vmatprep.mubr.bf16.mxu0 0
      %2405 = vmatmul.mubr.bf16.gmra.mxu0 %v1710
      %v2406 = vpop.f32.mrf.mxu0
      %v2407 = vadd.f32 %v1219, %v2406
      %v2408 = vpop.f32.mrf.mxu0
      %v2409 = vadd.f32 %v1221, %v2408
      %v2410 = vpop.f32.mrf.mxu0
      %v2411 = vadd.f32 %v1223, %v2410
      %v2412 = vpop.f32.mrf.mxu0
      %v2413 = vadd.f32 %v1225, %v2412
      %2414 = vmatprep.mubr.bf16.mxu0 0
      %2415 = vmatmul.mubr.bf16.gmra.mxu0 %v1711
      %v2416 = vpop.f32.mrf.mxu0
      %v2417 = vadd.f32 %v1229, %v2416
      %v2418 = vpop.f32.mrf.mxu0
      %v2419 = vadd.f32 %v1231, %v2418
      %v2420 = vpop.f32.mrf.mxu0
      %v2421 = vadd.f32 %v1233, %v2420
      %v2422 = vpop.f32.mrf.mxu0
      %v2423 = vadd.f32 %v1235, %v2422
      %2424 = vmatprep.mubr.bf16.mxu0 0
      %2425 = vmatmul.mubr.bf16.gmra.mxu0 %v1712
      %v2426 = vpop.f32.mrf.mxu0
      %v2427 = vadd.f32 %v1239, %v2426
      %v2428 = vpop.f32.mrf.mxu0
      %v2429 = vadd.f32 %v1241, %v2428
      %v2430 = vpop.f32.mrf.mxu0
      %v2431 = vadd.f32 %v1243, %v2430
      %v2432 = vpop.f32.mrf.mxu0
      %v2433 = vadd.f32 %v1245, %v2432
      %2434 = vdwg.mxu0
      %2435 = vmatprep.subr.bf16.mxu0 %v1982
      %2436 = vmatpush1.bf16.msra.mxu0 %v1981
      %2437 = vmatprep.subr.bf16.mxu0 %v1974
      %2438 = vmatpush1.bf16.msra.mxu0 %v1973
      %2439 = vmatprep.subr.bf16.mxu0 %v1966
      %2440 = vmatpush1.bf16.msra.mxu0 %v1965
      %2441 = vmatprep.subr.bf16.mxu0 %v1958
      %2442 = vmatpush1.bf16.msra.mxu0 %v1957
      %2443 = vmatprep.subr.bf16.mxu0 %v1950
      %2444 = vmatpush1.bf16.msra.mxu0 %v1949
      %2445 = vmatprep.subr.bf16.mxu0 %v1942
      %2446 = vmatpush1.bf16.msra.mxu0 %v1941
      %2447 = vmatprep.subr.bf16.mxu0 %v1934
      %2448 = vmatpush1.bf16.msra.mxu0 %v1933
      %2449 = vmatprep.subr.bf16.mxu0 %v1926
      %2450 = vmatpush1.bf16.msra.mxu0 %v1925
      %2451 = vmatprep.subr.bf16.mxu0 0
      %2452 = vmatpush2.bf16.msra.mxu0 0
      %2453 = vmatprep.subr.bf16.mxu0 0
      %2454 = vmatpush2.bf16.msra.mxu0 0
      %2455 = vmatprep.subr.bf16.mxu0 0
      %2456 = vmatpush2.bf16.msra.mxu0 0
      %2457 = vmatprep.subr.bf16.mxu0 0
      %2458 = vmatpush2.bf16.msra.mxu0 0
      %2459 = vmatprep.subr.bf16.mxu0 0
      %2460 = vmatpush2.bf16.msra.mxu0 0
      %2461 = vmatprep.subr.bf16.mxu0 0
      %2462 = vmatpush2.bf16.msra.mxu0 0
      %2463 = vmatprep.subr.bf16.mxu0 0
      %2464 = vmatpush2.bf16.msra.mxu0 0
      %2465 = vmatprep.subr.bf16.mxu0 0
      %2466 = vmatpush2.bf16.msra.mxu0 0
      %2467 = vmatprep.mubr.bf16.mxu0 0
      %2468 = vmatmul.mubr.bf16.gmra.mxu0 %v1697
      %v2469 = vpop.f32.mrf.mxu0
      %v2470 = vadd.f32 %v1282, %v2469
      %v2471 = vpop.f32.mrf.mxu0
      %v2472 = vadd.f32 %v1284, %v2471
      %v2473 = vpop.f32.mrf.mxu0
      %v2474 = vadd.f32 %v1286, %v2473
      %v2475 = vpop.f32.mrf.mxu0
      %v2476 = vadd.f32 %v1288, %v2475
      %2477 = vmatprep.mubr.bf16.mxu0 0
      %2478 = vmatmul.mubr.bf16.gmra.mxu0 %v1698
      %v2479 = vpop.f32.mrf.mxu0
      %v2480 = vadd.f32 %v1292, %v2479
      %v2481 = vpop.f32.mrf.mxu0
      %v2482 = vadd.f32 %v1294, %v2481
      %v2483 = vpop.f32.mrf.mxu0
      %v2484 = vadd.f32 %v1296, %v2483
      %v2485 = vpop.f32.mrf.mxu0
      %v2486 = vadd.f32 %v1298, %v2485
      %2487 = vmatprep.mubr.bf16.mxu0 0
      %2488 = vmatmul.mubr.bf16.gmra.mxu0 %v1699
      %v2489 = vpop.f32.mrf.mxu0
      %v2490 = vadd.f32 %v1302, %v2489
      %v2491 = vpop.f32.mrf.mxu0
      %v2492 = vadd.f32 %v1304, %v2491
      %v2493 = vpop.f32.mrf.mxu0
      %v2494 = vadd.f32 %v1306, %v2493
      %v2495 = vpop.f32.mrf.mxu0
      %v2496 = vadd.f32 %v1308, %v2495
      %2497 = vmatprep.mubr.bf16.mxu0 0
      %2498 = vmatmul.mubr.bf16.gmra.mxu0 %v1700
      %v2499 = vpop.f32.mrf.mxu0
      %v2500 = vadd.f32 %v1312, %v2499
      %v2501 = vpop.f32.mrf.mxu0
      %v2502 = vadd.f32 %v1314, %v2501
      %v2503 = vpop.f32.mrf.mxu0
      %v2504 = vadd.f32 %v1316, %v2503
      %v2505 = vpop.f32.mrf.mxu0
      %v2506 = vadd.f32 %v1318, %v2505
      %2507 = vmatprep.mubr.bf16.mxu0 0
      %2508 = vmatmul.mubr.bf16.gmra.mxu0 %v1701
      %v2509 = vpop.f32.mrf.mxu0
      %v2510 = vadd.f32 %v1322, %v2509
      %v2511 = vpop.f32.mrf.mxu0
      %v2512 = vadd.f32 %v1324, %v2511
      %v2513 = vpop.f32.mrf.mxu0
      %v2514 = vadd.f32 %v1326, %v2513
      %v2515 = vpop.f32.mrf.mxu0
      %v2516 = vadd.f32 %v1328, %v2515
      %2517 = vmatprep.mubr.bf16.mxu0 0
      %2518 = vmatmul.mubr.bf16.gmra.mxu0 %v1702
      %v2519 = vpop.f32.mrf.mxu0
      %v2520 = vadd.f32 %v1332, %v2519
      %v2521 = vpop.f32.mrf.mxu0
      %v2522 = vadd.f32 %v1334, %v2521
      %v2523 = vpop.f32.mrf.mxu0
      %v2524 = vadd.f32 %v1336, %v2523
      %v2525 = vpop.f32.mrf.mxu0
      %v2526 = vadd.f32 %v1338, %v2525
      %2527 = vmatprep.mubr.bf16.mxu0 0
      %2528 = vmatmul.mubr.bf16.gmra.mxu0 %v1703
      %v2529 = vpop.f32.mrf.mxu0
      %v2530 = vadd.f32 %v1342, %v2529
      %v2531 = vpop.f32.mrf.mxu0
      %v2532 = vadd.f32 %v1344, %v2531
      %v2533 = vpop.f32.mrf.mxu0
      %v2534 = vadd.f32 %v1346, %v2533
      %v2535 = vpop.f32.mrf.mxu0
      %v2536 = vadd.f32 %v1348, %v2535
      %2537 = vmatprep.mubr.bf16.mxu0 0
      %2538 = vmatmul.mubr.bf16.gmra.mxu0 %v1704
      %v2539 = vpop.f32.mrf.mxu0
      %v2540 = vadd.f32 %v1352, %v2539
      %v2541 = vpop.f32.mrf.mxu0
      %v2542 = vadd.f32 %v1354, %v2541
      %v2543 = vpop.f32.mrf.mxu0
      %v2544 = vadd.f32 %v1356, %v2543
      %v2545 = vpop.f32.mrf.mxu0
      %v2546 = vadd.f32 %v1358, %v2545
      %2547 = vmatprep.mubr.bf16.mxu0 0
      %2548 = vmatmul.mubr.bf16.gmra.mxu0 %v1705
      %v2549 = vpop.f32.mrf.mxu0
      %v2550 = vadd.f32 %v1362, %v2549
      %v2551 = vpop.f32.mrf.mxu0
      %v2552 = vadd.f32 %v1364, %v2551
      %v2553 = vpop.f32.mrf.mxu0
      %v2554 = vadd.f32 %v1366, %v2553
      %v2555 = vpop.f32.mrf.mxu0
      %v2556 = vadd.f32 %v1368, %v2555
      %2557 = vmatprep.mubr.bf16.mxu0 0
      %2558 = vmatmul.mubr.bf16.gmra.mxu0 %v1706
      %v2559 = vpop.f32.mrf.mxu0
      %v2560 = vadd.f32 %v1372, %v2559
      %v2561 = vpop.f32.mrf.mxu0
      %v2562 = vadd.f32 %v1374, %v2561
      %v2563 = vpop.f32.mrf.mxu0
      %v2564 = vadd.f32 %v1376, %v2563
      %v2565 = vpop.f32.mrf.mxu0
      %v2566 = vadd.f32 %v1378, %v2565
      %2567 = vmatprep.mubr.bf16.mxu0 0
      %2568 = vmatmul.mubr.bf16.gmra.mxu0 %v1707
      %v2569 = vpop.f32.mrf.mxu0
      %v2570 = vadd.f32 %v1382, %v2569
      %v2571 = vpop.f32.mrf.mxu0
      %v2572 = vadd.f32 %v1384, %v2571
      %v2573 = vpop.f32.mrf.mxu0
      %v2574 = vadd.f32 %v1386, %v2573
      %v2575 = vpop.f32.mrf.mxu0
      %v2576 = vadd.f32 %v1388, %v2575
      %2577 = vmatprep.mubr.bf16.mxu0 0
      %2578 = vmatmul.mubr.bf16.gmra.mxu0 %v1708
      %v2579 = vpop.f32.mrf.mxu0
      %v2580 = vadd.f32 %v1392, %v2579
      %v2581 = vpop.f32.mrf.mxu0
      %v2582 = vadd.f32 %v1394, %v2581
      %v2583 = vpop.f32.mrf.mxu0
      %v2584 = vadd.f32 %v1396, %v2583
      %v2585 = vpop.f32.mrf.mxu0
      %v2586 = vadd.f32 %v1398, %v2585
      %2587 = vmatprep.mubr.bf16.mxu0 0
      %2588 = vmatmul.mubr.bf16.gmra.mxu0 %v1709
      %v2589 = vpop.f32.mrf.mxu0
      %v2590 = vadd.f32 %v1402, %v2589
      %v2591 = vpop.f32.mrf.mxu0
      %v2592 = vadd.f32 %v1404, %v2591
      %v2593 = vpop.f32.mrf.mxu0
      %v2594 = vadd.f32 %v1406, %v2593
      %v2595 = vpop.f32.mrf.mxu0
      %v2596 = vadd.f32 %v1408, %v2595
      %2597 = vmatprep.mubr.bf16.mxu0 0
      %2598 = vmatmul.mubr.bf16.gmra.mxu0 %v1710
      %v2599 = vpop.f32.mrf.mxu0
      %v2600 = vadd.f32 %v1412, %v2599
      %v2601 = vpop.f32.mrf.mxu0
      %v2602 = vadd.f32 %v1414, %v2601
      %v2603 = vpop.f32.mrf.mxu0
      %v2604 = vadd.f32 %v1416, %v2603
      %v2605 = vpop.f32.mrf.mxu0
      %v2606 = vadd.f32 %v1418, %v2605
      %2607 = vmatprep.mubr.bf16.mxu0 0
      %2608 = vmatmul.mubr.bf16.gmra.mxu0 %v1711
      %v2609 = vpop.f32.mrf.mxu0
      %v2610 = vadd.f32 %v1422, %v2609
      %v2611 = vpop.f32.mrf.mxu0
      %v2612 = vadd.f32 %v1424, %v2611
      %v2613 = vpop.f32.mrf.mxu0
      %v2614 = vadd.f32 %v1426, %v2613
      %v2615 = vpop.f32.mrf.mxu0
      %v2616 = vadd.f32 %v1428, %v2615
      %2617 = vmatprep.mubr.bf16.mxu0 0
      %2618 = vmatmul.mubr.bf16.gmra.mxu0 %v1712
      %v2619 = vpop.f32.mrf.mxu0
      %v2620 = vadd.f32 %v1432, %v2619
      %v2621 = vpop.f32.mrf.mxu0
      %v2622 = vadd.f32 %v1434, %v2621
      %v2623 = vpop.f32.mrf.mxu0
      %v2624 = vadd.f32 %v1436, %v2623
      %v2625 = vpop.f32.mrf.mxu0
      %v2626 = vadd.f32 %v1438, %v2625
      %2627 = vdwg.mxu0
      %2628 = vmatprep.subr.bf16.mxu0 %v1984
      %2629 = vmatpush1.bf16.msra.mxu0 %v1983
      %2630 = vmatprep.subr.bf16.mxu0 %v1976
      %2631 = vmatpush1.bf16.msra.mxu0 %v1975
      %2632 = vmatprep.subr.bf16.mxu0 %v1968
      %2633 = vmatpush1.bf16.msra.mxu0 %v1967
      %2634 = vmatprep.subr.bf16.mxu0 %v1960
      %2635 = vmatpush1.bf16.msra.mxu0 %v1959
      %2636 = vmatprep.subr.bf16.mxu0 %v1952
      %2637 = vmatpush1.bf16.msra.mxu0 %v1951
      %2638 = vmatprep.subr.bf16.mxu0 %v1944
      %2639 = vmatpush1.bf16.msra.mxu0 %v1943
      %2640 = vmatprep.subr.bf16.mxu0 %v1936
      %2641 = vmatpush1.bf16.msra.mxu0 %v1935
      %2642 = vmatprep.subr.bf16.mxu0 %v1928
      %2643 = vmatpush1.bf16.msra.mxu0 %v1927
      %2644 = vmatprep.subr.bf16.mxu0 0
      %2645 = vmatpush2.bf16.msra.mxu0 0
      %2646 = vmatprep.subr.bf16.mxu0 0
      %2647 = vmatpush2.bf16.msra.mxu0 0
      %2648 = vmatprep.subr.bf16.mxu0 0
      %2649 = vmatpush2.bf16.msra.mxu0 0
      %2650 = vmatprep.subr.bf16.mxu0 0
      %2651 = vmatpush2.bf16.msra.mxu0 0
      %2652 = vmatprep.subr.bf16.mxu0 0
      %2653 = vmatpush2.bf16.msra.mxu0 0
      %2654 = vmatprep.subr.bf16.mxu0 0
      %2655 = vmatpush2.bf16.msra.mxu0 0
      %2656 = vmatprep.subr.bf16.mxu0 0
      %2657 = vmatpush2.bf16.msra.mxu0 0
      %2658 = vmatprep.subr.bf16.mxu0 0
      %2659 = vmatpush2.bf16.msra.mxu0 0
      %2660 = vmatprep.mubr.bf16.mxu0 0
      %2661 = vmatmul.mubr.bf16.gmra.mxu0 %v1697
      %v2662 = vpop.f32.mrf.mxu0
      %v2663 = vadd.f32 %v1475, %v2662
      %v2664 = vpop.f32.mrf.mxu0
      %v2665 = vadd.f32 %v1477, %v2664
      %v2666 = vpop.f32.mrf.mxu0
      %v2667 = vadd.f32 %v1479, %v2666
      %v2668 = vpop.f32.mrf.mxu0
      %v2669 = vadd.f32 %v1481, %v2668
      %2670 = vmatprep.mubr.bf16.mxu0 0
      %2671 = vmatmul.mubr.bf16.gmra.mxu0 %v1698
      %v2672 = vpop.f32.mrf.mxu0
      %v2673 = vadd.f32 %v1485, %v2672
      %v2674 = vpop.f32.mrf.mxu0
      %v2675 = vadd.f32 %v1487, %v2674
      %v2676 = vpop.f32.mrf.mxu0
      %v2677 = vadd.f32 %v1489, %v2676
      %v2678 = vpop.f32.mrf.mxu0
      %v2679 = vadd.f32 %v1491, %v2678
      %2680 = vmatprep.mubr.bf16.mxu0 0
      %2681 = vmatmul.mubr.bf16.gmra.mxu0 %v1699
      %v2682 = vpop.f32.mrf.mxu0
      %v2683 = vadd.f32 %v1495, %v2682
      %v2684 = vpop.f32.mrf.mxu0
      %v2685 = vadd.f32 %v1497, %v2684
      %v2686 = vpop.f32.mrf.mxu0
      %v2687 = vadd.f32 %v1499, %v2686
      %v2688 = vpop.f32.mrf.mxu0
      %v2689 = vadd.f32 %v1501, %v2688
      %2690 = vmatprep.mubr.bf16.mxu0 0
      %2691 = vmatmul.mubr.bf16.gmra.mxu0 %v1700
      %v2692 = vpop.f32.mrf.mxu0
      %v2693 = vadd.f32 %v1505, %v2692
      %v2694 = vpop.f32.mrf.mxu0
      %v2695 = vadd.f32 %v1507, %v2694
      %v2696 = vpop.f32.mrf.mxu0
      %v2697 = vadd.f32 %v1509, %v2696
      %v2698 = vpop.f32.mrf.mxu0
      %v2699 = vadd.f32 %v1511, %v2698
      %2700 = vmatprep.mubr.bf16.mxu0 0
      %2701 = vmatmul.mubr.bf16.gmra.mxu0 %v1701
      %v2702 = vpop.f32.mrf.mxu0
      %v2703 = vadd.f32 %v1515, %v2702
      %v2704 = vpop.f32.mrf.mxu0
      %v2705 = vadd.f32 %v1517, %v2704
      %v2706 = vpop.f32.mrf.mxu0
      %v2707 = vadd.f32 %v1519, %v2706
      %v2708 = vpop.f32.mrf.mxu0
      %v2709 = vadd.f32 %v1521, %v2708
      %2710 = vmatprep.mubr.bf16.mxu0 0
      %2711 = vmatmul.mubr.bf16.gmra.mxu0 %v1702
      %v2712 = vpop.f32.mrf.mxu0
      %v2713 = vadd.f32 %v1525, %v2712
      %v2714 = vpop.f32.mrf.mxu0
      %v2715 = vadd.f32 %v1527, %v2714
      %v2716 = vpop.f32.mrf.mxu0
      %v2717 = vadd.f32 %v1529, %v2716
      %v2718 = vpop.f32.mrf.mxu0
      %v2719 = vadd.f32 %v1531, %v2718
      %2720 = vmatprep.mubr.bf16.mxu0 0
      %2721 = vmatmul.mubr.bf16.gmra.mxu0 %v1703
      %v2722 = vpop.f32.mrf.mxu0
      %v2723 = vadd.f32 %v1535, %v2722
      %v2724 = vpop.f32.mrf.mxu0
      %v2725 = vadd.f32 %v1537, %v2724
      %v2726 = vpop.f32.mrf.mxu0
      %v2727 = vadd.f32 %v1539, %v2726
      %v2728 = vpop.f32.mrf.mxu0
      %v2729 = vadd.f32 %v1541, %v2728
      %2730 = vmatprep.mubr.bf16.mxu0 0
      %2731 = vmatmul.mubr.bf16.gmra.mxu0 %v1704
      %v2732 = vpop.f32.mrf.mxu0
      %v2733 = vadd.f32 %v1545, %v2732
      %v2734 = vpop.f32.mrf.mxu0
      %v2735 = vadd.f32 %v1547, %v2734
      %v2736 = vpop.f32.mrf.mxu0
      %v2737 = vadd.f32 %v1549, %v2736
      %v2738 = vpop.f32.mrf.mxu0
      %v2739 = vadd.f32 %v1551, %v2738
      %2740 = vmatprep.mubr.bf16.mxu0 0
      %2741 = vmatmul.mubr.bf16.gmra.mxu0 %v1705
      %v2742 = vpop.f32.mrf.mxu0
      %v2743 = vadd.f32 %v1555, %v2742
      %v2744 = vpop.f32.mrf.mxu0
      %v2745 = vadd.f32 %v1557, %v2744
      %v2746 = vpop.f32.mrf.mxu0
      %v2747 = vadd.f32 %v1559, %v2746
      %v2748 = vpop.f32.mrf.mxu0
      %v2749 = vadd.f32 %v1561, %v2748
      %2750 = vmatprep.mubr.bf16.mxu0 0
      %2751 = vmatmul.mubr.bf16.gmra.mxu0 %v1706
      %v2752 = vpop.f32.mrf.mxu0
      %v2753 = vadd.f32 %v1565, %v2752
      %v2754 = vpop.f32.mrf.mxu0
      %v2755 = vadd.f32 %v1567, %v2754
      %v2756 = vpop.f32.mrf.mxu0
      %v2757 = vadd.f32 %v1569, %v2756
      %v2758 = vpop.f32.mrf.mxu0
      %v2759 = vadd.f32 %v1571, %v2758
      %2760 = vmatprep.mubr.bf16.mxu0 0
      %2761 = vmatmul.mubr.bf16.gmra.mxu0 %v1707
      %v2762 = vpop.f32.mrf.mxu0
      %v2763 = vadd.f32 %v1575, %v2762
      %v2764 = vpop.f32.mrf.mxu0
      %v2765 = vadd.f32 %v1577, %v2764
      %v2766 = vpop.f32.mrf.mxu0
      %v2767 = vadd.f32 %v1579, %v2766
      %v2768 = vpop.f32.mrf.mxu0
      %v2769 = vadd.f32 %v1581, %v2768
      %2770 = vmatprep.mubr.bf16.mxu0 0
      %2771 = vmatmul.mubr.bf16.gmra.mxu0 %v1708
      %v2772 = vpop.f32.mrf.mxu0
      %v2773 = vadd.f32 %v1585, %v2772
      %v2774 = vpop.f32.mrf.mxu0
      %v2775 = vadd.f32 %v1587, %v2774
      %v2776 = vpop.f32.mrf.mxu0
      %v2777 = vadd.f32 %v1589, %v2776
      %v2778 = vpop.f32.mrf.mxu0
      %v2779 = vadd.f32 %v1591, %v2778
      %2780 = vmatprep.mubr.bf16.mxu0 0
      %2781 = vmatmul.mubr.bf16.gmra.mxu0 %v1709
      %v2782 = vpop.f32.mrf.mxu0
      %v2783 = vadd.f32 %v1595, %v2782
      %v2784 = vpop.f32.mrf.mxu0
      %v2785 = vadd.f32 %v1597, %v2784
      %v2786 = vpop.f32.mrf.mxu0
      %v2787 = vadd.f32 %v1599, %v2786
      %v2788 = vpop.f32.mrf.mxu0
      %v2789 = vadd.f32 %v1601, %v2788
      %2790 = vmatprep.mubr.bf16.mxu0 0
      %2791 = vmatmul.mubr.bf16.gmra.mxu0 %v1710
      %v2792 = vpop.f32.mrf.mxu0
      %v2793 = vadd.f32 %v1605, %v2792
      %v2794 = vpop.f32.mrf.mxu0
      %v2795 = vadd.f32 %v1607, %v2794
      %v2796 = vpop.f32.mrf.mxu0
      %v2797 = vadd.f32 %v1609, %v2796
      %v2798 = vpop.f32.mrf.mxu0
      %v2799 = vadd.f32 %v1611, %v2798
      %2800 = vmatprep.mubr.bf16.mxu0 0
      %2801 = vmatmul.mubr.bf16.gmra.mxu0 %v1711
      %v2802 = vpop.f32.mrf.mxu0
      %v2803 = vadd.f32 %v1615, %v2802
      %v2804 = vpop.f32.mrf.mxu0
      %v2805 = vadd.f32 %v1617, %v2804
      %v2806 = vpop.f32.mrf.mxu0
      %v2807 = vadd.f32 %v1619, %v2806
      %v2808 = vpop.f32.mrf.mxu0
      %v2809 = vadd.f32 %v1621, %v2808
      %2810 = vmatprep.mubr.bf16.mxu0 0
      %2811 = vmatmul.mubr.bf16.gmra.mxu0 %v1712
      %v2812 = vpop.f32.mrf.mxu0
      %v2813 = vadd.f32 %v1625, %v2812
      %v2814 = vpop.f32.mrf.mxu0
      %v2815 = vadd.f32 %v1627, %v2814
      %v2816 = vpop.f32.mrf.mxu0
      %v2817 = vadd.f32 %v1629, %v2816
      %v2818 = vpop.f32.mrf.mxu0
      %v2819 = vadd.f32 %v1631, %v2818
      %2820 = vdwg.mxu0
      %v2821 = vld [vmem:[%s4] sm:$0xff]
      %v2823 = vlaneseq
      %v2824 = vshrl.u32 %v2823, 7
      %v2825 = vsub.s32 0, %v2824
      %v2826 = vrot.slane %v2821, %v2825
      %v2827 = vlaneseq
      %v2828 = vshrl.u32 %v2827, 7
      %v2829 = vsub.s32 1, %v2828
      %v2830 = vrot.slane %v2821, %v2829
      %v2831 = vlaneseq
      %v2832 = vshrl.u32 %v2831, 7
      %v2833 = vsub.s32 2, %v2832
      %v2834 = vrot.slane %v2821, %v2833
      %v2835 = vlaneseq
      %v2836 = vshrl.u32 %v2835, 7
      %v2837 = vsub.s32 3, %v2836
      %v2838 = vrot.slane %v2821, %v2837
      %v2839 = vlaneseq
      %v2840 = vshrl.u32 %v2839, 7
      %v2841 = vsub.s32 4, %v2840
      %v2842 = vrot.slane %v2821, %v2841
      %v2843 = vlaneseq
      %v2844 = vshrl.u32 %v2843, 7
      %v2845 = vsub.s32 5, %v2844
      %v2846 = vrot.slane %v2821, %v2845
      %v2847 = vlaneseq
      %v2848 = vshrl.u32 %v2847, 7
      %v2849 = vsub.s32 6, %v2848
      %v2850 = vrot.slane %v2821, %v2849
      %v2851 = vlaneseq
      %v2852 = vshrl.u32 %v2851, 7
      %v2853 = vsub.s32 7, %v2852
      %v2854 = vrot.slane %v2821, %v2853
      %v2863 = vadd.f32 %v2084, %v2826
      %v2864 = vadd.f32 %v2086, %v2830
      %v2865 = vadd.f32 %v2277, %v2834
      %v2866 = vadd.f32 %v2279, %v2838
      %v2867 = vadd.f32 %v2470, %v2842
      %v2868 = vadd.f32 %v2472, %v2846
      %v2869 = vadd.f32 %v2663, %v2850
      %v2870 = vadd.f32 %v2665, %v2854
      %v2871 = vadd.f32 %v2088, %v2826
      %v2872 = vadd.f32 %v2090, %v2830
      %v2873 = vadd.f32 %v2281, %v2834
      %v2874 = vadd.f32 %v2283, %v2838
      %v2875 = vadd.f32 %v2474, %v2842
      %v2876 = vadd.f32 %v2476, %v2846
      %v2877 = vadd.f32 %v2667, %v2850
      %v2878 = vadd.f32 %v2669, %v2854
      %v2879 = vadd.f32 %v2094, %v2826
      %v2880 = vadd.f32 %v2096, %v2830
      %v2881 = vadd.f32 %v2287, %v2834
      %v2882 = vadd.f32 %v2289, %v2838
      %v2883 = vadd.f32 %v2480, %v2842
      %v2884 = vadd.f32 %v2482, %v2846
      %v2885 = vadd.f32 %v2673, %v2850
      %v2886 = vadd.f32 %v2675, %v2854
      %v2887 = vadd.f32 %v2098, %v2826
      %v2888 = vadd.f32 %v2100, %v2830
      %v2889 = vadd.f32 %v2291, %v2834
      %v2890 = vadd.f32 %v2293, %v2838
      %v2891 = vadd.f32 %v2484, %v2842
      %v2892 = vadd.f32 %v2486, %v2846
      %v2893 = vadd.f32 %v2677, %v2850
      %v2894 = vadd.f32 %v2679, %v2854
      %v2895 = vadd.f32 %v2104, %v2826
      %v2896 = vadd.f32 %v2106, %v2830
      %v2897 = vadd.f32 %v2297, %v2834
      %v2898 = vadd.f32 %v2299, %v2838
      %v2899 = vadd.f32 %v2490, %v2842
      %v2900 = vadd.f32 %v2492, %v2846
      %v2901 = vadd.f32 %v2683, %v2850
      %v2902 = vadd.f32 %v2685, %v2854
      %v2903 = vadd.f32 %v2108, %v2826
      %v2904 = vadd.f32 %v2110, %v2830
      %v2905 = vadd.f32 %v2301, %v2834
      %v2906 = vadd.f32 %v2303, %v2838
      %v2907 = vadd.f32 %v2494, %v2842
      %v2908 = vadd.f32 %v2496, %v2846
      %v2909 = vadd.f32 %v2687, %v2850
      %v2910 = vadd.f32 %v2689, %v2854
      %v2911 = vadd.f32 %v2114, %v2826
      %v2912 = vadd.f32 %v2116, %v2830
      %v2913 = vadd.f32 %v2307, %v2834
      %v2914 = vadd.f32 %v2309, %v2838
      %v2915 = vadd.f32 %v2500, %v2842
      %v2916 = vadd.f32 %v2502, %v2846
      %v2917 = vadd.f32 %v2693, %v2850
      %v2918 = vadd.f32 %v2695, %v2854
      %v2919 = vadd.f32 %v2118, %v2826
      %v2920 = vadd.f32 %v2120, %v2830
      %v2921 = vadd.f32 %v2311, %v2834
      %v2922 = vadd.f32 %v2313, %v2838
      %v2923 = vadd.f32 %v2504, %v2842
      %v2924 = vadd.f32 %v2506, %v2846
      %v2925 = vadd.f32 %v2697, %v2850
      %v2926 = vadd.f32 %v2699, %v2854
      %v2927 = vadd.f32 %v2124, %v2826
      %v2928 = vadd.f32 %v2126, %v2830
      %v2929 = vadd.f32 %v2317, %v2834
      %v2930 = vadd.f32 %v2319, %v2838
      %v2931 = vadd.f32 %v2510, %v2842
      %v2932 = vadd.f32 %v2512, %v2846
      %v2933 = vadd.f32 %v2703, %v2850
      %v2934 = vadd.f32 %v2705, %v2854
      %v2935 = vadd.f32 %v2128, %v2826
      %v2936 = vadd.f32 %v2130, %v2830
      %v2937 = vadd.f32 %v2321, %v2834
      %v2938 = vadd.f32 %v2323, %v2838
      %v2939 = vadd.f32 %v2514, %v2842
      %v2940 = vadd.f32 %v2516, %v2846
      %v2941 = vadd.f32 %v2707, %v2850
      %v2942 = vadd.f32 %v2709, %v2854
      %v2943 = vadd.f32 %v2134, %v2826
      %v2944 = vadd.f32 %v2136, %v2830
      %v2945 = vadd.f32 %v2327, %v2834
      %v2946 = vadd.f32 %v2329, %v2838
      %v2947 = vadd.f32 %v2520, %v2842
      %v2948 = vadd.f32 %v2522, %v2846
      %v2949 = vadd.f32 %v2713, %v2850
      %v2950 = vadd.f32 %v2715, %v2854
      %v2951 = vadd.f32 %v2138, %v2826
      %v2952 = vadd.f32 %v2140, %v2830
      %v2953 = vadd.f32 %v2331, %v2834
      %v2954 = vadd.f32 %v2333, %v2838
      %v2955 = vadd.f32 %v2524, %v2842
      %v2956 = vadd.f32 %v2526, %v2846
      %v2957 = vadd.f32 %v2717, %v2850
      %v2958 = vadd.f32 %v2719, %v2854
      %v2959 = vadd.f32 %v2144, %v2826
      %v2960 = vadd.f32 %v2146, %v2830
      %v2961 = vadd.f32 %v2337, %v2834
      %v2962 = vadd.f32 %v2339, %v2838
      %v2963 = vadd.f32 %v2530, %v2842
      %v2964 = vadd.f32 %v2532, %v2846
      %v2965 = vadd.f32 %v2723, %v2850
      %v2966 = vadd.f32 %v2725, %v2854
      %v2967 = vadd.f32 %v2148, %v2826
      %v2968 = vadd.f32 %v2150, %v2830
      %v2969 = vadd.f32 %v2341, %v2834
      %v2970 = vadd.f32 %v2343, %v2838
      %v2971 = vadd.f32 %v2534, %v2842
      %v2972 = vadd.f32 %v2536, %v2846
      %v2973 = vadd.f32 %v2727, %v2850
      %v2974 = vadd.f32 %v2729, %v2854
      %v2975 = vadd.f32 %v2154, %v2826
      %v2976 = vadd.f32 %v2156, %v2830
      %v2977 = vadd.f32 %v2347, %v2834
      %v2978 = vadd.f32 %v2349, %v2838
      %v2979 = vadd.f32 %v2540, %v2842
      %v2980 = vadd.f32 %v2542, %v2846
      %v2981 = vadd.f32 %v2733, %v2850
      %v2982 = vadd.f32 %v2735, %v2854
      %v2983 = vadd.f32 %v2158, %v2826
      %v2984 = vadd.f32 %v2160, %v2830
      %v2985 = vadd.f32 %v2351, %v2834
      %v2986 = vadd.f32 %v2353, %v2838
      %v2987 = vadd.f32 %v2544, %v2842
      %v2988 = vadd.f32 %v2546, %v2846
      %v2989 = vadd.f32 %v2737, %v2850
      %v2990 = vadd.f32 %v2739, %v2854
      %v2991 = vadd.f32 %v2164, %v2826
      %v2992 = vadd.f32 %v2166, %v2830
      %v2993 = vadd.f32 %v2357, %v2834
      %v2994 = vadd.f32 %v2359, %v2838
      %v2995 = vadd.f32 %v2550, %v2842
      %v2996 = vadd.f32 %v2552, %v2846
      %v2997 = vadd.f32 %v2743, %v2850
      %v2998 = vadd.f32 %v2745, %v2854
      %v2999 = vadd.f32 %v2168, %v2826
      %v3000 = vadd.f32 %v2170, %v2830
      %v3001 = vadd.f32 %v2361, %v2834
      %v3002 = vadd.f32 %v2363, %v2838
      %v3003 = vadd.f32 %v2554, %v2842
      %v3004 = vadd.f32 %v2556, %v2846
      %v3005 = vadd.f32 %v2747, %v2850
      %v3006 = vadd.f32 %v2749, %v2854
      %v3007 = vadd.f32 %v2174, %v2826
      %v3008 = vadd.f32 %v2176, %v2830
      %v3009 = vadd.f32 %v2367, %v2834
      %v3010 = vadd.f32 %v2369, %v2838
      %v3011 = vadd.f32 %v2560, %v2842
      %v3012 = vadd.f32 %v2562, %v2846
      %v3013 = vadd.f32 %v2753, %v2850
      %v3014 = vadd.f32 %v2755, %v2854
      %v3015 = vadd.f32 %v2178, %v2826
      %v3016 = vadd.f32 %v2180, %v2830
      %v3017 = vadd.f32 %v2371, %v2834
      %v3018 = vadd.f32 %v2373, %v2838
      %v3019 = vadd.f32 %v2564, %v2842
      %v3020 = vadd.f32 %v2566, %v2846
      %v3021 = vadd.f32 %v2757, %v2850
      %v3022 = vadd.f32 %v2759, %v2854
      %v3023 = vadd.f32 %v2184, %v2826
      %v3024 = vadd.f32 %v2186, %v2830
      %v3025 = vadd.f32 %v2377, %v2834
      %v3026 = vadd.f32 %v2379, %v2838
      %v3027 = vadd.f32 %v2570, %v2842
      %v3028 = vadd.f32 %v2572, %v2846
      %v3029 = vadd.f32 %v2763, %v2850
      %v3030 = vadd.f32 %v2765, %v2854
      %v3031 = vadd.f32 %v2188, %v2826
      %v3032 = vadd.f32 %v2190, %v2830
      %v3033 = vadd.f32 %v2381, %v2834
      %v3034 = vadd.f32 %v2383, %v2838
      %v3035 = vadd.f32 %v2574, %v2842
      %v3036 = vadd.f32 %v2576, %v2846
      %v3037 = vadd.f32 %v2767, %v2850
      %v3038 = vadd.f32 %v2769, %v2854
      %v3039 = vadd.f32 %v2194, %v2826
      %v3040 = vadd.f32 %v2196, %v2830
      %v3041 = vadd.f32 %v2387, %v2834
      %v3042 = vadd.f32 %v2389, %v2838
      %v3043 = vadd.f32 %v2580, %v2842
      %v3044 = vadd.f32 %v2582, %v2846
      %v3045 = vadd.f32 %v2773, %v2850
      %v3046 = vadd.f32 %v2775, %v2854
      %v3047 = vadd.f32 %v2198, %v2826
      %v3048 = vadd.f32 %v2200, %v2830
      %v3049 = vadd.f32 %v2391, %v2834
      %v3050 = vadd.f32 %v2393, %v2838
      %v3051 = vadd.f32 %v2584, %v2842
      %v3052 = vadd.f32 %v2586, %v2846
      %v3053 = vadd.f32 %v2777, %v2850
      %v3054 = vadd.f32 %v2779, %v2854
      %v3055 = vadd.f32 %v2204, %v2826
      %v3056 = vadd.f32 %v2206, %v2830
      %v3057 = vadd.f32 %v2397, %v2834
      %v3058 = vadd.f32 %v2399, %v2838
      %v3059 = vadd.f32 %v2590, %v2842
      %v3060 = vadd.f32 %v2592, %v2846
      %v3061 = vadd.f32 %v2783, %v2850
      %v3062 = vadd.f32 %v2785, %v2854
      %v3063 = vadd.f32 %v2208, %v2826
      %v3064 = vadd.f32 %v2210, %v2830
      %v3065 = vadd.f32 %v2401, %v2834
      %v3066 = vadd.f32 %v2403, %v2838
      %v3067 = vadd.f32 %v2594, %v2842
      %v3068 = vadd.f32 %v2596, %v2846
      %v3069 = vadd.f32 %v2787, %v2850
      %v3070 = vadd.f32 %v2789, %v2854
      %v3071 = vadd.f32 %v2214, %v2826
      %v3072 = vadd.f32 %v2216, %v2830
      %v3073 = vadd.f32 %v2407, %v2834
      %v3074 = vadd.f32 %v2409, %v2838
      %v3075 = vadd.f32 %v2600, %v2842
      %v3076 = vadd.f32 %v2602, %v2846
      %v3077 = vadd.f32 %v2793, %v2850
      %v3078 = vadd.f32 %v2795, %v2854
      %v3079 = vadd.f32 %v2218, %v2826
      %v3080 = vadd.f32 %v2220, %v2830
      %v3081 = vadd.f32 %v2411, %v2834
      %v3082 = vadd.f32 %v2413, %v2838
      %v3083 = vadd.f32 %v2604, %v2842
      %v3084 = vadd.f32 %v2606, %v2846
      %v3085 = vadd.f32 %v2797, %v2850
      %v3086 = vadd.f32 %v2799, %v2854
      %v3087 = vadd.f32 %v2224, %v2826
      %v3088 = vadd.f32 %v2226, %v2830
      %v3089 = vadd.f32 %v2417, %v2834
      %v3090 = vadd.f32 %v2419, %v2838
      %v3091 = vadd.f32 %v2610, %v2842
      %v3092 = vadd.f32 %v2612, %v2846
      %v3093 = vadd.f32 %v2803, %v2850
      %v3094 = vadd.f32 %v2805, %v2854
      %v3095 = vadd.f32 %v2228, %v2826
      %v3096 = vadd.f32 %v2230, %v2830
      %v3097 = vadd.f32 %v2421, %v2834
      %v3098 = vadd.f32 %v2423, %v2838
      %v3099 = vadd.f32 %v2614, %v2842
      %v3100 = vadd.f32 %v2616, %v2846
      %v3101 = vadd.f32 %v2807, %v2850
      %v3102 = vadd.f32 %v2809, %v2854
      %v3103 = vadd.f32 %v2234, %v2826
      %v3104 = vadd.f32 %v2236, %v2830
      %v3105 = vadd.f32 %v2427, %v2834
      %v3106 = vadd.f32 %v2429, %v2838
      %v3107 = vadd.f32 %v2620, %v2842
      %v3108 = vadd.f32 %v2622, %v2846
      %v3109 = vadd.f32 %v2813, %v2850
      %v3110 = vadd.f32 %v2815, %v2854
      %v3111 = vadd.f32 %v2238, %v2826
      %v3112 = vadd.f32 %v2240, %v2830
      %v3113 = vadd.f32 %v2431, %v2834
      %v3114 = vadd.f32 %v2433, %v2838
      %v3115 = vadd.f32 %v2624, %v2842
      %v3116 = vadd.f32 %v2626, %v2846
      %v3117 = vadd.f32 %v2817, %v2850
      %v3118 = vadd.f32 %v2819, %v2854
      %v3119 = vpack.c.bf16 %v2871, %v2863
      %v3120 = vpack.c.bf16 %v2872, %v2864
      %v3121 = vpack.c.bf16 %v2873, %v2865
      %v3122 = vpack.c.bf16 %v2874, %v2866
      %v3123 = vpack.c.bf16 %v2875, %v2867
      %v3124 = vpack.c.bf16 %v2876, %v2868
      %v3125 = vpack.c.bf16 %v2877, %v2869
      %v3126 = vpack.c.bf16 %v2878, %v2870
      %v3127 = vpack.c.bf16 %v2887, %v2879
      %v3128 = vpack.c.bf16 %v2888, %v2880
      %v3129 = vpack.c.bf16 %v2889, %v2881
      %v3130 = vpack.c.bf16 %v2890, %v2882
      %v3131 = vpack.c.bf16 %v2891, %v2883
      %v3132 = vpack.c.bf16 %v2892, %v2884
      %v3133 = vpack.c.bf16 %v2893, %v2885
      %v3134 = vpack.c.bf16 %v2894, %v2886
      %v3135 = vpack.c.bf16 %v2903, %v2895
      %v3136 = vpack.c.bf16 %v2904, %v2896
      %v3137 = vpack.c.bf16 %v2905, %v2897
      %v3138 = vpack.c.bf16 %v2906, %v2898
      %v3139 = vpack.c.bf16 %v2907, %v2899
      %v3140 = vpack.c.bf16 %v2908, %v2900
      %v3141 = vpack.c.bf16 %v2909, %v2901
      %v3142 = vpack.c.bf16 %v2910, %v2902
      %v3143 = vpack.c.bf16 %v2919, %v2911
      %v3144 = vpack.c.bf16 %v2920, %v2912
      %v3145 = vpack.c.bf16 %v2921, %v2913
      %v3146 = vpack.c.bf16 %v2922, %v2914
      %v3147 = vpack.c.bf16 %v2923, %v2915
      %v3148 = vpack.c.bf16 %v2924, %v2916
      %v3149 = vpack.c.bf16 %v2925, %v2917
      %v3150 = vpack.c.bf16 %v2926, %v2918
      %v3151 = vpack.c.bf16 %v2935, %v2927
      %v3152 = vpack.c.bf16 %v2936, %v2928
      %v3153 = vpack.c.bf16 %v2937, %v2929
      %v3154 = vpack.c.bf16 %v2938, %v2930
      %v3155 = vpack.c.bf16 %v2939, %v2931
      %v3156 = vpack.c.bf16 %v2940, %v2932
      %v3157 = vpack.c.bf16 %v2941, %v2933
      %v3158 = vpack.c.bf16 %v2942, %v2934
      %v3159 = vpack.c.bf16 %v2951, %v2943
      %v3160 = vpack.c.bf16 %v2952, %v2944
      %v3161 = vpack.c.bf16 %v2953, %v2945
      %v3162 = vpack.c.bf16 %v2954, %v2946
      %v3163 = vpack.c.bf16 %v2955, %v2947
      %v3164 = vpack.c.bf16 %v2956, %v2948
      %v3165 = vpack.c.bf16 %v2957, %v2949
      %v3166 = vpack.c.bf16 %v2958, %v2950
      %v3167 = vpack.c.bf16 %v2967, %v2959
      %v3168 = vpack.c.bf16 %v2968, %v2960
      %v3169 = vpack.c.bf16 %v2969, %v2961
      %v3170 = vpack.c.bf16 %v2970, %v2962
      %v3171 = vpack.c.bf16 %v2971, %v2963
      %v3172 = vpack.c.bf16 %v2972, %v2964
      %v3173 = vpack.c.bf16 %v2973, %v2965
      %v3174 = vpack.c.bf16 %v2974, %v2966
      %v3175 = vpack.c.bf16 %v2983, %v2975
      %v3176 = vpack.c.bf16 %v2984, %v2976
      %v3177 = vpack.c.bf16 %v2985, %v2977
      %v3178 = vpack.c.bf16 %v2986, %v2978
      %v3179 = vpack.c.bf16 %v2987, %v2979
      %v3180 = vpack.c.bf16 %v2988, %v2980
      %v3181 = vpack.c.bf16 %v2989, %v2981
      %v3182 = vpack.c.bf16 %v2990, %v2982
      %v3183 = vpack.c.bf16 %v2999, %v2991
      %v3184 = vpack.c.bf16 %v3000, %v2992
      %v3185 = vpack.c.bf16 %v3001, %v2993
      %v3186 = vpack.c.bf16 %v3002, %v2994
      %v3187 = vpack.c.bf16 %v3003, %v2995
      %v3188 = vpack.c.bf16 %v3004, %v2996
      %v3189 = vpack.c.bf16 %v3005, %v2997
      %v3190 = vpack.c.bf16 %v3006, %v2998
      %v3191 = vpack.c.bf16 %v3015, %v3007
      %v3192 = vpack.c.bf16 %v3016, %v3008
      %v3193 = vpack.c.bf16 %v3017, %v3009
      %v3194 = vpack.c.bf16 %v3018, %v3010
      %v3195 = vpack.c.bf16 %v3019, %v3011
      %v3196 = vpack.c.bf16 %v3020, %v3012
      %v3197 = vpack.c.bf16 %v3021, %v3013
      %v3198 = vpack.c.bf16 %v3022, %v3014
      %v3199 = vpack.c.bf16 %v3031, %v3023
      %v3200 = vpack.c.bf16 %v3032, %v3024
      %v3201 = vpack.c.bf16 %v3033, %v3025
      %v3202 = vpack.c.bf16 %v3034, %v3026
      %v3203 = vpack.c.bf16 %v3035, %v3027
      %v3204 = vpack.c.bf16 %v3036, %v3028
      %v3205 = vpack.c.bf16 %v3037, %v3029
      %v3206 = vpack.c.bf16 %v3038, %v3030
      %v3207 = vpack.c.bf16 %v3047, %v3039
      %v3208 = vpack.c.bf16 %v3048, %v3040
      %v3209 = vpack.c.bf16 %v3049, %v3041
      %v3210 = vpack.c.bf16 %v3050, %v3042
      %v3211 = vpack.c.bf16 %v3051, %v3043
      %v3212 = vpack.c.bf16 %v3052, %v3044
      %v3213 = vpack.c.bf16 %v3053, %v3045
      %v3214 = vpack.c.bf16 %v3054, %v3046
      %v3215 = vpack.c.bf16 %v3063, %v3055
      %v3216 = vpack.c.bf16 %v3064, %v3056
      %v3217 = vpack.c.bf16 %v3065, %v3057
      %v3218 = vpack.c.bf16 %v3066, %v3058
      %v3219 = vpack.c.bf16 %v3067, %v3059
      %v3220 = vpack.c.bf16 %v3068, %v3060
      %v3221 = vpack.c.bf16 %v3069, %v3061
      %v3222 = vpack.c.bf16 %v3070, %v3062
      %v3223 = vpack.c.bf16 %v3079, %v3071
      %v3224 = vpack.c.bf16 %v3080, %v3072
      %v3225 = vpack.c.bf16 %v3081, %v3073
      %v3226 = vpack.c.bf16 %v3082, %v3074
      %v3227 = vpack.c.bf16 %v3083, %v3075
      %v3228 = vpack.c.bf16 %v3084, %v3076
      %v3229 = vpack.c.bf16 %v3085, %v3077
      %v3230 = vpack.c.bf16 %v3086, %v3078
      %v3231 = vpack.c.bf16 %v3095, %v3087
      %v3232 = vpack.c.bf16 %v3096, %v3088
      %v3233 = vpack.c.bf16 %v3097, %v3089
      %v3234 = vpack.c.bf16 %v3098, %v3090
      %v3235 = vpack.c.bf16 %v3099, %v3091
      %v3236 = vpack.c.bf16 %v3100, %v3092
      %v3237 = vpack.c.bf16 %v3101, %v3093
      %v3238 = vpack.c.bf16 %v3102, %v3094
      %v3239 = vpack.c.bf16 %v3111, %v3103
      %v3240 = vpack.c.bf16 %v3112, %v3104
      %v3241 = vpack.c.bf16 %v3113, %v3105
      %v3242 = vpack.c.bf16 %v3114, %v3106
      %v3243 = vpack.c.bf16 %v3115, %v3107
      %v3244 = vpack.c.bf16 %v3116, %v3108
      %v3245 = vpack.c.bf16 %v3117, %v3109
      %v3246 = vpack.c.bf16 %v3118, %v3110
      %v3375 = vunpack.c.l.b16 %v3119
      %v3376 = vunpack.c.l.b16 %v3120
      %v3377 = vunpack.c.l.b16 %v3121
      %v3378 = vunpack.c.l.b16 %v3122
      %v3379 = vunpack.c.l.b16 %v3123
      %v3380 = vunpack.c.l.b16 %v3124
      %v3381 = vunpack.c.l.b16 %v3125
      %v3382 = vunpack.c.l.b16 %v3126
      %v3383 = vunpack.c.h.b16 %v3119
      %v3384 = vunpack.c.h.b16 %v3120
      %v3385 = vunpack.c.h.b16 %v3121
      %v3386 = vunpack.c.h.b16 %v3122
      %v3387 = vunpack.c.h.b16 %v3123
      %v3388 = vunpack.c.h.b16 %v3124
      %v3389 = vunpack.c.h.b16 %v3125
      %v3390 = vunpack.c.h.b16 %v3126
      %v3391 = vunpack.c.l.b16 %v3127
      %v3392 = vunpack.c.l.b16 %v3128
      %v3393 = vunpack.c.l.b16 %v3129
      %v3394 = vunpack.c.l.b16 %v3130
      %v3395 = vunpack.c.l.b16 %v3131
      %v3396 = vunpack.c.l.b16 %v3132
      %v3397 = vunpack.c.l.b16 %v3133
      %v3398 = vunpack.c.l.b16 %v3134
      %v3399 = vunpack.c.h.b16 %v3127
      %v3400 = vunpack.c.h.b16 %v3128
      %v3401 = vunpack.c.h.b16 %v3129
      %v3402 = vunpack.c.h.b16 %v3130
      %v3403 = vunpack.c.h.b16 %v3131
      %v3404 = vunpack.c.h.b16 %v3132
      %v3405 = vunpack.c.h.b16 %v3133
      %v3406 = vunpack.c.h.b16 %v3134
      %v3407 = vunpack.c.l.b16 %v3135
      %v3408 = vunpack.c.l.b16 %v3136
      %v3409 = vunpack.c.l.b16 %v3137
      %v3410 = vunpack.c.l.b16 %v3138
      %v3411 = vunpack.c.l.b16 %v3139
      %v3412 = vunpack.c.l.b16 %v3140
      %v3413 = vunpack.c.l.b16 %v3141
      %v3414 = vunpack.c.l.b16 %v3142
      %v3415 = vunpack.c.h.b16 %v3135
      %v3416 = vunpack.c.h.b16 %v3136
      %v3417 = vunpack.c.h.b16 %v3137
      %v3418 = vunpack.c.h.b16 %v3138
      %v3419 = vunpack.c.h.b16 %v3139
      %v3420 = vunpack.c.h.b16 %v3140
      %v3421 = vunpack.c.h.b16 %v3141
      %v3422 = vunpack.c.h.b16 %v3142
      %v3423 = vunpack.c.l.b16 %v3143
      %v3424 = vunpack.c.l.b16 %v3144
      %v3425 = vunpack.c.l.b16 %v3145
      %v3426 = vunpack.c.l.b16 %v3146
      %v3427 = vunpack.c.l.b16 %v3147
      %v3428 = vunpack.c.l.b16 %v3148
      %v3429 = vunpack.c.l.b16 %v3149
      %v3430 = vunpack.c.l.b16 %v3150
      %v3431 = vunpack.c.h.b16 %v3143
      %v3432 = vunpack.c.h.b16 %v3144
      %v3433 = vunpack.c.h.b16 %v3145
      %v3434 = vunpack.c.h.b16 %v3146
      %v3435 = vunpack.c.h.b16 %v3147
      %v3436 = vunpack.c.h.b16 %v3148
      %v3437 = vunpack.c.h.b16 %v3149
      %v3438 = vunpack.c.h.b16 %v3150
      %v3439 = vunpack.c.l.b16 %v3151
      %v3440 = vunpack.c.l.b16 %v3152
      %v3441 = vunpack.c.l.b16 %v3153
      %v3442 = vunpack.c.l.b16 %v3154
      %v3443 = vunpack.c.l.b16 %v3155
      %v3444 = vunpack.c.l.b16 %v3156
      %v3445 = vunpack.c.l.b16 %v3157
      %v3446 = vunpack.c.l.b16 %v3158
      %v3447 = vunpack.c.h.b16 %v3151
      %v3448 = vunpack.c.h.b16 %v3152
      %v3449 = vunpack.c.h.b16 %v3153
      %v3450 = vunpack.c.h.b16 %v3154
      %v3451 = vunpack.c.h.b16 %v3155
      %v3452 = vunpack.c.h.b16 %v3156
      %v3453 = vunpack.c.h.b16 %v3157
      %v3454 = vunpack.c.h.b16 %v3158
      %v3455 = vunpack.c.l.b16 %v3159
      %v3456 = vunpack.c.l.b16 %v3160
      %v3457 = vunpack.c.l.b16 %v3161
      %v3458 = vunpack.c.l.b16 %v3162
      %v3459 = vunpack.c.l.b16 %v3163
      %v3460 = vunpack.c.l.b16 %v3164
      %v3461 = vunpack.c.l.b16 %v3165
      %v3462 = vunpack.c.l.b16 %v3166
      %v3463 = vunpack.c.h.b16 %v3159
      %v3464 = vunpack.c.h.b16 %v3160
      %v3465 = vunpack.c.h.b16 %v3161
      %v3466 = vunpack.c.h.b16 %v3162
      %v3467 = vunpack.c.h.b16 %v3163
      %v3468 = vunpack.c.h.b16 %v3164
      %v3469 = vunpack.c.h.b16 %v3165
      %v3470 = vunpack.c.h.b16 %v3166
      %v3471 = vunpack.c.l.b16 %v3167
      %v3472 = vunpack.c.l.b16 %v3168
      %v3473 = vunpack.c.l.b16 %v3169
      %v3474 = vunpack.c.l.b16 %v3170
      %v3475 = vunpack.c.l.b16 %v3171
      %v3476 = vunpack.c.l.b16 %v3172
      %v3477 = vunpack.c.l.b16 %v3173
      %v3478 = vunpack.c.l.b16 %v3174
      %v3479 = vunpack.c.h.b16 %v3167
      %v3480 = vunpack.c.h.b16 %v3168
      %v3481 = vunpack.c.h.b16 %v3169
      %v3482 = vunpack.c.h.b16 %v3170
      %v3483 = vunpack.c.h.b16 %v3171
      %v3484 = vunpack.c.h.b16 %v3172
      %v3485 = vunpack.c.h.b16 %v3173
      %v3486 = vunpack.c.h.b16 %v3174
      %v3487 = vunpack.c.l.b16 %v3175
      %v3488 = vunpack.c.l.b16 %v3176
      %v3489 = vunpack.c.l.b16 %v3177
      %v3490 = vunpack.c.l.b16 %v3178
      %v3491 = vunpack.c.l.b16 %v3179
      %v3492 = vunpack.c.l.b16 %v3180
      %v3493 = vunpack.c.l.b16 %v3181
      %v3494 = vunpack.c.l.b16 %v3182
      %v3495 = vunpack.c.h.b16 %v3175
      %v3496 = vunpack.c.h.b16 %v3176
      %v3497 = vunpack.c.h.b16 %v3177
      %v3498 = vunpack.c.h.b16 %v3178
      %v3499 = vunpack.c.h.b16 %v3179
      %v3500 = vunpack.c.h.b16 %v3180
      %v3501 = vunpack.c.h.b16 %v3181
      %v3502 = vunpack.c.h.b16 %v3182
      %v3503 = vunpack.c.l.b16 %v3183
      %v3504 = vunpack.c.l.b16 %v3184
      %v3505 = vunpack.c.l.b16 %v3185
      %v3506 = vunpack.c.l.b16 %v3186
      %v3507 = vunpack.c.l.b16 %v3187
      %v3508 = vunpack.c.l.b16 %v3188
      %v3509 = vunpack.c.l.b16 %v3189
      %v3510 = vunpack.c.l.b16 %v3190
      %v3511 = vunpack.c.h.b16 %v3183
      %v3512 = vunpack.c.h.b16 %v3184
      %v3513 = vunpack.c.h.b16 %v3185
      %v3514 = vunpack.c.h.b16 %v3186
      %v3515 = vunpack.c.h.b16 %v3187
      %v3516 = vunpack.c.h.b16 %v3188
      %v3517 = vunpack.c.h.b16 %v3189
      %v3518 = vunpack.c.h.b16 %v3190
      %v3519 = vunpack.c.l.b16 %v3191
      %v3520 = vunpack.c.l.b16 %v3192
      %v3521 = vunpack.c.l.b16 %v3193
      %v3522 = vunpack.c.l.b16 %v3194
      %v3523 = vunpack.c.l.b16 %v3195
      %v3524 = vunpack.c.l.b16 %v3196
      %v3525 = vunpack.c.l.b16 %v3197
      %v3526 = vunpack.c.l.b16 %v3198
      %v3527 = vunpack.c.h.b16 %v3191
      %v3528 = vunpack.c.h.b16 %v3192
      %v3529 = vunpack.c.h.b16 %v3193
      %v3530 = vunpack.c.h.b16 %v3194
      %v3531 = vunpack.c.h.b16 %v3195
      %v3532 = vunpack.c.h.b16 %v3196
      %v3533 = vunpack.c.h.b16 %v3197
      %v3534 = vunpack.c.h.b16 %v3198
      %v3535 = vunpack.c.l.b16 %v3199
      %v3536 = vunpack.c.l.b16 %v3200
      %v3537 = vunpack.c.l.b16 %v3201
      %v3538 = vunpack.c.l.b16 %v3202
      %v3539 = vunpack.c.l.b16 %v3203
      %v3540 = vunpack.c.l.b16 %v3204
      %v3541 = vunpack.c.l.b16 %v3205
      %v3542 = vunpack.c.l.b16 %v3206
      %v3543 = vunpack.c.h.b16 %v3199
      %v3544 = vunpack.c.h.b16 %v3200
      %v3545 = vunpack.c.h.b16 %v3201
      %v3546 = vunpack.c.h.b16 %v3202
      %v3547 = vunpack.c.h.b16 %v3203
      %v3548 = vunpack.c.h.b16 %v3204
      %v3549 = vunpack.c.h.b16 %v3205
      %v3550 = vunpack.c.h.b16 %v3206
      %v3551 = vunpack.c.l.b16 %v3207
      %v3552 = vunpack.c.l.b16 %v3208
      %v3553 = vunpack.c.l.b16 %v3209
      %v3554 = vunpack.c.l.b16 %v3210
      %v3555 = vunpack.c.l.b16 %v3211
      %v3556 = vunpack.c.l.b16 %v3212
      %v3557 = vunpack.c.l.b16 %v3213
      %v3558 = vunpack.c.l.b16 %v3214
      %v3559 = vunpack.c.h.b16 %v3207
      %v3560 = vunpack.c.h.b16 %v3208
      %v3561 = vunpack.c.h.b16 %v3209
      %v3562 = vunpack.c.h.b16 %v3210
      %v3563 = vunpack.c.h.b16 %v3211
      %v3564 = vunpack.c.h.b16 %v3212
      %v3565 = vunpack.c.h.b16 %v3213
      %v3566 = vunpack.c.h.b16 %v3214
      %v3567 = vunpack.c.l.b16 %v3215
      %v3568 = vunpack.c.l.b16 %v3216
      %v3569 = vunpack.c.l.b16 %v3217
      %v3570 = vunpack.c.l.b16 %v3218
      %v3571 = vunpack.c.l.b16 %v3219
      %v3572 = vunpack.c.l.b16 %v3220
      %v3573 = vunpack.c.l.b16 %v3221
      %v3574 = vunpack.c.l.b16 %v3222
      %v3575 = vunpack.c.h.b16 %v3215
      %v3576 = vunpack.c.h.b16 %v3216
      %v3577 = vunpack.c.h.b16 %v3217
      %v3578 = vunpack.c.h.b16 %v3218
      %v3579 = vunpack.c.h.b16 %v3219
      %v3580 = vunpack.c.h.b16 %v3220
      %v3581 = vunpack.c.h.b16 %v3221
      %v3582 = vunpack.c.h.b16 %v3222
      %v3583 = vunpack.c.l.b16 %v3223
      %v3584 = vunpack.c.l.b16 %v3224
      %v3585 = vunpack.c.l.b16 %v3225
      %v3586 = vunpack.c.l.b16 %v3226
      %v3587 = vunpack.c.l.b16 %v3227
      %v3588 = vunpack.c.l.b16 %v3228
      %v3589 = vunpack.c.l.b16 %v3229
      %v3590 = vunpack.c.l.b16 %v3230
      %v3591 = vunpack.c.h.b16 %v3223
      %v3592 = vunpack.c.h.b16 %v3224
      %v3593 = vunpack.c.h.b16 %v3225
      %v3594 = vunpack.c.h.b16 %v3226
      %v3595 = vunpack.c.h.b16 %v3227
      %v3596 = vunpack.c.h.b16 %v3228
      %v3597 = vunpack.c.h.b16 %v3229
      %v3598 = vunpack.c.h.b16 %v3230
      %v3599 = vunpack.c.l.b16 %v3231
      %v3600 = vunpack.c.l.b16 %v3232
      %v3601 = vunpack.c.l.b16 %v3233
      %v3602 = vunpack.c.l.b16 %v3234
      %v3603 = vunpack.c.l.b16 %v3235
      %v3604 = vunpack.c.l.b16 %v3236
      %v3605 = vunpack.c.l.b16 %v3237
      %v3606 = vunpack.c.l.b16 %v3238
      %v3607 = vunpack.c.h.b16 %v3231
      %v3608 = vunpack.c.h.b16 %v3232
      %v3609 = vunpack.c.h.b16 %v3233
      %v3610 = vunpack.c.h.b16 %v3234
      %v3611 = vunpack.c.h.b16 %v3235
      %v3612 = vunpack.c.h.b16 %v3236
      %v3613 = vunpack.c.h.b16 %v3237
      %v3614 = vunpack.c.h.b16 %v3238
      %v3615 = vunpack.c.l.b16 %v3239
      %v3616 = vunpack.c.l.b16 %v3240
      %v3617 = vunpack.c.l.b16 %v3241
      %v3618 = vunpack.c.l.b16 %v3242
      %v3619 = vunpack.c.l.b16 %v3243
      %v3620 = vunpack.c.l.b16 %v3244
      %v3621 = vunpack.c.l.b16 %v3245
      %v3622 = vunpack.c.l.b16 %v3246
      %v3623 = vunpack.c.h.b16 %v3239
      %v3624 = vunpack.c.h.b16 %v3240
      %v3625 = vunpack.c.h.b16 %v3241
      %v3626 = vunpack.c.h.b16 %v3242
      %v3627 = vunpack.c.h.b16 %v3243
      %v3628 = vunpack.c.h.b16 %v3244
      %v3629 = vunpack.c.h.b16 %v3245
      %v3630 = vunpack.c.h.b16 %v3246
      %v3631 = vpack.c.b16 %v3376, %v3375
      %v3632 = vpack.c.b16 %v3378, %v3377
      %v3633 = vpack.c.b16 %v3380, %v3379
      %v3634 = vpack.c.b16 %v3382, %v3381
      %v3635 = vpack.c.b16 %v3384, %v3383
      %v3636 = vpack.c.b16 %v3386, %v3385
      %v3637 = vpack.c.b16 %v3388, %v3387
      %v3638 = vpack.c.b16 %v3390, %v3389
      %v3639 = vpack.c.b16 %v3392, %v3391
      %v3640 = vpack.c.b16 %v3394, %v3393
      %v3641 = vpack.c.b16 %v3396, %v3395
      %v3642 = vpack.c.b16 %v3398, %v3397
      %v3643 = vpack.c.b16 %v3400, %v3399
      %v3644 = vpack.c.b16 %v3402, %v3401
      %v3645 = vpack.c.b16 %v3404, %v3403
      %v3646 = vpack.c.b16 %v3406, %v3405
      %v3647 = vpack.c.b16 %v3408, %v3407
      %v3648 = vpack.c.b16 %v3410, %v3409
      %v3649 = vpack.c.b16 %v3412, %v3411
      %v3650 = vpack.c.b16 %v3414, %v3413
      %v3651 = vpack.c.b16 %v3416, %v3415
      %v3652 = vpack.c.b16 %v3418, %v3417
      %v3653 = vpack.c.b16 %v3420, %v3419
      %v3654 = vpack.c.b16 %v3422, %v3421
      %v3655 = vpack.c.b16 %v3424, %v3423
      %v3656 = vpack.c.b16 %v3426, %v3425
      %v3657 = vpack.c.b16 %v3428, %v3427
      %v3658 = vpack.c.b16 %v3430, %v3429
      %v3659 = vpack.c.b16 %v3432, %v3431
      %v3660 = vpack.c.b16 %v3434, %v3433
      %v3661 = vpack.c.b16 %v3436, %v3435
      %v3662 = vpack.c.b16 %v3438, %v3437
      %v3663 = vpack.c.b16 %v3440, %v3439
      %v3664 = vpack.c.b16 %v3442, %v3441
      %v3665 = vpack.c.b16 %v3444, %v3443
      %v3666 = vpack.c.b16 %v3446, %v3445
      %v3667 = vpack.c.b16 %v3448, %v3447
      %v3668 = vpack.c.b16 %v3450, %v3449
      %v3669 = vpack.c.b16 %v3452, %v3451
      %v3670 = vpack.c.b16 %v3454, %v3453
      %v3671 = vpack.c.b16 %v3456, %v3455
      %v3672 = vpack.c.b16 %v3458, %v3457
      %v3673 = vpack.c.b16 %v3460, %v3459
      %v3674 = vpack.c.b16 %v3462, %v3461
      %v3675 = vpack.c.b16 %v3464, %v3463
      %v3676 = vpack.c.b16 %v3466, %v3465
      %v3677 = vpack.c.b16 %v3468, %v3467
      %v3678 = vpack.c.b16 %v3470, %v3469
      %v3679 = vpack.c.b16 %v3472, %v3471
      %v3680 = vpack.c.b16 %v3474, %v3473
      %v3681 = vpack.c.b16 %v3476, %v3475
      %v3682 = vpack.c.b16 %v3478, %v3477
      %v3683 = vpack.c.b16 %v3480, %v3479
      %v3684 = vpack.c.b16 %v3482, %v3481
      %v3685 = vpack.c.b16 %v3484, %v3483
      %v3686 = vpack.c.b16 %v3486, %v3485
      %v3687 = vpack.c.b16 %v3488, %v3487
      %v3688 = vpack.c.b16 %v3490, %v3489
      %v3689 = vpack.c.b16 %v3492, %v3491
      %v3690 = vpack.c.b16 %v3494, %v3493
      %v3691 = vpack.c.b16 %v3496, %v3495
      %v3692 = vpack.c.b16 %v3498, %v3497
      %v3693 = vpack.c.b16 %v3500, %v3499
      %v3694 = vpack.c.b16 %v3502, %v3501
      %v3695 = vpack.c.b16 %v3504, %v3503
      %v3696 = vpack.c.b16 %v3506, %v3505
      %v3697 = vpack.c.b16 %v3508, %v3507
      %v3698 = vpack.c.b16 %v3510, %v3509
      %v3699 = vpack.c.b16 %v3512, %v3511
      %v3700 = vpack.c.b16 %v3514, %v3513
      %v3701 = vpack.c.b16 %v3516, %v3515
      %v3702 = vpack.c.b16 %v3518, %v3517
      %v3703 = vpack.c.b16 %v3520, %v3519
      %v3704 = vpack.c.b16 %v3522, %v3521
      %v3705 = vpack.c.b16 %v3524, %v3523
      %v3706 = vpack.c.b16 %v3526, %v3525
      %v3707 = vpack.c.b16 %v3528, %v3527
      %v3708 = vpack.c.b16 %v3530, %v3529
      %v3709 = vpack.c.b16 %v3532, %v3531
      %v3710 = vpack.c.b16 %v3534, %v3533
      %v3711 = vpack.c.b16 %v3536, %v3535
      %v3712 = vpack.c.b16 %v3538, %v3537
      %v3713 = vpack.c.b16 %v3540, %v3539
      %v3714 = vpack.c.b16 %v3542, %v3541
      %v3715 = vpack.c.b16 %v3544, %v3543
      %v3716 = vpack.c.b16 %v3546, %v3545
      %v3717 = vpack.c.b16 %v3548, %v3547
      %v3718 = vpack.c.b16 %v3550, %v3549
      %v3719 = vpack.c.b16 %v3552, %v3551
      %v3720 = vpack.c.b16 %v3554, %v3553
      %v3721 = vpack.c.b16 %v3556, %v3555
      %v3722 = vpack.c.b16 %v3558, %v3557
      %v3723 = vpack.c.b16 %v3560, %v3559
      %v3724 = vpack.c.b16 %v3562, %v3561
      %v3725 = vpack.c.b16 %v3564, %v3563
      %v3726 = vpack.c.b16 %v3566, %v3565
      %v3727 = vpack.c.b16 %v3568, %v3567
      %v3728 = vpack.c.b16 %v3570, %v3569
      %v3729 = vpack.c.b16 %v3572, %v3571
      %v3730 = vpack.c.b16 %v3574, %v3573
      %v3731 = vpack.c.b16 %v3576, %v3575
      %v3732 = vpack.c.b16 %v3578, %v3577
      %v3733 = vpack.c.b16 %v3580, %v3579
      %v3734 = vpack.c.b16 %v3582, %v3581
      %v3735 = vpack.c.b16 %v3584, %v3583
      %v3736 = vpack.c.b16 %v3586, %v3585
      %v3737 = vpack.c.b16 %v3588, %v3587
      %v3738 = vpack.c.b16 %v3590, %v3589
      %v3739 = vpack.c.b16 %v3592, %v3591
      %v3740 = vpack.c.b16 %v3594, %v3593
      %v3741 = vpack.c.b16 %v3596, %v3595
      %v3742 = vpack.c.b16 %v3598, %v3597
      %v3743 = vpack.c.b16 %v3600, %v3599
      %v3744 = vpack.c.b16 %v3602, %v3601
      %v3745 = vpack.c.b16 %v3604, %v3603
      %v3746 = vpack.c.b16 %v3606, %v3605
      %v3747 = vpack.c.b16 %v3608, %v3607
      %v3748 = vpack.c.b16 %v3610, %v3609
      %v3749 = vpack.c.b16 %v3612, %v3611
      %v3750 = vpack.c.b16 %v3614, %v3613
      %v3751 = vpack.c.b16 %v3616, %v3615
      %v3752 = vpack.c.b16 %v3618, %v3617
      %v3753 = vpack.c.b16 %v3620, %v3619
      %v3754 = vpack.c.b16 %v3622, %v3621
      %v3755 = vpack.c.b16 %v3624, %v3623
      %v3756 = vpack.c.b16 %v3626, %v3625
      %v3757 = vpack.c.b16 %v3628, %v3627
      %v3758 = vpack.c.b16 %v3630, %v3629
      %3887 = vst [vmem:[%s250] sm:$0xff] %v3631
      %3888 = vst [vmem:[%s250 + $0x8] sm:$0xff] %v3632
      %3889 = vst [vmem:[%s250 + $0x10] sm:$0xff] %v3633
      %3890 = vst [vmem:[%s250 + $0x18] sm:$0xff] %v3634
      %3891 = vst [vmem:[%s250 + $0x20] sm:$0xff] %v3635
      %3892 = vst [vmem:[%s250 + $0x28] sm:$0xff] %v3636
      %3893 = vst [vmem:[%s250 + $0x30] sm:$0xff] %v3637
      %3894 = vst [vmem:[%s250 + $0x38] sm:$0xff] %v3638
      %3895 = vst [vmem:[%s250 + $0x40] sm:$0xff] %v3639
      %3896 = vst [vmem:[%s250 + $0x48] sm:$0xff] %v3640
      %3897 = vst [vmem:[%s250 + $0x50] sm:$0xff] %v3641
      %3898 = vst [vmem:[%s250 + $0x58] sm:$0xff] %v3642
      %3899 = vst [vmem:[%s250 + $0x60] sm:$0xff] %v3643
      %3900 = vst [vmem:[%s250 + $0x68] sm:$0xff] %v3644
      %3901 = vst [vmem:[%s250 + $0x70] sm:$0xff] %v3645
      %3902 = vst [vmem:[%s250 + $0x78] sm:$0xff] %v3646
      %3903 = vst [vmem:[%s250 + $0x80] sm:$0xff] %v3647
      %3904 = vst [vmem:[%s250 + $0x88] sm:$0xff] %v3648
      %3905 = vst [vmem:[%s250 + $0x90] sm:$0xff] %v3649
      %3906 = vst [vmem:[%s250 + $0x98] sm:$0xff] %v3650
      %3907 = vst [vmem:[%s250 + $0xa0] sm:$0xff] %v3651
      %3908 = vst [vmem:[%s250 + $0xa8] sm:$0xff] %v3652
      %3909 = vst [vmem:[%s250 + $0xb0] sm:$0xff] %v3653
      %3910 = vst [vmem:[%s250 + $0xb8] sm:$0xff] %v3654
      %3911 = vst [vmem:[%s250 + $0xc0] sm:$0xff] %v3655
      %3912 = vst [vmem:[%s250 + $0xc8] sm:$0xff] %v3656
      %3913 = vst [vmem:[%s250 + $0xd0] sm:$0xff] %v3657
      %3914 = vst [vmem:[%s250 + $0xd8] sm:$0xff] %v3658
      %3915 = vst [vmem:[%s250 + $0xe0] sm:$0xff] %v3659
      %3916 = vst [vmem:[%s250 + $0xe8] sm:$0xff] %v3660
      %3917 = vst [vmem:[%s250 + $0xf0] sm:$0xff] %v3661
      %3918 = vst [vmem:[%s250 + $0xf8] sm:$0xff] %v3662
      %3919 = vst [vmem:[%s250 + $0x100] sm:$0xff] %v3663
      %3920 = vst [vmem:[%s250 + $0x108] sm:$0xff] %v3664
      %3921 = vst [vmem:[%s250 + $0x110] sm:$0xff] %v3665
      %3922 = vst [vmem:[%s250 + $0x118] sm:$0xff] %v3666
      %3923 = vst [vmem:[%s250 + $0x120] sm:$0xff] %v3667
      %3924 = vst [vmem:[%s250 + $0x128] sm:$0xff] %v3668
      %3925 = vst [vmem:[%s250 + $0x130] sm:$0xff] %v3669
      %3926 = vst [vmem:[%s250 + $0x138] sm:$0xff] %v3670
      %3927 = vst [vmem:[%s250 + $0x140] sm:$0xff] %v3671
      %3928 = vst [vmem:[%s250 + $0x148] sm:$0xff] %v3672
      %3929 = vst [vmem:[%s250 + $0x150] sm:$0xff] %v3673
      %3930 = vst [vmem:[%s250 + $0x158] sm:$0xff] %v3674
      %3931 = vst [vmem:[%s250 + $0x160] sm:$0xff] %v3675
      %3932 = vst [vmem:[%s250 + $0x168] sm:$0xff] %v3676
      %3933 = vst [vmem:[%s250 + $0x170] sm:$0xff] %v3677
      %3934 = vst [vmem:[%s250 + $0x178] sm:$0xff] %v3678
      %3935 = vst [vmem:[%s250 + $0x180] sm:$0xff] %v3679
      %3936 = vst [vmem:[%s250 + $0x188] sm:$0xff] %v3680
      %3937 = vst [vmem:[%s250 + $0x190] sm:$0xff] %v3681
      %3938 = vst [vmem:[%s250 + $0x198] sm:$0xff] %v3682
      %3939 = vst [vmem:[%s250 + $0x1a0] sm:$0xff] %v3683
      %3940 = vst [vmem:[%s250 + $0x1a8] sm:$0xff] %v3684
      %3941 = vst [vmem:[%s250 + $0x1b0] sm:$0xff] %v3685
      %3942 = vst [vmem:[%s250 + $0x1b8] sm:$0xff] %v3686
      %3943 = vst [vmem:[%s250 + $0x1c0] sm:$0xff] %v3687
      %3944 = vst [vmem:[%s250 + $0x1c8] sm:$0xff] %v3688
      %3945 = vst [vmem:[%s250 + $0x1d0] sm:$0xff] %v3689
      %3946 = vst [vmem:[%s250 + $0x1d8] sm:$0xff] %v3690
      %3947 = vst [vmem:[%s250 + $0x1e0] sm:$0xff] %v3691
      %3948 = vst [vmem:[%s250 + $0x1e8] sm:$0xff] %v3692
      %3949 = vst [vmem:[%s250 + $0x1f0] sm:$0xff] %v3693
      %3950 = vst [vmem:[%s250 + $0x1f8] sm:$0xff] %v3694
      %3951 = vst [vmem:[%s250 + $0x200] sm:$0xff] %v3695
      %3952 = vst [vmem:[%s250 + $0x208] sm:$0xff] %v3696
      %3953 = vst [vmem:[%s250 + $0x210] sm:$0xff] %v3697
      %3954 = vst [vmem:[%s250 + $0x218] sm:$0xff] %v3698
      %3955 = vst [vmem:[%s250 + $0x220] sm:$0xff] %v3699
      %3956 = vst [vmem:[%s250 + $0x228] sm:$0xff] %v3700
      %3957 = vst [vmem:[%s250 + $0x230] sm:$0xff] %v3701
      %3958 = vst [vmem:[%s250 + $0x238] sm:$0xff] %v3702
      %3959 = vst [vmem:[%s250 + $0x240] sm:$0xff] %v3703
      %3960 = vst [vmem:[%s250 + $0x248] sm:$0xff] %v3704
      %3961 = vst [vmem:[%s250 + $0x250] sm:$0xff] %v3705
      %3962 = vst [vmem:[%s250 + $0x258] sm:$0xff] %v3706
      %3963 = vst [vmem:[%s250 + $0x260] sm:$0xff] %v3707
      %3964 = vst [vmem:[%s250 + $0x268] sm:$0xff] %v3708
      %3965 = vst [vmem:[%s250 + $0x270] sm:$0xff] %v3709
      %3966 = vst [vmem:[%s250 + $0x278] sm:$0xff] %v3710
      %3967 = vst [vmem:[%s250 + $0x280] sm:$0xff] %v3711
      %3968 = vst [vmem:[%s250 + $0x288] sm:$0xff] %v3712
      %3969 = vst [vmem:[%s250 + $0x290] sm:$0xff] %v3713
      %3970 = vst [vmem:[%s250 + $0x298] sm:$0xff] %v3714
      %3971 = vst [vmem:[%s250 + $0x2a0] sm:$0xff] %v3715
      %3972 = vst [vmem:[%s250 + $0x2a8] sm:$0xff] %v3716
      %3973 = vst [vmem:[%s250 + $0x2b0] sm:$0xff] %v3717
      %3974 = vst [vmem:[%s250 + $0x2b8] sm:$0xff] %v3718
      %3975 = vst [vmem:[%s250 + $0x2c0] sm:$0xff] %v3719
      %3976 = vst [vmem:[%s250 + $0x2c8] sm:$0xff] %v3720
      %3977 = vst [vmem:[%s250 + $0x2d0] sm:$0xff] %v3721
      %3978 = vst [vmem:[%s250 + $0x2d8] sm:$0xff] %v3722
      %3979 = vst [vmem:[%s250 + $0x2e0] sm:$0xff] %v3723
      %3980 = vst [vmem:[%s250 + $0x2e8] sm:$0xff] %v3724
      %3981 = vst [vmem:[%s250 + $0x2f0] sm:$0xff] %v3725
      %3982 = vst [vmem:[%s250 + $0x2f8] sm:$0xff] %v3726
      %3983 = vst [vmem:[%s250 + $0x300] sm:$0xff] %v3727
      %3984 = vst [vmem:[%s250 + $0x308] sm:$0xff] %v3728
      %3985 = vst [vmem:[%s250 + $0x310] sm:$0xff] %v3729
      %3986 = vst [vmem:[%s250 + $0x318] sm:$0xff] %v3730
      %3987 = vst [vmem:[%s250 + $0x320] sm:$0xff] %v3731
      %3988 = vst [vmem:[%s250 + $0x328] sm:$0xff] %v3732
      %3989 = vst [vmem:[%s250 + $0x330] sm:$0xff] %v3733
      %3990 = vst [vmem:[%s250 + $0x338] sm:$0xff] %v3734
      %3991 = vst [vmem:[%s250 + $0x340] sm:$0xff] %v3735
      %3992 = vst [vmem:[%s250 + $0x348] sm:$0xff] %v3736
      %3993 = vst [vmem:[%s250 + $0x350] sm:$0xff] %v3737
      %3994 = vst [vmem:[%s250 + $0x358] sm:$0xff] %v3738
      %3995 = vst [vmem:[%s250 + $0x360] sm:$0xff] %v3739
      %3996 = vst [vmem:[%s250 + $0x368] sm:$0xff] %v3740
      %3997 = vst [vmem:[%s250 + $0x370] sm:$0xff] %v3741
      %3998 = vst [vmem:[%s250 + $0x378] sm:$0xff] %v3742
      %3999 = vst [vmem:[%s250 + $0x380] sm:$0xff] %v3743
      %4000 = vst [vmem:[%s250 + $0x388] sm:$0xff] %v3744
      %4001 = vst [vmem:[%s250 + $0x390] sm:$0xff] %v3745
      %4002 = vst [vmem:[%s250 + $0x398] sm:$0xff] %v3746
      %4003 = vst [vmem:[%s250 + $0x3a0] sm:$0xff] %v3747
      %4004 = vst [vmem:[%s250 + $0x3a8] sm:$0xff] %v3748
      %4005 = vst [vmem:[%s250 + $0x3b0] sm:$0xff] %v3749
      %4006 = vst [vmem:[%s250 + $0x3b8] sm:$0xff] %v3750
      %4007 = vst [vmem:[%s250 + $0x3c0] sm:$0xff] %v3751
      %4008 = vst [vmem:[%s250 + $0x3c8] sm:$0xff] %v3752
      %4009 = vst [vmem:[%s250 + $0x3d0] sm:$0xff] %v3753
      %4010 = vst [vmem:[%s250 + $0x3d8] sm:$0xff] %v3754
      %4011 = vst [vmem:[%s250 + $0x3e0] sm:$0xff] %v3755
      %4012 = vst [vmem:[%s250 + $0x3e8] sm:$0xff] %v3756
      %4013 = vst [vmem:[%s250 + $0x3f0] sm:$0xff] %v3757
      %4014 = vst [vmem:[%s250 + $0x3f8] sm:$0xff] %v3758
      %s4015 = smul.u32 32, %s16
      %p4016 = scmp.lt.s32.totalorder %s4015, 63
      %s4017 = scalar_select %p4016, %s4015, 63
      %s4018 = smul.addr %s4017, 8
      %s4019 = smul.addr %s4018, 4
      %s4020 = scalar_lea.vmem %s5, %s4019
      // Predicated region
      $region41: #{a_call__.8} parent=39 // pred_check
        %p4021 = pneg %p149
      $region42: #{a_call__.8} parent=39 // pred_check_branch
        %4023 = sbr.rel (%p4021) target = $region44
      $region43: #{a_call__.8} parent=39 // pred_region
        %s4024 = smul.u32 32, %s16
      $region44: #{a_call__.8} parent=39 // pred_fallthru
        _
    $region40: #{a_call__.8} parent=5 // pred_fallthru
      _
    %p4025 = scmp.le.s32.totalorder 2, %s11
    // Predicated region
    $region45: #{a_call__.8} parent=5 // pred_check
      %p4026 = pneg %p4025
    $region46: #{a_call__.8} parent=5 // pred_check_branch
      %4028 = sbr.rel (%p4026) target = $region48
    $region47: #{a_call__.8} parent=5 // pred_region
      %s4029 = ssub.s32 %s11, 2
      // Predicated region
      $region49: #{a_call__.8} parent=47 // pred_check
        %p4030 = pneg %p155
      $region50: #{a_call__.8} parent=47 // pred_check_branch
        %4032 = sbr.rel (%p4030) target = $region52
      $region51: #{a_call__.8} parent=47 // pred_region
        %s4033 = smul.u32 32, %s17
        %p4034 = scmp.lt.s32.totalorder %s4033, 63
        %s4035 = scalar_select %p4034, %s4033, 63
        %s4036 = smul.addr %s4035, 8
        %s4037 = smul.addr %s4036, 4
        %s4038 = scalar_lea.vmem %s5, %s4037
      $region52: #{a_call__.8} parent=47 // pred_fallthru
        _
    $region48: #{a_call__.8} parent=5 // pred_fallthru
      _
  $region6: #{a_call__.8} parent=0 // loop_footer
    %s15 = sadd.s32 1, %s11
  $region7: #{a_call__.8} parent=0 // loop_footer_branch
    %10 = sbr.rel target = $region3
  $region8: #{a_call__.8} parent=0 // loop_exit
    _

// kernel: custom-call.2
$region0: #{custom-call.2}
  %s0 = inlined_call_operand.vmem [shape: bf16[26,2,5], index: 0, kind: output, shape index: {}]

// kernel: a_call__.11
$region0: #{a_call__.11}
  #allocation0 [shape = 'u32[]', space=smem, size = 0x4, offset = 0x4, fixed_abs, tag = 'smem constant byte address 0x4 - core index']
  #allocation1 [shape = 'u32[144,128]{1,0:T(1,128)}', space=vmem, size = 0x12000, scoped, tag = 'internal scratch']
  #allocation2 [shape = 'bf16[32,128]{1,0:T(8,128)(2,1)}', space=vmem, size = 0x2000, scoped, tag = 'scratch operand']
  %s0 = inlined_call_operand.vmem [shape: bf16[16,8,128], index: 0, kind: input, shape index: {}]
  %s1 = inlined_call_operand.vmem [shape: bf16[16,24,128], index: 1, kind: input, shape index: {}]
  %s2 = inlined_call_operand.vmem [shape: bf16[128,128], index: 2, kind: input, shape index: {}]
  %s3 = inlined_call_operand.vmem [shape: f32[1,128], index: 3, kind: input, shape index: {}]
  %s4 = inlined_call_operand.vmem [shape: bf16[16,4,8,128], index: 4, kind: output, shape index: {}]
  %s5 = sld [smem:[#allocation0]]
  $region49: #{a_call__.11} parent=0
    _
  %s7 = ssub.s32 1, %s5
  %s8 = scalar_select 0, %s7, %s5
  loop: start=0, step=1, limit=18
  $region2: #{a_call__.11} parent=0 // loop_pre_header
    _
  $region3: #{a_call__.11} parent=0 // loop_header
    %s10 = sphi 0, %s14
    %p11 = scmp.ge.s32.totalorder %s10, 18
    %s17 = sphi 0, %s29
    %s18 = sphi 0, %s25
    %s19 = sphi 0, %s17
    %s20 = sphi 0, %s18
    %s21 = sphi 0, %s19
    %s22 = sphi 0, %s20
    %s34 = sphi 0, %s36
    %s37 = sphi 0, %s34
    %s38 = sphi 0, %s37
    %s54 = sphi 0, %s38
    %s60 = sphi 0, %s62
    %s63 = sphi 0, %s60
    %s64 = sphi 0, %s63
    %s80 = sphi 0, %s64
    %s84 = sphi 0, %s84
    %s86 = sphi 0, %s84
    %s87 = sphi 0, %s86
    %s101 = sphi 0, %s87
    %s105 = sphi 0, %s105
    %s107 = sphi 0, %s105
    %s108 = sphi 0, %s107
    %s122 = sphi 0, %s108
    %s130 = sphi 0, %s132
    %s133 = sphi 0, %s130
    %s134 = sphi 0, %s133
    %s150 = sphi 0, %s134
  $region4: #{a_call__.11} parent=0 // loop_header_branch
    %13 = sbr.rel (%p11) target = $region8
  $region5: #{a_call__.11} parent=0 // loop_body
    %s15 = ssub.s32 %s10, 1
    %s16 = ssub.s32 %s10, 2
    %s23 = sadd.s32 1, %s18
    %p24 = scmp.ge.s32.totalorder %s23, 1
    %s25 = scalar_select %p24, 0, %s23
    %s26 = sadd.s32 1, %s17
    %s27 = scalar_select %p24, %s26, %s17
    %p28 = scmp.ge.s32.totalorder %s27, 16
    %s29 = scalar_select %p28, 0, %s27
    %s30 = ssub.s32 %s17, %s29
    %s31 = ssub.s32 %s18, %s25
    %s32 = sor.u32 %s30, %s31
    %p33 = scmp.eq.s32.totalorder %s32, 0
    %s35 = sadd.s32 %s34, 1
    %s36 = scalar_select %p33, %s34, %s35
    %p39 = pneg %p33
    %p40 = scmp.eq.s32.totalorder %s10, 15
    %p41 = por %p39, %p40
    %p42 = scmp.ne.s32.totalorder %s34, %s37
    %p43 = scmp.eq.s32.totalorder %s10, 0
    %p44 = por %p42, %p43
    %p45 = scmp.ne.s32.totalorder %s34, %s37
    %p46 = scmp.eq.s32.totalorder %s15, 15
    %p47 = por %p45, %p46
    %p48 = scmp.ne.s32.totalorder %s37, %s38
    %p49 = scmp.eq.s32.totalorder %s15, 0
    %p50 = por %p48, %p49
    %p51 = scmp.ne.s32.totalorder %s37, %s38
    %p52 = scmp.eq.s32.totalorder %s16, 15
    %p53 = por %p51, %p52
    %p55 = scmp.ne.s32.totalorder %s38, %s54
    %p56 = scmp.eq.s32.totalorder %s16, 0
    %p57 = por %p55, %p56
    %s58 = ssub.s32 %s17, %s29
    %p59 = scmp.eq.s32.totalorder %s58, 0
    %s61 = sadd.s32 %s60, 1
    %s62 = scalar_select %p59, %s60, %s61
    %p65 = pneg %p59
    %p66 = scmp.eq.s32.totalorder %s10, 15
    %p67 = por %p65, %p66
    %p68 = scmp.ne.s32.totalorder %s60, %s63
    %p69 = scmp.eq.s32.totalorder %s10, 0
    %p70 = por %p68, %p69
    %p71 = scmp.ne.s32.totalorder %s60, %s63
    %p72 = scmp.eq.s32.totalorder %s15, 15
    %p73 = por %p71, %p72
    %p74 = scmp.ne.s32.totalorder %s63, %s64
    %p75 = scmp.eq.s32.totalorder %s15, 0
    %p76 = por %p74, %p75
    %p77 = scmp.ne.s32.totalorder %s63, %s64
    %p78 = scmp.eq.s32.totalorder %s16, 15
    %p79 = por %p77, %p78
    %p81 = scmp.ne.s32.totalorder %s64, %s80
    %p82 = scmp.eq.s32.totalorder %s16, 0
    %p83 = por %p81, %p82
    %s85 = sadd.s32 %s84, 1
    %p88 = scmp.eq.s32.totalorder %s10, 15
    %p89 = scmp.ne.s32.totalorder %s84, %s86
    %p90 = scmp.eq.s32.totalorder %s10, 0
    %p91 = por %p89, %p90
    %p92 = scmp.ne.s32.totalorder %s84, %s86
    %p93 = scmp.eq.s32.totalorder %s15, 15
    %p94 = por %p92, %p93
    %p95 = scmp.ne.s32.totalorder %s86, %s87
    %p96 = scmp.eq.s32.totalorder %s15, 0
    %p97 = por %p95, %p96
    %p98 = scmp.ne.s32.totalorder %s86, %s87
    %p99 = scmp.eq.s32.totalorder %s16, 15
    %p100 = por %p98, %p99
    %p102 = scmp.ne.s32.totalorder %s87, %s101
    %p103 = scmp.eq.s32.totalorder %s16, 0
    %p104 = por %p102, %p103
    %s106 = sadd.s32 %s105, 1
    %p109 = scmp.eq.s32.totalorder %s10, 15
    %p110 = scmp.ne.s32.totalorder %s105, %s107
    %p111 = scmp.eq.s32.totalorder %s10, 0
    %p112 = por %p110, %p111
    %p113 = scmp.ne.s32.totalorder %s105, %s107
    %p114 = scmp.eq.s32.totalorder %s15, 15
    %p115 = por %p113, %p114
    %p116 = scmp.ne.s32.totalorder %s107, %s108
    %p117 = scmp.eq.s32.totalorder %s15, 0
    %p118 = por %p116, %p117
    %p119 = scmp.ne.s32.totalorder %s107, %s108
    %p120 = scmp.eq.s32.totalorder %s16, 15
    %p121 = por %p119, %p120
    %p123 = scmp.ne.s32.totalorder %s108, %s122
    %p124 = scmp.eq.s32.totalorder %s16, 0
    %p125 = por %p123, %p124
    %s126 = ssub.s32 %s17, %s29
    %s127 = ssub.s32 %s18, %s25
    %s128 = sor.u32 %s126, %s127
    %p129 = scmp.eq.s32.totalorder %s128, 0
    %s131 = sadd.s32 %s130, 1
    %s132 = scalar_select %p129, %s130, %s131
    %p135 = pneg %p129
    %p136 = scmp.eq.s32.totalorder %s10, 15
    %p137 = por %p135, %p136
    %p138 = scmp.ne.s32.totalorder %s130, %s133
    %p139 = scmp.eq.s32.totalorder %s10, 0
    %p140 = por %p138, %p139
    %p141 = scmp.ne.s32.totalorder %s130, %s133
    %p142 = scmp.eq.s32.totalorder %s15, 15
    %p143 = por %p141, %p142
    %p144 = scmp.ne.s32.totalorder %s133, %s134
    %p145 = scmp.eq.s32.totalorder %s15, 0
    %p146 = por %p144, %p145
    %p147 = scmp.ne.s32.totalorder %s133, %s134
    %p148 = scmp.eq.s32.totalorder %s16, 15
    %p149 = por %p147, %p148
    %p151 = scmp.ne.s32.totalorder %s134, %s150
    %p152 = scmp.eq.s32.totalorder %s16, 0
    %p153 = por %p151, %p152
    %p154 = scmp.le.s32.totalorder 1, %s10
    %p155 = scmp.lt.s32.totalorder %s10, 17
    %p156 = pnand %p154, %p155
    %p157 = pneg %p156
    // Predicated region
    $region9: #{a_call__.11} parent=5 // pred_check
      _
    $region10: #{a_call__.11} parent=5 // pred_check_branch
      %159 = sbr.rel (%p156) target = $region12
    $region11: #{a_call__.11} parent=5 // pred_region
      %s160 = ssub.s32 %s10, 1
      // Predicated region
      $region13: #{a_call__.11} parent=11 // pred_check
        %p161 = pneg %p97
      $region14: #{a_call__.11} parent=11 // pred_check_branch
        %163 = sbr.rel (%p161) target = $region16
      $region15: #{a_call__.11} parent=11 // pred_region
        _
      $region16: #{a_call__.11} parent=11 // pred_fallthru
        _
      // Predicated region
      $region17: #{a_call__.11} parent=11 // pred_check
        %p164 = pneg %p118
      $region18: #{a_call__.11} parent=11 // pred_check_branch
        %166 = sbr.rel (%p164) target = $region20
      $region19: #{a_call__.11} parent=11 // pred_region
        _
      $region20: #{a_call__.11} parent=11 // pred_fallthru
        _
    $region12: #{a_call__.11} parent=5 // pred_fallthru
      _
    %p167 = scmp.lt.s32.totalorder %s10, 16
    // Predicated region
    $region21: #{a_call__.11} parent=5 // pred_check
      %p168 = pneg %p167
    $region22: #{a_call__.11} parent=5 // pred_check_branch
      %170 = sbr.rel (%p168) target = $region24
    $region23: #{a_call__.11} parent=5 // pred_region
      // Predicated region
      $region25: #{a_call__.11} parent=23 // pred_check
        %p171 = pneg %p44
      $region26: #{a_call__.11} parent=23 // pred_check_branch
        %173 = sbr.rel (%p171) target = $region28
      $region27: #{a_call__.11} parent=23 // pred_region
        %p174 = scmp.lt.s32.totalorder %s17, 15
        %s175 = scalar_select %p174, %s17, 15
        %p176 = scmp.lt.s32.totalorder %s18, 0
        %s177 = scalar_select %p176, %s18, 0
        %s178 = sadd.s32 %s177, %s175
        %s179 = smul.addr %s178, 4
        %s180 = scalar_lea.vmem %s0, %s179
      $region28: #{a_call__.11} parent=23 // pred_fallthru
        _
      // Predicated region
      $region29: #{a_call__.11} parent=23 // pred_check
        %p181 = pneg %p70
      $region30: #{a_call__.11} parent=23 // pred_check_branch
        %183 = sbr.rel (%p181) target = $region32
      $region31: #{a_call__.11} parent=23 // pred_region
        %p184 = scmp.lt.s32.totalorder %s17, 15
        %s185 = scalar_select %p184, %s17, 15
        %s186 = smul.addr %s185, 3
        %s187 = smul.addr %s186, 4
        %s188 = scalar_lea.vmem %s1, %s187
      $region32: #{a_call__.11} parent=23 // pred_fallthru
        _
    $region24: #{a_call__.11} parent=5 // pred_fallthru
      _
    %p189 = scmp.le.s32.totalorder 1, %s10
    %p190 = scmp.lt.s32.totalorder %s10, 17
    %p191 = pnand %p189, %p190
    %p192 = pneg %p191
    // Predicated region
    $region33: #{a_call__.11} parent=5 // pred_check
      _
    $region34: #{a_call__.11} parent=5 // pred_check_branch
      %194 = sbr.rel (%p191) target = $region36
    $region35: #{a_call__.11} parent=5 // pred_region
      %s195 = ssub.s32 %s10, 1
      %p196 = scmp.lt.s32.totalorder %s19, 15
      %s197 = scalar_select %p196, %s19, 15
      %p198 = scmp.lt.s32.totalorder %s20, 0
      %s199 = scalar_select %p198, %s20, 0
      %s200 = sadd.s32 %s199, %s197
      %s201 = smul.addr %s200, 4
      %s202 = scalar_lea.vmem %s0, %s201
      %p203 = pneg %p50
      %p204 = pneg %p47
      %p205 = scmp.lt.s32.totalorder %s19, 15
      %s206 = scalar_select %p205, %s19, 15
      %s207 = smul.addr %s206, 3
      %s208 = smul.addr %s207, 4
      %s209 = scalar_lea.vmem %s1, %s208
      %p210 = pneg %p76
      %p211 = pneg %p73
      %p212 = pneg %p97
      %p213 = pneg %p94
      %p214 = pneg %p118
      %p215 = pneg %p115
      %p216 = pneg %p146
      %p217 = pneg %p143
      %p218 = scmp.lt.s32.totalorder %s19, 15
      %s219 = scalar_select %p218, %s19, 15
      %p220 = scmp.lt.s32.totalorder %s20, 0
      %s221 = scalar_select %p220, %s20, 0
      %s222 = smul.addr %s219, 4
      %s223 = sadd.s32 %s221, %s222
      %s224 = smul.addr %s223, 4
      %s225 = scalar_lea.vmem %s4, %s224
      %p226 = scmp.lt.s32.totalorder %s19, 15
      %s227 = scalar_select %p226, %s19, 15
      %p228 = scmp.lt.s32.totalorder %s20, 0
      %s229 = scalar_select %p228, %s20, 0
      %s230 = sadd.s32 %s229, %s227
      %s231 = smul.addr %s230, 4
      %s232 = scalar_lea.vmem %s0, %s231
      %p233 = scmp.lt.s32.totalorder %s19, 15
      %s234 = scalar_select %p233, %s19, 15
      %s235 = smul.addr %s234, 3
      %s236 = smul.addr %s235, 4
      %s237 = scalar_lea.vmem %s1, %s236
      %p238 = scmp.lt.s32.totalorder %s19, 15
      %s239 = scalar_select %p238, %s19, 15
      %p240 = scmp.lt.s32.totalorder %s20, 0
      %s241 = scalar_select %p240, %s20, 0
      %s242 = smul.addr %s239, 4
      %s243 = sadd.s32 %s241, %s242
      %s244 = smul.addr %s243, 4
      %s245 = scalar_lea.vmem %s4, %s244
      %s247 = smul.u32 %s20, 8
      %v248 = vld [vmem:[%s232] sm:$0xf]
      %s249 = sshra.s32 %s247, 3
      %s250 = sand.u32 %s247, 7
      %s251 = smul.addr %s249, 4
      %s252 = scalar_lea.vmem %s237, %s251
      %v253 = vld [vmem:[%s252] sm:$0xf]
      %v254 = vld [vmem:[%s252 + $0x4] sm:$0xf]
      %v255 = vadd.bf16 %v248, %v253
      %v256 = vtanh.bf16.pop %v255
      %257 = vst [vmem:[#allocation2] sm:$0xf] %v256
      %vm258 = vsmask.f32 3328
      %vm259 = vsmask.f32 7440
      %vm260 = vmor %vm258, %vm259
      %v262 = vshrl.u32 %v253, 16
      %v264 = vrot.slane %v262, 4
      %v265 = vshll.u32 %v253, 16
      %v267 = vrot.slane %v265, 5
      %v268 = vor.u32 %v264, %v267
      %v269 = vrot.slane %v268, 4
      %v271 = vshll.u32 %v254, 16
      %v273 = vrot.slane %v271, 5
      %v274 = vsel %vm260, %v269, %v273
      %v276 = vadd.bf16 %v248, %v274
      %v277 = vtanh.bf16.pop %v276
      %278 = vst [vmem:[#allocation2 + $0x4] sm:$0xf] %v277
      %vm281 = vcmask 1042432
      %vm282 = vcmask 1046532
      %vm283 = vmor %vm281, %vm282
      %v284 = vrot.slane %v253, 5
      %v285 = vrot.slane %v284, 4
      %v286 = vrot.slane %v254, 5
      %v287 = vsel %vm283, %v285, %v286
      %v289 = vadd.bf16 %v248, %v287
      %v290 = vtanh.bf16.pop %v289
      %291 = vst [vmem:[#allocation2 + $0x8] sm:$0xf] %v290
      %vm292 = vsmask.f32 2304
      %vm293 = vsmask.f32 6416
      %vm294 = vmor %vm292, %vm293
      %v295 = vrot.slane %v262, 5
      %v296 = vrot.slane %v265, 6
      %v297 = vor.u32 %v295, %v296
      %v298 = vrot.slane %v297, 4
      %v299 = vshrl.u32 %v254, 16
      %v301 = vrot.slane %v299, 5
      %v302 = vrot.slane %v271, 6
      %v303 = vor.u32 %v301, %v302
      %v304 = vsel %vm294, %v298, %v303
      %v306 = vadd.bf16 %v248, %v304
      %v307 = vtanh.bf16.pop %v306
      %308 = vst [vmem:[#allocation2 + $0xc] sm:$0xf] %v307
      %v309 = vld [vmem:[#allocation2] sm:$0xf]
      %v310 = vld [vmem:[#allocation2 + $0x4] sm:$0xf]
      %v311 = vld [vmem:[#allocation2 + $0x8] sm:$0xf]
      %v312 = vld [vmem:[#allocation2 + $0xc] sm:$0xf]
      %v313 = vld [vmem:[%s2] sm:$0xf]
      %v314 = vld [vmem:[%s2 + $0x4] sm:$0xf]
      %v315 = vld [vmem:[%s2 + $0x8] sm:$0xf]
      %v316 = vld [vmem:[%s2 + $0xc] sm:$0xf]
      %v317 = vld [vmem:[%s2 + $0x10] sm:$0xf]
      %v318 = vld [vmem:[%s2 + $0x14] sm:$0xf]
      %v319 = vld [vmem:[%s2 + $0x18] sm:$0xf]
      %v320 = vld [vmem:[%s2 + $0x1c] sm:$0xf]
      %v321 = vld [vmem:[%s2 + $0x20] sm:$0xf]
      %v322 = vld [vmem:[%s2 + $0x24] sm:$0xf]
      %v323 = vld [vmem:[%s2 + $0x28] sm:$0xf]
      %v324 = vld [vmem:[%s2 + $0x2c] sm:$0xf]
      %v325 = vld [vmem:[%s2 + $0x30] sm:$0xf]
      %v326 = vld [vmem:[%s2 + $0x34] sm:$0xf]
      %v327 = vld [vmem:[%s2 + $0x38] sm:$0xf]
      %v328 = vld [vmem:[%s2 + $0x3c] sm:$0xf]
      %v329 = vld [vmem:[%s3] sm:$0x1]
      %v331 = vlaneseq
      %v332 = vshrl.u32 %v331, 7
      %v333 = vsub.s32 0, %v332
      %v334 = vrot.slane %v329, %v333
      %v340 = vunpack.c.l.b16 %v309
      %v341 = vunpack.c.l.b16 %v310
      %v342 = vunpack.c.l.b16 %v311
      %v343 = vunpack.c.l.b16 %v312
      %v344 = vpack.c.b16 %v341, %v340
      %v345 = vpack.c.b16 %v343, %v342
      %v364 = vunpack.c.l.b16 %v313
      %v365 = vunpack.c.l.b16 %v314
      %v366 = vunpack.c.l.b16 %v315
      %v367 = vunpack.c.l.b16 %v316
      %v368 = vunpack.c.l.b16 %v317
      %v369 = vunpack.c.l.b16 %v318
      %v370 = vunpack.c.l.b16 %v319
      %v371 = vunpack.c.l.b16 %v320
      %v372 = vunpack.c.l.b16 %v321
      %v373 = vunpack.c.l.b16 %v322
      %v374 = vunpack.c.l.b16 %v323
      %v375 = vunpack.c.l.b16 %v324
      %v376 = vunpack.c.l.b16 %v325
      %v377 = vunpack.c.l.b16 %v326
      %v378 = vunpack.c.l.b16 %v327
      %v379 = vunpack.c.l.b16 %v328
      %v380 = vpack.c.b16 %v365, %v364
      %v381 = vpack.c.b16 %v367, %v366
      %v382 = vpack.c.b16 %v369, %v368
      %v383 = vpack.c.b16 %v371, %v370
      %v384 = vpack.c.b16 %v373, %v372
      %v385 = vpack.c.b16 %v375, %v374
      %v386 = vpack.c.b16 %v377, %v376
      %v387 = vpack.c.b16 %v379, %v378
      %396 = vmatprep.subr.bf16.mxu0 0
      %397 = vmatpush1.bf16.msra.mxu0 %v387
      %398 = vmatprep.subr.bf16.mxu0 0
      %399 = vmatpush1.bf16.msra.mxu0 %v386
      %400 = vmatprep.subr.bf16.mxu0 0
      %401 = vmatpush1.bf16.msra.mxu0 %v385
      %402 = vmatprep.subr.bf16.mxu0 0
      %403 = vmatpush1.bf16.msra.mxu0 %v384
      %404 = vmatprep.subr.bf16.mxu0 0
      %405 = vmatpush1.bf16.msra.mxu0 %v383
      %406 = vmatprep.subr.bf16.mxu0 0
      %407 = vmatpush1.bf16.msra.mxu0 %v382
      %408 = vmatprep.subr.bf16.mxu0 0
      %409 = vmatpush1.bf16.msra.mxu0 %v381
      %410 = vmatprep.subr.bf16.mxu0 0
      %411 = vmatpush1.bf16.msra.mxu0 %v380
      %412 = vmatprep.subr.bf16.mxu0 0
      %413 = vmatpush2.bf16.msra.mxu0 0
      %414 = vmatprep.subr.bf16.mxu0 0
      %415 = vmatpush2.bf16.msra.mxu0 0
      %416 = vmatprep.subr.bf16.mxu0 0
      %417 = vmatpush2.bf16.msra.mxu0 0
      %418 = vmatprep.subr.bf16.mxu0 0
      %419 = vmatpush2.bf16.msra.mxu0 0
      %420 = vmatprep.subr.bf16.mxu0 0
      %421 = vmatpush2.bf16.msra.mxu0 0
      %422 = vmatprep.subr.bf16.mxu0 0
      %423 = vmatpush2.bf16.msra.mxu0 0
      %424 = vmatprep.subr.bf16.mxu0 0
      %425 = vmatpush2.bf16.msra.mxu0 0
      %426 = vmatprep.subr.bf16.mxu0 0
      %427 = vmatpush2.bf16.msra.mxu0 0
      %428 = vmatprep.mubr.bf16.mxu0 0
      %429 = vmatmul.mubr.bf16.gmra.mxu0 %v344
      %v430 = vpop.f32.mrf.mxu0
      %v431 = vadd.f32 %v334, %v430
      %v432 = vpop.f32.mrf.mxu0
      %v433 = vpop.f32.mrf.mxu0
      %v434 = vadd.f32 %v334, %v433
      %v435 = vpop.f32.mrf.mxu0
      %436 = vmatprep.mubr.bf16.mxu0 0
      %437 = vmatmul.mubr.bf16.gmra.mxu0 %v345
      %v438 = vpop.f32.mrf.mxu0
      %v439 = vadd.f32 %v334, %v438
      %v440 = vpop.f32.mrf.mxu0
      %v441 = vpop.f32.mrf.mxu0
      %v442 = vadd.f32 %v334, %v441
      %v443 = vpop.f32.mrf.mxu0
      %444 = vdwg.mxu0
      %v445 = vpack.c.bf16 %v431, %v431
      %v446 = vpack.c.bf16 %v434, %v434
      %v447 = vpack.c.bf16 %v439, %v439
      %v448 = vpack.c.bf16 %v442, %v442
      %449 = vst [vmem:[%s245] sm:$0xf] %v445
      %450 = vst [vmem:[%s245 + $0x4] sm:$0xf] %v446
      %451 = vst [vmem:[%s245 + $0x8] sm:$0xf] %v447
      %452 = vst [vmem:[%s245 + $0xc] sm:$0xf] %v448
      %p453 = scmp.lt.s32.totalorder %s19, 15
      %s454 = scalar_select %p453, %s19, 15
      %p455 = scmp.lt.s32.totalorder %s20, 0
      %s456 = scalar_select %p455, %s20, 0
      %s457 = smul.addr %s454, 4
      %s458 = sadd.s32 %s456, %s457
      %s459 = smul.addr %s458, 4
      %s460 = scalar_lea.vmem %s4, %s459
      // Predicated region
      $region37: #{a_call__.11} parent=35 // pred_check
        %p461 = pneg %p143
      $region38: #{a_call__.11} parent=35 // pred_check_branch
        %463 = sbr.rel (%p461) target = $region40
      $region39: #{a_call__.11} parent=35 // pred_region
        _
      $region40: #{a_call__.11} parent=35 // pred_fallthru
        _
    $region36: #{a_call__.11} parent=5 // pred_fallthru
      _
    %p464 = scmp.le.s32.totalorder 2, %s10
    // Predicated region
    $region41: #{a_call__.11} parent=5 // pred_check
      %p465 = pneg %p464
    $region42: #{a_call__.11} parent=5 // pred_check_branch
      %467 = sbr.rel (%p465) target = $region44
    $region43: #{a_call__.11} parent=5 // pred_region
      %s468 = ssub.s32 %s10, 2
      // Predicated region
      $region45: #{a_call__.11} parent=43 // pred_check
        %p469 = pneg %p149
      $region46: #{a_call__.11} parent=43 // pred_check_branch
        %471 = sbr.rel (%p469) target = $region48
      $region47: #{a_call__.11} parent=43 // pred_region
        %p472 = scmp.lt.s32.totalorder %s21, 15
        %s473 = scalar_select %p472, %s21, 15
        %p474 = scmp.lt.s32.totalorder %s22, 0
        %s475 = scalar_select %p474, %s22, 0
        %s476 = smul.addr %s473, 4
        %s477 = sadd.s32 %s475, %s476
        %s478 = smul.addr %s477, 4
        %s479 = scalar_lea.vmem %s4, %s478
      $region48: #{a_call__.11} parent=43 // pred_fallthru
        _
    $region44: #{a_call__.11} parent=5 // pred_fallthru
      _
  $region6: #{a_call__.11} parent=0 // loop_footer
    %s14 = sadd.s32 1, %s10
  $region7: #{a_call__.11} parent=0 // loop_footer_branch
    %9 = sbr.rel target = $region3
  $region8: #{a_call__.11} parent=0 // loop_exit
    _

// kernel: a_call__.10
$region0: #{a_call__.10}
  #allocation0 [shape = 'u32[]', space=smem, size = 0x4, offset = 0x4, fixed_abs, tag = 'smem constant byte address 0x4 - core index']
  #allocation1 [shape = 'u32[144,128]{1,0:T(1,128)}', space=vmem, size = 0x12000, scoped, tag = 'internal scratch']
  %s0 = inlined_call_operand.vmem [shape: bf16[128,1024], index: 0, kind: input, shape index: {}]
  %s1 = inlined_call_operand.vmem [shape: bf16[1024,128], index: 1, kind: input, shape index: {}]
  %s2 = inlined_call_operand.vmem [shape: f32[1,128], index: 2, kind: input, shape index: {}]
  %s3 = inlined_call_operand.vmem [shape: bf16[128,256], index: 3, kind: input, shape index: {}]
  %s4 = inlined_call_operand.vmem [shape: f32[1,128], index: 4, kind: input, shape index: {}]
  %s5 = inlined_call_operand.vmem [shape: bf16[128,128], index: 5, kind: output, shape index: {0}]
  %s6 = inlined_call_operand.vmem [shape: bf16[128,128], index: 6, kind: output, shape index: {1}]
  %7 = xla_tuple %s5, %s6
  %s8 = sld [smem:[#allocation0]]
  $region38: #{a_call__.10} parent=0
    _
  %s10 = ssub.s32 1, %s8
  %s11 = scalar_select 0, %s10, %s8
  // Predicated region
  $region2: #{a_call__.10} parent=0 // pred_check
    _
  $region3: #{a_call__.10} parent=0 // pred_check_branch
    %13 = sbr.rel (0) target = $region5
  $region4: #{a_call__.10} parent=0 // pred_region
    _
  $region5: #{a_call__.10} parent=0 // pred_fallthru
    _
  // Predicated region
  $region6: #{a_call__.10} parent=0 // pred_check
    _
  $region7: #{a_call__.10} parent=0 // pred_check_branch
    %15 = sbr.rel (0) target = $region9
  $region8: #{a_call__.10} parent=0 // pred_region
    _
  $region9: #{a_call__.10} parent=0 // pred_fallthru
    _
  // Predicated region
  $region10: #{a_call__.10} parent=0 // pred_check
    _
  $region11: #{a_call__.10} parent=0 // pred_check_branch
    %17 = sbr.rel (0) target = $region13
  $region12: #{a_call__.10} parent=0 // pred_region
    _
  $region13: #{a_call__.10} parent=0 // pred_fallthru
    _
  // Predicated region
  $region14: #{a_call__.10} parent=0 // pred_check
    _
  $region15: #{a_call__.10} parent=0 // pred_check_branch
    %19 = sbr.rel (0) target = $region17
  $region16: #{a_call__.10} parent=0 // pred_region
    _
  $region17: #{a_call__.10} parent=0 // pred_fallthru
    _
  // Predicated region
  $region18: #{a_call__.10} parent=0 // pred_check
    _
  $region19: #{a_call__.10} parent=0 // pred_check_branch
    %21 = sbr.rel (0) target = $region21
  $region20: #{a_call__.10} parent=0 // pred_region
    _
  $region21: #{a_call__.10} parent=0 // pred_fallthru
    _
  %v23 = vld [vmem:[%s0] sm:$0xff]
  %v24 = vld [vmem:[%s0 + $0x8] sm:$0xff]
  %v25 = vld [vmem:[%s0 + $0x10] sm:$0xff]
  %v26 = vld [vmem:[%s0 + $0x18] sm:$0xff]
  %v27 = vld [vmem:[%s0 + $0x20] sm:$0xff]
  %v28 = vld [vmem:[%s0 + $0x28] sm:$0xff]
  %v29 = vld [vmem:[%s0 + $0x30] sm:$0xff]
  %v30 = vld [vmem:[%s0 + $0x38] sm:$0xff]
  %v31 = vld [vmem:[%s0 + $0x40] sm:$0xff]
  %v32 = vld [vmem:[%s0 + $0x48] sm:$0xff]
  %v33 = vld [vmem:[%s0 + $0x50] sm:$0xff]
  %v34 = vld [vmem:[%s0 + $0x58] sm:$0xff]
  %v35 = vld [vmem:[%s0 + $0x60] sm:$0xff]
  %v36 = vld [vmem:[%s0 + $0x68] sm:$0xff]
  %v37 = vld [vmem:[%s0 + $0x70] sm:$0xff]
  %v38 = vld [vmem:[%s0 + $0x78] sm:$0xff]
  %v39 = vld [vmem:[%s0 + $0x80] sm:$0xff]
  %v40 = vld [vmem:[%s0 + $0x88] sm:$0xff]
  %v41 = vld [vmem:[%s0 + $0x90] sm:$0xff]
  %v42 = vld [vmem:[%s0 + $0x98] sm:$0xff]
  %v43 = vld [vmem:[%s0 + $0xa0] sm:$0xff]
  %v44 = vld [vmem:[%s0 + $0xa8] sm:$0xff]
  %v45 = vld [vmem:[%s0 + $0xb0] sm:$0xff]
  %v46 = vld [vmem:[%s0 + $0xb8] sm:$0xff]
  %v47 = vld [vmem:[%s0 + $0xc0] sm:$0xff]
  %v48 = vld [vmem:[%s0 + $0xc8] sm:$0xff]
  %v49 = vld [vmem:[%s0 + $0xd0] sm:$0xff]
  %v50 = vld [vmem:[%s0 + $0xd8] sm:$0xff]
  %v51 = vld [vmem:[%s0 + $0xe0] sm:$0xff]
  %v52 = vld [vmem:[%s0 + $0xe8] sm:$0xff]
  %v53 = vld [vmem:[%s0 + $0xf0] sm:$0xff]
  %v54 = vld [vmem:[%s0 + $0xf8] sm:$0xff]
  %v55 = vld [vmem:[%s0 + $0x100] sm:$0xff]
  %v56 = vld [vmem:[%s0 + $0x108] sm:$0xff]
  %v57 = vld [vmem:[%s0 + $0x110] sm:$0xff]
  %v58 = vld [vmem:[%s0 + $0x118] sm:$0xff]
  %v59 = vld [vmem:[%s0 + $0x120] sm:$0xff]
  %v60 = vld [vmem:[%s0 + $0x128] sm:$0xff]
  %v61 = vld [vmem:[%s0 + $0x130] sm:$0xff]
  %v62 = vld [vmem:[%s0 + $0x138] sm:$0xff]
  %v63 = vld [vmem:[%s0 + $0x140] sm:$0xff]
  %v64 = vld [vmem:[%s0 + $0x148] sm:$0xff]
  %v65 = vld [vmem:[%s0 + $0x150] sm:$0xff]
  %v66 = vld [vmem:[%s0 + $0x158] sm:$0xff]
  %v67 = vld [vmem:[%s0 + $0x160] sm:$0xff]
  %v68 = vld [vmem:[%s0 + $0x168] sm:$0xff]
  %v69 = vld [vmem:[%s0 + $0x170] sm:$0xff]
  %v70 = vld [vmem:[%s0 + $0x178] sm:$0xff]
  %v71 = vld [vmem:[%s0 + $0x180] sm:$0xff]
  %v72 = vld [vmem:[%s0 + $0x188] sm:$0xff]
  %v73 = vld [vmem:[%s0 + $0x190] sm:$0xff]
  %v74 = vld [vmem:[%s0 + $0x198] sm:$0xff]
  %v75 = vld [vmem:[%s0 + $0x1a0] sm:$0xff]
  %v76 = vld [vmem:[%s0 + $0x1a8] sm:$0xff]
  %v77 = vld [vmem:[%s0 + $0x1b0] sm:$0xff]
  %v78 = vld [vmem:[%s0 + $0x1b8] sm:$0xff]
  %v79 = vld [vmem:[%s0 + $0x1c0] sm:$0xff]
  %v80 = vld [vmem:[%s0 + $0x1c8] sm:$0xff]
  %v81 = vld [vmem:[%s0 + $0x1d0] sm:$0xff]
  %v82 = vld [vmem:[%s0 + $0x1d8] sm:$0xff]
  %v83 = vld [vmem:[%s0 + $0x1e0] sm:$0xff]
  %v84 = vld [vmem:[%s0 + $0x1e8] sm:$0xff]
  %v85 = vld [vmem:[%s0 + $0x1f0] sm:$0xff]
  %v86 = vld [vmem:[%s0 + $0x1f8] sm:$0xff]
  %v87 = vld [vmem:[%s1] sm:$0xf]
  %v88 = vld [vmem:[%s1 + $0x4] sm:$0xf]
  %v89 = vld [vmem:[%s1 + $0x8] sm:$0xf]
  %v90 = vld [vmem:[%s1 + $0xc] sm:$0xf]
  %v91 = vld [vmem:[%s1 + $0x10] sm:$0xf]
  %v92 = vld [vmem:[%s1 + $0x14] sm:$0xf]
  %v93 = vld [vmem:[%s1 + $0x18] sm:$0xf]
  %v94 = vld [vmem:[%s1 + $0x1c] sm:$0xf]
  %v95 = vld [vmem:[%s1 + $0x20] sm:$0xf]
  %v96 = vld [vmem:[%s1 + $0x24] sm:$0xf]
  %v97 = vld [vmem:[%s1 + $0x28] sm:$0xf]
  %v98 = vld [vmem:[%s1 + $0x2c] sm:$0xf]
  %v99 = vld [vmem:[%s1 + $0x30] sm:$0xf]
  %v100 = vld [vmem:[%s1 + $0x34] sm:$0xf]
  %v101 = vld [vmem:[%s1 + $0x38] sm:$0xf]
  %v102 = vld [vmem:[%s1 + $0x3c] sm:$0xf]
  %v103 = vld [vmem:[%s1 + $0x40] sm:$0xf]
  %v104 = vld [vmem:[%s1 + $0x44] sm:$0xf]
  %v105 = vld [vmem:[%s1 + $0x48] sm:$0xf]
  %v106 = vld [vmem:[%s1 + $0x4c] sm:$0xf]
  %v107 = vld [vmem:[%s1 + $0x50] sm:$0xf]
  %v108 = vld [vmem:[%s1 + $0x54] sm:$0xf]
  %v109 = vld [vmem:[%s1 + $0x58] sm:$0xf]
  %v110 = vld [vmem:[%s1 + $0x5c] sm:$0xf]
  %v111 = vld [vmem:[%s1 + $0x60] sm:$0xf]
  %v112 = vld [vmem:[%s1 + $0x64] sm:$0xf]
  %v113 = vld [vmem:[%s1 + $0x68] sm:$0xf]
  %v114 = vld [vmem:[%s1 + $0x6c] sm:$0xf]
  %v115 = vld [vmem:[%s1 + $0x70] sm:$0xf]
  %v116 = vld [vmem:[%s1 + $0x74] sm:$0xf]
  %v117 = vld [vmem:[%s1 + $0x78] sm:$0xf]
  %v118 = vld [vmem:[%s1 + $0x7c] sm:$0xf]
  %v119 = vld [vmem:[%s1 + $0x80] sm:$0xf]
  %v120 = vld [vmem:[%s1 + $0x84] sm:$0xf]
  %v121 = vld [vmem:[%s1 + $0x88] sm:$0xf]
  %v122 = vld [vmem:[%s1 + $0x8c] sm:$0xf]
  %v123 = vld [vmem:[%s1 + $0x90] sm:$0xf]
  %v124 = vld [vmem:[%s1 + $0x94] sm:$0xf]
  %v125 = vld [vmem:[%s1 + $0x98] sm:$0xf]
  %v126 = vld [vmem:[%s1 + $0x9c] sm:$0xf]
  %v127 = vld [vmem:[%s1 + $0xa0] sm:$0xf]
  %v128 = vld [vmem:[%s1 + $0xa4] sm:$0xf]
  %v129 = vld [vmem:[%s1 + $0xa8] sm:$0xf]
  %v130 = vld [vmem:[%s1 + $0xac] sm:$0xf]
  %v131 = vld [vmem:[%s1 + $0xb0] sm:$0xf]
  %v132 = vld [vmem:[%s1 + $0xb4] sm:$0xf]
  %v133 = vld [vmem:[%s1 + $0xb8] sm:$0xf]
  %v134 = vld [vmem:[%s1 + $0xbc] sm:$0xf]
  %v135 = vld [vmem:[%s1 + $0xc0] sm:$0xf]
  %v136 = vld [vmem:[%s1 + $0xc4] sm:$0xf]
  %v137 = vld [vmem:[%s1 + $0xc8] sm:$0xf]
  %v138 = vld [vmem:[%s1 + $0xcc] sm:$0xf]
  %v139 = vld [vmem:[%s1 + $0xd0] sm:$0xf]
  %v140 = vld [vmem:[%s1 + $0xd4] sm:$0xf]
  %v141 = vld [vmem:[%s1 + $0xd8] sm:$0xf]
  %v142 = vld [vmem:[%s1 + $0xdc] sm:$0xf]
  %v143 = vld [vmem:[%s1 + $0xe0] sm:$0xf]
  %v144 = vld [vmem:[%s1 + $0xe4] sm:$0xf]
  %v145 = vld [vmem:[%s1 + $0xe8] sm:$0xf]
  %v146 = vld [vmem:[%s1 + $0xec] sm:$0xf]
  %v147 = vld [vmem:[%s1 + $0xf0] sm:$0xf]
  %v148 = vld [vmem:[%s1 + $0xf4] sm:$0xf]
  %v149 = vld [vmem:[%s1 + $0xf8] sm:$0xf]
  %v150 = vld [vmem:[%s1 + $0xfc] sm:$0xf]
  %v151 = vld [vmem:[%s1 + $0x100] sm:$0xf]
  %v152 = vld [vmem:[%s1 + $0x104] sm:$0xf]
  %v153 = vld [vmem:[%s1 + $0x108] sm:$0xf]
  %v154 = vld [vmem:[%s1 + $0x10c] sm:$0xf]
  %v155 = vld [vmem:[%s1 + $0x110] sm:$0xf]
  %v156 = vld [vmem:[%s1 + $0x114] sm:$0xf]
  %v157 = vld [vmem:[%s1 + $0x118] sm:$0xf]
  %v158 = vld [vmem:[%s1 + $0x11c] sm:$0xf]
  %v159 = vld [vmem:[%s1 + $0x120] sm:$0xf]
  %v160 = vld [vmem:[%s1 + $0x124] sm:$0xf]
  %v161 = vld [vmem:[%s1 + $0x128] sm:$0xf]
  %v162 = vld [vmem:[%s1 + $0x12c] sm:$0xf]
  %v163 = vld [vmem:[%s1 + $0x130] sm:$0xf]
  %v164 = vld [vmem:[%s1 + $0x134] sm:$0xf]
  %v165 = vld [vmem:[%s1 + $0x138] sm:$0xf]
  %v166 = vld [vmem:[%s1 + $0x13c] sm:$0xf]
  %v167 = vld [vmem:[%s1 + $0x140] sm:$0xf]
  %v168 = vld [vmem:[%s1 + $0x144] sm:$0xf]
  %v169 = vld [vmem:[%s1 + $0x148] sm:$0xf]
  %v170 = vld [vmem:[%s1 + $0x14c] sm:$0xf]
  %v171 = vld [vmem:[%s1 + $0x150] sm:$0xf]
  %v172 = vld [vmem:[%s1 + $0x154] sm:$0xf]
  %v173 = vld [vmem:[%s1 + $0x158] sm:$0xf]
  %v174 = vld [vmem:[%s1 + $0x15c] sm:$0xf]
  %v175 = vld [vmem:[%s1 + $0x160] sm:$0xf]
  %v176 = vld [vmem:[%s1 + $0x164] sm:$0xf]
  %v177 = vld [vmem:[%s1 + $0x168] sm:$0xf]
  %v178 = vld [vmem:[%s1 + $0x16c] sm:$0xf]
  %v179 = vld [vmem:[%s1 + $0x170] sm:$0xf]
  %v180 = vld [vmem:[%s1 + $0x174] sm:$0xf]
  %v181 = vld [vmem:[%s1 + $0x178] sm:$0xf]
  %v182 = vld [vmem:[%s1 + $0x17c] sm:$0xf]
  %v183 = vld [vmem:[%s1 + $0x180] sm:$0xf]
  %v184 = vld [vmem:[%s1 + $0x184] sm:$0xf]
  %v185 = vld [vmem:[%s1 + $0x188] sm:$0xf]
  %v186 = vld [vmem:[%s1 + $0x18c] sm:$0xf]
  %v187 = vld [vmem:[%s1 + $0x190] sm:$0xf]
  %v188 = vld [vmem:[%s1 + $0x194] sm:$0xf]
  %v189 = vld [vmem:[%s1 + $0x198] sm:$0xf]
  %v190 = vld [vmem:[%s1 + $0x19c] sm:$0xf]
  %v191 = vld [vmem:[%s1 + $0x1a0] sm:$0xf]
  %v192 = vld [vmem:[%s1 + $0x1a4] sm:$0xf]
  %v193 = vld [vmem:[%s1 + $0x1a8] sm:$0xf]
  %v194 = vld [vmem:[%s1 + $0x1ac] sm:$0xf]
  %v195 = vld [vmem:[%s1 + $0x1b0] sm:$0xf]
  %v196 = vld [vmem:[%s1 + $0x1b4] sm:$0xf]
  %v197 = vld [vmem:[%s1 + $0x1b8] sm:$0xf]
  %v198 = vld [vmem:[%s1 + $0x1bc] sm:$0xf]
  %v199 = vld [vmem:[%s1 + $0x1c0] sm:$0xf]
  %v200 = vld [vmem:[%s1 + $0x1c4] sm:$0xf]
  %v201 = vld [vmem:[%s1 + $0x1c8] sm:$0xf]
  %v202 = vld [vmem:[%s1 + $0x1cc] sm:$0xf]
  %v203 = vld [vmem:[%s1 + $0x1d0] sm:$0xf]
  %v204 = vld [vmem:[%s1 + $0x1d4] sm:$0xf]
  %v205 = vld [vmem:[%s1 + $0x1d8] sm:$0xf]
  %v206 = vld [vmem:[%s1 + $0x1dc] sm:$0xf]
  %v207 = vld [vmem:[%s1 + $0x1e0] sm:$0xf]
  %v208 = vld [vmem:[%s1 + $0x1e4] sm:$0xf]
  %v209 = vld [vmem:[%s1 + $0x1e8] sm:$0xf]
  %v210 = vld [vmem:[%s1 + $0x1ec] sm:$0xf]
  %v211 = vld [vmem:[%s1 + $0x1f0] sm:$0xf]
  %v212 = vld [vmem:[%s1 + $0x1f4] sm:$0xf]
  %v213 = vld [vmem:[%s1 + $0x1f8] sm:$0xf]
  %v214 = vld [vmem:[%s1 + $0x1fc] sm:$0xf]
  %v215 = vld [vmem:[%s2] sm:$0x1]
  %v217 = vlaneseq
  %v218 = vshrl.u32 %v217, 7
  %v219 = vsub.s32 0, %v218
  %v220 = vrot.slane %v215, %v219
  %v286 = vunpack.c.l.b16 %v23
  %v287 = vunpack.c.h.b16 %v23
  %v288 = vunpack.c.l.b16 %v24
  %v289 = vunpack.c.h.b16 %v24
  %v290 = vunpack.c.l.b16 %v25
  %v291 = vunpack.c.h.b16 %v25
  %v292 = vunpack.c.l.b16 %v26
  %v293 = vunpack.c.h.b16 %v26
  %v294 = vunpack.c.l.b16 %v27
  %v295 = vunpack.c.h.b16 %v27
  %v296 = vunpack.c.l.b16 %v28
  %v297 = vunpack.c.h.b16 %v28
  %v298 = vunpack.c.l.b16 %v29
  %v299 = vunpack.c.h.b16 %v29
  %v300 = vunpack.c.l.b16 %v30
  %v301 = vunpack.c.h.b16 %v30
  %v302 = vunpack.c.l.b16 %v31
  %v303 = vunpack.c.h.b16 %v31
  %v304 = vunpack.c.l.b16 %v32
  %v305 = vunpack.c.h.b16 %v32
  %v306 = vunpack.c.l.b16 %v33
  %v307 = vunpack.c.h.b16 %v33
  %v308 = vunpack.c.l.b16 %v34
  %v309 = vunpack.c.h.b16 %v34
  %v310 = vunpack.c.l.b16 %v35
  %v311 = vunpack.c.h.b16 %v35
  %v312 = vunpack.c.l.b16 %v36
  %v313 = vunpack.c.h.b16 %v36
  %v314 = vunpack.c.l.b16 %v37
  %v315 = vunpack.c.h.b16 %v37
  %v316 = vunpack.c.l.b16 %v38
  %v317 = vunpack.c.h.b16 %v38
  %v318 = vunpack.c.l.b16 %v39
  %v319 = vunpack.c.h.b16 %v39
  %v320 = vunpack.c.l.b16 %v40
  %v321 = vunpack.c.h.b16 %v40
  %v322 = vunpack.c.l.b16 %v41
  %v323 = vunpack.c.h.b16 %v41
  %v324 = vunpack.c.l.b16 %v42
  %v325 = vunpack.c.h.b16 %v42
  %v326 = vunpack.c.l.b16 %v43
  %v327 = vunpack.c.h.b16 %v43
  %v328 = vunpack.c.l.b16 %v44
  %v329 = vunpack.c.h.b16 %v44
  %v330 = vunpack.c.l.b16 %v45
  %v331 = vunpack.c.h.b16 %v45
  %v332 = vunpack.c.l.b16 %v46
  %v333 = vunpack.c.h.b16 %v46
  %v334 = vunpack.c.l.b16 %v47
  %v335 = vunpack.c.h.b16 %v47
  %v336 = vunpack.c.l.b16 %v48
  %v337 = vunpack.c.h.b16 %v48
  %v338 = vunpack.c.l.b16 %v49
  %v339 = vunpack.c.h.b16 %v49
  %v340 = vunpack.c.l.b16 %v50
  %v341 = vunpack.c.h.b16 %v50
  %v342 = vunpack.c.l.b16 %v51
  %v343 = vunpack.c.h.b16 %v51
  %v344 = vunpack.c.l.b16 %v52
  %v345 = vunpack.c.h.b16 %v52
  %v346 = vunpack.c.l.b16 %v53
  %v347 = vunpack.c.h.b16 %v53
  %v348 = vunpack.c.l.b16 %v54
  %v349 = vunpack.c.h.b16 %v54
  %v350 = vunpack.c.l.b16 %v55
  %v351 = vunpack.c.h.b16 %v55
  %v352 = vunpack.c.l.b16 %v56
  %v353 = vunpack.c.h.b16 %v56
  %v354 = vunpack.c.l.b16 %v57
  %v355 = vunpack.c.h.b16 %v57
  %v356 = vunpack.c.l.b16 %v58
  %v357 = vunpack.c.h.b16 %v58
  %v358 = vunpack.c.l.b16 %v59
  %v359 = vunpack.c.h.b16 %v59
  %v360 = vunpack.c.l.b16 %v60
  %v361 = vunpack.c.h.b16 %v60
  %v362 = vunpack.c.l.b16 %v61
  %v363 = vunpack.c.h.b16 %v61
  %v364 = vunpack.c.l.b16 %v62
  %v365 = vunpack.c.h.b16 %v62
  %v366 = vunpack.c.l.b16 %v63
  %v367 = vunpack.c.h.b16 %v63
  %v368 = vunpack.c.l.b16 %v64
  %v369 = vunpack.c.h.b16 %v64
  %v370 = vunpack.c.l.b16 %v65
  %v371 = vunpack.c.h.b16 %v65
  %v372 = vunpack.c.l.b16 %v66
  %v373 = vunpack.c.h.b16 %v66
  %v374 = vunpack.c.l.b16 %v67
  %v375 = vunpack.c.h.b16 %v67
  %v376 = vunpack.c.l.b16 %v68
  %v377 = vunpack.c.h.b16 %v68
  %v378 = vunpack.c.l.b16 %v69
  %v379 = vunpack.c.h.b16 %v69
  %v380 = vunpack.c.l.b16 %v70
  %v381 = vunpack.c.h.b16 %v70
  %v382 = vunpack.c.l.b16 %v71
  %v383 = vunpack.c.h.b16 %v71
  %v384 = vunpack.c.l.b16 %v72
  %v385 = vunpack.c.h.b16 %v72
  %v386 = vunpack.c.l.b16 %v73
  %v387 = vunpack.c.h.b16 %v73
  %v388 = vunpack.c.l.b16 %v74
  %v389 = vunpack.c.h.b16 %v74
  %v390 = vunpack.c.l.b16 %v75
  %v391 = vunpack.c.h.b16 %v75
  %v392 = vunpack.c.l.b16 %v76
  %v393 = vunpack.c.h.b16 %v76
  %v394 = vunpack.c.l.b16 %v77
  %v395 = vunpack.c.h.b16 %v77
  %v396 = vunpack.c.l.b16 %v78
  %v397 = vunpack.c.h.b16 %v78
  %v398 = vunpack.c.l.b16 %v79
  %v399 = vunpack.c.h.b16 %v79
  %v400 = vunpack.c.l.b16 %v80
  %v401 = vunpack.c.h.b16 %v80
  %v402 = vunpack.c.l.b16 %v81
  %v403 = vunpack.c.h.b16 %v81
  %v404 = vunpack.c.l.b16 %v82
  %v405 = vunpack.c.h.b16 %v82
  %v406 = vunpack.c.l.b16 %v83
  %v407 = vunpack.c.h.b16 %v83
  %v408 = vunpack.c.l.b16 %v84
  %v409 = vunpack.c.h.b16 %v84
  %v410 = vunpack.c.l.b16 %v85
  %v411 = vunpack.c.h.b16 %v85
  %v412 = vunpack.c.l.b16 %v86
  %v413 = vunpack.c.h.b16 %v86
  %v414 = vpack.c.b16 %v294, %v286
  %v415 = vpack.c.b16 %v295, %v287
  %v416 = vpack.c.b16 %v296, %v288
  %v417 = vpack.c.b16 %v297, %v289
  %v418 = vpack.c.b16 %v298, %v290
  %v419 = vpack.c.b16 %v299, %v291
  %v420 = vpack.c.b16 %v300, %v292
  %v421 = vpack.c.b16 %v301, %v293
  %v422 = vpack.c.b16 %v310, %v302
  %v423 = vpack.c.b16 %v311, %v303
  %v424 = vpack.c.b16 %v312, %v304
  %v425 = vpack.c.b16 %v313, %v305
  %v426 = vpack.c.b16 %v314, %v306
  %v427 = vpack.c.b16 %v315, %v307
  %v428 = vpack.c.b16 %v316, %v308
  %v429 = vpack.c.b16 %v317, %v309
  %v430 = vpack.c.b16 %v326, %v318
  %v431 = vpack.c.b16 %v327, %v319
  %v432 = vpack.c.b16 %v328, %v320
  %v433 = vpack.c.b16 %v329, %v321
  %v434 = vpack.c.b16 %v330, %v322
  %v435 = vpack.c.b16 %v331, %v323
  %v436 = vpack.c.b16 %v332, %v324
  %v437 = vpack.c.b16 %v333, %v325
  %v438 = vpack.c.b16 %v342, %v334
  %v439 = vpack.c.b16 %v343, %v335
  %v440 = vpack.c.b16 %v344, %v336
  %v441 = vpack.c.b16 %v345, %v337
  %v442 = vpack.c.b16 %v346, %v338
  %v443 = vpack.c.b16 %v347, %v339
  %v444 = vpack.c.b16 %v348, %v340
  %v445 = vpack.c.b16 %v349, %v341
  %v446 = vpack.c.b16 %v358, %v350
  %v447 = vpack.c.b16 %v359, %v351
  %v448 = vpack.c.b16 %v360, %v352
  %v449 = vpack.c.b16 %v361, %v353
  %v450 = vpack.c.b16 %v362, %v354
  %v451 = vpack.c.b16 %v363, %v355
  %v452 = vpack.c.b16 %v364, %v356
  %v453 = vpack.c.b16 %v365, %v357
  %v454 = vpack.c.b16 %v374, %v366
  %v455 = vpack.c.b16 %v375, %v367
  %v456 = vpack.c.b16 %v376, %v368
  %v457 = vpack.c.b16 %v377, %v369
  %v458 = vpack.c.b16 %v378, %v370
  %v459 = vpack.c.b16 %v379, %v371
  %v460 = vpack.c.b16 %v380, %v372
  %v461 = vpack.c.b16 %v381, %v373
  %v462 = vpack.c.b16 %v390, %v382
  %v463 = vpack.c.b16 %v391, %v383
  %v464 = vpack.c.b16 %v392, %v384
  %v465 = vpack.c.b16 %v393, %v385
  %v466 = vpack.c.b16 %v394, %v386
  %v467 = vpack.c.b16 %v395, %v387
  %v468 = vpack.c.b16 %v396, %v388
  %v469 = vpack.c.b16 %v397, %v389
  %v470 = vpack.c.b16 %v406, %v398
  %v471 = vpack.c.b16 %v407, %v399
  %v472 = vpack.c.b16 %v408, %v400
  %v473 = vpack.c.b16 %v409, %v401
  %v474 = vpack.c.b16 %v410, %v402
  %v475 = vpack.c.b16 %v411, %v403
  %v476 = vpack.c.b16 %v412, %v404
  %v477 = vpack.c.b16 %v413, %v405
  %v670 = vunpack.c.l.b16 %v87
  %v671 = vunpack.c.l.b16 %v88
  %v672 = vunpack.c.l.b16 %v89
  %v673 = vunpack.c.l.b16 %v90
  %v674 = vunpack.c.l.b16 %v91
  %v675 = vunpack.c.l.b16 %v92
  %v676 = vunpack.c.l.b16 %v93
  %v677 = vunpack.c.l.b16 %v94
  %v678 = vunpack.c.l.b16 %v95
  %v679 = vunpack.c.l.b16 %v96
  %v680 = vunpack.c.l.b16 %v97
  %v681 = vunpack.c.l.b16 %v98
  %v682 = vunpack.c.l.b16 %v99
  %v683 = vunpack.c.l.b16 %v100
  %v684 = vunpack.c.l.b16 %v101
  %v685 = vunpack.c.l.b16 %v102
  %v686 = vunpack.c.l.b16 %v103
  %v687 = vunpack.c.l.b16 %v104
  %v688 = vunpack.c.l.b16 %v105
  %v689 = vunpack.c.l.b16 %v106
  %v690 = vunpack.c.l.b16 %v107
  %v691 = vunpack.c.l.b16 %v108
  %v692 = vunpack.c.l.b16 %v109
  %v693 = vunpack.c.l.b16 %v110
  %v694 = vunpack.c.l.b16 %v111
  %v695 = vunpack.c.l.b16 %v112
  %v696 = vunpack.c.l.b16 %v113
  %v697 = vunpack.c.l.b16 %v114
  %v698 = vunpack.c.l.b16 %v115
  %v699 = vunpack.c.l.b16 %v116
  %v700 = vunpack.c.l.b16 %v117
  %v701 = vunpack.c.l.b16 %v118
  %v702 = vunpack.c.l.b16 %v119
  %v703 = vunpack.c.l.b16 %v120
  %v704 = vunpack.c.l.b16 %v121
  %v705 = vunpack.c.l.b16 %v122
  %v706 = vunpack.c.l.b16 %v123
  %v707 = vunpack.c.l.b16 %v124
  %v708 = vunpack.c.l.b16 %v125
  %v709 = vunpack.c.l.b16 %v126
  %v710 = vunpack.c.l.b16 %v127
  %v711 = vunpack.c.l.b16 %v128
  %v712 = vunpack.c.l.b16 %v129
  %v713 = vunpack.c.l.b16 %v130
  %v714 = vunpack.c.l.b16 %v131
  %v715 = vunpack.c.l.b16 %v132
  %v716 = vunpack.c.l.b16 %v133
  %v717 = vunpack.c.l.b16 %v134
  %v718 = vunpack.c.l.b16 %v135
  %v719 = vunpack.c.l.b16 %v136
  %v720 = vunpack.c.l.b16 %v137
  %v721 = vunpack.c.l.b16 %v138
  %v722 = vunpack.c.l.b16 %v139
  %v723 = vunpack.c.l.b16 %v140
  %v724 = vunpack.c.l.b16 %v141
  %v725 = vunpack.c.l.b16 %v142
  %v726 = vunpack.c.l.b16 %v143
  %v727 = vunpack.c.l.b16 %v144
  %v728 = vunpack.c.l.b16 %v145
  %v729 = vunpack.c.l.b16 %v146
  %v730 = vunpack.c.l.b16 %v147
  %v731 = vunpack.c.l.b16 %v148
  %v732 = vunpack.c.l.b16 %v149
  %v733 = vunpack.c.l.b16 %v150
  %v734 = vunpack.c.l.b16 %v151
  %v735 = vunpack.c.l.b16 %v152
  %v736 = vunpack.c.l.b16 %v153
  %v737 = vunpack.c.l.b16 %v154
  %v738 = vunpack.c.l.b16 %v155
  %v739 = vunpack.c.l.b16 %v156
  %v740 = vunpack.c.l.b16 %v157
  %v741 = vunpack.c.l.b16 %v158
  %v742 = vunpack.c.l.b16 %v159
  %v743 = vunpack.c.l.b16 %v160
  %v744 = vunpack.c.l.b16 %v161
  %v745 = vunpack.c.l.b16 %v162
  %v746 = vunpack.c.l.b16 %v163
  %v747 = vunpack.c.l.b16 %v164
  %v748 = vunpack.c.l.b16 %v165
  %v749 = vunpack.c.l.b16 %v166
  %v750 = vunpack.c.l.b16 %v167
  %v751 = vunpack.c.l.b16 %v168
  %v752 = vunpack.c.l.b16 %v169
  %v753 = vunpack.c.l.b16 %v170
  %v754 = vunpack.c.l.b16 %v171
  %v755 = vunpack.c.l.b16 %v172
  %v756 = vunpack.c.l.b16 %v173
  %v757 = vunpack.c.l.b16 %v174
  %v758 = vunpack.c.l.b16 %v175
  %v759 = vunpack.c.l.b16 %v176
  %v760 = vunpack.c.l.b16 %v177
  %v761 = vunpack.c.l.b16 %v178
  %v762 = vunpack.c.l.b16 %v179
  %v763 = vunpack.c.l.b16 %v180
  %v764 = vunpack.c.l.b16 %v181
  %v765 = vunpack.c.l.b16 %v182
  %v766 = vunpack.c.l.b16 %v183
  %v767 = vunpack.c.l.b16 %v184
  %v768 = vunpack.c.l.b16 %v185
  %v769 = vunpack.c.l.b16 %v186
  %v770 = vunpack.c.l.b16 %v187
  %v771 = vunpack.c.l.b16 %v188
  %v772 = vunpack.c.l.b16 %v189
  %v773 = vunpack.c.l.b16 %v190
  %v774 = vunpack.c.l.b16 %v191
  %v775 = vunpack.c.l.b16 %v192
  %v776 = vunpack.c.l.b16 %v193
  %v777 = vunpack.c.l.b16 %v194
  %v778 = vunpack.c.l.b16 %v195
  %v779 = vunpack.c.l.b16 %v196
  %v780 = vunpack.c.l.b16 %v197
  %v781 = vunpack.c.l.b16 %v198
  %v782 = vunpack.c.l.b16 %v199
  %v783 = vunpack.c.l.b16 %v200
  %v784 = vunpack.c.l.b16 %v201
  %v785 = vunpack.c.l.b16 %v202
  %v786 = vunpack.c.l.b16 %v203
  %v787 = vunpack.c.l.b16 %v204
  %v788 = vunpack.c.l.b16 %v205
  %v789 = vunpack.c.l.b16 %v206
  %v790 = vunpack.c.l.b16 %v207
  %v791 = vunpack.c.l.b16 %v208
  %v792 = vunpack.c.l.b16 %v209
  %v793 = vunpack.c.l.b16 %v210
  %v794 = vunpack.c.l.b16 %v211
  %v795 = vunpack.c.l.b16 %v212
  %v796 = vunpack.c.l.b16 %v213
  %v797 = vunpack.c.l.b16 %v214
  %v798 = vpack.c.b16 %v671, %v670
  %v799 = vpack.c.b16 %v673, %v672
  %v800 = vpack.c.b16 %v675, %v674
  %v801 = vpack.c.b16 %v677, %v676
  %v802 = vpack.c.b16 %v679, %v678
  %v803 = vpack.c.b16 %v681, %v680
  %v804 = vpack.c.b16 %v683, %v682
  %v805 = vpack.c.b16 %v685, %v684
  %v806 = vpack.c.b16 %v687, %v686
  %v807 = vpack.c.b16 %v689, %v688
  %v808 = vpack.c.b16 %v691, %v690
  %v809 = vpack.c.b16 %v693, %v692
  %v810 = vpack.c.b16 %v695, %v694
  %v811 = vpack.c.b16 %v697, %v696
  %v812 = vpack.c.b16 %v699, %v698
  %v813 = vpack.c.b16 %v701, %v700
  %v814 = vpack.c.b16 %v703, %v702
  %v815 = vpack.c.b16 %v705, %v704
  %v816 = vpack.c.b16 %v707, %v706
  %v817 = vpack.c.b16 %v709, %v708
  %v818 = vpack.c.b16 %v711, %v710
  %v819 = vpack.c.b16 %v713, %v712
  %v820 = vpack.c.b16 %v715, %v714
  %v821 = vpack.c.b16 %v717, %v716
  %v822 = vpack.c.b16 %v719, %v718
  %v823 = vpack.c.b16 %v721, %v720
  %v824 = vpack.c.b16 %v723, %v722
  %v825 = vpack.c.b16 %v725, %v724
  %v826 = vpack.c.b16 %v727, %v726
  %v827 = vpack.c.b16 %v729, %v728
  %v828 = vpack.c.b16 %v731, %v730
  %v829 = vpack.c.b16 %v733, %v732
  %v830 = vpack.c.b16 %v735, %v734
  %v831 = vpack.c.b16 %v737, %v736
  %v832 = vpack.c.b16 %v739, %v738
  %v833 = vpack.c.b16 %v741, %v740
  %v834 = vpack.c.b16 %v743, %v742
  %v835 = vpack.c.b16 %v745, %v744
  %v836 = vpack.c.b16 %v747, %v746
  %v837 = vpack.c.b16 %v749, %v748
  %v838 = vpack.c.b16 %v751, %v750
  %v839 = vpack.c.b16 %v753, %v752
  %v840 = vpack.c.b16 %v755, %v754
  %v841 = vpack.c.b16 %v757, %v756
  %v842 = vpack.c.b16 %v759, %v758
  %v843 = vpack.c.b16 %v761, %v760
  %v844 = vpack.c.b16 %v763, %v762
  %v845 = vpack.c.b16 %v765, %v764
  %v846 = vpack.c.b16 %v767, %v766
  %v847 = vpack.c.b16 %v769, %v768
  %v848 = vpack.c.b16 %v771, %v770
  %v849 = vpack.c.b16 %v773, %v772
  %v850 = vpack.c.b16 %v775, %v774
  %v851 = vpack.c.b16 %v777, %v776
  %v852 = vpack.c.b16 %v779, %v778
  %v853 = vpack.c.b16 %v781, %v780
  %v854 = vpack.c.b16 %v783, %v782
  %v855 = vpack.c.b16 %v785, %v784
  %v856 = vpack.c.b16 %v787, %v786
  %v857 = vpack.c.b16 %v789, %v788
  %v858 = vpack.c.b16 %v791, %v790
  %v859 = vpack.c.b16 %v793, %v792
  %v860 = vpack.c.b16 %v795, %v794
  %v861 = vpack.c.b16 %v797, %v796
  %926 = vmatprep.subr.bf16.mxu0 0
  %927 = vmatpush1.bf16.msra.mxu0 %v805
  %928 = vmatprep.subr.bf16.mxu0 0
  %929 = vmatpush1.bf16.msra.mxu0 %v804
  %930 = vmatprep.subr.bf16.mxu0 0
  %931 = vmatpush1.bf16.msra.mxu0 %v803
  %932 = vmatprep.subr.bf16.mxu0 0
  %933 = vmatpush1.bf16.msra.mxu0 %v802
  %934 = vmatprep.subr.bf16.mxu0 0
  %935 = vmatpush1.bf16.msra.mxu0 %v801
  %936 = vmatprep.subr.bf16.mxu0 0
  %937 = vmatpush1.bf16.msra.mxu0 %v800
  %938 = vmatprep.subr.bf16.mxu0 0
  %939 = vmatpush1.bf16.msra.mxu0 %v799
  %940 = vmatprep.subr.bf16.mxu0 0
  %941 = vmatpush1.bf16.msra.mxu0 %v798
  %942 = vmatprep.subr.bf16.mxu0 0
  %943 = vmatpush2.bf16.msra.mxu0 %v813
  %944 = vmatprep.subr.bf16.mxu0 0
  %945 = vmatpush2.bf16.msra.mxu0 %v812
  %946 = vmatprep.subr.bf16.mxu0 0
  %947 = vmatpush2.bf16.msra.mxu0 %v811
  %948 = vmatprep.subr.bf16.mxu0 0
  %949 = vmatpush2.bf16.msra.mxu0 %v810
  %950 = vmatprep.subr.bf16.mxu0 0
  %951 = vmatpush2.bf16.msra.mxu0 %v809
  %952 = vmatprep.subr.bf16.mxu0 0
  %953 = vmatpush2.bf16.msra.mxu0 %v808
  %954 = vmatprep.subr.bf16.mxu0 0
  %955 = vmatpush2.bf16.msra.mxu0 %v807
  %956 = vmatprep.subr.bf16.mxu0 0
  %957 = vmatpush2.bf16.msra.mxu0 %v806
  %958 = vmatprep.mubr.bf16.mxu0 %v415
  %959 = vmatmul.mubr.bf16.gmra.mxu0 %v414
  %v960 = vpop.f32.mrf.mxu0
  %v961 = vadd.f32 %v220, %v960
  %v962 = vpop.f32.mrf.mxu0
  %v963 = vpop.f32.mrf.mxu0
  %v964 = vadd.f32 %v220, %v963
  %v965 = vpop.f32.mrf.mxu0
  %966 = vmatprep.mubr.bf16.mxu0 %v423
  %967 = vmatmul.mubr.bf16.gmra.mxu0 %v422
  %v968 = vpop.f32.mrf.mxu0
  %v969 = vadd.f32 %v220, %v968
  %v970 = vpop.f32.mrf.mxu0
  %v971 = vpop.f32.mrf.mxu0
  %v972 = vadd.f32 %v220, %v971
  %v973 = vpop.f32.mrf.mxu0
  %974 = vmatprep.mubr.bf16.mxu0 %v431
  %975 = vmatmul.mubr.bf16.gmra.mxu0 %v430
  %v976 = vpop.f32.mrf.mxu0
  %v977 = vadd.f32 %v220, %v976
  %v978 = vpop.f32.mrf.mxu0
  %v979 = vpop.f32.mrf.mxu0
  %v980 = vadd.f32 %v220, %v979
  %v981 = vpop.f32.mrf.mxu0
  %982 = vmatprep.mubr.bf16.mxu0 %v439
  %983 = vmatmul.mubr.bf16.gmra.mxu0 %v438
  %v984 = vpop.f32.mrf.mxu0
  %v985 = vadd.f32 %v220, %v984
  %v986 = vpop.f32.mrf.mxu0
  %v987 = vpop.f32.mrf.mxu0
  %v988 = vadd.f32 %v220, %v987
  %v989 = vpop.f32.mrf.mxu0
  %990 = vmatprep.mubr.bf16.mxu0 %v447
  %991 = vmatmul.mubr.bf16.gmra.mxu0 %v446
  %v992 = vpop.f32.mrf.mxu0
  %v993 = vadd.f32 %v220, %v992
  %v994 = vpop.f32.mrf.mxu0
  %v995 = vpop.f32.mrf.mxu0
  %v996 = vadd.f32 %v220, %v995
  %v997 = vpop.f32.mrf.mxu0
  %998 = vmatprep.mubr.bf16.mxu0 %v455
  %999 = vmatmul.mubr.bf16.gmra.mxu0 %v454
  %v1000 = vpop.f32.mrf.mxu0
  %v1001 = vadd.f32 %v220, %v1000
  %v1002 = vpop.f32.mrf.mxu0
  %v1003 = vpop.f32.mrf.mxu0
  %v1004 = vadd.f32 %v220, %v1003
  %v1005 = vpop.f32.mrf.mxu0
  %1006 = vmatprep.mubr.bf16.mxu0 %v463
  %1007 = vmatmul.mubr.bf16.gmra.mxu0 %v462
  %v1008 = vpop.f32.mrf.mxu0
  %v1009 = vadd.f32 %v220, %v1008
  %v1010 = vpop.f32.mrf.mxu0
  %v1011 = vpop.f32.mrf.mxu0
  %v1012 = vadd.f32 %v220, %v1011
  %v1013 = vpop.f32.mrf.mxu0
  %1014 = vmatprep.mubr.bf16.mxu0 %v471
  %1015 = vmatmul.mubr.bf16.gmra.mxu0 %v470
  %v1016 = vpop.f32.mrf.mxu0
  %v1017 = vadd.f32 %v220, %v1016
  %v1018 = vpop.f32.mrf.mxu0
  %v1019 = vpop.f32.mrf.mxu0
  %v1020 = vadd.f32 %v220, %v1019
  %v1021 = vpop.f32.mrf.mxu0
  %1022 = vdwg.mxu0
  %1023 = vmatprep.subr.bf16.mxu0 0
  %1024 = vmatpush1.bf16.msra.mxu0 %v821
  %1025 = vmatprep.subr.bf16.mxu0 0
  %1026 = vmatpush1.bf16.msra.mxu0 %v820
  %1027 = vmatprep.subr.bf16.mxu0 0
  %1028 = vmatpush1.bf16.msra.mxu0 %v819
  %1029 = vmatprep.subr.bf16.mxu0 0
  %1030 = vmatpush1.bf16.msra.mxu0 %v818
  %1031 = vmatprep.subr.bf16.mxu0 0
  %1032 = vmatpush1.bf16.msra.mxu0 %v817
  %1033 = vmatprep.subr.bf16.mxu0 0
  %1034 = vmatpush1.bf16.msra.mxu0 %v816
  %1035 = vmatprep.subr.bf16.mxu0 0
  %1036 = vmatpush1.bf16.msra.mxu0 %v815
  %1037 = vmatprep.subr.bf16.mxu0 0
  %1038 = vmatpush1.bf16.msra.mxu0 %v814
  %1039 = vmatprep.subr.bf16.mxu0 0
  %1040 = vmatpush2.bf16.msra.mxu0 %v829
  %1041 = vmatprep.subr.bf16.mxu0 0
  %1042 = vmatpush2.bf16.msra.mxu0 %v828
  %1043 = vmatprep.subr.bf16.mxu0 0
  %1044 = vmatpush2.bf16.msra.mxu0 %v827
  %1045 = vmatprep.subr.bf16.mxu0 0
  %1046 = vmatpush2.bf16.msra.mxu0 %v826
  %1047 = vmatprep.subr.bf16.mxu0 0
  %1048 = vmatpush2.bf16.msra.mxu0 %v825
  %1049 = vmatprep.subr.bf16.mxu0 0
  %1050 = vmatpush2.bf16.msra.mxu0 %v824
  %1051 = vmatprep.subr.bf16.mxu0 0
  %1052 = vmatpush2.bf16.msra.mxu0 %v823
  %1053 = vmatprep.subr.bf16.mxu0 0
  %1054 = vmatpush2.bf16.msra.mxu0 %v822
  %1055 = vmatprep.mubr.bf16.mxu0 %v417
  %1056 = vmatmul.mubr.bf16.gmra.mxu0 %v416
  %v1057 = vpop.f32.mrf.mxu0
  %v1058 = vadd.f32 %v961, %v1057
  %v1059 = vpop.f32.mrf.mxu0
  %v1060 = vpop.f32.mrf.mxu0
  %v1061 = vadd.f32 %v964, %v1060
  %v1062 = vpop.f32.mrf.mxu0
  %1063 = vmatprep.mubr.bf16.mxu0 %v425
  %1064 = vmatmul.mubr.bf16.gmra.mxu0 %v424
  %v1065 = vpop.f32.mrf.mxu0
  %v1066 = vadd.f32 %v969, %v1065
  %v1067 = vpop.f32.mrf.mxu0
  %v1068 = vpop.f32.mrf.mxu0
  %v1069 = vadd.f32 %v972, %v1068
  %v1070 = vpop.f32.mrf.mxu0
  %1071 = vmatprep.mubr.bf16.mxu0 %v433
  %1072 = vmatmul.mubr.bf16.gmra.mxu0 %v432
  %v1073 = vpop.f32.mrf.mxu0
  %v1074 = vadd.f32 %v977, %v1073
  %v1075 = vpop.f32.mrf.mxu0
  %v1076 = vpop.f32.mrf.mxu0
  %v1077 = vadd.f32 %v980, %v1076
  %v1078 = vpop.f32.mrf.mxu0
  %1079 = vmatprep.mubr.bf16.mxu0 %v441
  %1080 = vmatmul.mubr.bf16.gmra.mxu0 %v440
  %v1081 = vpop.f32.mrf.mxu0
  %v1082 = vadd.f32 %v985, %v1081
  %v1083 = vpop.f32.mrf.mxu0
  %v1084 = vpop.f32.mrf.mxu0
  %v1085 = vadd.f32 %v988, %v1084
  %v1086 = vpop.f32.mrf.mxu0
  %1087 = vmatprep.mubr.bf16.mxu0 %v449
  %1088 = vmatmul.mubr.bf16.gmra.mxu0 %v448
  %v1089 = vpop.f32.mrf.mxu0
  %v1090 = vadd.f32 %v993, %v1089
  %v1091 = vpop.f32.mrf.mxu0
  %v1092 = vpop.f32.mrf.mxu0
  %v1093 = vadd.f32 %v996, %v1092
  %v1094 = vpop.f32.mrf.mxu0
  %1095 = vmatprep.mubr.bf16.mxu0 %v457
  %1096 = vmatmul.mubr.bf16.gmra.mxu0 %v456
  %v1097 = vpop.f32.mrf.mxu0
  %v1098 = vadd.f32 %v1001, %v1097
  %v1099 = vpop.f32.mrf.mxu0
  %v1100 = vpop.f32.mrf.mxu0
  %v1101 = vadd.f32 %v1004, %v1100
  %v1102 = vpop.f32.mrf.mxu0
  %1103 = vmatprep.mubr.bf16.mxu0 %v465
  %1104 = vmatmul.mubr.bf16.gmra.mxu0 %v464
  %v1105 = vpop.f32.mrf.mxu0
  %v1106 = vadd.f32 %v1009, %v1105
  %v1107 = vpop.f32.mrf.mxu0
  %v1108 = vpop.f32.mrf.mxu0
  %v1109 = vadd.f32 %v1012, %v1108
  %v1110 = vpop.f32.mrf.mxu0
  %1111 = vmatprep.mubr.bf16.mxu0 %v473
  %1112 = vmatmul.mubr.bf16.gmra.mxu0 %v472
  %v1113 = vpop.f32.mrf.mxu0
  %v1114 = vadd.f32 %v1017, %v1113
  %v1115 = vpop.f32.mrf.mxu0
  %v1116 = vpop.f32.mrf.mxu0
  %v1117 = vadd.f32 %v1020, %v1116
  %v1118 = vpop.f32.mrf.mxu0
  %1119 = vdwg.mxu0
  %1120 = vmatprep.subr.bf16.mxu0 0
  %1121 = vmatpush1.bf16.msra.mxu0 %v837
  %1122 = vmatprep.subr.bf16.mxu0 0
  %1123 = vmatpush1.bf16.msra.mxu0 %v836
  %1124 = vmatprep.subr.bf16.mxu0 0
  %1125 = vmatpush1.bf16.msra.mxu0 %v835
  %1126 = vmatprep.subr.bf16.mxu0 0
  %1127 = vmatpush1.bf16.msra.mxu0 %v834
  %1128 = vmatprep.subr.bf16.mxu0 0
  %1129 = vmatpush1.bf16.msra.mxu0 %v833
  %1130 = vmatprep.subr.bf16.mxu0 0
  %1131 = vmatpush1.bf16.msra.mxu0 %v832
  %1132 = vmatprep.subr.bf16.mxu0 0
  %1133 = vmatpush1.bf16.msra.mxu0 %v831
  %1134 = vmatprep.subr.bf16.mxu0 0
  %1135 = vmatpush1.bf16.msra.mxu0 %v830
  %1136 = vmatprep.subr.bf16.mxu0 0
  %1137 = vmatpush2.bf16.msra.mxu0 %v845
  %1138 = vmatprep.subr.bf16.mxu0 0
  %1139 = vmatpush2.bf16.msra.mxu0 %v844
  %1140 = vmatprep.subr.bf16.mxu0 0
  %1141 = vmatpush2.bf16.msra.mxu0 %v843
  %1142 = vmatprep.subr.bf16.mxu0 0
  %1143 = vmatpush2.bf16.msra.mxu0 %v842
  %1144 = vmatprep.subr.bf16.mxu0 0
  %1145 = vmatpush2.bf16.msra.mxu0 %v841
  %1146 = vmatprep.subr.bf16.mxu0 0
  %1147 = vmatpush2.bf16.msra.mxu0 %v840
  %1148 = vmatprep.subr.bf16.mxu0 0
  %1149 = vmatpush2.bf16.msra.mxu0 %v839
  %1150 = vmatprep.subr.bf16.mxu0 0
  %1151 = vmatpush2.bf16.msra.mxu0 %v838
  %1152 = vmatprep.mubr.bf16.mxu0 %v419
  %1153 = vmatmul.mubr.bf16.gmra.mxu0 %v418
  %v1154 = vpop.f32.mrf.mxu0
  %v1155 = vadd.f32 %v1058, %v1154
  %v1156 = vpop.f32.mrf.mxu0
  %v1157 = vpop.f32.mrf.mxu0
  %v1158 = vadd.f32 %v1061, %v1157
  %v1159 = vpop.f32.mrf.mxu0
  %1160 = vmatprep.mubr.bf16.mxu0 %v427
  %1161 = vmatmul.mubr.bf16.gmra.mxu0 %v426
  %v1162 = vpop.f32.mrf.mxu0
  %v1163 = vadd.f32 %v1066, %v1162
  %v1164 = vpop.f32.mrf.mxu0
  %v1165 = vpop.f32.mrf.mxu0
  %v1166 = vadd.f32 %v1069, %v1165
  %v1167 = vpop.f32.mrf.mxu0
  %1168 = vmatprep.mubr.bf16.mxu0 %v435
  %1169 = vmatmul.mubr.bf16.gmra.mxu0 %v434
  %v1170 = vpop.f32.mrf.mxu0
  %v1171 = vadd.f32 %v1074, %v1170
  %v1172 = vpop.f32.mrf.mxu0
  %v1173 = vpop.f32.mrf.mxu0
  %v1174 = vadd.f32 %v1077, %v1173
  %v1175 = vpop.f32.mrf.mxu0
  %1176 = vmatprep.mubr.bf16.mxu0 %v443
  %1177 = vmatmul.mubr.bf16.gmra.mxu0 %v442
  %v1178 = vpop.f32.mrf.mxu0
  %v1179 = vadd.f32 %v1082, %v1178
  %v1180 = vpop.f32.mrf.mxu0
  %v1181 = vpop.f32.mrf.mxu0
  %v1182 = vadd.f32 %v1085, %v1181
  %v1183 = vpop.f32.mrf.mxu0
  %1184 = vmatprep.mubr.bf16.mxu0 %v451
  %1185 = vmatmul.mubr.bf16.gmra.mxu0 %v450
  %v1186 = vpop.f32.mrf.mxu0
  %v1187 = vadd.f32 %v1090, %v1186
  %v1188 = vpop.f32.mrf.mxu0
  %v1189 = vpop.f32.mrf.mxu0
  %v1190 = vadd.f32 %v1093, %v1189
  %v1191 = vpop.f32.mrf.mxu0
  %1192 = vmatprep.mubr.bf16.mxu0 %v459
  %1193 = vmatmul.mubr.bf16.gmra.mxu0 %v458
  %v1194 = vpop.f32.mrf.mxu0
  %v1195 = vadd.f32 %v1098, %v1194
  %v1196 = vpop.f32.mrf.mxu0
  %v1197 = vpop.f32.mrf.mxu0
  %v1198 = vadd.f32 %v1101, %v1197
  %v1199 = vpop.f32.mrf.mxu0
  %1200 = vmatprep.mubr.bf16.mxu0 %v467
  %1201 = vmatmul.mubr.bf16.gmra.mxu0 %v466
  %v1202 = vpop.f32.mrf.mxu0
  %v1203 = vadd.f32 %v1106, %v1202
  %v1204 = vpop.f32.mrf.mxu0
  %v1205 = vpop.f32.mrf.mxu0
  %v1206 = vadd.f32 %v1109, %v1205
  %v1207 = vpop.f32.mrf.mxu0
  %1208 = vmatprep.mubr.bf16.mxu0 %v475
  %1209 = vmatmul.mubr.bf16.gmra.mxu0 %v474
  %v1210 = vpop.f32.mrf.mxu0
  %v1211 = vadd.f32 %v1114, %v1210
  %v1212 = vpop.f32.mrf.mxu0
  %v1213 = vpop.f32.mrf.mxu0
  %v1214 = vadd.f32 %v1117, %v1213
  %v1215 = vpop.f32.mrf.mxu0
  %1216 = vdwg.mxu0
  %1217 = vmatprep.subr.bf16.mxu0 0
  %1218 = vmatpush1.bf16.msra.mxu0 %v853
  %1219 = vmatprep.subr.bf16.mxu0 0
  %1220 = vmatpush1.bf16.msra.mxu0 %v852
  %1221 = vmatprep.subr.bf16.mxu0 0
  %1222 = vmatpush1.bf16.msra.mxu0 %v851
  %1223 = vmatprep.subr.bf16.mxu0 0
  %1224 = vmatpush1.bf16.msra.mxu0 %v850
  %1225 = vmatprep.subr.bf16.mxu0 0
  %1226 = vmatpush1.bf16.msra.mxu0 %v849
  %1227 = vmatprep.subr.bf16.mxu0 0
  %1228 = vmatpush1.bf16.msra.mxu0 %v848
  %1229 = vmatprep.subr.bf16.mxu0 0
  %1230 = vmatpush1.bf16.msra.mxu0 %v847
  %1231 = vmatprep.subr.bf16.mxu0 0
  %1232 = vmatpush1.bf16.msra.mxu0 %v846
  %1233 = vmatprep.subr.bf16.mxu0 0
  %1234 = vmatpush2.bf16.msra.mxu0 %v861
  %1235 = vmatprep.subr.bf16.mxu0 0
  %1236 = vmatpush2.bf16.msra.mxu0 %v860
  %1237 = vmatprep.subr.bf16.mxu0 0
  %1238 = vmatpush2.bf16.msra.mxu0 %v859
  %1239 = vmatprep.subr.bf16.mxu0 0
  %1240 = vmatpush2.bf16.msra.mxu0 %v858
  %1241 = vmatprep.subr.bf16.mxu0 0
  %1242 = vmatpush2.bf16.msra.mxu0 %v857
  %1243 = vmatprep.subr.bf16.mxu0 0
  %1244 = vmatpush2.bf16.msra.mxu0 %v856
  %1245 = vmatprep.subr.bf16.mxu0 0
  %1246 = vmatpush2.bf16.msra.mxu0 %v855
  %1247 = vmatprep.subr.bf16.mxu0 0
  %1248 = vmatpush2.bf16.msra.mxu0 %v854
  %1249 = vmatprep.mubr.bf16.mxu0 %v421
  %1250 = vmatmul.mubr.bf16.gmra.mxu0 %v420
  %v1251 = vpop.f32.mrf.mxu0
  %v1252 = vadd.f32 %v1155, %v1251
  %v1253 = vpop.f32.mrf.mxu0
  %v1254 = vpop.f32.mrf.mxu0
  %v1255 = vadd.f32 %v1158, %v1254
  %v1256 = vpop.f32.mrf.mxu0
  %1257 = vmatprep.mubr.bf16.mxu0 %v429
  %1258 = vmatmul.mubr.bf16.gmra.mxu0 %v428
  %v1259 = vpop.f32.mrf.mxu0
  %v1260 = vadd.f32 %v1163, %v1259
  %v1261 = vpop.f32.mrf.mxu0
  %v1262 = vpop.f32.mrf.mxu0
  %v1263 = vadd.f32 %v1166, %v1262
  %v1264 = vpop.f32.mrf.mxu0
  %1265 = vmatprep.mubr.bf16.mxu0 %v437
  %1266 = vmatmul.mubr.bf16.gmra.mxu0 %v436
  %v1267 = vpop.f32.mrf.mxu0
  %v1268 = vadd.f32 %v1171, %v1267
  %v1269 = vpop.f32.mrf.mxu0
  %v1270 = vpop.f32.mrf.mxu0
  %v1271 = vadd.f32 %v1174, %v1270
  %v1272 = vpop.f32.mrf.mxu0
  %1273 = vmatprep.mubr.bf16.mxu0 %v445
  %1274 = vmatmul.mubr.bf16.gmra.mxu0 %v444
  %v1275 = vpop.f32.mrf.mxu0
  %v1276 = vadd.f32 %v1179, %v1275
  %v1277 = vpop.f32.mrf.mxu0
  %v1278 = vpop.f32.mrf.mxu0
  %v1279 = vadd.f32 %v1182, %v1278
  %v1280 = vpop.f32.mrf.mxu0
  %1281 = vmatprep.mubr.bf16.mxu0 %v453
  %1282 = vmatmul.mubr.bf16.gmra.mxu0 %v452
  %v1283 = vpop.f32.mrf.mxu0
  %v1284 = vadd.f32 %v1187, %v1283
  %v1285 = vpop.f32.mrf.mxu0
  %v1286 = vpop.f32.mrf.mxu0
  %v1287 = vadd.f32 %v1190, %v1286
  %v1288 = vpop.f32.mrf.mxu0
  %1289 = vmatprep.mubr.bf16.mxu0 %v461
  %1290 = vmatmul.mubr.bf16.gmra.mxu0 %v460
  %v1291 = vpop.f32.mrf.mxu0
  %v1292 = vadd.f32 %v1195, %v1291
  %v1293 = vpop.f32.mrf.mxu0
  %v1294 = vpop.f32.mrf.mxu0
  %v1295 = vadd.f32 %v1198, %v1294
  %v1296 = vpop.f32.mrf.mxu0
  %1297 = vmatprep.mubr.bf16.mxu0 %v469
  %1298 = vmatmul.mubr.bf16.gmra.mxu0 %v468
  %v1299 = vpop.f32.mrf.mxu0
  %v1300 = vadd.f32 %v1203, %v1299
  %v1301 = vpop.f32.mrf.mxu0
  %v1302 = vpop.f32.mrf.mxu0
  %v1303 = vadd.f32 %v1206, %v1302
  %v1304 = vpop.f32.mrf.mxu0
  %1305 = vmatprep.mubr.bf16.mxu0 %v477
  %1306 = vmatmul.mubr.bf16.gmra.mxu0 %v476
  %v1307 = vpop.f32.mrf.mxu0
  %v1308 = vadd.f32 %v1211, %v1307
  %v1309 = vpop.f32.mrf.mxu0
  %v1310 = vpop.f32.mrf.mxu0
  %v1311 = vadd.f32 %v1214, %v1310
  %v1312 = vpop.f32.mrf.mxu0
  %1313 = vdwg.mxu0
  %v1314 = vtanh.pop %v1252
  %v1315 = vtanh.pop %v1255
  %v1316 = vtanh.pop %v1260
  %v1317 = vtanh.pop %v1263
  %v1318 = vtanh.pop %v1268
  %v1319 = vtanh.pop %v1271
  %v1320 = vtanh.pop %v1276
  %v1321 = vtanh.pop %v1279
  %v1322 = vtanh.pop %v1284
  %v1323 = vtanh.pop %v1287
  %v1324 = vtanh.pop %v1292
  %v1325 = vtanh.pop %v1295
  %v1326 = vtanh.pop %v1300
  %v1327 = vtanh.pop %v1303
  %v1328 = vtanh.pop %v1308
  %v1329 = vtanh.pop %v1311
  %v1330 = vpack.c.bf16 %v1315, %v1314
  %v1331 = vpack.c.bf16 %v1317, %v1316
  %v1332 = vpack.c.bf16 %v1319, %v1318
  %v1333 = vpack.c.bf16 %v1321, %v1320
  %v1334 = vpack.c.bf16 %v1323, %v1322
  %v1335 = vpack.c.bf16 %v1325, %v1324
  %v1336 = vpack.c.bf16 %v1327, %v1326
  %v1337 = vpack.c.bf16 %v1329, %v1328
  %v1338 = vld [vmem:[%s3] sm:$0xff]
  %v1339 = vld [vmem:[%s3 + $0x8] sm:$0xff]
  %v1340 = vld [vmem:[%s3 + $0x10] sm:$0xff]
  %v1341 = vld [vmem:[%s3 + $0x18] sm:$0xff]
  %v1342 = vld [vmem:[%s3 + $0x20] sm:$0xff]
  %v1343 = vld [vmem:[%s3 + $0x28] sm:$0xff]
  %v1344 = vld [vmem:[%s3 + $0x30] sm:$0xff]
  %v1345 = vld [vmem:[%s3 + $0x38] sm:$0xff]
  %v1346 = vld [vmem:[%s3 + $0x40] sm:$0xff]
  %v1347 = vld [vmem:[%s3 + $0x48] sm:$0xff]
  %v1348 = vld [vmem:[%s3 + $0x50] sm:$0xff]
  %v1349 = vld [vmem:[%s3 + $0x58] sm:$0xff]
  %v1350 = vld [vmem:[%s3 + $0x60] sm:$0xff]
  %v1351 = vld [vmem:[%s3 + $0x68] sm:$0xff]
  %v1352 = vld [vmem:[%s3 + $0x70] sm:$0xff]
  %v1353 = vld [vmem:[%s3 + $0x78] sm:$0xff]
  %v1370 = vunpack.c.l.b16 %v1338
  %v1371 = vunpack.c.h.b16 %v1338
  %v1372 = vunpack.c.l.b16 %v1339
  %v1373 = vunpack.c.h.b16 %v1339
  %v1374 = vunpack.c.l.b16 %v1340
  %v1375 = vunpack.c.h.b16 %v1340
  %v1376 = vunpack.c.l.b16 %v1341
  %v1377 = vunpack.c.h.b16 %v1341
  %v1378 = vunpack.c.l.b16 %v1342
  %v1379 = vunpack.c.h.b16 %v1342
  %v1380 = vunpack.c.l.b16 %v1343
  %v1381 = vunpack.c.h.b16 %v1343
  %v1382 = vunpack.c.l.b16 %v1344
  %v1383 = vunpack.c.h.b16 %v1344
  %v1384 = vunpack.c.l.b16 %v1345
  %v1385 = vunpack.c.h.b16 %v1345
  %v1386 = vunpack.c.l.b16 %v1346
  %v1387 = vunpack.c.h.b16 %v1346
  %v1388 = vunpack.c.l.b16 %v1347
  %v1389 = vunpack.c.h.b16 %v1347
  %v1390 = vunpack.c.l.b16 %v1348
  %v1391 = vunpack.c.h.b16 %v1348
  %v1392 = vunpack.c.l.b16 %v1349
  %v1393 = vunpack.c.h.b16 %v1349
  %v1394 = vunpack.c.l.b16 %v1350
  %v1395 = vunpack.c.h.b16 %v1350
  %v1396 = vunpack.c.l.b16 %v1351
  %v1397 = vunpack.c.h.b16 %v1351
  %v1398 = vunpack.c.l.b16 %v1352
  %v1399 = vunpack.c.h.b16 %v1352
  %v1400 = vunpack.c.l.b16 %v1353
  %v1401 = vunpack.c.h.b16 %v1353
  %v1402 = vpack.c.b16 %v1372, %v1370
  %v1403 = vpack.c.b16 %v1373, %v1371
  %v1404 = vpack.c.b16 %v1376, %v1374
  %v1405 = vpack.c.b16 %v1377, %v1375
  %v1406 = vpack.c.b16 %v1380, %v1378
  %v1407 = vpack.c.b16 %v1381, %v1379
  %v1408 = vpack.c.b16 %v1384, %v1382
  %v1409 = vpack.c.b16 %v1385, %v1383
  %v1410 = vpack.c.b16 %v1388, %v1386
  %v1411 = vpack.c.b16 %v1389, %v1387
  %v1412 = vpack.c.b16 %v1392, %v1390
  %v1413 = vpack.c.b16 %v1393, %v1391
  %v1414 = vpack.c.b16 %v1396, %v1394
  %v1415 = vpack.c.b16 %v1397, %v1395
  %v1416 = vpack.c.b16 %v1400, %v1398
  %v1417 = vpack.c.b16 %v1401, %v1399
  %1434 = vmatprep.subr.bf16.mxu0 %v1417
  %1435 = vmatpush1.bf16.msra.mxu0 %v1416
  %1436 = vmatprep.subr.bf16.mxu0 %v1415
  %1437 = vmatpush1.bf16.msra.mxu0 %v1414
  %1438 = vmatprep.subr.bf16.mxu0 %v1413
  %1439 = vmatpush1.bf16.msra.mxu0 %v1412
  %1440 = vmatprep.subr.bf16.mxu0 %v1411
  %1441 = vmatpush1.bf16.msra.mxu0 %v1410
  %1442 = vmatprep.subr.bf16.mxu0 %v1409
  %1443 = vmatpush1.bf16.msra.mxu0 %v1408
  %1444 = vmatprep.subr.bf16.mxu0 %v1407
  %1445 = vmatpush1.bf16.msra.mxu0 %v1406
  %1446 = vmatprep.subr.bf16.mxu0 %v1405
  %1447 = vmatpush1.bf16.msra.mxu0 %v1404
  %1448 = vmatprep.subr.bf16.mxu0 %v1403
  %1449 = vmatpush1.bf16.msra.mxu0 %v1402
  %1450 = vmatprep.subr.bf16.mxu0 0
  %1451 = vmatpush2.bf16.msra.mxu0 0
  %1452 = vmatprep.subr.bf16.mxu0 0
  %1453 = vmatpush2.bf16.msra.mxu0 0
  %1454 = vmatprep.subr.bf16.mxu0 0
  %1455 = vmatpush2.bf16.msra.mxu0 0
  %1456 = vmatprep.subr.bf16.mxu0 0
  %1457 = vmatpush2.bf16.msra.mxu0 0
  %1458 = vmatprep.subr.bf16.mxu0 0
  %1459 = vmatpush2.bf16.msra.mxu0 0
  %1460 = vmatprep.subr.bf16.mxu0 0
  %1461 = vmatpush2.bf16.msra.mxu0 0
  %1462 = vmatprep.subr.bf16.mxu0 0
  %1463 = vmatpush2.bf16.msra.mxu0 0
  %1464 = vmatprep.subr.bf16.mxu0 0
  %1465 = vmatpush2.bf16.msra.mxu0 0
  %1466 = vmatprep.mubr.bf16.mxu0 0
  %1467 = vmatmul.mubr.bf16.gmra.mxu0 %v1330
  %v1468 = vpop.f32.mrf.mxu0
  %v1469 = vadd.f32 0.0, %v1468
  %v1470 = vpop.f32.mrf.mxu0
  %v1471 = vadd.f32 0.0, %v1470
  %v1472 = vpop.f32.mrf.mxu0
  %v1473 = vadd.f32 0.0, %v1472
  %v1474 = vpop.f32.mrf.mxu0
  %v1475 = vadd.f32 0.0, %v1474
  %1476 = vmatprep.mubr.bf16.mxu0 0
  %1477 = vmatmul.mubr.bf16.gmra.mxu0 %v1331
  %v1478 = vpop.f32.mrf.mxu0
  %v1479 = vadd.f32 0.0, %v1478
  %v1480 = vpop.f32.mrf.mxu0
  %v1481 = vadd.f32 0.0, %v1480
  %v1482 = vpop.f32.mrf.mxu0
  %v1483 = vadd.f32 0.0, %v1482
  %v1484 = vpop.f32.mrf.mxu0
  %v1485 = vadd.f32 0.0, %v1484
  %1486 = vmatprep.mubr.bf16.mxu0 0
  %1487 = vmatmul.mubr.bf16.gmra.mxu0 %v1332
  %v1488 = vpop.f32.mrf.mxu0
  %v1489 = vadd.f32 0.0, %v1488
  %v1490 = vpop.f32.mrf.mxu0
  %v1491 = vadd.f32 0.0, %v1490
  %v1492 = vpop.f32.mrf.mxu0
  %v1493 = vadd.f32 0.0, %v1492
  %v1494 = vpop.f32.mrf.mxu0
  %v1495 = vadd.f32 0.0, %v1494
  %1496 = vmatprep.mubr.bf16.mxu0 0
  %1497 = vmatmul.mubr.bf16.gmra.mxu0 %v1333
  %v1498 = vpop.f32.mrf.mxu0
  %v1499 = vadd.f32 0.0, %v1498
  %v1500 = vpop.f32.mrf.mxu0
  %v1501 = vadd.f32 0.0, %v1500
  %v1502 = vpop.f32.mrf.mxu0
  %v1503 = vadd.f32 0.0, %v1502
  %v1504 = vpop.f32.mrf.mxu0
  %v1505 = vadd.f32 0.0, %v1504
  %1506 = vmatprep.mubr.bf16.mxu0 0
  %1507 = vmatmul.mubr.bf16.gmra.mxu0 %v1334
  %v1508 = vpop.f32.mrf.mxu0
  %v1509 = vadd.f32 0.0, %v1508
  %v1510 = vpop.f32.mrf.mxu0
  %v1511 = vadd.f32 0.0, %v1510
  %v1512 = vpop.f32.mrf.mxu0
  %v1513 = vadd.f32 0.0, %v1512
  %v1514 = vpop.f32.mrf.mxu0
  %v1515 = vadd.f32 0.0, %v1514
  %1516 = vmatprep.mubr.bf16.mxu0 0
  %1517 = vmatmul.mubr.bf16.gmra.mxu0 %v1335
  %v1518 = vpop.f32.mrf.mxu0
  %v1519 = vadd.f32 0.0, %v1518
  %v1520 = vpop.f32.mrf.mxu0
  %v1521 = vadd.f32 0.0, %v1520
  %v1522 = vpop.f32.mrf.mxu0
  %v1523 = vadd.f32 0.0, %v1522
  %v1524 = vpop.f32.mrf.mxu0
  %v1525 = vadd.f32 0.0, %v1524
  %1526 = vmatprep.mubr.bf16.mxu0 0
  %1527 = vmatmul.mubr.bf16.gmra.mxu0 %v1336
  %v1528 = vpop.f32.mrf.mxu0
  %v1529 = vadd.f32 0.0, %v1528
  %v1530 = vpop.f32.mrf.mxu0
  %v1531 = vadd.f32 0.0, %v1530
  %v1532 = vpop.f32.mrf.mxu0
  %v1533 = vadd.f32 0.0, %v1532
  %v1534 = vpop.f32.mrf.mxu0
  %v1535 = vadd.f32 0.0, %v1534
  %1536 = vmatprep.mubr.bf16.mxu0 0
  %1537 = vmatmul.mubr.bf16.gmra.mxu0 %v1337
  %v1538 = vpop.f32.mrf.mxu0
  %v1539 = vadd.f32 0.0, %v1538
  %v1540 = vpop.f32.mrf.mxu0
  %v1541 = vadd.f32 0.0, %v1540
  %v1542 = vpop.f32.mrf.mxu0
  %v1543 = vadd.f32 0.0, %v1542
  %v1544 = vpop.f32.mrf.mxu0
  %v1545 = vadd.f32 0.0, %v1544
  %1546 = vdwg.mxu0
  %v1547 = vpack.c.bf16 %v1473, %v1469
  %v1548 = vpack.c.bf16 %v1483, %v1479
  %v1549 = vpack.c.bf16 %v1493, %v1489
  %v1550 = vpack.c.bf16 %v1503, %v1499
  %v1551 = vpack.c.bf16 %v1513, %v1509
  %v1552 = vpack.c.bf16 %v1523, %v1519
  %v1553 = vpack.c.bf16 %v1533, %v1529
  %v1554 = vpack.c.bf16 %v1543, %v1539
  %v1563 = vunpack.c.l.b16 %v1547
  %v1564 = vunpack.c.h.b16 %v1547
  %v1565 = vunpack.c.l.b16 %v1548
  %v1566 = vunpack.c.h.b16 %v1548
  %v1567 = vunpack.c.l.b16 %v1549
  %v1568 = vunpack.c.h.b16 %v1549
  %v1569 = vunpack.c.l.b16 %v1550
  %v1570 = vunpack.c.h.b16 %v1550
  %v1571 = vunpack.c.l.b16 %v1551
  %v1572 = vunpack.c.h.b16 %v1551
  %v1573 = vunpack.c.l.b16 %v1552
  %v1574 = vunpack.c.h.b16 %v1552
  %v1575 = vunpack.c.l.b16 %v1553
  %v1576 = vunpack.c.h.b16 %v1553
  %v1577 = vunpack.c.l.b16 %v1554
  %v1578 = vunpack.c.h.b16 %v1554
  %v1579 = vpack.c.b16 %v1563, %v1563
  %v1580 = vpack.c.b16 %v1564, %v1564
  %v1581 = vpack.c.b16 %v1565, %v1565
  %v1582 = vpack.c.b16 %v1566, %v1566
  %v1583 = vpack.c.b16 %v1567, %v1567
  %v1584 = vpack.c.b16 %v1568, %v1568
  %v1585 = vpack.c.b16 %v1569, %v1569
  %v1586 = vpack.c.b16 %v1570, %v1570
  %v1587 = vpack.c.b16 %v1571, %v1571
  %v1588 = vpack.c.b16 %v1572, %v1572
  %v1589 = vpack.c.b16 %v1573, %v1573
  %v1590 = vpack.c.b16 %v1574, %v1574
  %v1591 = vpack.c.b16 %v1575, %v1575
  %v1592 = vpack.c.b16 %v1576, %v1576
  %v1593 = vpack.c.b16 %v1577, %v1577
  %v1594 = vpack.c.b16 %v1578, %v1578
  %1611 = vst [vmem:[%s5] sm:$0xf] %v1579
  %1612 = vst [vmem:[%s5 + $0x4] sm:$0xf] %v1580
  %1613 = vst [vmem:[%s5 + $0x8] sm:$0xf] %v1581
  %1614 = vst [vmem:[%s5 + $0xc] sm:$0xf] %v1582
  %1615 = vst [vmem:[%s5 + $0x10] sm:$0xf] %v1583
  %1616 = vst [vmem:[%s5 + $0x14] sm:$0xf] %v1584
  %1617 = vst [vmem:[%s5 + $0x18] sm:$0xf] %v1585
  %1618 = vst [vmem:[%s5 + $0x1c] sm:$0xf] %v1586
  %1619 = vst [vmem:[%s5 + $0x20] sm:$0xf] %v1587
  %1620 = vst [vmem:[%s5 + $0x24] sm:$0xf] %v1588
  %1621 = vst [vmem:[%s5 + $0x28] sm:$0xf] %v1589
  %1622 = vst [vmem:[%s5 + $0x2c] sm:$0xf] %v1590
  %1623 = vst [vmem:[%s5 + $0x30] sm:$0xf] %v1591
  %1624 = vst [vmem:[%s5 + $0x34] sm:$0xf] %v1592
  %1625 = vst [vmem:[%s5 + $0x38] sm:$0xf] %v1593
  %1626 = vst [vmem:[%s5 + $0x3c] sm:$0xf] %v1594
  %v1627 = vld [vmem:[%s4] sm:$0x1]
  %v1629 = vlaneseq
  %v1630 = vshrl.u32 %v1629, 7
  %v1631 = vsub.s32 0, %v1630
  %v1632 = vrot.slane %v1627, %v1631
  %v1634 = vadd.f32 %v1471, %v1632
  %v1635 = vadd.f32 %v1475, %v1632
  %v1636 = vadd.f32 %v1481, %v1632
  %v1637 = vadd.f32 %v1485, %v1632
  %v1638 = vadd.f32 %v1491, %v1632
  %v1639 = vadd.f32 %v1495, %v1632
  %v1640 = vadd.f32 %v1501, %v1632
  %v1641 = vadd.f32 %v1505, %v1632
  %v1642 = vadd.f32 %v1511, %v1632
  %v1643 = vadd.f32 %v1515, %v1632
  %v1644 = vadd.f32 %v1521, %v1632
  %v1645 = vadd.f32 %v1525, %v1632
  %v1646 = vadd.f32 %v1531, %v1632
  %v1647 = vadd.f32 %v1535, %v1632
  %v1648 = vadd.f32 %v1541, %v1632
  %v1649 = vadd.f32 %v1545, %v1632
  %v1650 = vpack.c.bf16 %v1635, %v1634
  %v1651 = vpack.c.bf16 %v1637, %v1636
  %v1652 = vpack.c.bf16 %v1639, %v1638
  %v1653 = vpack.c.bf16 %v1641, %v1640
  %v1654 = vpack.c.bf16 %v1643, %v1642
  %v1655 = vpack.c.bf16 %v1645, %v1644
  %v1656 = vpack.c.bf16 %v1647, %v1646
  %v1657 = vpack.c.bf16 %v1649, %v1648
  %v1666 = vunpack.c.l.b16 %v1650
  %v1667 = vunpack.c.h.b16 %v1650
  %v1668 = vunpack.c.l.b16 %v1651
  %v1669 = vunpack.c.h.b16 %v1651
  %v1670 = vunpack.c.l.b16 %v1652
  %v1671 = vunpack.c.h.b16 %v1652
  %v1672 = vunpack.c.l.b16 %v1653
  %v1673 = vunpack.c.h.b16 %v1653
  %v1674 = vunpack.c.l.b16 %v1654
  %v1675 = vunpack.c.h.b16 %v1654
  %v1676 = vunpack.c.l.b16 %v1655
  %v1677 = vunpack.c.h.b16 %v1655
  %v1678 = vunpack.c.l.b16 %v1656
  %v1679 = vunpack.c.h.b16 %v1656
  %v1680 = vunpack.c.l.b16 %v1657
  %v1681 = vunpack.c.h.b16 %v1657
  %v1682 = vpack.c.b16 %v1666, %v1666
  %v1683 = vpack.c.b16 %v1667, %v1667
  %v1684 = vpack.c.b16 %v1668, %v1668
  %v1685 = vpack.c.b16 %v1669, %v1669
  %v1686 = vpack.c.b16 %v1670, %v1670
  %v1687 = vpack.c.b16 %v1671, %v1671
  %v1688 = vpack.c.b16 %v1672, %v1672
  %v1689 = vpack.c.b16 %v1673, %v1673
  %v1690 = vpack.c.b16 %v1674, %v1674
  %v1691 = vpack.c.b16 %v1675, %v1675
  %v1692 = vpack.c.b16 %v1676, %v1676
  %v1693 = vpack.c.b16 %v1677, %v1677
  %v1694 = vpack.c.b16 %v1678, %v1678
  %v1695 = vpack.c.b16 %v1679, %v1679
  %v1696 = vpack.c.b16 %v1680, %v1680
  %v1697 = vpack.c.b16 %v1681, %v1681
  %1714 = vst [vmem:[%s6] sm:$0xf] %v1682
  %1715 = vst [vmem:[%s6 + $0x4] sm:$0xf] %v1683
  %1716 = vst [vmem:[%s6 + $0x8] sm:$0xf] %v1684
  %1717 = vst [vmem:[%s6 + $0xc] sm:$0xf] %v1685
  %1718 = vst [vmem:[%s6 + $0x10] sm:$0xf] %v1686
  %1719 = vst [vmem:[%s6 + $0x14] sm:$0xf] %v1687
  %1720 = vst [vmem:[%s6 + $0x18] sm:$0xf] %v1688
  %1721 = vst [vmem:[%s6 + $0x1c] sm:$0xf] %v1689
  %1722 = vst [vmem:[%s6 + $0x20] sm:$0xf] %v1690
  %1723 = vst [vmem:[%s6 + $0x24] sm:$0xf] %v1691
  %1724 = vst [vmem:[%s6 + $0x28] sm:$0xf] %v1692
  %1725 = vst [vmem:[%s6 + $0x2c] sm:$0xf] %v1693
  %1726 = vst [vmem:[%s6 + $0x30] sm:$0xf] %v1694
  %1727 = vst [vmem:[%s6 + $0x34] sm:$0xf] %v1695
  %1728 = vst [vmem:[%s6 + $0x38] sm:$0xf] %v1696
  %1729 = vst [vmem:[%s6 + $0x3c] sm:$0xf] %v1697
  // Predicated region
  $region22: #{a_call__.10} parent=0 // pred_check
    _
  $region23: #{a_call__.10} parent=0 // pred_check_branch
    %1731 = sbr.rel (0) target = $region25
  $region24: #{a_call__.10} parent=0 // pred_region
    _
  $region25: #{a_call__.10} parent=0 // pred_fallthru
    _
  // Predicated region
  $region26: #{a_call__.10} parent=0 // pred_check
    _
  $region27: #{a_call__.10} parent=0 // pred_check_branch
    %1733 = sbr.rel (0) target = $region29
  $region28: #{a_call__.10} parent=0 // pred_region
    _
  $region29: #{a_call__.10} parent=0 // pred_fallthru
    _
  // Predicated region
  $region30: #{a_call__.10} parent=0 // pred_check
    _
  $region31: #{a_call__.10} parent=0 // pred_check_branch
    %1735 = sbr.rel (0) target = $region33
  $region32: #{a_call__.10} parent=0 // pred_region
    _
  $region33: #{a_call__.10} parent=0 // pred_fallthru
    _
  // Predicated region
  $region34: #{a_call__.10} parent=0 // pred_check
    _
  $region35: #{a_call__.10} parent=0 // pred_check_branch
    %1737 = sbr.rel (0) target = $region37
  $region36: #{a_call__.10} parent=0 // pred_region
    _
  $region37: #{a_call__.10} parent=0 // pred_fallthru
    _

</llo_original>
